<compile_context>
chip_gen: v7x
topology: tpu7x:2x2x1
jax: 0.10.0
libtpu: 0.0.40
codegen_flags: <defaults>
</compile_context>

<pallas_src>
import functools

import jax
import jax.numpy as jnp
from jax.experimental import pallas as pl
from jax.experimental.pallas import tpu as pltpu


def _spp_fused_kernel(x_ref, w_ref, scale_ref, shift_ref, out_ref, padbuf, yp,
                      *, H, W, C, Cin, incr, slots, pm, k, q, tn, neg_slope):
    """One image (grid axis 0) x one Cout tile (grid axis 1).

    x_ref     : (1, H, W, C)        f32   unpadded input image
    w_ref     : (k*k, Cin, tn)      bf16  conv taps for this Cout tile
    scale_ref : (1, tn)             f32   folded BN scale
    shift_ref : (1, tn)             f32   folded BN shift
    out_ref   : (1, H, W, tn)       f32
    padbuf    : (H+2pm, W+2pm, C)   f32   -inf-halo scratch for the max pools
    yp        : (H+2q, W+2q, Cin)   bf16  zero-halo concat result (conv input), persists over j
    """
    j = pl.program_id(1)

    # ------------- stage 1: max pools + channel concat (only once per image) -------------
    @pl.when(j == 0)
    def _pool_concat():
        # -inf halo for the max pools (interior is rewritten each cascade step).
        if pm > 0:
            padbuf[:pm, :, :] = jnp.full((pm, W + 2 * pm, C), -jnp.inf, jnp.float32)
            padbuf[pm + H:, :, :] = jnp.full((pm, W + 2 * pm, C), -jnp.inf, jnp.float32)
            padbuf[pm:pm + H, :pm, :] = jnp.full((H, pm, C), -jnp.inf, jnp.float32)
            padbuf[pm:pm + H, pm + W:, :] = jnp.full((H, pm, C), -jnp.inf, jnp.float32)
        # zero halo for the conv input.
        if q > 0:
            yp[:q, :, :] = jnp.zeros((q, W + 2 * q, Cin), jnp.bfloat16)
            yp[q + H:, :, :] = jnp.zeros((q, W + 2 * q, Cin), jnp.bfloat16)
            yp[q:q + H, :q, :] = jnp.zeros((H, q, Cin), jnp.bfloat16)
            yp[q:q + H, q + W:, :] = jnp.zeros((H, q, Cin), jnp.bfloat16)

        cur = x_ref[0]                                            # (H, W, C) f32
        yp[q:q + H, q:q + W, 0:C] = cur.astype(jnp.bfloat16)      # identity branch

        # Cascaded pooling: maxpool_{s_t}(x) = maxpool_{m_t}(maxpool_{s_{t-1}}(x)),
        # each incremental window m_t applied separably (rows then columns) with -inf halo.
        for step, m in enumerate(incr):
            p = m // 2
            base = pm - p
            padbuf[pm:pm + H, pm:pm + W, :] = cur                 # re-pad previous result
            rowmax = padbuf[base:base + H, :, :]
            for d in range(1, m):
                rowmax = jnp.maximum(rowmax, padbuf[base + d:base + d + H, :, :])
            cur = rowmax[:, base:base + W, :]
            for d in range(1, m):
                cur = jnp.maximum(cur, rowmax[:, base + d:base + d + W, :])
            c0 = (slots[step] + 1) * C                            # channel slot (original order)
            yp[q:q + H, q:q + W, c0:c0 + C] = cur.astype(jnp.bfloat16)

    # ------------- stage 2: kxk conv (bf16 MXU, f32 acc) + BN + leaky relu -------------
    acc = jnp.zeros((H * W, tn), jnp.float32)
    for dj in range(k):
        col = yp[:, dj:dj + W, :]                                 # one lane/sublane shift per dj
        for di in range(k):
            patch = col[di:di + H].reshape(H * W, Cin)
            acc = acc + jnp.dot(patch, w_ref[di * k + dj],
                                preferred_element_type=jnp.float32)
    bn = acc * scale_ref[...] + shift_ref[...]                    # (H*W, tn) * (1, tn)
    act = jnp.where(bn >= 0, bn, neg_slope * bn)                  # leaky_relu(0.1)
    out_ref[0] = act.reshape(H, W, tn).astype(out_ref.dtype)


def spp_forward(x_nchw, conv_w, bn_gamma, bn_beta, bn_mean, bn_var,
                *, pool_sizes=(5, 9, 13), k=3, eps=1e-5, neg_slope=0.1,
                cout_tile=256):
    N, C, H, W = x_nchw.shape
    Cout = conv_w.shape[0]
    Cin = C * (1 + len(pool_sizes))
    assert conv_w.shape == (Cout, Cin, k, k)
    assert all(s % 2 == 1 for s in pool_sizes), "SPP pool sizes must be odd"

    # Cascade plan: process sizes ascending; step t applies incremental window
    # m_t = s_t - s_{t-1} + 1 to the previous pooled result (exact for odd sizes, -inf padding).
    order = sorted(range(len(pool_sizes)), key=lambda i: pool_sizes[i])
    incr, slots = [], []
    prev = 1
    for i in order:
        incr.append(pool_sizes[i] - prev + 1)
        slots.append(i)
        prev = pool_sizes[i]
    pm = max((m // 2 for m in incr), default=0)
    q = k // 2

    # Cout tiling (one weight/output tile per inner grid step).
    tn = cout_tile if (Cout % cout_tile == 0) else Cout
    jt = Cout // tn

    x = jnp.transpose(x_nchw, (0, 2, 3, 1)).astype(jnp.float32)          # NCHW -> NHWC
    # conv weight (Cout, Cin, kh, kw) -> per-tap matrices (k*k, Cin, Cout), bf16 for the MXU.
    w_taps = jnp.transpose(conv_w, (2, 3, 1, 0)).reshape(k * k, Cin, Cout).astype(jnp.bfloat16)
    inv_std = 1.0 / jnp.sqrt(bn_var.astype(jnp.float32) + eps)
    scale = (bn_gamma * inv_std).reshape(1, Cout).astype(jnp.float32)
    shift = (bn_beta - bn_mean * bn_gamma * inv_std).reshape(1, Cout).astype(jnp.float32)

    kernel = functools.partial(
        _spp_fused_kernel, H=H, W=W, C=C, Cin=Cin, incr=tuple(incr),
        slots=tuple(slots), pm=pm, k=k, q=q, tn=tn, neg_slope=neg_slope)

    # TODO(synk): for very large H*W*Cin (whole-image VMEM scratch > a few MB, e.g. v7x 64 MiB),
    # add a spatial (H) tile grid axis with halo handling on top of this Cout tiling.
    out = pl.pallas_call(
        kernel,
        out_shape=jax.ShapeDtypeStruct((N, H, W, Cout), jnp.float32),
        grid=(N, jt),
        in_specs=[
            pl.BlockSpec((1, H, W, C), lambda n, j: (n, 0, 0, 0)),
            pl.BlockSpec((k * k, Cin, tn), lambda n, j: (0, 0, j)),
            pl.BlockSpec((1, tn), lambda n, j: (0, j)),
            pl.BlockSpec((1, tn), lambda n, j: (0, j)),
        ],
        out_specs=pl.BlockSpec((1, H, W, tn), lambda n, j: (n, 0, 0, j)),
        scratch_shapes=[
            pltpu.VMEM((H + 2 * pm, W + 2 * pm, C), jnp.float32),   # -inf-padded pool buffer
            pltpu.VMEM((H + 2 * q, W + 2 * q, Cin), jnp.bfloat16),  # zero-padded concat result
        ],
        compiler_params=pltpu.CompilerParams(
            dimension_semantics=("parallel", "arbitrary")),
    )(x, w_taps, scale, shift)

    return jnp.transpose(out, (0, 3, 1, 2))                              # NHWC -> NCHW


if __name__ == "__main__":
    key = jax.random.PRNGKey(0)
    k_x, k_w, k_g, k_b, k_m, k_v = jax.random.split(key, 6)

    N, C, H, W = 2, 4, 16, 16
    pool_sizes = (5, 9, 13)
    ksize = 3
    Cin = C * (1 + len(pool_sizes))   # concatenated channels = SPP's ch_in
    Cout = 8

    x = jax.random.normal(k_x, (N, C, H, W), jnp.float32)
    conv_w = 0.1 * jax.random.normal(k_w, (Cout, Cin, ksize, ksize), jnp.float32)
    bn_gamma = 1.0 + 0.1 * jax.random.normal(k_g, (Cout,), jnp.float32)
    bn_beta = 0.1 * jax.random.normal(k_b, (Cout,), jnp.float32)
    bn_mean = 0.1 * jax.random.normal(k_m, (Cout,), jnp.float32)
    bn_var = jnp.abs(jax.random.normal(k_v, (Cout,), jnp.float32)) + 0.5

    out = spp_forward(x, conv_w, bn_gamma, bn_beta, bn_mean, bn_var,
                      pool_sizes=pool_sizes, k=ksize)
    jax.block_until_ready(out)
    assert out.shape == (N, Cout, H, W)
    assert bool(jnp.isfinite(out).all())
    print("KERNEL_OK")
</pallas_src>

<mosaic_0001>
module attributes {stable_mosaic.version = 11 : i64} {
  func.func @_spp_fused_kernel(%arg0: i32, %arg1: i32, %arg2: memref<1x16x16x4xf32, #tpu.memory_space<vmem>>, %arg3: memref<9x16x8xbf16, #tpu.memory_space<vmem>>, %arg4: memref<1x8xf32, #tpu.memory_space<vmem>>, %arg5: memref<1x8xf32, #tpu.memory_space<vmem>>, %arg6: memref<1x16x16x8xf32, #tpu.memory_space<vmem>>, %arg7: memref<20x20x4xf32, #tpu.memory_space<vmem>>, %arg8: memref<18x18x16xbf16, #tpu.memory_space<vmem>>) attributes {dimension_semantics = [#tpu.dimension_semantics<parallel>, #tpu.dimension_semantics<arbitrary>], iteration_bounds = array<i64: 2, 1>, scalar_prefetch = 0 : i64, scratch_operands = 2 : i64, tpu.core_type = #tpu.core_type<tc>, window_params = [{transform_indices = @transform_0, window_bounds = array<i64: 1, 16, 16, 4>}, {transform_indices = @transform_1, window_bounds = array<i64: 9, 16, 8>}, {transform_indices = @transform_2, window_bounds = array<i64: 1, 8>}, {transform_indices = @transform_3, window_bounds = array<i64: 1, 8>}, {transform_indices = @transform_4, window_bounds = array<i64: 1, 16, 16, 8>}]} {
    %c0_i32 = arith.constant 0 : i32
    %0 = arith.cmpi eq, %arg1, %c0_i32 : i32
    %1 = arith.extui %0 : i1 to i32
    %c0_i32_0 = arith.constant 0 : i32
    %2 = arith.cmpi ne, %1, %c0_i32_0 : i32
    scf.if %2 {
      %cst_47 = arith.constant 0xFF800000 : f32
      %76 = vector.broadcast %cst_47 : f32 to vector<2x20x4xf32>
      %c0_48 = arith.constant 0 : index
      %c0_49 = arith.constant 0 : index
      %c0_50 = arith.constant 0 : index
      %77 = vector.load %arg7[%c0_48, %c0_49, %c0_50] : memref<20x20x4xf32, #tpu.memory_space<vmem>>, vector<2x20x4xf32>
      tpu.vector_store %arg7[%c0_48, %c0_49, %c0_50], %76 {strides = array<i32>} : memref<20x20x4xf32, #tpu.memory_space<vmem>>, vector<2x20x4xf32>,
      %cst_51 = arith.constant 0xFF800000 : f32
      %78 = vector.broadcast %cst_51 : f32 to vector<2x20x4xf32>
      %c18 = arith.constant 18 : index
      %c0_52 = arith.constant 0 : index
      %c0_53 = arith.constant 0 : index
      %79 = vector.load %arg7[%c18, %c0_52, %c0_53] : memref<20x20x4xf32, #tpu.memory_space<vmem>>, vector<2x20x4xf32>
      tpu.vector_store %arg7[%c18, %c0_52, %c0_53], %78 {strides = array<i32>} : memref<20x20x4xf32, #tpu.memory_space<vmem>>, vector<2x20x4xf32>,
      %cst_54 = arith.constant 0xFF800000 : f32
      %80 = vector.broadcast %cst_54 : f32 to vector<16x2x4xf32>
      %c2_55 = arith.constant 2 : index
      %c0_56 = arith.constant 0 : index
      %c0_57 = arith.constant 0 : index
      %81 = vector.load %arg7[%c2_55, %c0_56, %c0_57] : memref<20x20x4xf32, #tpu.memory_space<vmem>>, vector<16x2x4xf32>
      tpu.vector_store %arg7[%c2_55, %c0_56, %c0_57], %80 {strides = array<i32>} : memref<20x20x4xf32, #tpu.memory_space<vmem>>, vector<16x2x4xf32>,
      %cst_58 = arith.constant 0xFF800000 : f32
      %82 = vector.broadcast %cst_58 : f32 to vector<16x2x4xf32>
      %c2_59 = arith.constant 2 : index
      %c18_60 = arith.constant 18 : index
      %c0_61 = arith.constant 0 : index
      %83 = vector.load %arg7[%c2_59, %c18_60, %c0_61] : memref<20x20x4xf32, #tpu.memory_space<vmem>>, vector<16x2x4xf32>
      tpu.vector_store %arg7[%c2_59, %c18_60, %c0_61], %82 {strides = array<i32>} : memref<20x20x4xf32, #tpu.memory_space<vmem>>, vector<16x2x4xf32>,
      %cst_62 = arith.constant 0.000000e+00 : bf16
      %84 = vector.broadcast %cst_62 : bf16 to vector<1x18x16xbf16>
      %c0_63 = arith.constant 0 : index
      %c0_64 = arith.constant 0 : index
      %c0_65 = arith.constant 0 : index
      %85 = vector.load %arg8[%c0_63, %c0_64, %c0_65] : memref<18x18x16xbf16, #tpu.memory_space<vmem>>, vector<1x18x16xbf16>
      tpu.vector_store %arg8[%c0_63, %c0_64, %c0_65], %84 {strides = array<i32>} : memref<18x18x16xbf16, #tpu.memory_space<vmem>>, vector<1x18x16xbf16>,
      %cst_66 = arith.constant 0.000000e+00 : bf16
      %86 = vector.broadcast %cst_66 : bf16 to vector<1x18x16xbf16>
      %c17 = arith.constant 17 : index
      %c0_67 = arith.constant 0 : index
      %c0_68 = arith.constant 0 : index
      %87 = vector.load %arg8[%c17, %c0_67, %c0_68] : memref<18x18x16xbf16, #tpu.memory_space<vmem>>, vector<1x18x16xbf16>
      tpu.vector_store %arg8[%c17, %c0_67, %c0_68], %86 {strides = array<i32>} : memref<18x18x16xbf16, #tpu.memory_space<vmem>>, vector<1x18x16xbf16>,
      %cst_69 = arith.constant 0.000000e+00 : bf16
      %88 = vector.broadcast %cst_69 : bf16 to vector<16x1x16xbf16>
      %c1_70 = arith.constant 1 : index
      %c0_71 = arith.constant 0 : index
      %c0_72 = arith.constant 0 : index
      %89 = vector.load %arg8[%c1_70, %c0_71, %c0_72] : memref<18x18x16xbf16, #tpu.memory_space<vmem>>, vector<16x1x16xbf16>
      tpu.vector_store %arg8[%c1_70, %c0_71, %c0_72], %88 {strides = array<i32>} : memref<18x18x16xbf16, #tpu.memory_space<vmem>>, vector<16x1x16xbf16>,
      %cst_73 = arith.constant 0.000000e+00 : bf16
      %90 = vector.broadcast %cst_73 : bf16 to vector<16x1x16xbf16>
      %c1_74 = arith.constant 1 : index
      %c17_75 = arith.constant 17 : index
      %c0_76 = arith.constant 0 : index
      %91 = vector.load %arg8[%c1_74, %c17_75, %c0_76] : memref<18x18x16xbf16, #tpu.memory_space<vmem>>, vector<16x1x16xbf16>
      tpu.vector_store %arg8[%c1_74, %c17_75, %c0_76], %90 {strides = array<i32>} : memref<18x18x16xbf16, #tpu.memory_space<vmem>>, vector<16x1x16xbf16>,
      %c0_77 = arith.constant 0 : index
      %c0_78 = arith.constant 0 : index
      %c0_79 = arith.constant 0 : index
      %c0_80 = arith.constant 0 : index
      %92 = vector.load %arg2[%c0_77, %c0_78, %c0_79, %c0_80] : memref<1x16x16x4xf32, #tpu.memory_space<vmem>>, vector<1x16x16x4xf32>
      %93 = vector.shape_cast %92 : vector<1x16x16x4xf32> to vector<16x16x4xf32>
      %94 = arith.truncf %93 : vector<16x16x4xf32> to vector<16x16x4xbf16>
      %c1_81 = arith.constant 1 : index
      %c1_82 = arith.constant 1 : index
      %c0_83 = arith.constant 0 : index
      %95 = vector.load %arg8[%c1_81, %c1_82, %c0_83] : memref<18x18x16xbf16, #tpu.memory_space<vmem>>, vector<16x16x4xbf16>
      tpu.vector_store %arg8[%c1_81, %c1_82, %c0_83], %94 {strides = array<i32>} : memref<18x18x16xbf16, #tpu.memory_space<vmem>>, vector<16x16x4xbf16>,
      %c2_84 = arith.constant 2 : index
      %c2_85 = arith.constant 2 : index
      %c0_86 = arith.constant 0 : index
      %96 = vector.load %arg7[%c2_84, %c2_85, %c0_86] : memref<20x20x4xf32, #tpu.memory_space<vmem>>, vector<16x16x4xf32>
      tpu.vector_store %arg7[%c2_84, %c2_85, %c0_86], %93 {strides = array<i32>} : memref<20x20x4xf32, #tpu.memory_space<vmem>>, vector<16x16x4xf32>,
      %c0_87 = arith.constant 0 : index
      %c0_88 = arith.constant 0 : index
      %c0_89 = arith.constant 0 : index
      %97 = vector.load %arg7[%c0_87, %c0_88, %c0_89] : memref<20x20x4xf32, #tpu.memory_space<vmem>>, vector<16x20x4xf32>
      %c1_90 = arith.constant 1 : index
      %c0_91 = arith.constant 0 : index
      %c0_92 = arith.constant 0 : index
      %98 = vector.load %arg7[%c1_90, %c0_91, %c0_92] : memref<20x20x4xf32, #tpu.memory_space<vmem>>, vector<16x20x4xf32>
      %99 = arith.maximumf %97, %98 : vector<16x20x4xf32>
      %c2_93 = arith.constant 2 : index
      %c0_94 = arith.constant 0 : index
      %c0_95 = arith.constant 0 : index
      %100 = vector.load %arg7[%c2_93, %c0_94, %c0_95] : memref<20x20x4xf32, #tpu.memory_space<vmem>>, vector<16x20x4xf32>
      %101 = arith.maximumf %99, %100 : vector<16x20x4xf32>
      %c3_96 = arith.constant 3 : index
      %c0_97 = arith.constant 0 : index
      %c0_98 = arith.constant 0 : index
      %102 = vector.load %arg7[%c3_96, %c0_97, %c0_98] : memref<20x20x4xf32, #tpu.memory_space<vmem>>, vector<16x20x4xf32>
      %103 = arith.maximumf %101, %102 : vector<16x20x4xf32>
      %c4_99 = arith.constant 4 : index
      %c0_100 = arith.constant 0 : index
      %c0_101 = arith.constant 0 : index
      %104 = vector.load %arg7[%c4_99, %c0_100, %c0_101] : memref<20x20x4xf32, #tpu.memory_space<vmem>>, vector<16x20x4xf32>
      %105 = arith.maximumf %103, %104 : vector<16x20x4xf32>
      %106 = vector.extract_strided_slice %105 {offsets = [0, 0, 0], sizes = [16, 16, 4], strides = [1, 1, 1]} : vector<16x20x4xf32> to vector<16x16x4xf32>
      %107 = vector.extract_strided_slice %105 {offsets = [0, 1, 0], sizes = [16, 16, 4], strides = [1, 1, 1]} : vector<16x20x4xf32> to vector<16x16x4xf32>
      %108 = arith.maximumf %106, %107 : vector<16x16x4xf32>
      %109 = vector.extract_strided_slice %105 {offsets = [0, 2, 0], sizes = [16, 16, 4], strides = [1, 1, 1]} : vector<16x20x4xf32> to vector<16x16x4xf32>
      %110 = arith.maximumf %108, %109 : vector<16x16x4xf32>
      %111 = vector.extract_strided_slice %105 {offsets = [0, 3, 0], sizes = [16, 16, 4], strides = [1, 1, 1]} : vector<16x20x4xf32> to vector<16x16x4xf32>
      %112 = arith.maximumf %110, %111 : vector<16x16x4xf32>
      %113 = vector.extract_strided_slice %105 {offsets = [0, 4, 0], sizes = [16, 16, 4], strides = [1, 1, 1]} : vector<16x20x4xf32> to vector<16x16x4xf32>
      %114 = arith.maximumf %112, %113 : vector<16x16x4xf32>
      %115 = arith.truncf %114 : vector<16x16x4xf32> to vector<16x16x4xbf16>
      %c1_102 = arith.constant 1 : index
      %c1_103 = arith.constant 1 : index
      %c4_104 = arith.constant 4 : index
      %116 = vector.load %arg8[%c1_102, %c1_103, %c4_104] : memref<18x18x16xbf16, #tpu.memory_space<vmem>>, vector<16x16x4xbf16>
      tpu.vector_store %arg8[%c1_102, %c1_103, %c4_104], %115 {strides = array<i32>} : memref<18x18x16xbf16, #tpu.memory_space<vmem>>, vector<16x16x4xbf16>,
      %c2_105 = arith.constant 2 : index
      %c2_106 = arith.constant 2 : index
      %c0_107 = arith.constant 0 : index
      %117 = vector.load %arg7[%c2_105, %c2_106, %c0_107] : memref<20x20x4xf32, #tpu.memory_space<vmem>>, vector<16x16x4xf32>
      tpu.vector_store %arg7[%c2_105, %c2_106, %c0_107], %114 {strides = array<i32>} : memref<20x20x4xf32, #tpu.memory_space<vmem>>, vector<16x16x4xf32>,
      %c0_108 = arith.constant 0 : index
      %c0_109 = arith.constant 0 : index
      %c0_110 = arith.constant 0 : index
      %118 = vector.load %arg7[%c0_108, %c0_109, %c0_110] : memref<20x20x4xf32, #tpu.memory_space<vmem>>, vector<16x20x4xf32>
      %c1_111 = arith.constant 1 : index
      %c0_112 = arith.constant 0 : index
      %c0_113 = arith.constant 0 : index
      %119 = vector.load %arg7[%c1_111, %c0_112, %c0_113] : memref<20x20x4xf32, #tpu.memory_space<vmem>>, vector<16x20x4xf32>
      %120 = arith.maximumf %118, %119 : vector<16x20x4xf32>
      %c2_114 = arith.constant 2 : index
      %c0_115 = arith.constant 0 : index
      %c0_116 = arith.constant 0 : index
      %121 = vector.load %arg7[%c2_114, %c0_115, %c0_116] : memref<20x20x4xf32, #tpu.memory_space<vmem>>, vector<16x20x4xf32>
      %122 = arith.maximumf %120, %121 : vector<16x20x4xf32>
      %c3_117 = arith.constant 3 : index
      %c0_118 = arith.constant 0 : index
      %c0_119 = arith.constant 0 : index
      %123 = vector.load %arg7[%c3_117, %c0_118, %c0_119] : memref<20x20x4xf32, #tpu.memory_space<vmem>>, vector<16x20x4xf32>
      %124 = arith.maximumf %122, %123 : vector<16x20x4xf32>
      %c4_120 = arith.constant 4 : index
      %c0_121 = arith.constant 0 : index
      %c0_122 = arith.constant 0 : index
      %125 = vector.load %arg7[%c4_120, %c0_121, %c0_122] : memref<20x20x4xf32, #tpu.memory_space<vmem>>, vector<16x20x4xf32>
      %126 = arith.maximumf %124, %125 : vector<16x20x4xf32>
      %127 = vector.extract_strided_slice %126 {offsets = [0, 0, 0], sizes = [16, 16, 4], strides = [1, 1, 1]} : vector<16x20x4xf32> to vector<16x16x4xf32>
      %128 = vector.extract_strided_slice %126 {offsets = [0, 1, 0], sizes = [16, 16, 4], strides = [1, 1, 1]} : vector<16x20x4xf32> to vector<16x16x4xf32>
      %129 = arith.maximumf %127, %128 : vector<16x16x4xf32>
      %130 = vector.extract_strided_slice %126 {offsets = [0, 2, 0], sizes = [16, 16, 4], strides = [1, 1, 1]} : vector<16x20x4xf32> to vector<16x16x4xf32>
      %131 = arith.maximumf %129, %130 : vector<16x16x4xf32>
      %132 = vector.extract_strided_slice %126 {offsets = [0, 3, 0], sizes = [16, 16, 4], strides = [1, 1, 1]} : vector<16x20x4xf32> to vector<16x16x4xf32>
      %133 = arith.maximumf %131, %132 : vector<16x16x4xf32>
      %134 = vector.extract_strided_slice %126 {offsets = [0, 4, 0], sizes = [16, 16, 4], strides = [1, 1, 1]} : vector<16x20x4xf32> to vector<16x16x4xf32>
      %135 = arith.maximumf %133, %134 : vector<16x16x4xf32>
      %136 = arith.truncf %135 : vector<16x16x4xf32> to vector<16x16x4xbf16>
      %c1_123 = arith.constant 1 : index
      %c1_124 = arith.constant 1 : index
      %c8_125 = arith.constant 8 : index
      %137 = vector.load %arg8[%c1_123, %c1_124, %c8_125] : memref<18x18x16xbf16, #tpu.memory_space<vmem>>, vector<16x16x4xbf16>
      tpu.vector_store %arg8[%c1_123, %c1_124, %c8_125], %136 {strides = array<i32>} : memref<18x18x16xbf16, #tpu.memory_space<vmem>>, vector<16x16x4xbf16>,
      %c2_126 = arith.constant 2 : index
      %c2_127 = arith.constant 2 : index
      %c0_128 = arith.constant 0 : index
      %138 = vector.load %arg7[%c2_126, %c2_127, %c0_128] : memref<20x20x4xf32, #tpu.memory_space<vmem>>, vector<16x16x4xf32>
      tpu.vector_store %arg7[%c2_126, %c2_127, %c0_128], %135 {strides = array<i32>} : memref<20x20x4xf32, #tpu.memory_space<vmem>>, vector<16x16x4xf32>,
      %c0_129 = arith.constant 0 : index
      %c0_130 = arith.constant 0 : index
      %c0_131 = arith.constant 0 : index
      %139 = vector.load %arg7[%c0_129, %c0_130, %c0_131] : memref<20x20x4xf32, #tpu.memory_space<vmem>>, vector<16x20x4xf32>
      %c1_132 = arith.constant 1 : index
      %c0_133 = arith.constant 0 : index
      %c0_134 = arith.constant 0 : index
      %140 = vector.load %arg7[%c1_132, %c0_133, %c0_134] : memref<20x20x4xf32, #tpu.memory_space<vmem>>, vector<16x20x4xf32>
      %141 = arith.maximumf %139, %140 : vector<16x20x4xf32>
      %c2_135 = arith.constant 2 : index
      %c0_136 = arith.constant 0 : index
      %c0_137 = arith.constant 0 : index
      %142 = vector.load %arg7[%c2_135, %c0_136, %c0_137] : memref<20x20x4xf32, #tpu.memory_space<vmem>>, vector<16x20x4xf32>
      %143 = arith.maximumf %141, %142 : vector<16x20x4xf32>
      %c3_138 = arith.constant 3 : index
      %c0_139 = arith.constant 0 : index
      %c0_140 = arith.constant 0 : index
      %144 = vector.load %arg7[%c3_138, %c0_139, %c0_140] : memref<20x20x4xf32, #tpu.memory_space<vmem>>, vector<16x20x4xf32>
      %145 = arith.maximumf %143, %144 : vector<16x20x4xf32>
      %c4_141 = arith.constant 4 : index
      %c0_142 = arith.constant 0 : index
      %c0_143 = arith.constant 0 : index
      %146 = vector.load %arg7[%c4_141, %c0_142, %c0_143] : memref<20x20x4xf32, #tpu.memory_space<vmem>>, vector<16x20x4xf32>
      %147 = arith.maximumf %145, %146 : vector<16x20x4xf32>
      %148 = vector.extract_strided_slice %147 {offsets = [0, 0, 0], sizes = [16, 16, 4], strides = [1, 1, 1]} : vector<16x20x4xf32> to vector<16x16x4xf32>
      %149 = vector.extract_strided_slice %147 {offsets = [0, 1, 0], sizes = [16, 16, 4], strides = [1, 1, 1]} : vector<16x20x4xf32> to vector<16x16x4xf32>
      %150 = arith.maximumf %148, %149 : vector<16x16x4xf32>
      %151 = vector.extract_strided_slice %147 {offsets = [0, 2, 0], sizes = [16, 16, 4], strides = [1, 1, 1]} : vector<16x20x4xf32> to vector<16x16x4xf32>
      %152 = arith.maximumf %150, %151 : vector<16x16x4xf32>
      %153 = vector.extract_strided_slice %147 {offsets = [0, 3, 0], sizes = [16, 16, 4], strides = [1, 1, 1]} : vector<16x20x4xf32> to vector<16x16x4xf32>
      %154 = arith.maximumf %152, %153 : vector<16x16x4xf32>
      %155 = vector.extract_strided_slice %147 {offsets = [0, 4, 0], sizes = [16, 16, 4], strides = [1, 1, 1]} : vector<16x20x4xf32> to vector<16x16x4xf32>
      %156 = arith.maximumf %154, %155 : vector<16x16x4xf32>
      %157 = arith.truncf %156 : vector<16x16x4xf32> to vector<16x16x4xbf16>
      %c1_144 = arith.constant 1 : index
      %c1_145 = arith.constant 1 : index
      %c12 = arith.constant 12 : index
      %158 = vector.load %arg8[%c1_144, %c1_145, %c12] : memref<18x18x16xbf16, #tpu.memory_space<vmem>>, vector<16x16x4xbf16>
      tpu.vector_store %arg8[%c1_144, %c1_145, %c12], %157 {strides = array<i32>} : memref<18x18x16xbf16, #tpu.memory_space<vmem>>, vector<16x16x4xbf16>,
    } else {
    }
    %cst = arith.constant 0.000000e+00 : f32
    %3 = vector.broadcast %cst : f32 to vector<256x8xf32>
    %c0 = arith.constant 0 : index
    %c0_1 = arith.constant 0 : index
    %c0_2 = arith.constant 0 : index
    %4 = vector.load %arg8[%c0, %c0_1, %c0_2] : memref<18x18x16xbf16, #tpu.memory_space<vmem>>, vector<18x16x16xbf16>
    %5 = vector.extract_strided_slice %4 {offsets = [0, 0, 0], sizes = [16, 16, 16], strides = [1, 1, 1]} : vector<18x16x16xbf16> to vector<16x16x16xbf16>
    %6 = vector.shape_cast %5 : vector<16x16x16xbf16> to vector<256x16xbf16>
    %c0_3 = arith.constant 0 : index
    %c0_4 = arith.constant 0 : index
    %c0_5 = arith.constant 0 : index
    %7 = vector.load %arg3[%c0_3, %c0_4, %c0_5] : memref<9x16x8xbf16, #tpu.memory_space<vmem>>, vector<1x16x8xbf16>
    %8 = vector.shape_cast %7 : vector<1x16x8xbf16> to vector<16x8xbf16>
    %cst_6 = arith.constant dense<0.000000e+00> : vector<256x8xf32>
    %9 = tpu.matmul %6, %8, %cst_6 {dimension_numbers = #tpu.dot_dimension_numbers<[1], [0], [0], [1], [0, 0, 1, 1], [], []>} : vector<256x16xbf16>, vector<16x8xbf16>, vector<256x8xf32> -> vector<256x8xf32>
    %10 = arith.addf %3, %9 : vector<256x8xf32>
    %11 = vector.extract_strided_slice %4 {offsets = [1, 0, 0], sizes = [16, 16, 16], strides = [1, 1, 1]} : vector<18x16x16xbf16> to vector<16x16x16xbf16>
    %12 = vector.shape_cast %11 : vector<16x16x16xbf16> to vector<256x16xbf16>
    %c3 = arith.constant 3 : index
    %c0_7 = arith.constant 0 : index
    %c0_8 = arith.constant 0 : index
    %13 = vector.load %arg3[%c3, %c0_7, %c0_8] : memref<9x16x8xbf16, #tpu.memory_space<vmem>>, vector<1x16x8xbf16>
    %14 = vector.shape_cast %13 : vector<1x16x8xbf16> to vector<16x8xbf16>
    %cst_9 = arith.constant dense<0.000000e+00> : vector<256x8xf32>
    %15 = tpu.matmul %12, %14, %cst_9 {dimension_numbers = #tpu.dot_dimension_numbers<[1], [0], [0], [1], [0, 0, 1, 1], [], []>} : vector<256x16xbf16>, vector<16x8xbf16>, vector<256x8xf32> -> vector<256x8xf32>
    %16 = arith.addf %10, %15 : vector<256x8xf32>
    %17 = vector.extract_strided_slice %4 {offsets = [2, 0, 0], sizes = [16, 16, 16], strides = [1, 1, 1]} : vector<18x16x16xbf16> to vector<16x16x16xbf16>
    %18 = vector.shape_cast %17 : vector<16x16x16xbf16> to vector<256x16xbf16>
    %c6 = arith.constant 6 : index
    %c0_10 = arith.constant 0 : index
    %c0_11 = arith.constant 0 : index
    %19 = vector.load %arg3[%c6, %c0_10, %c0_11] : memref<9x16x8xbf16, #tpu.memory_space<vmem>>, vector<1x16x8xbf16>
    %20 = vector.shape_cast %19 : vector<1x16x8xbf16> to vector<16x8xbf16>
    %cst_12 = arith.constant dense<0.000000e+00> : vector<256x8xf32>
    %21 = tpu.matmul %18, %20, %cst_12 {dimension_numbers = #tpu.dot_dimension_numbers<[1], [0], [0], [1], [0, 0, 1, 1], [], []>} : vector<256x16xbf16>, vector<16x8xbf16>, vector<256x8xf32> -> vector<256x8xf32>
    %22 = arith.addf %16, %21 : vector<256x8xf32>
    %c0_13 = arith.constant 0 : index
    %c1 = arith.constant 1 : index
    %c0_14 = arith.constant 0 : index
    %23 = vector.load %arg8[%c0_13, %c1, %c0_14] : memref<18x18x16xbf16, #tpu.memory_space<vmem>>, vector<18x16x16xbf16>
    %24 = vector.extract_strided_slice %23 {offsets = [0, 0, 0], sizes = [16, 16, 16], strides = [1, 1, 1]} : vector<18x16x16xbf16> to vector<16x16x16xbf16>
    %25 = vector.shape_cast %24 : vector<16x16x16xbf16> to vector<256x16xbf16>
    %c1_15 = arith.constant 1 : index
    %c0_16 = arith.constant 0 : index
    %c0_17 = arith.constant 0 : index
    %26 = vector.load %arg3[%c1_15, %c0_16, %c0_17] : memref<9x16x8xbf16, #tpu.memory_space<vmem>>, vector<1x16x8xbf16>
    %27 = vector.shape_cast %26 : vector<1x16x8xbf16> to vector<16x8xbf16>
    %cst_18 = arith.constant dense<0.000000e+00> : vector<256x8xf32>
    %28 = tpu.matmul %25, %27, %cst_18 {dimension_numbers = #tpu.dot_dimension_numbers<[1], [0], [0], [1], [0, 0, 1, 1], [], []>} : vector<256x16xbf16>, vector<16x8xbf16>, vector<256x8xf32> -> vector<256x8xf32>
    %29 = arith.addf %22, %28 : vector<256x8xf32>
    %30 = vector.extract_strided_slice %23 {offsets = [1, 0, 0], sizes = [16, 16, 16], strides = [1, 1, 1]} : vector<18x16x16xbf16> to vector<16x16x16xbf16>
    %31 = vector.shape_cast %30 : vector<16x16x16xbf16> to vector<256x16xbf16>
    %c4 = arith.constant 4 : index
    %c0_19 = arith.constant 0 : index
    %c0_20 = arith.constant 0 : index
    %32 = vector.load %arg3[%c4, %c0_19, %c0_20] : memref<9x16x8xbf16, #tpu.memory_space<vmem>>, vector<1x16x8xbf16>
    %33 = vector.shape_cast %32 : vector<1x16x8xbf16> to vector<16x8xbf16>
    %cst_21 = arith.constant dense<0.000000e+00> : vector<256x8xf32>
    %34 = tpu.matmul %31, %33, %cst_21 {dimension_numbers = #tpu.dot_dimension_numbers<[1], [0], [0], [1], [0, 0, 1, 1], [], []>} : vector<256x16xbf16>, vector<16x8xbf16>, vector<256x8xf32> -> vector<256x8xf32>
    %35 = arith.addf %29, %34 : vector<256x8xf32>
    %36 = vector.extract_strided_slice %23 {offsets = [2, 0, 0], sizes = [16, 16, 16], strides = [1, 1, 1]} : vector<18x16x16xbf16> to vector<16x16x16xbf16>
    %37 = vector.shape_cast %36 : vector<16x16x16xbf16> to vector<256x16xbf16>
    %c7 = arith.constant 7 : index
    %c0_22 = arith.constant 0 : index
    %c0_23 = arith.constant 0 : index
    %38 = vector.load %arg3[%c7, %c0_22, %c0_23] : memref<9x16x8xbf16, #tpu.memory_space<vmem>>, vector<1x16x8xbf16>
    %39 = vector.shape_cast %38 : vector<1x16x8xbf16> to vector<16x8xbf16>
    %cst_24 = arith.constant dense<0.000000e+00> : vector<256x8xf32>
    %40 = tpu.matmul %37, %39, %cst_24 {dimension_numbers = #tpu.dot_dimension_numbers<[1], [0], [0], [1], [0, 0, 1, 1], [], []>} : vector<256x16xbf16>, vector<16x8xbf16>, vector<256x8xf32> -> vector<256x8xf32>
    %41 = arith.addf %35, %40 : vector<256x8xf32>
    %c0_25 = arith.constant 0 : index
    %c2 = arith.constant 2 : index
    %c0_26 = arith.constant 0 : index
    %42 = vector.load %arg8[%c0_25, %c2, %c0_26] : memref<18x18x16xbf16, #tpu.memory_space<vmem>>, vector<18x16x16xbf16>
    %43 = vector.extract_strided_slice %42 {offsets = [0, 0, 0], sizes = [16, 16, 16], strides = [1, 1, 1]} : vector<18x16x16xbf16> to vector<16x16x16xbf16>
    %44 = vector.shape_cast %43 : vector<16x16x16xbf16> to vector<256x16xbf16>
    %c2_27 = arith.constant 2 : index
    %c0_28 = arith.constant 0 : index
    %c0_29 = arith.constant 0 : index
    %45 = vector.load %arg3[%c2_27, %c0_28, %c0_29] : memref<9x16x8xbf16, #tpu.memory_space<vmem>>, vector<1x16x8xbf16>
    %46 = vector.shape_cast %45 : vector<1x16x8xbf16> to vector<16x8xbf16>
    %cst_30 = arith.constant dense<0.000000e+00> : vector<256x8xf32>
    %47 = tpu.matmul %44, %46, %cst_30 {dimension_numbers = #tpu.dot_dimension_numbers<[1], [0], [0], [1], [0, 0, 1, 1], [], []>} : vector<256x16xbf16>, vector<16x8xbf16>, vector<256x8xf32> -> vector<256x8xf32>
    %48 = arith.addf %41, %47 : vector<256x8xf32>
    %49 = vector.extract_strided_slice %42 {offsets = [1, 0, 0], sizes = [16, 16, 16], strides = [1, 1, 1]} : vector<18x16x16xbf16> to vector<16x16x16xbf16>
    %50 = vector.shape_cast %49 : vector<16x16x16xbf16> to vector<256x16xbf16>
    %c5 = arith.constant 5 : index
    %c0_31 = arith.constant 0 : index
    %c0_32 = arith.constant 0 : index
    %51 = vector.load %arg3[%c5, %c0_31, %c0_32] : memref<9x16x8xbf16, #tpu.memory_space<vmem>>, vector<1x16x8xbf16>
    %52 = vector.shape_cast %51 : vector<1x16x8xbf16> to vector<16x8xbf16>
    %cst_33 = arith.constant dense<0.000000e+00> : vector<256x8xf32>
    %53 = tpu.matmul %50, %52, %cst_33 {dimension_numbers = #tpu.dot_dimension_numbers<[1], [0], [0], [1], [0, 0, 1, 1], [], []>} : vector<256x16xbf16>, vector<16x8xbf16>, vector<256x8xf32> -> vector<256x8xf32>
    %54 = arith.addf %48, %53 : vector<256x8xf32>
    %55 = vector.extract_strided_slice %42 {offsets = [2, 0, 0], sizes = [16, 16, 16], strides = [1, 1, 1]} : vector<18x16x16xbf16> to vector<16x16x16xbf16>
    %56 = vector.shape_cast %55 : vector<16x16x16xbf16> to vector<256x16xbf16>
    %c8 = arith.constant 8 : index
    %c0_34 = arith.constant 0 : index
    %c0_35 = arith.constant 0 : index
    %57 = vector.load %arg3[%c8, %c0_34, %c0_35] : memref<9x16x8xbf16, #tpu.memory_space<vmem>>, vector<1x16x8xbf16>
    %58 = vector.shape_cast %57 : vector<1x16x8xbf16> to vector<16x8xbf16>
    %cst_36 = arith.constant dense<0.000000e+00> : vector<256x8xf32>
    %59 = tpu.matmul %56, %58, %cst_36 {dimension_numbers = #tpu.dot_dimension_numbers<[1], [0], [0], [1], [0, 0, 1, 1], [], []>} : vector<256x16xbf16>, vector<16x8xbf16>, vector<256x8xf32> -> vector<256x8xf32>
    %60 = arith.addf %54, %59 : vector<256x8xf32>
    %c0_37 = arith.constant 0 : index
    %c0_38 = arith.constant 0 : index
    %61 = vector.load %arg4[%c0_37, %c0_38] : memref<1x8xf32, #tpu.memory_space<vmem>>, vector<1x8xf32>
    %62 = vector.broadcast %61 : vector<1x8xf32> to vector<256x8xf32>
    %63 = arith.mulf %60, %62 : vector<256x8xf32>
    %c0_39 = arith.constant 0 : index
    %c0_40 = arith.constant 0 : index
    %64 = vector.load %arg5[%c0_39, %c0_40] : memref<1x8xf32, #tpu.memory_space<vmem>>, vector<1x8xf32>
    %65 = vector.broadcast %64 : vector<1x8xf32> to vector<256x8xf32>
    %66 = arith.addf %63, %65 : vector<256x8xf32>
    %cst_41 = arith.constant 0.000000e+00 : f32
    %67 = vector.broadcast %cst_41 : f32 to vector<256x8xf32>
    %68 = arith.cmpf oge, %66, %67 : vector<256x8xf32>
    %cst_42 = arith.constant 1.000000e-01 : f32
    %69 = vector.broadcast %cst_42 : f32 to vector<256x8xf32>
    %70 = arith.mulf %69, %66 : vector<256x8xf32>
    %71 = arith.select %68, %66, %70 : vector<256x8xi1>, vector<256x8xf32>
    %72 = vector.shape_cast %71 : vector<256x8xf32> to vector<16x16x8xf32>
    %c0_43 = arith.constant 0 : index
    %c0_44 = arith.constant 0 : index
    %c0_45 = arith.constant 0 : index
    %c0_46 = arith.constant 0 : index
    %73 = vector.load %arg6[%c0_43, %c0_44, %c0_45, %c0_46] : memref<1x16x16x8xf32, #tpu.memory_space<vmem>>, vector<1x16x16x8xf32>
    %74 = vector.shape_cast %73 : vector<1x16x16x8xf32> to vector<16x16x8xf32>
    %75 = vector.shape_cast %72 : vector<16x16x8xf32> to vector<1x16x16x8xf32>
    tpu.vector_store %arg6[%c0_43, %c0_44, %c0_45, %c0_46], %75 {strides = array<i32>} : memref<1x16x16x8xf32, #tpu.memory_space<vmem>>, vector<1x16x16x8xf32>,
    return
  }
  func.func @transform_0(%arg0: i32, %arg1: i32) -> (i32, i32, i32, i32) {
    %c0_i32 = arith.constant 0 : i32
    %c0_i32_0 = arith.constant 0 : i32
    %c0_i32_1 = arith.constant 0 : i32
    %c0_i32_2 = arith.constant 0 : i32
    return %arg0, %c0_i32, %c0_i32_0, %c0_i32_1 : i32, i32, i32, i32
  }
  func.func @transform_1(%arg0: i32, %arg1: i32) -> (i32, i32, i32) {
    %c0_i32 = arith.constant 0 : i32
    %c0_i32_0 = arith.constant 0 : i32
    %c0_i32_1 = arith.constant 0 : i32
    return %c0_i32, %c0_i32_0, %arg1 : i32, i32, i32
  }
  func.func @transform_2(%arg0: i32, %arg1: i32) -> (i32, i32) {
    %c0_i32 = arith.constant 0 : i32
    %c0_i32_0 = arith.constant 0 : i32
    return %c0_i32, %arg1 : i32, i32
  }
  func.func @transform_3(%arg0: i32, %arg1: i32) -> (i32, i32) {
    %c0_i32 = arith.constant 0 : i32
    %c0_i32_0 = arith.constant 0 : i32
    return %c0_i32, %arg1 : i32, i32
  }
  func.func @transform_4(%arg0: i32, %arg1: i32) -> (i32, i32, i32, i32) {
    %c0_i32 = arith.constant 0 : i32
    %c0_i32_0 = arith.constant 0 : i32
    %c0_i32_1 = arith.constant 0 : i32
    return %arg0, %c0_i32, %c0_i32_0, %arg1 : i32, i32, i32, i32
  }
}

</mosaic_0001>

<llo_original>
// kernel: tpu_custom_call.1
$region0: #{tpu_custom_call.1}
  #allocation0 [shape = 'u32[]', space=smem, size = 0x4, offset = 0x4, fixed_abs, tag = 'smem constant byte address 0x4 - core index']
  #allocation1 [shape = 'u32[144,128]{1,0:T(1,128)}', space=vmem, size = 0x12000, scoped, tag = 'internal scratch']
  #allocation2 [shape = 'f32[20,20,4]{2,1,0:T(8,128)}', space=vmem, size = 0x3c000, scoped, tag = 'scratch operand']
  #allocation3 [shape = 'bf16[18,18,16]{2,1,0:T(8,128)(2,1)}', space=vmem, size = 0x1b000, scoped, tag = 'scratch operand']
  %s0 = inlined_call_operand.vmem [shape: f32[2,16,16,4], index: 0, kind: input, shape index: {}]
  %s1 = inlined_call_operand.vmem [shape: bf16[9,16,8], index: 1, kind: input, shape index: {}]
  %s2 = inlined_call_operand.vmem [shape: f32[1,8], index: 2, kind: input, shape index: {}]
  %s3 = inlined_call_operand.vmem [shape: f32[1,8], index: 3, kind: input, shape index: {}]
  %s4 = inlined_call_operand.vmem [shape: f32[2,16,16,8], index: 4, kind: output, shape index: {}]
  %s5 = sld [smem:[#allocation0]]
  $region53: #{tpu_custom_call.1} parent=0
    _
  %s7 = ssub.s32 1, %s5
  %s8 = scalar_select 0, %s7, %s5
  loop: start=0, step=1, limit=4
  $region2: #{tpu_custom_call.1} parent=0 // loop_pre_header
    _
  $region3: #{tpu_custom_call.1} parent=0 // loop_header
    %s10 = sphi 0, %s14
    %p11 = scmp.ge.s32.totalorder %s10, 4
    %s17 = sphi 0, %s29
    %s18 = sphi 0, %s25
    %s19 = sphi 0, %s17
    %s20 = sphi 0, %s18
    %s21 = sphi 0, %s19
    %s22 = sphi 0, %s20
    %s32 = sphi 0, %s34
    %s35 = sphi 0, %s32
    %s36 = sphi 0, %s35
    %s52 = sphi 0, %s36
    %s58 = sphi 0, %s60
    %s61 = sphi 0, %s58
    %s62 = sphi 0, %s61
    %s78 = sphi 0, %s62
    %s84 = sphi 0, %s86
    %s87 = sphi 0, %s84
    %s88 = sphi 0, %s87
    %s104 = sphi 0, %s88
    %s110 = sphi 0, %s112
    %s113 = sphi 0, %s110
    %s114 = sphi 0, %s113
    %s130 = sphi 0, %s114
    %s138 = sphi 0, %s140
    %s141 = sphi 0, %s138
    %s142 = sphi 0, %s141
    %s158 = sphi 0, %s142
  $region4: #{tpu_custom_call.1} parent=0 // loop_header_branch
    %13 = sbr.rel (%p11) target = $region8
  $region5: #{tpu_custom_call.1} parent=0 // loop_body
    %s15 = ssub.s32 %s10, 1
    %s16 = ssub.s32 %s10, 2
    %s23 = sadd.s32 1, %s18
    %p24 = scmp.ge.s32.totalorder %s23, 1
    %s25 = scalar_select %p24, 0, %s23
    %s26 = sadd.s32 1, %s17
    %s27 = scalar_select %p24, %s26, %s17
    %p28 = scmp.ge.s32.totalorder %s27, 2
    %s29 = scalar_select %p28, 0, %s27
    %s30 = ssub.s32 %s17, %s29
    %p31 = scmp.eq.s32.totalorder %s30, 0
    %s33 = sadd.s32 %s32, 1
    %s34 = scalar_select %p31, %s32, %s33
    %p37 = pneg %p31
    %p38 = scmp.eq.s32.totalorder %s10, 1
    %p39 = por %p37, %p38
    %p40 = scmp.ne.s32.totalorder %s32, %s35
    %p41 = scmp.eq.s32.totalorder %s10, 0
    %p42 = por %p40, %p41
    %p43 = scmp.ne.s32.totalorder %s32, %s35
    %p44 = scmp.eq.s32.totalorder %s15, 1
    %p45 = por %p43, %p44
    %p46 = scmp.ne.s32.totalorder %s35, %s36
    %p47 = scmp.eq.s32.totalorder %s15, 0
    %p48 = por %p46, %p47
    %p49 = scmp.ne.s32.totalorder %s35, %s36
    %p50 = scmp.eq.s32.totalorder %s16, 1
    %p51 = por %p49, %p50
    %p53 = scmp.ne.s32.totalorder %s36, %s52
    %p54 = scmp.eq.s32.totalorder %s16, 0
    %p55 = por %p53, %p54
    %s56 = ssub.s32 %s18, %s25
    %p57 = scmp.eq.s32.totalorder %s56, 0
    %s59 = sadd.s32 %s58, 1
    %s60 = scalar_select %p57, %s58, %s59
    %p63 = pneg %p57
    %p64 = scmp.eq.s32.totalorder %s10, 1
    %p65 = por %p63, %p64
    %p66 = scmp.ne.s32.totalorder %s58, %s61
    %p67 = scmp.eq.s32.totalorder %s10, 0
    %p68 = por %p66, %p67
    %p69 = scmp.ne.s32.totalorder %s58, %s61
    %p70 = scmp.eq.s32.totalorder %s15, 1
    %p71 = por %p69, %p70
    %p72 = scmp.ne.s32.totalorder %s61, %s62
    %p73 = scmp.eq.s32.totalorder %s15, 0
    %p74 = por %p72, %p73
    %p75 = scmp.ne.s32.totalorder %s61, %s62
    %p76 = scmp.eq.s32.totalorder %s16, 1
    %p77 = por %p75, %p76
    %p79 = scmp.ne.s32.totalorder %s62, %s78
    %p80 = scmp.eq.s32.totalorder %s16, 0
    %p81 = por %p79, %p80
    %s82 = ssub.s32 %s18, %s25
    %p83 = scmp.eq.s32.totalorder %s82, 0
    %s85 = sadd.s32 %s84, 1
    %s86 = scalar_select %p83, %s84, %s85
    %p89 = pneg %p83
    %p90 = scmp.eq.s32.totalorder %s10, 1
    %p91 = por %p89, %p90
    %p92 = scmp.ne.s32.totalorder %s84, %s87
    %p93 = scmp.eq.s32.totalorder %s10, 0
    %p94 = por %p92, %p93
    %p95 = scmp.ne.s32.totalorder %s84, %s87
    %p96 = scmp.eq.s32.totalorder %s15, 1
    %p97 = por %p95, %p96
    %p98 = scmp.ne.s32.totalorder %s87, %s88
    %p99 = scmp.eq.s32.totalorder %s15, 0
    %p100 = por %p98, %p99
    %p101 = scmp.ne.s32.totalorder %s87, %s88
    %p102 = scmp.eq.s32.totalorder %s16, 1
    %p103 = por %p101, %p102
    %p105 = scmp.ne.s32.totalorder %s88, %s104
    %p106 = scmp.eq.s32.totalorder %s16, 0
    %p107 = por %p105, %p106
    %s108 = ssub.s32 %s18, %s25
    %p109 = scmp.eq.s32.totalorder %s108, 0
    %s111 = sadd.s32 %s110, 1
    %s112 = scalar_select %p109, %s110, %s111
    %p115 = pneg %p109
    %p116 = scmp.eq.s32.totalorder %s10, 1
    %p117 = por %p115, %p116
    %p118 = scmp.ne.s32.totalorder %s110, %s113
    %p119 = scmp.eq.s32.totalorder %s10, 0
    %p120 = por %p118, %p119
    %p121 = scmp.ne.s32.totalorder %s110, %s113
    %p122 = scmp.eq.s32.totalorder %s15, 1
    %p123 = por %p121, %p122
    %p124 = scmp.ne.s32.totalorder %s113, %s114
    %p125 = scmp.eq.s32.totalorder %s15, 0
    %p126 = por %p124, %p125
    %p127 = scmp.ne.s32.totalorder %s113, %s114
    %p128 = scmp.eq.s32.totalorder %s16, 1
    %p129 = por %p127, %p128
    %p131 = scmp.ne.s32.totalorder %s114, %s130
    %p132 = scmp.eq.s32.totalorder %s16, 0
    %p133 = por %p131, %p132
    %s134 = ssub.s32 %s17, %s29
    %s135 = ssub.s32 %s18, %s25
    %s136 = sor.u32 %s134, %s135
    %p137 = scmp.eq.s32.totalorder %s136, 0
    %s139 = sadd.s32 %s138, 1
    %s140 = scalar_select %p137, %s138, %s139
    %p143 = pneg %p137
    %p144 = scmp.eq.s32.totalorder %s10, 1
    %p145 = por %p143, %p144
    %p146 = scmp.ne.s32.totalorder %s138, %s141
    %p147 = scmp.eq.s32.totalorder %s10, 0
    %p148 = por %p146, %p147
    %p149 = scmp.ne.s32.totalorder %s138, %s141
    %p150 = scmp.eq.s32.totalorder %s15, 1
    %p151 = por %p149, %p150
    %p152 = scmp.ne.s32.totalorder %s141, %s142
    %p153 = scmp.eq.s32.totalorder %s15, 0
    %p154 = por %p152, %p153
    %p155 = scmp.ne.s32.totalorder %s141, %s142
    %p156 = scmp.eq.s32.totalorder %s16, 1
    %p157 = por %p155, %p156
    %p159 = scmp.ne.s32.totalorder %s142, %s158
    %p160 = scmp.eq.s32.totalorder %s16, 0
    %p161 = por %p159, %p160
    %p162 = scmp.le.s32.totalorder 1, %s10
    %p163 = scmp.lt.s32.totalorder %s10, 3
    %p164 = pnand %p162, %p163
    %p165 = pneg %p164
    // Predicated region
    $region9: #{tpu_custom_call.1} parent=5 // pred_check
      _
    $region10: #{tpu_custom_call.1} parent=5 // pred_check_branch
      %167 = sbr.rel (%p164) target = $region12
    $region11: #{tpu_custom_call.1} parent=5 // pred_region
      %s168 = ssub.s32 %s10, 1
      // Predicated region
      $region13: #{tpu_custom_call.1} parent=11 // pred_check
        %p169 = pneg %p74
      $region14: #{tpu_custom_call.1} parent=11 // pred_check_branch
        %171 = sbr.rel (%p169) target = $region16
      $region15: #{tpu_custom_call.1} parent=11 // pred_region
        %p172 = scmp.lt.s32.totalorder %s20, 0
        %s173 = scalar_select %p172, %s20, 0
        %s174 = smul.addr %s173, 4
        %s175 = scalar_lea.vmem %s1, %s174
      $region16: #{tpu_custom_call.1} parent=11 // pred_fallthru
        _
      // Predicated region
      $region17: #{tpu_custom_call.1} parent=11 // pred_check
        %p176 = pneg %p100
      $region18: #{tpu_custom_call.1} parent=11 // pred_check_branch
        %178 = sbr.rel (%p176) target = $region20
      $region19: #{tpu_custom_call.1} parent=11 // pred_region
        %p179 = scmp.lt.s32.totalorder %s20, 0
        %s180 = scalar_select %p179, %s20, 0
        %s181 = scalar_lea.vmem %s2, %s180
      $region20: #{tpu_custom_call.1} parent=11 // pred_fallthru
        _
      // Predicated region
      $region21: #{tpu_custom_call.1} parent=11 // pred_check
        %p182 = pneg %p126
      $region22: #{tpu_custom_call.1} parent=11 // pred_check_branch
        %184 = sbr.rel (%p182) target = $region24
      $region23: #{tpu_custom_call.1} parent=11 // pred_region
        %p185 = scmp.lt.s32.totalorder %s20, 0
        %s186 = scalar_select %p185, %s20, 0
        %s187 = scalar_lea.vmem %s3, %s186
      $region24: #{tpu_custom_call.1} parent=11 // pred_fallthru
        _
    $region12: #{tpu_custom_call.1} parent=5 // pred_fallthru
      _
    %p188 = scmp.lt.s32.totalorder %s10, 2
    // Predicated region
    $region25: #{tpu_custom_call.1} parent=5 // pred_check
      %p189 = pneg %p188
    $region26: #{tpu_custom_call.1} parent=5 // pred_check_branch
      %191 = sbr.rel (%p189) target = $region28
    $region27: #{tpu_custom_call.1} parent=5 // pred_region
      // Predicated region
      $region29: #{tpu_custom_call.1} parent=27 // pred_check
        %p192 = pneg %p42
      $region30: #{tpu_custom_call.1} parent=27 // pred_check_branch
        %194 = sbr.rel (%p192) target = $region32
      $region31: #{tpu_custom_call.1} parent=27 // pred_region
        %p195 = scmp.lt.s32.totalorder %s17, 1
        %s196 = scalar_select %p195, %s17, 1
        %s197 = smul.addr %s196, 32
        %s198 = smul.addr %s197, 8
        %s199 = scalar_lea.vmem %s0, %s198
      $region32: #{tpu_custom_call.1} parent=27 // pred_fallthru
        _
    $region28: #{tpu_custom_call.1} parent=5 // pred_fallthru
      _
    %p200 = scmp.le.s32.totalorder 1, %s10
    %p201 = scmp.lt.s32.totalorder %s10, 3
    %p202 = pnand %p200, %p201
    %p203 = pneg %p202
    // Predicated region
    $region33: #{tpu_custom_call.1} parent=5 // pred_check
      _
    $region34: #{tpu_custom_call.1} parent=5 // pred_check_branch
      %205 = sbr.rel (%p202) target = $region36
    $region35: #{tpu_custom_call.1} parent=5 // pred_region
      %s206 = ssub.s32 %s10, 1
      %p207 = scmp.lt.s32.totalorder %s19, 1
      %s208 = scalar_select %p207, %s19, 1
      %s209 = smul.addr %s208, 32
      %s210 = smul.addr %s209, 8
      %s211 = scalar_lea.vmem %s0, %s210
      %p212 = pneg %p48
      %p213 = pneg %p45
      %p214 = scmp.lt.s32.totalorder %s20, 0
      %s215 = scalar_select %p214, %s20, 0
      %s216 = smul.addr %s215, 4
      %s217 = scalar_lea.vmem %s1, %s216
      %p218 = pneg %p74
      %p219 = pneg %p71
      %p220 = scmp.lt.s32.totalorder %s20, 0
      %s221 = scalar_select %p220, %s20, 0
      %s222 = scalar_lea.vmem %s2, %s221
      %p223 = pneg %p100
      %p224 = pneg %p97
      %p225 = scmp.lt.s32.totalorder %s20, 0
      %s226 = scalar_select %p225, %s20, 0
      %s227 = scalar_lea.vmem %s3, %s226
      %p228 = pneg %p126
      %p229 = pneg %p123
      %p230 = pneg %p154
      %p231 = pneg %p151
      %p232 = scmp.lt.s32.totalorder %s19, 1
      %s233 = scalar_select %p232, %s19, 1
      %p234 = scmp.lt.s32.totalorder %s20, 0
      %s235 = scalar_select %p234, %s20, 0
      %s236 = smul.addr %s233, 32
      %s237 = sadd.s32 %s235, %s236
      %s238 = smul.addr %s237, 8
      %s239 = scalar_lea.vmem %s4, %s238
      %p240 = scmp.lt.s32.totalorder %s19, 1
      %s241 = scalar_select %p240, %s19, 1
      %s242 = smul.addr %s241, 32
      %s243 = smul.addr %s242, 8
      %s244 = scalar_lea.vmem %s0, %s243
      %p245 = scmp.lt.s32.totalorder %s20, 0
      %s246 = scalar_select %p245, %s20, 0
      %s247 = smul.addr %s246, 4
      %s248 = scalar_lea.vmem %s1, %s247
      %p249 = scmp.lt.s32.totalorder %s20, 0
      %s250 = scalar_select %p249, %s20, 0
      %s251 = scalar_lea.vmem %s2, %s250
      %p252 = scmp.lt.s32.totalorder %s20, 0
      %s253 = scalar_select %p252, %s20, 0
      %s254 = scalar_lea.vmem %s3, %s253
      %p255 = scmp.lt.s32.totalorder %s19, 1
      %s256 = scalar_select %p255, %s19, 1
      %p257 = scmp.lt.s32.totalorder %s20, 0
      %s258 = scalar_select %p257, %s20, 0
      %s259 = smul.addr %s256, 32
      %s260 = sadd.s32 %s258, %s259
      %s261 = smul.addr %s260, 8
      %s262 = scalar_lea.vmem %s4, %s261
      %p264 = scmp.eq.s32.totalorder %s20, 0
      // Predicated region
      $region37: #{tpu_custom_call.1} parent=35 // pred_check
        %p265 = pneg %p264
      $region38: #{tpu_custom_call.1} parent=35 // pred_check_branch
        %267 = sbr.rel (%p265) target = $region40
      $region39: #{tpu_custom_call.1} parent=35 // pred_region
        %vm268 = vcmask 31744
        %269 = vst.msk [vmem:[#allocation2] sm:$0xff] %vm268, -inf
        %270 = vst.msk [vmem:[#allocation2 + $0x8] sm:$0xff] %vm268, -inf
        %vm271 = vcmask 27648
        %272 = vst.msk [vmem:[#allocation2 + $0x10] sm:$0xf] %vm271, -inf
        %273 = vst.msk [vmem:[#allocation2 + $0x18] sm:$0xff] %vm268, -inf
        %274 = vst.msk [vmem:[#allocation2 + $0x20] sm:$0xff] %vm268, -inf
        %275 = vst.msk [vmem:[#allocation2 + $0x28] sm:$0xf] %vm271, -inf
        %s276 = scalar_lea.vmem [#allocation2], 432
        %277 = vst.msk [vmem:[%s276] sm:$0xff] %vm268, -inf
        %278 = vst.msk [vmem:[%s276 + $0x8] sm:$0xff] %vm268, -inf
        %279 = vst.msk [vmem:[%s276 + $0x10] sm:$0xf] %vm271, -inf
        %280 = vst.msk [vmem:[%s276 + $0x18] sm:$0xff] %vm268, -inf
        %281 = vst.msk [vmem:[%s276 + $0x20] sm:$0xff] %vm268, -inf
        %282 = vst.msk [vmem:[%s276 + $0x28] sm:$0xf] %vm271, -inf
        %s283 = scalar_lea.vmem [#allocation2], 48
        %vm284 = vcmask 25600
        %285 = vst.msk [vmem:[%s283] sm:$0x3] %vm284, -inf
        %286 = vst.msk [vmem:[%s283 + $0x18] sm:$0x3] %vm284, -inf
        %287 = vst.msk [vmem:[%s283 + $0x30] sm:$0x3] %vm284, -inf
        %288 = vst.msk [vmem:[%s283 + $0x48] sm:$0x3] %vm284, -inf
        %289 = vst.msk [vmem:[%s283 + $0x60] sm:$0x3] %vm284, -inf
        %290 = vst.msk [vmem:[%s283 + $0x78] sm:$0x3] %vm284, -inf
        %291 = vst.msk [vmem:[%s283 + $0x90] sm:$0x3] %vm284, -inf
        %292 = vst.msk [vmem:[%s283 + $0xa8] sm:$0x3] %vm284, -inf
        %293 = vst.msk [vmem:[%s283 + $0xc0] sm:$0x3] %vm284, -inf
        %294 = vst.msk [vmem:[%s283 + $0xd8] sm:$0x3] %vm284, -inf
        %295 = vst.msk [vmem:[%s283 + $0xf0] sm:$0x3] %vm284, -inf
        %296 = vst.msk [vmem:[%s283 + $0x108] sm:$0x3] %vm284, -inf
        %297 = vst.msk [vmem:[%s283 + $0x120] sm:$0x3] %vm284, -inf
        %298 = vst.msk [vmem:[%s283 + $0x138] sm:$0x3] %vm284, -inf
        %299 = vst.msk [vmem:[%s283 + $0x150] sm:$0x3] %vm284, -inf
        %300 = vst.msk [vmem:[%s283 + $0x168] sm:$0x3] %vm284, -inf
        %301 = vst.msk [vmem:[%s283 + $0x12] sm:$0x3] %vm284, -inf
        %302 = vst.msk [vmem:[%s283 + $0x2a] sm:$0x3] %vm284, -inf
        %303 = vst.msk [vmem:[%s283 + $0x42] sm:$0x3] %vm284, -inf
        %304 = vst.msk [vmem:[%s283 + $0x5a] sm:$0x3] %vm284, -inf
        %305 = vst.msk [vmem:[%s283 + $0x72] sm:$0x3] %vm284, -inf
        %306 = vst.msk [vmem:[%s283 + $0x8a] sm:$0x3] %vm284, -inf
        %307 = vst.msk [vmem:[%s283 + $0xa2] sm:$0x3] %vm284, -inf
        %308 = vst.msk [vmem:[%s283 + $0xba] sm:$0x3] %vm284, -inf
        %309 = vst.msk [vmem:[%s283 + $0xd2] sm:$0x3] %vm284, -inf
        %310 = vst.msk [vmem:[%s283 + $0xea] sm:$0x3] %vm284, -inf
        %311 = vst.msk [vmem:[%s283 + $0x102] sm:$0x3] %vm284, -inf
        %312 = vst.msk [vmem:[%s283 + $0x11a] sm:$0x3] %vm284, -inf
        %313 = vst.msk [vmem:[%s283 + $0x132] sm:$0x3] %vm284, -inf
        %314 = vst.msk [vmem:[%s283 + $0x14a] sm:$0x3] %vm284, -inf
        %315 = vst.msk [vmem:[%s283 + $0x162] sm:$0x3] %vm284, -inf
        %316 = vst.msk [vmem:[%s283 + $0x17a] sm:$0x3] %vm284, -inf
        %vm317 = vcmask 125952
        %318 = vst.msk [vmem:[#allocation3] sm:$0xf] %vm317, 0
        %319 = vst.msk [vmem:[#allocation3 + $0x4] sm:$0xf] %vm317, 0
        %vm320 = vcmask 122880
        %321 = vst.msk [vmem:[#allocation3 + $0x8] sm:$0x1] %vm320, 0
        %s322 = scalar_lea.vmem [#allocation3], 204
        %323 = vst.msk [vmem:[%s322] sm:$0xf] %vm317, 0
        %324 = vst.msk [vmem:[%s322 + $0x4] sm:$0xf] %vm317, 0
        %325 = vst.msk [vmem:[%s322 + $0x8] sm:$0x1] %vm320, 0
        %s326 = scalar_lea.vmem [#allocation3], 12
        %vm327 = vcmask 122880
        %vm328 = vsmask.f32 256
        %vm329 = vmand %vm327, %vm328
        %v330 = vld [vmem:[%s326] sm:$0x1]
        %v331 = vsel %vm329, 0, %v330
        %332 = vst [vmem:[%s326] sm:$0x1] %v331
        %v333 = vld [vmem:[%s326 + $0xc] sm:$0x1]
        %v334 = vsel %vm329, 0, %v333
        %335 = vst [vmem:[%s326 + $0xc] sm:$0x1] %v334
        %v336 = vld [vmem:[%s326 + $0x18] sm:$0x1]
        %v337 = vsel %vm329, 0, %v336
        %338 = vst [vmem:[%s326 + $0x18] sm:$0x1] %v337
        %v339 = vld [vmem:[%s326 + $0x24] sm:$0x1]
        %v340 = vsel %vm329, 0, %v339
        %341 = vst [vmem:[%s326 + $0x24] sm:$0x1] %v340
        %v342 = vld [vmem:[%s326 + $0x30] sm:$0x1]
        %v343 = vsel %vm329, 0, %v342
        %344 = vst [vmem:[%s326 + $0x30] sm:$0x1] %v343
        %v345 = vld [vmem:[%s326 + $0x3c] sm:$0x1]
        %v346 = vsel %vm329, 0, %v345
        %347 = vst [vmem:[%s326 + $0x3c] sm:$0x1] %v346
        %v348 = vld [vmem:[%s326 + $0x48] sm:$0x1]
        %v349 = vsel %vm329, 0, %v348
        %350 = vst [vmem:[%s326 + $0x48] sm:$0x1] %v349
        %v351 = vld [vmem:[%s326 + $0x54] sm:$0x1]
        %v352 = vsel %vm329, 0, %v351
        %353 = vst [vmem:[%s326 + $0x54] sm:$0x1] %v352
        %v354 = vld [vmem:[%s326 + $0x60] sm:$0x1]
        %v355 = vsel %vm329, 0, %v354
        %356 = vst [vmem:[%s326 + $0x60] sm:$0x1] %v355
        %v357 = vld [vmem:[%s326 + $0x6c] sm:$0x1]
        %v358 = vsel %vm329, 0, %v357
        %359 = vst [vmem:[%s326 + $0x6c] sm:$0x1] %v358
        %v360 = vld [vmem:[%s326 + $0x78] sm:$0x1]
        %v361 = vsel %vm329, 0, %v360
        %362 = vst [vmem:[%s326 + $0x78] sm:$0x1] %v361
        %v363 = vld [vmem:[%s326 + $0x84] sm:$0x1]
        %v364 = vsel %vm329, 0, %v363
        %365 = vst [vmem:[%s326 + $0x84] sm:$0x1] %v364
        %v366 = vld [vmem:[%s326 + $0x90] sm:$0x1]
        %v367 = vsel %vm329, 0, %v366
        %368 = vst [vmem:[%s326 + $0x90] sm:$0x1] %v367
        %v369 = vld [vmem:[%s326 + $0x9c] sm:$0x1]
        %v370 = vsel %vm329, 0, %v369
        %371 = vst [vmem:[%s326 + $0x9c] sm:$0x1] %v370
        %v372 = vld [vmem:[%s326 + $0xa8] sm:$0x1]
        %v373 = vsel %vm329, 0, %v372
        %374 = vst [vmem:[%s326 + $0xa8] sm:$0x1] %v373
        %v375 = vld [vmem:[%s326 + $0xb4] sm:$0x1]
        %v376 = vsel %vm329, 0, %v375
        %377 = vst [vmem:[%s326 + $0xb4] sm:$0x1] %v376
        %vm378 = vsmask.f32 7938
        %vm379 = vmand %vm327, %vm378
        %v380 = vld [vmem:[%s326 + $0x8] sm:$0x1]
        %v381 = vsel %vm379, 0, %v380
        %382 = vst [vmem:[%s326 + $0x8] sm:$0x1] %v381
        %v383 = vld [vmem:[%s326 + $0x14] sm:$0x1]
        %v384 = vsel %vm379, 0, %v383
        %385 = vst [vmem:[%s326 + $0x14] sm:$0x1] %v384
        %v386 = vld [vmem:[%s326 + $0x20] sm:$0x1]
        %v387 = vsel %vm379, 0, %v386
        %388 = vst [vmem:[%s326 + $0x20] sm:$0x1] %v387
        %v389 = vld [vmem:[%s326 + $0x2c] sm:$0x1]
        %v390 = vsel %vm379, 0, %v389
        %391 = vst [vmem:[%s326 + $0x2c] sm:$0x1] %v390
        %v392 = vld [vmem:[%s326 + $0x38] sm:$0x1]
        %v393 = vsel %vm379, 0, %v392
        %394 = vst [vmem:[%s326 + $0x38] sm:$0x1] %v393
        %v395 = vld [vmem:[%s326 + $0x44] sm:$0x1]
        %v396 = vsel %vm379, 0, %v395
        %397 = vst [vmem:[%s326 + $0x44] sm:$0x1] %v396
        %v398 = vld [vmem:[%s326 + $0x50] sm:$0x1]
        %v399 = vsel %vm379, 0, %v398
        %400 = vst [vmem:[%s326 + $0x50] sm:$0x1] %v399
        %v401 = vld [vmem:[%s326 + $0x5c] sm:$0x1]
        %v402 = vsel %vm379, 0, %v401
        %403 = vst [vmem:[%s326 + $0x5c] sm:$0x1] %v402
        %v404 = vld [vmem:[%s326 + $0x68] sm:$0x1]
        %v405 = vsel %vm379, 0, %v404
        %406 = vst [vmem:[%s326 + $0x68] sm:$0x1] %v405
        %v407 = vld [vmem:[%s326 + $0x74] sm:$0x1]
        %v408 = vsel %vm379, 0, %v407
        %409 = vst [vmem:[%s326 + $0x74] sm:$0x1] %v408
        %v410 = vld [vmem:[%s326 + $0x80] sm:$0x1]
        %v411 = vsel %vm379, 0, %v410
        %412 = vst [vmem:[%s326 + $0x80] sm:$0x1] %v411
        %v413 = vld [vmem:[%s326 + $0x8c] sm:$0x1]
        %v414 = vsel %vm379, 0, %v413
        %415 = vst [vmem:[%s326 + $0x8c] sm:$0x1] %v414
        %v416 = vld [vmem:[%s326 + $0x98] sm:$0x1]
        %v417 = vsel %vm379, 0, %v416
        %418 = vst [vmem:[%s326 + $0x98] sm:$0x1] %v417
        %v419 = vld [vmem:[%s326 + $0xa4] sm:$0x1]
        %v420 = vsel %vm379, 0, %v419
        %421 = vst [vmem:[%s326 + $0xa4] sm:$0x1] %v420
        %v422 = vld [vmem:[%s326 + $0xb0] sm:$0x1]
        %v423 = vsel %vm379, 0, %v422
        %424 = vst [vmem:[%s326 + $0xb0] sm:$0x1] %v423
        %v425 = vld [vmem:[%s326 + $0xbc] sm:$0x1]
        %v426 = vsel %vm379, 0, %v425
        %427 = vst [vmem:[%s326 + $0xbc] sm:$0x1] %v426
        %v428 = vld [vmem:[%s244] sm:$0xff]
        %v429 = vld [vmem:[%s244 + $0x8] sm:$0xff]
        %v430 = vld [vmem:[%s244 + $0x10] sm:$0xff]
        %v431 = vld [vmem:[%s244 + $0x18] sm:$0xff]
        %v432 = vld [vmem:[%s244 + $0x20] sm:$0xff]
        %v433 = vld [vmem:[%s244 + $0x28] sm:$0xff]
        %v434 = vld [vmem:[%s244 + $0x30] sm:$0xff]
        %v435 = vld [vmem:[%s244 + $0x38] sm:$0xff]
        %v436 = vld [vmem:[%s244 + $0x40] sm:$0xff]
        %v437 = vld [vmem:[%s244 + $0x48] sm:$0xff]
        %v438 = vld [vmem:[%s244 + $0x50] sm:$0xff]
        %v439 = vld [vmem:[%s244 + $0x58] sm:$0xff]
        %v440 = vld [vmem:[%s244 + $0x60] sm:$0xff]
        %v441 = vld [vmem:[%s244 + $0x68] sm:$0xff]
        %v442 = vld [vmem:[%s244 + $0x70] sm:$0xff]
        %v443 = vld [vmem:[%s244 + $0x78] sm:$0xff]
        %v444 = vld [vmem:[%s244 + $0x80] sm:$0xff]
        %v445 = vld [vmem:[%s244 + $0x88] sm:$0xff]
        %v446 = vld [vmem:[%s244 + $0x90] sm:$0xff]
        %v447 = vld [vmem:[%s244 + $0x98] sm:$0xff]
        %v448 = vld [vmem:[%s244 + $0xa0] sm:$0xff]
        %v449 = vld [vmem:[%s244 + $0xa8] sm:$0xff]
        %v450 = vld [vmem:[%s244 + $0xb0] sm:$0xff]
        %v451 = vld [vmem:[%s244 + $0xb8] sm:$0xff]
        %v452 = vld [vmem:[%s244 + $0xc0] sm:$0xff]
        %v453 = vld [vmem:[%s244 + $0xc8] sm:$0xff]
        %v454 = vld [vmem:[%s244 + $0xd0] sm:$0xff]
        %v455 = vld [vmem:[%s244 + $0xd8] sm:$0xff]
        %v456 = vld [vmem:[%s244 + $0xe0] sm:$0xff]
        %v457 = vld [vmem:[%s244 + $0xe8] sm:$0xff]
        %v458 = vld [vmem:[%s244 + $0xf0] sm:$0xff]
        %v459 = vld [vmem:[%s244 + $0xf8] sm:$0xff]
        %v460 = vpack.c.bf16 %v429, %v428
        %v461 = vpack.c.bf16 %v431, %v430
        %v462 = vpack.c.bf16 %v433, %v432
        %v463 = vpack.c.bf16 %v435, %v434
        %v464 = vpack.c.bf16 %v437, %v436
        %v465 = vpack.c.bf16 %v439, %v438
        %v466 = vpack.c.bf16 %v441, %v440
        %v467 = vpack.c.bf16 %v443, %v442
        %v468 = vpack.c.bf16 %v445, %v444
        %v469 = vpack.c.bf16 %v447, %v446
        %v470 = vpack.c.bf16 %v449, %v448
        %v471 = vpack.c.bf16 %v451, %v450
        %v472 = vpack.c.bf16 %v453, %v452
        %v473 = vpack.c.bf16 %v455, %v454
        %v474 = vpack.c.bf16 %v457, %v456
        %v475 = vpack.c.bf16 %v459, %v458
        %v492 = vunpack.c.l.b16 %v460
        %v493 = vunpack.c.h.b16 %v460
        %v494 = vunpack.c.l.b16 %v461
        %v495 = vunpack.c.h.b16 %v461
        %v496 = vunpack.c.l.b16 %v462
        %v497 = vunpack.c.h.b16 %v462
        %v498 = vunpack.c.l.b16 %v463
        %v499 = vunpack.c.h.b16 %v463
        %v500 = vunpack.c.l.b16 %v464
        %v501 = vunpack.c.h.b16 %v464
        %v502 = vunpack.c.l.b16 %v465
        %v503 = vunpack.c.h.b16 %v465
        %v504 = vunpack.c.l.b16 %v466
        %v505 = vunpack.c.h.b16 %v466
        %v506 = vunpack.c.l.b16 %v467
        %v507 = vunpack.c.h.b16 %v467
        %v508 = vunpack.c.l.b16 %v468
        %v509 = vunpack.c.h.b16 %v468
        %v510 = vunpack.c.l.b16 %v469
        %v511 = vunpack.c.h.b16 %v469
        %v512 = vunpack.c.l.b16 %v470
        %v513 = vunpack.c.h.b16 %v470
        %v514 = vunpack.c.l.b16 %v471
        %v515 = vunpack.c.h.b16 %v471
        %v516 = vunpack.c.l.b16 %v472
        %v517 = vunpack.c.h.b16 %v472
        %v518 = vunpack.c.l.b16 %v473
        %v519 = vunpack.c.h.b16 %v473
        %v520 = vunpack.c.l.b16 %v474
        %v521 = vunpack.c.h.b16 %v474
        %v522 = vunpack.c.l.b16 %v475
        %v523 = vunpack.c.h.b16 %v475
        %v524 = vpack.c.b16 %v492, %v492
        %v525 = vpack.c.b16 %v493, %v493
        %v526 = vpack.c.b16 %v494, %v494
        %v527 = vpack.c.b16 %v495, %v495
        %v528 = vpack.c.b16 %v496, %v496
        %v529 = vpack.c.b16 %v497, %v497
        %v530 = vpack.c.b16 %v498, %v498
        %v531 = vpack.c.b16 %v499, %v499
        %v532 = vpack.c.b16 %v500, %v500
        %v533 = vpack.c.b16 %v501, %v501
        %v534 = vpack.c.b16 %v502, %v502
        %v535 = vpack.c.b16 %v503, %v503
        %v536 = vpack.c.b16 %v504, %v504
        %v537 = vpack.c.b16 %v505, %v505
        %v538 = vpack.c.b16 %v506, %v506
        %v539 = vpack.c.b16 %v507, %v507
        %v540 = vpack.c.b16 %v508, %v508
        %v541 = vpack.c.b16 %v509, %v509
        %v542 = vpack.c.b16 %v510, %v510
        %v543 = vpack.c.b16 %v511, %v511
        %v544 = vpack.c.b16 %v512, %v512
        %v545 = vpack.c.b16 %v513, %v513
        %v546 = vpack.c.b16 %v514, %v514
        %v547 = vpack.c.b16 %v515, %v515
        %v548 = vpack.c.b16 %v516, %v516
        %v549 = vpack.c.b16 %v517, %v517
        %v550 = vpack.c.b16 %v518, %v518
        %v551 = vpack.c.b16 %v519, %v519
        %v552 = vpack.c.b16 %v520, %v520
        %v553 = vpack.c.b16 %v521, %v521
        %v554 = vpack.c.b16 %v522, %v522
        %v555 = vpack.c.b16 %v523, %v523
        %vm556 = vsmask.f32 4368
        %vm557 = vmor %vm328, %vm556
        %v559 = vshrl.u32 %v524, 16
        %v561 = vrot.slane %v559, 7
        %v562 = vshll.u32 %v524, 16
        %v564 = vor.u32 %v561, %v562
        %v565 = vrot.slane %v561, 4
        %v567 = vshrl.u32 %v525, 16
        %v569 = vrot.slane %v567, 7
        %v570 = vshll.u32 %v525, 16
        %v572 = vor.u32 %v569, %v570
        %v573 = vsel %vm557, %v565, %v572
        %v574 = vrot.slane %v569, 4
        %v576 = vshrl.u32 %v526, 16
        %v578 = vrot.slane %v576, 7
        %v579 = vshll.u32 %v526, 16
        %v581 = vor.u32 %v578, %v579
        %v582 = vrot.slane %v578, 4
        %v584 = vshrl.u32 %v527, 16
        %v586 = vrot.slane %v584, 7
        %v587 = vshll.u32 %v527, 16
        %v589 = vor.u32 %v586, %v587
        %v590 = vsel %vm557, %v582, %v589
        %v591 = vrot.slane %v586, 4
        %v593 = vshrl.u32 %v528, 16
        %v595 = vrot.slane %v593, 7
        %v596 = vshll.u32 %v528, 16
        %v598 = vor.u32 %v595, %v596
        %v599 = vrot.slane %v595, 4
        %v601 = vshrl.u32 %v529, 16
        %v603 = vrot.slane %v601, 7
        %v604 = vshll.u32 %v529, 16
        %v606 = vor.u32 %v603, %v604
        %v607 = vsel %vm557, %v599, %v606
        %v608 = vrot.slane %v603, 4
        %v610 = vshrl.u32 %v530, 16
        %v612 = vrot.slane %v610, 7
        %v613 = vshll.u32 %v530, 16
        %v615 = vor.u32 %v612, %v613
        %v616 = vrot.slane %v612, 4
        %v618 = vshrl.u32 %v531, 16
        %v620 = vrot.slane %v618, 7
        %v621 = vshll.u32 %v531, 16
        %v623 = vor.u32 %v620, %v621
        %v624 = vsel %vm557, %v616, %v623
        %v625 = vrot.slane %v620, 4
        %v627 = vshrl.u32 %v532, 16
        %v629 = vrot.slane %v627, 7
        %v630 = vshll.u32 %v532, 16
        %v632 = vor.u32 %v629, %v630
        %v633 = vrot.slane %v629, 4
        %v635 = vshrl.u32 %v533, 16
        %v637 = vrot.slane %v635, 7
        %v638 = vshll.u32 %v533, 16
        %v640 = vor.u32 %v637, %v638
        %v641 = vsel %vm557, %v633, %v640
        %v642 = vrot.slane %v637, 4
        %v644 = vshrl.u32 %v534, 16
        %v646 = vrot.slane %v644, 7
        %v647 = vshll.u32 %v534, 16
        %v649 = vor.u32 %v646, %v647
        %v650 = vrot.slane %v646, 4
        %v652 = vshrl.u32 %v535, 16
        %v654 = vrot.slane %v652, 7
        %v655 = vshll.u32 %v535, 16
        %v657 = vor.u32 %v654, %v655
        %v658 = vsel %vm557, %v650, %v657
        %v659 = vrot.slane %v654, 4
        %v661 = vshrl.u32 %v536, 16
        %v663 = vrot.slane %v661, 7
        %v664 = vshll.u32 %v536, 16
        %v666 = vor.u32 %v663, %v664
        %v667 = vrot.slane %v663, 4
        %v669 = vshrl.u32 %v537, 16
        %v671 = vrot.slane %v669, 7
        %v672 = vshll.u32 %v537, 16
        %v674 = vor.u32 %v671, %v672
        %v675 = vsel %vm557, %v667, %v674
        %v676 = vrot.slane %v671, 4
        %v678 = vshrl.u32 %v538, 16
        %v680 = vrot.slane %v678, 7
        %v681 = vshll.u32 %v538, 16
        %v683 = vor.u32 %v680, %v681
        %v684 = vrot.slane %v680, 4
        %v686 = vshrl.u32 %v539, 16
        %v688 = vrot.slane %v686, 7
        %v689 = vshll.u32 %v539, 16
        %v691 = vor.u32 %v688, %v689
        %v692 = vsel %vm557, %v684, %v691
        %v693 = vrot.slane %v688, 4
        %v695 = vshrl.u32 %v540, 16
        %v697 = vrot.slane %v695, 7
        %v698 = vshll.u32 %v540, 16
        %v700 = vor.u32 %v697, %v698
        %v701 = vrot.slane %v697, 4
        %v703 = vshrl.u32 %v541, 16
        %v705 = vrot.slane %v703, 7
        %v706 = vshll.u32 %v541, 16
        %v708 = vor.u32 %v705, %v706
        %v709 = vsel %vm557, %v701, %v708
        %v710 = vrot.slane %v705, 4
        %v712 = vshrl.u32 %v542, 16
        %v714 = vrot.slane %v712, 7
        %v715 = vshll.u32 %v542, 16
        %v717 = vor.u32 %v714, %v715
        %v718 = vrot.slane %v714, 4
        %v720 = vshrl.u32 %v543, 16
        %v722 = vrot.slane %v720, 7
        %v723 = vshll.u32 %v543, 16
        %v725 = vor.u32 %v722, %v723
        %v726 = vsel %vm557, %v718, %v725
        %v727 = vrot.slane %v722, 4
        %v729 = vshrl.u32 %v544, 16
        %v731 = vrot.slane %v729, 7
        %v732 = vshll.u32 %v544, 16
        %v734 = vor.u32 %v731, %v732
        %v735 = vrot.slane %v731, 4
        %v737 = vshrl.u32 %v545, 16
        %v739 = vrot.slane %v737, 7
        %v740 = vshll.u32 %v545, 16
        %v742 = vor.u32 %v739, %v740
        %v743 = vsel %vm557, %v735, %v742
        %v744 = vrot.slane %v739, 4
        %v746 = vshrl.u32 %v546, 16
        %v748 = vrot.slane %v746, 7
        %v749 = vshll.u32 %v546, 16
        %v751 = vor.u32 %v748, %v749
        %v752 = vrot.slane %v748, 4
        %v754 = vshrl.u32 %v547, 16
        %v756 = vrot.slane %v754, 7
        %v757 = vshll.u32 %v547, 16
        %v759 = vor.u32 %v756, %v757
        %v760 = vsel %vm557, %v752, %v759
        %v761 = vrot.slane %v756, 4
        %v763 = vshrl.u32 %v548, 16
        %v765 = vrot.slane %v763, 7
        %v766 = vshll.u32 %v548, 16
        %v768 = vor.u32 %v765, %v766
        %v769 = vrot.slane %v765, 4
        %v771 = vshrl.u32 %v549, 16
        %v773 = vrot.slane %v771, 7
        %v774 = vshll.u32 %v549, 16
        %v776 = vor.u32 %v773, %v774
        %v777 = vsel %vm557, %v769, %v776
        %v778 = vrot.slane %v773, 4
        %v780 = vshrl.u32 %v550, 16
        %v782 = vrot.slane %v780, 7
        %v783 = vshll.u32 %v550, 16
        %v785 = vor.u32 %v782, %v783
        %v786 = vrot.slane %v782, 4
        %v788 = vshrl.u32 %v551, 16
        %v790 = vrot.slane %v788, 7
        %v791 = vshll.u32 %v551, 16
        %v793 = vor.u32 %v790, %v791
        %v794 = vsel %vm557, %v786, %v793
        %v795 = vrot.slane %v790, 4
        %v797 = vshrl.u32 %v552, 16
        %v799 = vrot.slane %v797, 7
        %v800 = vshll.u32 %v552, 16
        %v802 = vor.u32 %v799, %v800
        %v803 = vrot.slane %v799, 4
        %v805 = vshrl.u32 %v553, 16
        %v807 = vrot.slane %v805, 7
        %v808 = vshll.u32 %v553, 16
        %v810 = vor.u32 %v807, %v808
        %v811 = vsel %vm557, %v803, %v810
        %v812 = vrot.slane %v807, 4
        %v814 = vshrl.u32 %v554, 16
        %v816 = vrot.slane %v814, 7
        %v817 = vshll.u32 %v554, 16
        %v819 = vor.u32 %v816, %v817
        %v820 = vrot.slane %v816, 4
        %v822 = vshrl.u32 %v555, 16
        %v824 = vrot.slane %v822, 7
        %v825 = vshll.u32 %v555, 16
        %v827 = vor.u32 %v824, %v825
        %v828 = vsel %vm557, %v820, %v827
        %v829 = vrot.slane %v824, 4
        %vm878 = vcmask 27648
        %vm879 = vmand %vm878, %vm378
        %v880 = vld [vmem:[%s326] sm:$0xf]
        %v881 = vsel %vm879, %v564, %v880
        %882 = vst [vmem:[%s326] sm:$0xf] %v881
        %883 = vst.msk [vmem:[%s326 + $0x4] sm:$0xf] %vm271, %v573
        %vm884 = vcmask 24576
        %vm885 = vmand %vm884, %vm328
        %v886 = vld [vmem:[%s326 + $0x8] sm:$0x1]
        %v887 = vsel %vm885, %v574, %v886
        %888 = vst [vmem:[%s326 + $0x8] sm:$0x1] %v887
        %v889 = vld [vmem:[%s326 + $0xc] sm:$0xf]
        %v890 = vsel %vm879, %v581, %v889
        %891 = vst [vmem:[%s326 + $0xc] sm:$0xf] %v890
        %892 = vst.msk [vmem:[%s326 + $0x10] sm:$0xf] %vm271, %v590
        %v893 = vld [vmem:[%s326 + $0x14] sm:$0x1]
        %v894 = vsel %vm885, %v591, %v893
        %895 = vst [vmem:[%s326 + $0x14] sm:$0x1] %v894
        %v896 = vld [vmem:[%s326 + $0x18] sm:$0xf]
        %v897 = vsel %vm879, %v598, %v896
        %898 = vst [vmem:[%s326 + $0x18] sm:$0xf] %v897
        %899 = vst.msk [vmem:[%s326 + $0x1c] sm:$0xf] %vm271, %v607
        %v900 = vld [vmem:[%s326 + $0x20] sm:$0x1]
        %v901 = vsel %vm885, %v608, %v900
        %902 = vst [vmem:[%s326 + $0x20] sm:$0x1] %v901
        %v903 = vld [vmem:[%s326 + $0x24] sm:$0xf]
        %v904 = vsel %vm879, %v615, %v903
        %905 = vst [vmem:[%s326 + $0x24] sm:$0xf] %v904
        %906 = vst.msk [vmem:[%s326 + $0x28] sm:$0xf] %vm271, %v624
        %v907 = vld [vmem:[%s326 + $0x2c] sm:$0x1]
        %v908 = vsel %vm885, %v625, %v907
        %909 = vst [vmem:[%s326 + $0x2c] sm:$0x1] %v908
        %v910 = vld [vmem:[%s326 + $0x30] sm:$0xf]
        %v911 = vsel %vm879, %v632, %v910
        %912 = vst [vmem:[%s326 + $0x30] sm:$0xf] %v911
        %913 = vst.msk [vmem:[%s326 + $0x34] sm:$0xf] %vm271, %v641
        %v914 = vld [vmem:[%s326 + $0x38] sm:$0x1]
        %v915 = vsel %vm885, %v642, %v914
        %916 = vst [vmem:[%s326 + $0x38] sm:$0x1] %v915
        %v917 = vld [vmem:[%s326 + $0x3c] sm:$0xf]
        %v918 = vsel %vm879, %v649, %v917
        %919 = vst [vmem:[%s326 + $0x3c] sm:$0xf] %v918
        %920 = vst.msk [vmem:[%s326 + $0x40] sm:$0xf] %vm271, %v658
        %v921 = vld [vmem:[%s326 + $0x44] sm:$0x1]
        %v922 = vsel %vm885, %v659, %v921
        %923 = vst [vmem:[%s326 + $0x44] sm:$0x1] %v922
        %v924 = vld [vmem:[%s326 + $0x48] sm:$0xf]
        %v925 = vsel %vm879, %v666, %v924
        %926 = vst [vmem:[%s326 + $0x48] sm:$0xf] %v925
        %927 = vst.msk [vmem:[%s326 + $0x4c] sm:$0xf] %vm271, %v675
        %v928 = vld [vmem:[%s326 + $0x50] sm:$0x1]
        %v929 = vsel %vm885, %v676, %v928
        %930 = vst [vmem:[%s326 + $0x50] sm:$0x1] %v929
        %v931 = vld [vmem:[%s326 + $0x54] sm:$0xf]
        %v932 = vsel %vm879, %v683, %v931
        %933 = vst [vmem:[%s326 + $0x54] sm:$0xf] %v932
        %934 = vst.msk [vmem:[%s326 + $0x58] sm:$0xf] %vm271, %v692
        %v935 = vld [vmem:[%s326 + $0x5c] sm:$0x1]
        %v936 = vsel %vm885, %v693, %v935
        %937 = vst [vmem:[%s326 + $0x5c] sm:$0x1] %v936
        %v938 = vld [vmem:[%s326 + $0x60] sm:$0xf]
        %v939 = vsel %vm879, %v700, %v938
        %940 = vst [vmem:[%s326 + $0x60] sm:$0xf] %v939
        %941 = vst.msk [vmem:[%s326 + $0x64] sm:$0xf] %vm271, %v709
        %v942 = vld [vmem:[%s326 + $0x68] sm:$0x1]
        %v943 = vsel %vm885, %v710, %v942
        %944 = vst [vmem:[%s326 + $0x68] sm:$0x1] %v943
        %v945 = vld [vmem:[%s326 + $0x6c] sm:$0xf]
        %v946 = vsel %vm879, %v717, %v945
        %947 = vst [vmem:[%s326 + $0x6c] sm:$0xf] %v946
        %948 = vst.msk [vmem:[%s326 + $0x70] sm:$0xf] %vm271, %v726
        %v949 = vld [vmem:[%s326 + $0x74] sm:$0x1]
        %v950 = vsel %vm885, %v727, %v949
        %951 = vst [vmem:[%s326 + $0x74] sm:$0x1] %v950
        %v952 = vld [vmem:[%s326 + $0x78] sm:$0xf]
        %v953 = vsel %vm879, %v734, %v952
        %954 = vst [vmem:[%s326 + $0x78] sm:$0xf] %v953
        %955 = vst.msk [vmem:[%s326 + $0x7c] sm:$0xf] %vm271, %v743
        %v956 = vld [vmem:[%s326 + $0x80] sm:$0x1]
        %v957 = vsel %vm885, %v744, %v956
        %958 = vst [vmem:[%s326 + $0x80] sm:$0x1] %v957
        %v959 = vld [vmem:[%s326 + $0x84] sm:$0xf]
        %v960 = vsel %vm879, %v751, %v959
        %961 = vst [vmem:[%s326 + $0x84] sm:$0xf] %v960
        %962 = vst.msk [vmem:[%s326 + $0x88] sm:$0xf] %vm271, %v760
        %v963 = vld [vmem:[%s326 + $0x8c] sm:$0x1]
        %v964 = vsel %vm885, %v761, %v963
        %965 = vst [vmem:[%s326 + $0x8c] sm:$0x1] %v964
        %v966 = vld [vmem:[%s326 + $0x90] sm:$0xf]
        %v967 = vsel %vm879, %v768, %v966
        %968 = vst [vmem:[%s326 + $0x90] sm:$0xf] %v967
        %969 = vst.msk [vmem:[%s326 + $0x94] sm:$0xf] %vm271, %v777
        %v970 = vld [vmem:[%s326 + $0x98] sm:$0x1]
        %v971 = vsel %vm885, %v778, %v970
        %972 = vst [vmem:[%s326 + $0x98] sm:$0x1] %v971
        %v973 = vld [vmem:[%s326 + $0x9c] sm:$0xf]
        %v974 = vsel %vm879, %v785, %v973
        %975 = vst [vmem:[%s326 + $0x9c] sm:$0xf] %v974
        %976 = vst.msk [vmem:[%s326 + $0xa0] sm:$0xf] %vm271, %v794
        %v977 = vld [vmem:[%s326 + $0xa4] sm:$0x1]
        %v978 = vsel %vm885, %v795, %v977
        %979 = vst [vmem:[%s326 + $0xa4] sm:$0x1] %v978
        %v980 = vld [vmem:[%s326 + $0xa8] sm:$0xf]
        %v981 = vsel %vm879, %v802, %v980
        %982 = vst [vmem:[%s326 + $0xa8] sm:$0xf] %v981
        %983 = vst.msk [vmem:[%s326 + $0xac] sm:$0xf] %vm271, %v811
        %v984 = vld [vmem:[%s326 + $0xb0] sm:$0x1]
        %v985 = vsel %vm885, %v812, %v984
        %986 = vst [vmem:[%s326 + $0xb0] sm:$0x1] %v985
        %v987 = vld [vmem:[%s326 + $0xb4] sm:$0xf]
        %v988 = vsel %vm879, %v819, %v987
        %989 = vst [vmem:[%s326 + $0xb4] sm:$0xf] %v988
        %990 = vst.msk [vmem:[%s326 + $0xb8] sm:$0xf] %vm271, %v828
        %v991 = vld [vmem:[%s326 + $0xbc] sm:$0x1]
        %v992 = vsel %vm885, %v829, %v991
        %993 = vst [vmem:[%s326 + $0xbc] sm:$0x1] %v992
        %994 = vst.msk [vmem:[%s283 + $0x2] sm:$0xff] %vm268, %v428
        %995 = vst.msk [vmem:[%s283 + $0xa] sm:$0xff] %vm268, %v429
        %996 = vst.msk [vmem:[%s283 + $0x1a] sm:$0xff] %vm268, %v430
        %997 = vst.msk [vmem:[%s283 + $0x22] sm:$0xff] %vm268, %v431
        %998 = vst.msk [vmem:[%s283 + $0x32] sm:$0xff] %vm268, %v432
        %999 = vst.msk [vmem:[%s283 + $0x3a] sm:$0xff] %vm268, %v433
        %1000 = vst.msk [vmem:[%s283 + $0x4a] sm:$0xff] %vm268, %v434
        %1001 = vst.msk [vmem:[%s283 + $0x52] sm:$0xff] %vm268, %v435
        %1002 = vst.msk [vmem:[%s283 + $0x62] sm:$0xff] %vm268, %v436
        %1003 = vst.msk [vmem:[%s283 + $0x6a] sm:$0xff] %vm268, %v437
        %1004 = vst.msk [vmem:[%s283 + $0x7a] sm:$0xff] %vm268, %v438
        %1005 = vst.msk [vmem:[%s283 + $0x82] sm:$0xff] %vm268, %v439
        %1006 = vst.msk [vmem:[%s283 + $0x92] sm:$0xff] %vm268, %v440
        %1007 = vst.msk [vmem:[%s283 + $0x9a] sm:$0xff] %vm268, %v441
        %1008 = vst.msk [vmem:[%s283 + $0xaa] sm:$0xff] %vm268, %v442
        %1009 = vst.msk [vmem:[%s283 + $0xb2] sm:$0xff] %vm268, %v443
        %1010 = vst.msk [vmem:[%s283 + $0xc2] sm:$0xff] %vm268, %v444
        %1011 = vst.msk [vmem:[%s283 + $0xca] sm:$0xff] %vm268, %v445
        %1012 = vst.msk [vmem:[%s283 + $0xda] sm:$0xff] %vm268, %v446
        %1013 = vst.msk [vmem:[%s283 + $0xe2] sm:$0xff] %vm268, %v447
        %1014 = vst.msk [vmem:[%s283 + $0xf2] sm:$0xff] %vm268, %v448
        %1015 = vst.msk [vmem:[%s283 + $0xfa] sm:$0xff] %vm268, %v449
        %1016 = vst.msk [vmem:[%s283 + $0x10a] sm:$0xff] %vm268, %v450
        %1017 = vst.msk [vmem:[%s283 + $0x112] sm:$0xff] %vm268, %v451
        %1018 = vst.msk [vmem:[%s283 + $0x122] sm:$0xff] %vm268, %v452
        %1019 = vst.msk [vmem:[%s283 + $0x12a] sm:$0xff] %vm268, %v453
        %1020 = vst.msk [vmem:[%s283 + $0x13a] sm:$0xff] %vm268, %v454
        %1021 = vst.msk [vmem:[%s283 + $0x142] sm:$0xff] %vm268, %v455
        %1022 = vst.msk [vmem:[%s283 + $0x152] sm:$0xff] %vm268, %v456
        %1023 = vst.msk [vmem:[%s283 + $0x15a] sm:$0xff] %vm268, %v457
        %1024 = vst.msk [vmem:[%s283 + $0x16a] sm:$0xff] %vm268, %v458
        %1025 = vst.msk [vmem:[%s283 + $0x172] sm:$0xff] %vm268, %v459
        %v1026 = vld [vmem:[#allocation2] sm:$0xff]
        %v1027 = vld [vmem:[#allocation2 + $0x8] sm:$0xff]
        %v1028 = vld [vmem:[#allocation2 + $0x10] sm:$0xf]
        %v1029 = vld [vmem:[#allocation2 + $0x18] sm:$0xff]
        %v1030 = vld [vmem:[#allocation2 + $0x20] sm:$0xff]
        %v1031 = vld [vmem:[#allocation2 + $0x28] sm:$0xf]
        %v1032 = vld [vmem:[#allocation2 + $0x30] sm:$0xff]
        %v1033 = vld [vmem:[#allocation2 + $0x38] sm:$0xff]
        %v1034 = vld [vmem:[#allocation2 + $0x40] sm:$0xf]
        %v1035 = vld [vmem:[#allocation2 + $0x48] sm:$0xff]
        %v1036 = vld [vmem:[#allocation2 + $0x50] sm:$0xff]
        %v1037 = vld [vmem:[#allocation2 + $0x58] sm:$0xf]
        %v1038 = vld [vmem:[#allocation2 + $0x60] sm:$0xff]
        %v1039 = vld [vmem:[#allocation2 + $0x68] sm:$0xff]
        %v1040 = vld [vmem:[#allocation2 + $0x70] sm:$0xf]
        %v1041 = vld [vmem:[#allocation2 + $0x78] sm:$0xff]
        %v1042 = vld [vmem:[#allocation2 + $0x80] sm:$0xff]
        %v1043 = vld [vmem:[#allocation2 + $0x88] sm:$0xf]
        %v1044 = vld [vmem:[#allocation2 + $0x90] sm:$0xff]
        %v1045 = vld [vmem:[#allocation2 + $0x98] sm:$0xff]
        %v1046 = vld [vmem:[#allocation2 + $0xa0] sm:$0xf]
        %v1047 = vld [vmem:[#allocation2 + $0xa8] sm:$0xff]
        %v1048 = vld [vmem:[#allocation2 + $0xb0] sm:$0xff]
        %v1049 = vld [vmem:[#allocation2 + $0xb8] sm:$0xf]
        %v1050 = vld [vmem:[#allocation2 + $0xc0] sm:$0xff]
        %v1051 = vld [vmem:[#allocation2 + $0xc8] sm:$0xff]
        %v1052 = vld [vmem:[#allocation2 + $0xd0] sm:$0xf]
        %v1053 = vld [vmem:[#allocation2 + $0xd8] sm:$0xff]
        %v1054 = vld [vmem:[#allocation2 + $0xe0] sm:$0xff]
        %v1055 = vld [vmem:[#allocation2 + $0xe8] sm:$0xf]
        %v1056 = vld [vmem:[#allocation2 + $0xf0] sm:$0xff]
        %v1057 = vld [vmem:[#allocation2 + $0xf8] sm:$0xff]
        %v1058 = vld [vmem:[#allocation2 + $0x100] sm:$0xf]
        %v1059 = vld [vmem:[#allocation2 + $0x108] sm:$0xff]
        %v1060 = vld [vmem:[#allocation2 + $0x110] sm:$0xff]
        %v1061 = vld [vmem:[#allocation2 + $0x118] sm:$0xf]
        %v1062 = vld [vmem:[#allocation2 + $0x120] sm:$0xff]
        %v1063 = vld [vmem:[#allocation2 + $0x128] sm:$0xff]
        %v1064 = vld [vmem:[#allocation2 + $0x130] sm:$0xf]
        %v1065 = vld [vmem:[#allocation2 + $0x138] sm:$0xff]
        %v1066 = vld [vmem:[#allocation2 + $0x140] sm:$0xff]
        %v1067 = vld [vmem:[#allocation2 + $0x148] sm:$0xf]
        %v1068 = vld [vmem:[#allocation2 + $0x150] sm:$0xff]
        %v1069 = vld [vmem:[#allocation2 + $0x158] sm:$0xff]
        %v1070 = vld [vmem:[#allocation2 + $0x160] sm:$0xf]
        %v1071 = vld [vmem:[#allocation2 + $0x168] sm:$0xff]
        %v1072 = vld [vmem:[#allocation2 + $0x170] sm:$0xff]
        %v1073 = vld [vmem:[#allocation2 + $0x178] sm:$0xf]
        %s1074 = scalar_lea.vmem [#allocation2], 24
        %v1075 = vld [vmem:[%s1074] sm:$0xff]
        %v1076 = vld [vmem:[%s1074 + $0x8] sm:$0xff]
        %v1077 = vld [vmem:[%s1074 + $0x10] sm:$0xf]
        %v1078 = vld [vmem:[%s1074 + $0x18] sm:$0xff]
        %v1079 = vld [vmem:[%s1074 + $0x20] sm:$0xff]
        %v1080 = vld [vmem:[%s1074 + $0x28] sm:$0xf]
        %v1081 = vld [vmem:[%s1074 + $0x30] sm:$0xff]
        %v1082 = vld [vmem:[%s1074 + $0x38] sm:$0xff]
        %v1083 = vld [vmem:[%s1074 + $0x40] sm:$0xf]
        %v1084 = vld [vmem:[%s1074 + $0x48] sm:$0xff]
        %v1085 = vld [vmem:[%s1074 + $0x50] sm:$0xff]
        %v1086 = vld [vmem:[%s1074 + $0x58] sm:$0xf]
        %v1087 = vld [vmem:[%s1074 + $0x60] sm:$0xff]
        %v1088 = vld [vmem:[%s1074 + $0x68] sm:$0xff]
        %v1089 = vld [vmem:[%s1074 + $0x70] sm:$0xf]
        %v1090 = vld [vmem:[%s1074 + $0x78] sm:$0xff]
        %v1091 = vld [vmem:[%s1074 + $0x80] sm:$0xff]
        %v1092 = vld [vmem:[%s1074 + $0x88] sm:$0xf]
        %v1093 = vld [vmem:[%s1074 + $0x90] sm:$0xff]
        %v1094 = vld [vmem:[%s1074 + $0x98] sm:$0xff]
        %v1095 = vld [vmem:[%s1074 + $0xa0] sm:$0xf]
        %v1096 = vld [vmem:[%s1074 + $0xa8] sm:$0xff]
        %v1097 = vld [vmem:[%s1074 + $0xb0] sm:$0xff]
        %v1098 = vld [vmem:[%s1074 + $0xb8] sm:$0xf]
        %v1099 = vld [vmem:[%s1074 + $0xc0] sm:$0xff]
        %v1100 = vld [vmem:[%s1074 + $0xc8] sm:$0xff]
        %v1101 = vld [vmem:[%s1074 + $0xd0] sm:$0xf]
        %v1102 = vld [vmem:[%s1074 + $0xd8] sm:$0xff]
        %v1103 = vld [vmem:[%s1074 + $0xe0] sm:$0xff]
        %v1104 = vld [vmem:[%s1074 + $0xe8] sm:$0xf]
        %v1105 = vld [vmem:[%s1074 + $0xf0] sm:$0xff]
        %v1106 = vld [vmem:[%s1074 + $0xf8] sm:$0xff]
        %v1107 = vld [vmem:[%s1074 + $0x100] sm:$0xf]
        %v1108 = vld [vmem:[%s1074 + $0x108] sm:$0xff]
        %v1109 = vld [vmem:[%s1074 + $0x110] sm:$0xff]
        %v1110 = vld [vmem:[%s1074 + $0x118] sm:$0xf]
        %v1111 = vld [vmem:[%s1074 + $0x120] sm:$0xff]
        %v1112 = vld [vmem:[%s1074 + $0x128] sm:$0xff]
        %v1113 = vld [vmem:[%s1074 + $0x130] sm:$0xf]
        %v1114 = vld [vmem:[%s1074 + $0x138] sm:$0xff]
        %v1115 = vld [vmem:[%s1074 + $0x140] sm:$0xff]
        %v1116 = vld [vmem:[%s1074 + $0x148] sm:$0xf]
        %v1117 = vld [vmem:[%s1074 + $0x150] sm:$0xff]
        %v1118 = vld [vmem:[%s1074 + $0x158] sm:$0xff]
        %v1119 = vld [vmem:[%s1074 + $0x160] sm:$0xf]
        %v1120 = vld [vmem:[%s1074 + $0x168] sm:$0xff]
        %v1121 = vld [vmem:[%s1074 + $0x170] sm:$0xff]
        %v1122 = vld [vmem:[%s1074 + $0x178] sm:$0xf]
        %v1123 = vmax.f32 %v1026, %v1075
        %v1124 = vmax.f32 %v1027, %v1076
        %v1125 = vmax.f32 %v1028, %v1077
        %v1126 = vmax.f32 %v1029, %v1078
        %v1127 = vmax.f32 %v1030, %v1079
        %v1128 = vmax.f32 %v1031, %v1080
        %v1129 = vmax.f32 %v1032, %v1081
        %v1130 = vmax.f32 %v1033, %v1082
        %v1131 = vmax.f32 %v1034, %v1083
        %v1132 = vmax.f32 %v1035, %v1084
        %v1133 = vmax.f32 %v1036, %v1085
        %v1134 = vmax.f32 %v1037, %v1086
        %v1135 = vmax.f32 %v1038, %v1087
        %v1136 = vmax.f32 %v1039, %v1088
        %v1137 = vmax.f32 %v1040, %v1089
        %v1138 = vmax.f32 %v1041, %v1090
        %v1139 = vmax.f32 %v1042, %v1091
        %v1140 = vmax.f32 %v1043, %v1092
        %v1141 = vmax.f32 %v1044, %v1093
        %v1142 = vmax.f32 %v1045, %v1094
        %v1143 = vmax.f32 %v1046, %v1095
        %v1144 = vmax.f32 %v1047, %v1096
        %v1145 = vmax.f32 %v1048, %v1097
        %v1146 = vmax.f32 %v1049, %v1098
        %v1147 = vmax.f32 %v1050, %v1099
        %v1148 = vmax.f32 %v1051, %v1100
        %v1149 = vmax.f32 %v1052, %v1101
        %v1150 = vmax.f32 %v1053, %v1102
        %v1151 = vmax.f32 %v1054, %v1103
        %v1152 = vmax.f32 %v1055, %v1104
        %v1153 = vmax.f32 %v1056, %v1105
        %v1154 = vmax.f32 %v1057, %v1106
        %v1155 = vmax.f32 %v1058, %v1107
        %v1156 = vmax.f32 %v1059, %v1108
        %v1157 = vmax.f32 %v1060, %v1109
        %v1158 = vmax.f32 %v1061, %v1110
        %v1159 = vmax.f32 %v1062, %v1111
        %v1160 = vmax.f32 %v1063, %v1112
        %v1161 = vmax.f32 %v1064, %v1113
        %v1162 = vmax.f32 %v1065, %v1114
        %v1163 = vmax.f32 %v1066, %v1115
        %v1164 = vmax.f32 %v1067, %v1116
        %v1165 = vmax.f32 %v1068, %v1117
        %v1166 = vmax.f32 %v1069, %v1118
        %v1167 = vmax.f32 %v1070, %v1119
        %v1168 = vmax.f32 %v1071, %v1120
        %v1169 = vmax.f32 %v1072, %v1121
        %v1170 = vmax.f32 %v1073, %v1122
        %v1171 = vld [vmem:[%s283] sm:$0xff]
        %v1172 = vld [vmem:[%s283 + $0x8] sm:$0xff]
        %v1173 = vld [vmem:[%s283 + $0x10] sm:$0xf]
        %v1174 = vld [vmem:[%s283 + $0x18] sm:$0xff]
        %v1175 = vld [vmem:[%s283 + $0x20] sm:$0xff]
        %v1176 = vld [vmem:[%s283 + $0x28] sm:$0xf]
        %v1177 = vld [vmem:[%s283 + $0x30] sm:$0xff]
        %v1178 = vld [vmem:[%s283 + $0x38] sm:$0xff]
        %v1179 = vld [vmem:[%s283 + $0x40] sm:$0xf]
        %v1180 = vld [vmem:[%s283 + $0x48] sm:$0xff]
        %v1181 = vld [vmem:[%s283 + $0x50] sm:$0xff]
        %v1182 = vld [vmem:[%s283 + $0x58] sm:$0xf]
        %v1183 = vld [vmem:[%s283 + $0x60] sm:$0xff]
        %v1184 = vld [vmem:[%s283 + $0x68] sm:$0xff]
        %v1185 = vld [vmem:[%s283 + $0x70] sm:$0xf]
        %v1186 = vld [vmem:[%s283 + $0x78] sm:$0xff]
        %v1187 = vld [vmem:[%s283 + $0x80] sm:$0xff]
        %v1188 = vld [vmem:[%s283 + $0x88] sm:$0xf]
        %v1189 = vld [vmem:[%s283 + $0x90] sm:$0xff]
        %v1190 = vld [vmem:[%s283 + $0x98] sm:$0xff]
        %v1191 = vld [vmem:[%s283 + $0xa0] sm:$0xf]
        %v1192 = vld [vmem:[%s283 + $0xa8] sm:$0xff]
        %v1193 = vld [vmem:[%s283 + $0xb0] sm:$0xff]
        %v1194 = vld [vmem:[%s283 + $0xb8] sm:$0xf]
        %v1195 = vld [vmem:[%s283 + $0xc0] sm:$0xff]
        %v1196 = vld [vmem:[%s283 + $0xc8] sm:$0xff]
        %v1197 = vld [vmem:[%s283 + $0xd0] sm:$0xf]
        %v1198 = vld [vmem:[%s283 + $0xd8] sm:$0xff]
        %v1199 = vld [vmem:[%s283 + $0xe0] sm:$0xff]
        %v1200 = vld [vmem:[%s283 + $0xe8] sm:$0xf]
        %v1201 = vld [vmem:[%s283 + $0xf0] sm:$0xff]
        %v1202 = vld [vmem:[%s283 + $0xf8] sm:$0xff]
        %v1203 = vld [vmem:[%s283 + $0x100] sm:$0xf]
        %v1204 = vld [vmem:[%s283 + $0x108] sm:$0xff]
        %v1205 = vld [vmem:[%s283 + $0x110] sm:$0xff]
        %v1206 = vld [vmem:[%s283 + $0x118] sm:$0xf]
        %v1207 = vld [vmem:[%s283 + $0x120] sm:$0xff]
        %v1208 = vld [vmem:[%s283 + $0x128] sm:$0xff]
        %v1209 = vld [vmem:[%s283 + $0x130] sm:$0xf]
        %v1210 = vld [vmem:[%s283 + $0x138] sm:$0xff]
        %v1211 = vld [vmem:[%s283 + $0x140] sm:$0xff]
        %v1212 = vld [vmem:[%s283 + $0x148] sm:$0xf]
        %v1213 = vld [vmem:[%s283 + $0x150] sm:$0xff]
        %v1214 = vld [vmem:[%s283 + $0x158] sm:$0xff]
        %v1215 = vld [vmem:[%s283 + $0x160] sm:$0xf]
        %v1216 = vld [vmem:[%s283 + $0x168] sm:$0xff]
        %v1217 = vld [vmem:[%s283 + $0x170] sm:$0xff]
        %v1218 = vld [vmem:[%s283 + $0x178] sm:$0xf]
        %v1219 = vmax.f32 %v1123, %v1171
        %v1220 = vmax.f32 %v1124, %v1172
        %v1221 = vmax.f32 %v1125, %v1173
        %v1222 = vmax.f32 %v1126, %v1174
        %v1223 = vmax.f32 %v1127, %v1175
        %v1224 = vmax.f32 %v1128, %v1176
        %v1225 = vmax.f32 %v1129, %v1177
        %v1226 = vmax.f32 %v1130, %v1178
        %v1227 = vmax.f32 %v1131, %v1179
        %v1228 = vmax.f32 %v1132, %v1180
        %v1229 = vmax.f32 %v1133, %v1181
        %v1230 = vmax.f32 %v1134, %v1182
        %v1231 = vmax.f32 %v1135, %v1183
        %v1232 = vmax.f32 %v1136, %v1184
        %v1233 = vmax.f32 %v1137, %v1185
        %v1234 = vmax.f32 %v1138, %v1186
        %v1235 = vmax.f32 %v1139, %v1187
        %v1236 = vmax.f32 %v1140, %v1188
        %v1237 = vmax.f32 %v1141, %v1189
        %v1238 = vmax.f32 %v1142, %v1190
        %v1239 = vmax.f32 %v1143, %v1191
        %v1240 = vmax.f32 %v1144, %v1192
        %v1241 = vmax.f32 %v1145, %v1193
        %v1242 = vmax.f32 %v1146, %v1194
        %v1243 = vmax.f32 %v1147, %v1195
        %v1244 = vmax.f32 %v1148, %v1196
        %v1245 = vmax.f32 %v1149, %v1197
        %v1246 = vmax.f32 %v1150, %v1198
        %v1247 = vmax.f32 %v1151, %v1199
        %v1248 = vmax.f32 %v1152, %v1200
        %v1249 = vmax.f32 %v1153, %v1201
        %v1250 = vmax.f32 %v1154, %v1202
        %v1251 = vmax.f32 %v1155, %v1203
        %v1252 = vmax.f32 %v1156, %v1204
        %v1253 = vmax.f32 %v1157, %v1205
        %v1254 = vmax.f32 %v1158, %v1206
        %v1255 = vmax.f32 %v1159, %v1207
        %v1256 = vmax.f32 %v1160, %v1208
        %v1257 = vmax.f32 %v1161, %v1209
        %v1258 = vmax.f32 %v1162, %v1210
        %v1259 = vmax.f32 %v1163, %v1211
        %v1260 = vmax.f32 %v1164, %v1212
        %v1261 = vmax.f32 %v1165, %v1213
        %v1262 = vmax.f32 %v1166, %v1214
        %v1263 = vmax.f32 %v1167, %v1215
        %v1264 = vmax.f32 %v1168, %v1216
        %v1265 = vmax.f32 %v1169, %v1217
        %v1266 = vmax.f32 %v1170, %v1218
        %s1267 = scalar_lea.vmem [#allocation2], 72
        %v1268 = vld [vmem:[%s1267] sm:$0xff]
        %v1269 = vld [vmem:[%s1267 + $0x8] sm:$0xff]
        %v1270 = vld [vmem:[%s1267 + $0x10] sm:$0xf]
        %v1271 = vld [vmem:[%s1267 + $0x18] sm:$0xff]
        %v1272 = vld [vmem:[%s1267 + $0x20] sm:$0xff]
        %v1273 = vld [vmem:[%s1267 + $0x28] sm:$0xf]
        %v1274 = vld [vmem:[%s1267 + $0x30] sm:$0xff]
        %v1275 = vld [vmem:[%s1267 + $0x38] sm:$0xff]
        %v1276 = vld [vmem:[%s1267 + $0x40] sm:$0xf]
        %v1277 = vld [vmem:[%s1267 + $0x48] sm:$0xff]
        %v1278 = vld [vmem:[%s1267 + $0x50] sm:$0xff]
        %v1279 = vld [vmem:[%s1267 + $0x58] sm:$0xf]
        %v1280 = vld [vmem:[%s1267 + $0x60] sm:$0xff]
        %v1281 = vld [vmem:[%s1267 + $0x68] sm:$0xff]
        %v1282 = vld [vmem:[%s1267 + $0x70] sm:$0xf]
        %v1283 = vld [vmem:[%s1267 + $0x78] sm:$0xff]
        %v1284 = vld [vmem:[%s1267 + $0x80] sm:$0xff]
        %v1285 = vld [vmem:[%s1267 + $0x88] sm:$0xf]
        %v1286 = vld [vmem:[%s1267 + $0x90] sm:$0xff]
        %v1287 = vld [vmem:[%s1267 + $0x98] sm:$0xff]
        %v1288 = vld [vmem:[%s1267 + $0xa0] sm:$0xf]
        %v1289 = vld [vmem:[%s1267 + $0xa8] sm:$0xff]
        %v1290 = vld [vmem:[%s1267 + $0xb0] sm:$0xff]
        %v1291 = vld [vmem:[%s1267 + $0xb8] sm:$0xf]
        %v1292 = vld [vmem:[%s1267 + $0xc0] sm:$0xff]
        %v1293 = vld [vmem:[%s1267 + $0xc8] sm:$0xff]
        %v1294 = vld [vmem:[%s1267 + $0xd0] sm:$0xf]
        %v1295 = vld [vmem:[%s1267 + $0xd8] sm:$0xff]
        %v1296 = vld [vmem:[%s1267 + $0xe0] sm:$0xff]
        %v1297 = vld [vmem:[%s1267 + $0xe8] sm:$0xf]
        %v1298 = vld [vmem:[%s1267 + $0xf0] sm:$0xff]
        %v1299 = vld [vmem:[%s1267 + $0xf8] sm:$0xff]
        %v1300 = vld [vmem:[%s1267 + $0x100] sm:$0xf]
        %v1301 = vld [vmem:[%s1267 + $0x108] sm:$0xff]
        %v1302 = vld [vmem:[%s1267 + $0x110] sm:$0xff]
        %v1303 = vld [vmem:[%s1267 + $0x118] sm:$0xf]
        %v1304 = vld [vmem:[%s1267 + $0x120] sm:$0xff]
        %v1305 = vld [vmem:[%s1267 + $0x128] sm:$0xff]
        %v1306 = vld [vmem:[%s1267 + $0x130] sm:$0xf]
        %v1307 = vld [vmem:[%s1267 + $0x138] sm:$0xff]
        %v1308 = vld [vmem:[%s1267 + $0x140] sm:$0xff]
        %v1309 = vld [vmem:[%s1267 + $0x148] sm:$0xf]
        %v1310 = vld [vmem:[%s1267 + $0x150] sm:$0xff]
        %v1311 = vld [vmem:[%s1267 + $0x158] sm:$0xff]
        %v1312 = vld [vmem:[%s1267 + $0x160] sm:$0xf]
        %v1313 = vld [vmem:[%s1267 + $0x168] sm:$0xff]
        %v1314 = vld [vmem:[%s1267 + $0x170] sm:$0xff]
        %v1315 = vld [vmem:[%s1267 + $0x178] sm:$0xf]
        %v1316 = vmax.f32 %v1219, %v1268
        %v1317 = vmax.f32 %v1220, %v1269
        %v1318 = vmax.f32 %v1221, %v1270
        %v1319 = vmax.f32 %v1222, %v1271
        %v1320 = vmax.f32 %v1223, %v1272
        %v1321 = vmax.f32 %v1224, %v1273
        %v1322 = vmax.f32 %v1225, %v1274
        %v1323 = vmax.f32 %v1226, %v1275
        %v1324 = vmax.f32 %v1227, %v1276
        %v1325 = vmax.f32 %v1228, %v1277
        %v1326 = vmax.f32 %v1229, %v1278
        %v1327 = vmax.f32 %v1230, %v1279
        %v1328 = vmax.f32 %v1231, %v1280
        %v1329 = vmax.f32 %v1232, %v1281
        %v1330 = vmax.f32 %v1233, %v1282
        %v1331 = vmax.f32 %v1234, %v1283
        %v1332 = vmax.f32 %v1235, %v1284
        %v1333 = vmax.f32 %v1236, %v1285
        %v1334 = vmax.f32 %v1237, %v1286
        %v1335 = vmax.f32 %v1238, %v1287
        %v1336 = vmax.f32 %v1239, %v1288
        %v1337 = vmax.f32 %v1240, %v1289
        %v1338 = vmax.f32 %v1241, %v1290
        %v1339 = vmax.f32 %v1242, %v1291
        %v1340 = vmax.f32 %v1243, %v1292
        %v1341 = vmax.f32 %v1244, %v1293
        %v1342 = vmax.f32 %v1245, %v1294
        %v1343 = vmax.f32 %v1246, %v1295
        %v1344 = vmax.f32 %v1247, %v1296
        %v1345 = vmax.f32 %v1248, %v1297
        %v1346 = vmax.f32 %v1249, %v1298
        %v1347 = vmax.f32 %v1250, %v1299
        %v1348 = vmax.f32 %v1251, %v1300
        %v1349 = vmax.f32 %v1252, %v1301
        %v1350 = vmax.f32 %v1253, %v1302
        %v1351 = vmax.f32 %v1254, %v1303
        %v1352 = vmax.f32 %v1255, %v1304
        %v1353 = vmax.f32 %v1256, %v1305
        %v1354 = vmax.f32 %v1257, %v1306
        %v1355 = vmax.f32 %v1258, %v1307
        %v1356 = vmax.f32 %v1259, %v1308
        %v1357 = vmax.f32 %v1260, %v1309
        %v1358 = vmax.f32 %v1261, %v1310
        %v1359 = vmax.f32 %v1262, %v1311
        %v1360 = vmax.f32 %v1263, %v1312
        %v1361 = vmax.f32 %v1264, %v1313
        %v1362 = vmax.f32 %v1265, %v1314
        %v1363 = vmax.f32 %v1266, %v1315
        %s1364 = scalar_lea.vmem [#allocation2], 96
        %v1365 = vld [vmem:[%s1364] sm:$0xff]
        %v1366 = vld [vmem:[%s1364 + $0x8] sm:$0xff]
        %v1367 = vld [vmem:[%s1364 + $0x10] sm:$0xf]
        %v1368 = vld [vmem:[%s1364 + $0x18] sm:$0xff]
        %v1369 = vld [vmem:[%s1364 + $0x20] sm:$0xff]
        %v1370 = vld [vmem:[%s1364 + $0x28] sm:$0xf]
        %v1371 = vld [vmem:[%s1364 + $0x30] sm:$0xff]
        %v1372 = vld [vmem:[%s1364 + $0x38] sm:$0xff]
        %v1373 = vld [vmem:[%s1364 + $0x40] sm:$0xf]
        %v1374 = vld [vmem:[%s1364 + $0x48] sm:$0xff]
        %v1375 = vld [vmem:[%s1364 + $0x50] sm:$0xff]
        %v1376 = vld [vmem:[%s1364 + $0x58] sm:$0xf]
        %v1377 = vld [vmem:[%s1364 + $0x60] sm:$0xff]
        %v1378 = vld [vmem:[%s1364 + $0x68] sm:$0xff]
        %v1379 = vld [vmem:[%s1364 + $0x70] sm:$0xf]
        %v1380 = vld [vmem:[%s1364 + $0x78] sm:$0xff]
        %v1381 = vld [vmem:[%s1364 + $0x80] sm:$0xff]
        %v1382 = vld [vmem:[%s1364 + $0x88] sm:$0xf]
        %v1383 = vld [vmem:[%s1364 + $0x90] sm:$0xff]
        %v1384 = vld [vmem:[%s1364 + $0x98] sm:$0xff]
        %v1385 = vld [vmem:[%s1364 + $0xa0] sm:$0xf]
        %v1386 = vld [vmem:[%s1364 + $0xa8] sm:$0xff]
        %v1387 = vld [vmem:[%s1364 + $0xb0] sm:$0xff]
        %v1388 = vld [vmem:[%s1364 + $0xb8] sm:$0xf]
        %v1389 = vld [vmem:[%s1364 + $0xc0] sm:$0xff]
        %v1390 = vld [vmem:[%s1364 + $0xc8] sm:$0xff]
        %v1391 = vld [vmem:[%s1364 + $0xd0] sm:$0xf]
        %v1392 = vld [vmem:[%s1364 + $0xd8] sm:$0xff]
        %v1393 = vld [vmem:[%s1364 + $0xe0] sm:$0xff]
        %v1394 = vld [vmem:[%s1364 + $0xe8] sm:$0xf]
        %v1395 = vld [vmem:[%s1364 + $0xf0] sm:$0xff]
        %v1396 = vld [vmem:[%s1364 + $0xf8] sm:$0xff]
        %v1397 = vld [vmem:[%s1364 + $0x100] sm:$0xf]
        %v1398 = vld [vmem:[%s1364 + $0x108] sm:$0xff]
        %v1399 = vld [vmem:[%s1364 + $0x110] sm:$0xff]
        %v1400 = vld [vmem:[%s1364 + $0x118] sm:$0xf]
        %v1401 = vld [vmem:[%s1364 + $0x120] sm:$0xff]
        %v1402 = vld [vmem:[%s1364 + $0x128] sm:$0xff]
        %v1403 = vld [vmem:[%s1364 + $0x130] sm:$0xf]
        %v1404 = vld [vmem:[%s1364 + $0x138] sm:$0xff]
        %v1405 = vld [vmem:[%s1364 + $0x140] sm:$0xff]
        %v1406 = vld [vmem:[%s1364 + $0x148] sm:$0xf]
        %v1407 = vld [vmem:[%s1364 + $0x150] sm:$0xff]
        %v1408 = vld [vmem:[%s1364 + $0x158] sm:$0xff]
        %v1409 = vld [vmem:[%s1364 + $0x160] sm:$0xf]
        %v1410 = vld [vmem:[%s1364 + $0x168] sm:$0xff]
        %v1411 = vld [vmem:[%s1364 + $0x170] sm:$0xff]
        %v1412 = vld [vmem:[%s1364 + $0x178] sm:$0xf]
        %v1413 = vmax.f32 %v1316, %v1365
        %v1414 = vmax.f32 %v1317, %v1366
        %v1415 = vmax.f32 %v1318, %v1367
        %v1416 = vmax.f32 %v1319, %v1368
        %v1417 = vmax.f32 %v1320, %v1369
        %v1418 = vmax.f32 %v1321, %v1370
        %v1419 = vmax.f32 %v1322, %v1371
        %v1420 = vmax.f32 %v1323, %v1372
        %v1421 = vmax.f32 %v1324, %v1373
        %v1422 = vmax.f32 %v1325, %v1374
        %v1423 = vmax.f32 %v1326, %v1375
        %v1424 = vmax.f32 %v1327, %v1376
        %v1425 = vmax.f32 %v1328, %v1377
        %v1426 = vmax.f32 %v1329, %v1378
        %v1427 = vmax.f32 %v1330, %v1379
        %v1428 = vmax.f32 %v1331, %v1380
        %v1429 = vmax.f32 %v1332, %v1381
        %v1430 = vmax.f32 %v1333, %v1382
        %v1431 = vmax.f32 %v1334, %v1383
        %v1432 = vmax.f32 %v1335, %v1384
        %v1433 = vmax.f32 %v1336, %v1385
        %v1434 = vmax.f32 %v1337, %v1386
        %v1435 = vmax.f32 %v1338, %v1387
        %v1436 = vmax.f32 %v1339, %v1388
        %v1437 = vmax.f32 %v1340, %v1389
        %v1438 = vmax.f32 %v1341, %v1390
        %v1439 = vmax.f32 %v1342, %v1391
        %v1440 = vmax.f32 %v1343, %v1392
        %v1441 = vmax.f32 %v1344, %v1393
        %v1442 = vmax.f32 %v1345, %v1394
        %v1443 = vmax.f32 %v1346, %v1395
        %v1444 = vmax.f32 %v1347, %v1396
        %v1445 = vmax.f32 %v1348, %v1397
        %v1446 = vmax.f32 %v1349, %v1398
        %v1447 = vmax.f32 %v1350, %v1399
        %v1448 = vmax.f32 %v1351, %v1400
        %v1449 = vmax.f32 %v1352, %v1401
        %v1450 = vmax.f32 %v1353, %v1402
        %v1451 = vmax.f32 %v1354, %v1403
        %v1452 = vmax.f32 %v1355, %v1404
        %v1453 = vmax.f32 %v1356, %v1405
        %v1454 = vmax.f32 %v1357, %v1406
        %v1455 = vmax.f32 %v1358, %v1407
        %v1456 = vmax.f32 %v1359, %v1408
        %v1457 = vmax.f32 %v1360, %v1409
        %v1458 = vmax.f32 %v1361, %v1410
        %v1459 = vmax.f32 %v1362, %v1411
        %v1460 = vmax.f32 %v1363, %v1412
        %vm1509 = vcmask 1046528
        %v1510 = vrot.slane %v1413, 1
        %v1511 = vrot.slane %v1414, 1
        %v1512 = vsel %vm1509, %v1510, %v1511
        %v1513 = vrot.slane %v1415, 1
        %v1514 = vsel %vm1509, %v1511, %v1513
        %v1515 = vrot.slane %v1416, 1
        %v1516 = vrot.slane %v1417, 1
        %v1517 = vsel %vm1509, %v1515, %v1516
        %v1518 = vrot.slane %v1418, 1
        %v1519 = vsel %vm1509, %v1516, %v1518
        %v1520 = vrot.slane %v1419, 1
        %v1521 = vrot.slane %v1420, 1
        %v1522 = vsel %vm1509, %v1520, %v1521
        %v1523 = vrot.slane %v1421, 1
        %v1524 = vsel %vm1509, %v1521, %v1523
        %v1525 = vrot.slane %v1422, 1
        %v1526 = vrot.slane %v1423, 1
        %v1527 = vsel %vm1509, %v1525, %v1526
        %v1528 = vrot.slane %v1424, 1
        %v1529 = vsel %vm1509, %v1526, %v1528
        %v1530 = vrot.slane %v1425, 1
        %v1531 = vrot.slane %v1426, 1
        %v1532 = vsel %vm1509, %v1530, %v1531
        %v1533 = vrot.slane %v1427, 1
        %v1534 = vsel %vm1509, %v1531, %v1533
        %v1535 = vrot.slane %v1428, 1
        %v1536 = vrot.slane %v1429, 1
        %v1537 = vsel %vm1509, %v1535, %v1536
        %v1538 = vrot.slane %v1430, 1
        %v1539 = vsel %vm1509, %v1536, %v1538
        %v1540 = vrot.slane %v1431, 1
        %v1541 = vrot.slane %v1432, 1
        %v1542 = vsel %vm1509, %v1540, %v1541
        %v1543 = vrot.slane %v1433, 1
        %v1544 = vsel %vm1509, %v1541, %v1543
        %v1545 = vrot.slane %v1434, 1
        %v1546 = vrot.slane %v1435, 1
        %v1547 = vsel %vm1509, %v1545, %v1546
        %v1548 = vrot.slane %v1436, 1
        %v1549 = vsel %vm1509, %v1546, %v1548
        %v1550 = vrot.slane %v1437, 1
        %v1551 = vrot.slane %v1438, 1
        %v1552 = vsel %vm1509, %v1550, %v1551
        %v1553 = vrot.slane %v1439, 1
        %v1554 = vsel %vm1509, %v1551, %v1553
        %v1555 = vrot.slane %v1440, 1
        %v1556 = vrot.slane %v1441, 1
        %v1557 = vsel %vm1509, %v1555, %v1556
        %v1558 = vrot.slane %v1442, 1
        %v1559 = vsel %vm1509, %v1556, %v1558
        %v1560 = vrot.slane %v1443, 1
        %v1561 = vrot.slane %v1444, 1
        %v1562 = vsel %vm1509, %v1560, %v1561
        %v1563 = vrot.slane %v1445, 1
        %v1564 = vsel %vm1509, %v1561, %v1563
        %v1565 = vrot.slane %v1446, 1
        %v1566 = vrot.slane %v1447, 1
        %v1567 = vsel %vm1509, %v1565, %v1566
        %v1568 = vrot.slane %v1448, 1
        %v1569 = vsel %vm1509, %v1566, %v1568
        %v1570 = vrot.slane %v1449, 1
        %v1571 = vrot.slane %v1450, 1
        %v1572 = vsel %vm1509, %v1570, %v1571
        %v1573 = vrot.slane %v1451, 1
        %v1574 = vsel %vm1509, %v1571, %v1573
        %v1575 = vrot.slane %v1452, 1
        %v1576 = vrot.slane %v1453, 1
        %v1577 = vsel %vm1509, %v1575, %v1576
        %v1578 = vrot.slane %v1454, 1
        %v1579 = vsel %vm1509, %v1576, %v1578
        %v1580 = vrot.slane %v1455, 1
        %v1581 = vrot.slane %v1456, 1
        %v1582 = vsel %vm1509, %v1580, %v1581
        %v1583 = vrot.slane %v1457, 1
        %v1584 = vsel %vm1509, %v1581, %v1583
        %v1585 = vrot.slane %v1458, 1
        %v1586 = vrot.slane %v1459, 1
        %v1587 = vsel %vm1509, %v1585, %v1586
        %v1588 = vrot.slane %v1460, 1
        %v1589 = vsel %vm1509, %v1586, %v1588
        %v1622 = vmax.f32 %v1413, %v1512
        %v1623 = vmax.f32 %v1414, %v1514
        %v1624 = vmax.f32 %v1416, %v1517
        %v1625 = vmax.f32 %v1417, %v1519
        %v1626 = vmax.f32 %v1419, %v1522
        %v1627 = vmax.f32 %v1420, %v1524
        %v1628 = vmax.f32 %v1422, %v1527
        %v1629 = vmax.f32 %v1423, %v1529
        %v1630 = vmax.f32 %v1425, %v1532
        %v1631 = vmax.f32 %v1426, %v1534
        %v1632 = vmax.f32 %v1428, %v1537
        %v1633 = vmax.f32 %v1429, %v1539
        %v1634 = vmax.f32 %v1431, %v1542
        %v1635 = vmax.f32 %v1432, %v1544
        %v1636 = vmax.f32 %v1434, %v1547
        %v1637 = vmax.f32 %v1435, %v1549
        %v1638 = vmax.f32 %v1437, %v1552
        %v1639 = vmax.f32 %v1438, %v1554
        %v1640 = vmax.f32 %v1440, %v1557
        %v1641 = vmax.f32 %v1441, %v1559
        %v1642 = vmax.f32 %v1443, %v1562
        %v1643 = vmax.f32 %v1444, %v1564
        %v1644 = vmax.f32 %v1446, %v1567
        %v1645 = vmax.f32 %v1447, %v1569
        %v1646 = vmax.f32 %v1449, %v1572
        %v1647 = vmax.f32 %v1450, %v1574
        %v1648 = vmax.f32 %v1452, %v1577
        %v1649 = vmax.f32 %v1453, %v1579
        %v1650 = vmax.f32 %v1455, %v1582
        %v1651 = vmax.f32 %v1456, %v1584
        %v1652 = vmax.f32 %v1458, %v1587
        %v1653 = vmax.f32 %v1459, %v1589
        %vm1654 = vcmask 1045504
        %v1655 = vrot.slane %v1413, 2
        %v1656 = vrot.slane %v1414, 2
        %v1657 = vsel %vm1654, %v1655, %v1656
        %v1658 = vrot.slane %v1415, 2
        %v1659 = vsel %vm1654, %v1656, %v1658
        %v1660 = vrot.slane %v1416, 2
        %v1661 = vrot.slane %v1417, 2
        %v1662 = vsel %vm1654, %v1660, %v1661
        %v1663 = vrot.slane %v1418, 2
        %v1664 = vsel %vm1654, %v1661, %v1663
        %v1665 = vrot.slane %v1419, 2
        %v1666 = vrot.slane %v1420, 2
        %v1667 = vsel %vm1654, %v1665, %v1666
        %v1668 = vrot.slane %v1421, 2
        %v1669 = vsel %vm1654, %v1666, %v1668
        %v1670 = vrot.slane %v1422, 2
        %v1671 = vrot.slane %v1423, 2
        %v1672 = vsel %vm1654, %v1670, %v1671
        %v1673 = vrot.slane %v1424, 2
        %v1674 = vsel %vm1654, %v1671, %v1673
        %v1675 = vrot.slane %v1425, 2
        %v1676 = vrot.slane %v1426, 2
        %v1677 = vsel %vm1654, %v1675, %v1676
        %v1678 = vrot.slane %v1427, 2
        %v1679 = vsel %vm1654, %v1676, %v1678
        %v1680 = vrot.slane %v1428, 2
        %v1681 = vrot.slane %v1429, 2
        %v1682 = vsel %vm1654, %v1680, %v1681
        %v1683 = vrot.slane %v1430, 2
        %v1684 = vsel %vm1654, %v1681, %v1683
        %v1685 = vrot.slane %v1431, 2
        %v1686 = vrot.slane %v1432, 2
        %v1687 = vsel %vm1654, %v1685, %v1686
        %v1688 = vrot.slane %v1433, 2
        %v1689 = vsel %vm1654, %v1686, %v1688
        %v1690 = vrot.slane %v1434, 2
        %v1691 = vrot.slane %v1435, 2
        %v1692 = vsel %vm1654, %v1690, %v1691
        %v1693 = vrot.slane %v1436, 2
        %v1694 = vsel %vm1654, %v1691, %v1693
        %v1695 = vrot.slane %v1437, 2
        %v1696 = vrot.slane %v1438, 2
        %v1697 = vsel %vm1654, %v1695, %v1696
        %v1698 = vrot.slane %v1439, 2
        %v1699 = vsel %vm1654, %v1696, %v1698
        %v1700 = vrot.slane %v1440, 2
        %v1701 = vrot.slane %v1441, 2
        %v1702 = vsel %vm1654, %v1700, %v1701
        %v1703 = vrot.slane %v1442, 2
        %v1704 = vsel %vm1654, %v1701, %v1703
        %v1705 = vrot.slane %v1443, 2
        %v1706 = vrot.slane %v1444, 2
        %v1707 = vsel %vm1654, %v1705, %v1706
        %v1708 = vrot.slane %v1445, 2
        %v1709 = vsel %vm1654, %v1706, %v1708
        %v1710 = vrot.slane %v1446, 2
        %v1711 = vrot.slane %v1447, 2
        %v1712 = vsel %vm1654, %v1710, %v1711
        %v1713 = vrot.slane %v1448, 2
        %v1714 = vsel %vm1654, %v1711, %v1713
        %v1715 = vrot.slane %v1449, 2
        %v1716 = vrot.slane %v1450, 2
        %v1717 = vsel %vm1654, %v1715, %v1716
        %v1718 = vrot.slane %v1451, 2
        %v1719 = vsel %vm1654, %v1716, %v1718
        %v1720 = vrot.slane %v1452, 2
        %v1721 = vrot.slane %v1453, 2
        %v1722 = vsel %vm1654, %v1720, %v1721
        %v1723 = vrot.slane %v1454, 2
        %v1724 = vsel %vm1654, %v1721, %v1723
        %v1725 = vrot.slane %v1455, 2
        %v1726 = vrot.slane %v1456, 2
        %v1727 = vsel %vm1654, %v1725, %v1726
        %v1728 = vrot.slane %v1457, 2
        %v1729 = vsel %vm1654, %v1726, %v1728
        %v1730 = vrot.slane %v1458, 2
        %v1731 = vrot.slane %v1459, 2
        %v1732 = vsel %vm1654, %v1730, %v1731
        %v1733 = vrot.slane %v1460, 2
        %v1734 = vsel %vm1654, %v1731, %v1733
        %v1767 = vmax.f32 %v1622, %v1657
        %v1768 = vmax.f32 %v1623, %v1659
        %v1769 = vmax.f32 %v1624, %v1662
        %v1770 = vmax.f32 %v1625, %v1664
        %v1771 = vmax.f32 %v1626, %v1667
        %v1772 = vmax.f32 %v1627, %v1669
        %v1773 = vmax.f32 %v1628, %v1672
        %v1774 = vmax.f32 %v1629, %v1674
        %v1775 = vmax.f32 %v1630, %v1677
        %v1776 = vmax.f32 %v1631, %v1679
        %v1777 = vmax.f32 %v1632, %v1682
        %v1778 = vmax.f32 %v1633, %v1684
        %v1779 = vmax.f32 %v1634, %v1687
        %v1780 = vmax.f32 %v1635, %v1689
        %v1781 = vmax.f32 %v1636, %v1692
        %v1782 = vmax.f32 %v1637, %v1694
        %v1783 = vmax.f32 %v1638, %v1697
        %v1784 = vmax.f32 %v1639, %v1699
        %v1785 = vmax.f32 %v1640, %v1702
        %v1786 = vmax.f32 %v1641, %v1704
        %v1787 = vmax.f32 %v1642, %v1707
        %v1788 = vmax.f32 %v1643, %v1709
        %v1789 = vmax.f32 %v1644, %v1712
        %v1790 = vmax.f32 %v1645, %v1714
        %v1791 = vmax.f32 %v1646, %v1717
        %v1792 = vmax.f32 %v1647, %v1719
        %v1793 = vmax.f32 %v1648, %v1722
        %v1794 = vmax.f32 %v1649, %v1724
        %v1795 = vmax.f32 %v1650, %v1727
        %v1796 = vmax.f32 %v1651, %v1729
        %v1797 = vmax.f32 %v1652, %v1732
        %v1798 = vmax.f32 %v1653, %v1734
        %vm1799 = vcmask 1044480
        %v1800 = vrot.slane %v1413, 3
        %v1801 = vrot.slane %v1414, 3
        %v1802 = vsel %vm1799, %v1800, %v1801
        %v1803 = vrot.slane %v1415, 3
        %v1804 = vsel %vm1799, %v1801, %v1803
        %v1805 = vrot.slane %v1416, 3
        %v1806 = vrot.slane %v1417, 3
        %v1807 = vsel %vm1799, %v1805, %v1806
        %v1808 = vrot.slane %v1418, 3
        %v1809 = vsel %vm1799, %v1806, %v1808
        %v1810 = vrot.slane %v1419, 3
        %v1811 = vrot.slane %v1420, 3
        %v1812 = vsel %vm1799, %v1810, %v1811
        %v1813 = vrot.slane %v1421, 3
        %v1814 = vsel %vm1799, %v1811, %v1813
        %v1815 = vrot.slane %v1422, 3
        %v1816 = vrot.slane %v1423, 3
        %v1817 = vsel %vm1799, %v1815, %v1816
        %v1818 = vrot.slane %v1424, 3
        %v1819 = vsel %vm1799, %v1816, %v1818
        %v1820 = vrot.slane %v1425, 3
        %v1821 = vrot.slane %v1426, 3
        %v1822 = vsel %vm1799, %v1820, %v1821
        %v1823 = vrot.slane %v1427, 3
        %v1824 = vsel %vm1799, %v1821, %v1823
        %v1825 = vrot.slane %v1428, 3
        %v1826 = vrot.slane %v1429, 3
        %v1827 = vsel %vm1799, %v1825, %v1826
        %v1828 = vrot.slane %v1430, 3
        %v1829 = vsel %vm1799, %v1826, %v1828
        %v1830 = vrot.slane %v1431, 3
        %v1831 = vrot.slane %v1432, 3
        %v1832 = vsel %vm1799, %v1830, %v1831
        %v1833 = vrot.slane %v1433, 3
        %v1834 = vsel %vm1799, %v1831, %v1833
        %v1835 = vrot.slane %v1434, 3
        %v1836 = vrot.slane %v1435, 3
        %v1837 = vsel %vm1799, %v1835, %v1836
        %v1838 = vrot.slane %v1436, 3
        %v1839 = vsel %vm1799, %v1836, %v1838
        %v1840 = vrot.slane %v1437, 3
        %v1841 = vrot.slane %v1438, 3
        %v1842 = vsel %vm1799, %v1840, %v1841
        %v1843 = vrot.slane %v1439, 3
        %v1844 = vsel %vm1799, %v1841, %v1843
        %v1845 = vrot.slane %v1440, 3
        %v1846 = vrot.slane %v1441, 3
        %v1847 = vsel %vm1799, %v1845, %v1846
        %v1848 = vrot.slane %v1442, 3
        %v1849 = vsel %vm1799, %v1846, %v1848
        %v1850 = vrot.slane %v1443, 3
        %v1851 = vrot.slane %v1444, 3
        %v1852 = vsel %vm1799, %v1850, %v1851
        %v1853 = vrot.slane %v1445, 3
        %v1854 = vsel %vm1799, %v1851, %v1853
        %v1855 = vrot.slane %v1446, 3
        %v1856 = vrot.slane %v1447, 3
        %v1857 = vsel %vm1799, %v1855, %v1856
        %v1858 = vrot.slane %v1448, 3
        %v1859 = vsel %vm1799, %v1856, %v1858
        %v1860 = vrot.slane %v1449, 3
        %v1861 = vrot.slane %v1450, 3
        %v1862 = vsel %vm1799, %v1860, %v1861
        %v1863 = vrot.slane %v1451, 3
        %v1864 = vsel %vm1799, %v1861, %v1863
        %v1865 = vrot.slane %v1452, 3
        %v1866 = vrot.slane %v1453, 3
        %v1867 = vsel %vm1799, %v1865, %v1866
        %v1868 = vrot.slane %v1454, 3
        %v1869 = vsel %vm1799, %v1866, %v1868
        %v1870 = vrot.slane %v1455, 3
        %v1871 = vrot.slane %v1456, 3
        %v1872 = vsel %vm1799, %v1870, %v1871
        %v1873 = vrot.slane %v1457, 3
        %v1874 = vsel %vm1799, %v1871, %v1873
        %v1875 = vrot.slane %v1458, 3
        %v1876 = vrot.slane %v1459, 3
        %v1877 = vsel %vm1799, %v1875, %v1876
        %v1878 = vrot.slane %v1460, 3
        %v1879 = vsel %vm1799, %v1876, %v1878
        %v1912 = vmax.f32 %v1767, %v1802
        %v1913 = vmax.f32 %v1768, %v1804
        %v1914 = vmax.f32 %v1769, %v1807
        %v1915 = vmax.f32 %v1770, %v1809
        %v1916 = vmax.f32 %v1771, %v1812
        %v1917 = vmax.f32 %v1772, %v1814
        %v1918 = vmax.f32 %v1773, %v1817
        %v1919 = vmax.f32 %v1774, %v1819
        %v1920 = vmax.f32 %v1775, %v1822
        %v1921 = vmax.f32 %v1776, %v1824
        %v1922 = vmax.f32 %v1777, %v1827
        %v1923 = vmax.f32 %v1778, %v1829
        %v1924 = vmax.f32 %v1779, %v1832
        %v1925 = vmax.f32 %v1780, %v1834
        %v1926 = vmax.f32 %v1781, %v1837
        %v1927 = vmax.f32 %v1782, %v1839
        %v1928 = vmax.f32 %v1783, %v1842
        %v1929 = vmax.f32 %v1784, %v1844
        %v1930 = vmax.f32 %v1785, %v1847
        %v1931 = vmax.f32 %v1786, %v1849
        %v1932 = vmax.f32 %v1787, %v1852
        %v1933 = vmax.f32 %v1788, %v1854
        %v1934 = vmax.f32 %v1789, %v1857
        %v1935 = vmax.f32 %v1790, %v1859
        %v1936 = vmax.f32 %v1791, %v1862
        %v1937 = vmax.f32 %v1792, %v1864
        %v1938 = vmax.f32 %v1793, %v1867
        %v1939 = vmax.f32 %v1794, %v1869
        %v1940 = vmax.f32 %v1795, %v1872
        %v1941 = vmax.f32 %v1796, %v1874
        %v1942 = vmax.f32 %v1797, %v1877
        %v1943 = vmax.f32 %v1798, %v1879
        %vm1944 = vcmask 1043456
        %v1945 = vrot.slane %v1413, 4
        %v1946 = vrot.slane %v1414, 4
        %v1947 = vsel %vm1944, %v1945, %v1946
        %v1948 = vrot.slane %v1415, 4
        %v1949 = vsel %vm1944, %v1946, %v1948
        %v1950 = vrot.slane %v1416, 4
        %v1951 = vrot.slane %v1417, 4
        %v1952 = vsel %vm1944, %v1950, %v1951
        %v1953 = vrot.slane %v1418, 4
        %v1954 = vsel %vm1944, %v1951, %v1953
        %v1955 = vrot.slane %v1419, 4
        %v1956 = vrot.slane %v1420, 4
        %v1957 = vsel %vm1944, %v1955, %v1956
        %v1958 = vrot.slane %v1421, 4
        %v1959 = vsel %vm1944, %v1956, %v1958
        %v1960 = vrot.slane %v1422, 4
        %v1961 = vrot.slane %v1423, 4
        %v1962 = vsel %vm1944, %v1960, %v1961
        %v1963 = vrot.slane %v1424, 4
        %v1964 = vsel %vm1944, %v1961, %v1963
        %v1965 = vrot.slane %v1425, 4
        %v1966 = vrot.slane %v1426, 4
        %v1967 = vsel %vm1944, %v1965, %v1966
        %v1968 = vrot.slane %v1427, 4
        %v1969 = vsel %vm1944, %v1966, %v1968
        %v1970 = vrot.slane %v1428, 4
        %v1971 = vrot.slane %v1429, 4
        %v1972 = vsel %vm1944, %v1970, %v1971
        %v1973 = vrot.slane %v1430, 4
        %v1974 = vsel %vm1944, %v1971, %v1973
        %v1975 = vrot.slane %v1431, 4
        %v1976 = vrot.slane %v1432, 4
        %v1977 = vsel %vm1944, %v1975, %v1976
        %v1978 = vrot.slane %v1433, 4
        %v1979 = vsel %vm1944, %v1976, %v1978
        %v1980 = vrot.slane %v1434, 4
        %v1981 = vrot.slane %v1435, 4
        %v1982 = vsel %vm1944, %v1980, %v1981
        %v1983 = vrot.slane %v1436, 4
        %v1984 = vsel %vm1944, %v1981, %v1983
        %v1985 = vrot.slane %v1437, 4
        %v1986 = vrot.slane %v1438, 4
        %v1987 = vsel %vm1944, %v1985, %v1986
        %v1988 = vrot.slane %v1439, 4
        %v1989 = vsel %vm1944, %v1986, %v1988
        %v1990 = vrot.slane %v1440, 4
        %v1991 = vrot.slane %v1441, 4
        %v1992 = vsel %vm1944, %v1990, %v1991
        %v1993 = vrot.slane %v1442, 4
        %v1994 = vsel %vm1944, %v1991, %v1993
        %v1995 = vrot.slane %v1443, 4
        %v1996 = vrot.slane %v1444, 4
        %v1997 = vsel %vm1944, %v1995, %v1996
        %v1998 = vrot.slane %v1445, 4
        %v1999 = vsel %vm1944, %v1996, %v1998
        %v2000 = vrot.slane %v1446, 4
        %v2001 = vrot.slane %v1447, 4
        %v2002 = vsel %vm1944, %v2000, %v2001
        %v2003 = vrot.slane %v1448, 4
        %v2004 = vsel %vm1944, %v2001, %v2003
        %v2005 = vrot.slane %v1449, 4
        %v2006 = vrot.slane %v1450, 4
        %v2007 = vsel %vm1944, %v2005, %v2006
        %v2008 = vrot.slane %v1451, 4
        %v2009 = vsel %vm1944, %v2006, %v2008
        %v2010 = vrot.slane %v1452, 4
        %v2011 = vrot.slane %v1453, 4
        %v2012 = vsel %vm1944, %v2010, %v2011
        %v2013 = vrot.slane %v1454, 4
        %v2014 = vsel %vm1944, %v2011, %v2013
        %v2015 = vrot.slane %v1455, 4
        %v2016 = vrot.slane %v1456, 4
        %v2017 = vsel %vm1944, %v2015, %v2016
        %v2018 = vrot.slane %v1457, 4
        %v2019 = vsel %vm1944, %v2016, %v2018
        %v2020 = vrot.slane %v1458, 4
        %v2021 = vrot.slane %v1459, 4
        %v2022 = vsel %vm1944, %v2020, %v2021
        %v2023 = vrot.slane %v1460, 4
        %v2024 = vsel %vm1944, %v2021, %v2023
        %v2057 = vmax.f32 %v1912, %v1947
        %v2058 = vmax.f32 %v1913, %v1949
        %v2059 = vmax.f32 %v1914, %v1952
        %v2060 = vmax.f32 %v1915, %v1954
        %v2061 = vmax.f32 %v1916, %v1957
        %v2062 = vmax.f32 %v1917, %v1959
        %v2063 = vmax.f32 %v1918, %v1962
        %v2064 = vmax.f32 %v1919, %v1964
        %v2065 = vmax.f32 %v1920, %v1967
        %v2066 = vmax.f32 %v1921, %v1969
        %v2067 = vmax.f32 %v1922, %v1972
        %v2068 = vmax.f32 %v1923, %v1974
        %v2069 = vmax.f32 %v1924, %v1977
        %v2070 = vmax.f32 %v1925, %v1979
        %v2071 = vmax.f32 %v1926, %v1982
        %v2072 = vmax.f32 %v1927, %v1984
        %v2073 = vmax.f32 %v1928, %v1987
        %v2074 = vmax.f32 %v1929, %v1989
        %v2075 = vmax.f32 %v1930, %v1992
        %v2076 = vmax.f32 %v1931, %v1994
        %v2077 = vmax.f32 %v1932, %v1997
        %v2078 = vmax.f32 %v1933, %v1999
        %v2079 = vmax.f32 %v1934, %v2002
        %v2080 = vmax.f32 %v1935, %v2004
        %v2081 = vmax.f32 %v1936, %v2007
        %v2082 = vmax.f32 %v1937, %v2009
        %v2083 = vmax.f32 %v1938, %v2012
        %v2084 = vmax.f32 %v1939, %v2014
        %v2085 = vmax.f32 %v1940, %v2017
        %v2086 = vmax.f32 %v1941, %v2019
        %v2087 = vmax.f32 %v1942, %v2022
        %v2088 = vmax.f32 %v1943, %v2024
        %v2089 = vpack.c.bf16 %v2058, %v2057
        %v2090 = vpack.c.bf16 %v2060, %v2059
        %v2091 = vpack.c.bf16 %v2062, %v2061
        %v2092 = vpack.c.bf16 %v2064, %v2063
        %v2093 = vpack.c.bf16 %v2066, %v2065
        %v2094 = vpack.c.bf16 %v2068, %v2067
        %v2095 = vpack.c.bf16 %v2070, %v2069
        %v2096 = vpack.c.bf16 %v2072, %v2071
        %v2097 = vpack.c.bf16 %v2074, %v2073
        %v2098 = vpack.c.bf16 %v2076, %v2075
        %v2099 = vpack.c.bf16 %v2078, %v2077
        %v2100 = vpack.c.bf16 %v2080, %v2079
        %v2101 = vpack.c.bf16 %v2082, %v2081
        %v2102 = vpack.c.bf16 %v2084, %v2083
        %v2103 = vpack.c.bf16 %v2086, %v2085
        %v2104 = vpack.c.bf16 %v2088, %v2087
        %v2121 = vunpack.c.l.b16 %v2089
        %v2122 = vunpack.c.h.b16 %v2089
        %v2123 = vunpack.c.l.b16 %v2090
        %v2124 = vunpack.c.h.b16 %v2090
        %v2125 = vunpack.c.l.b16 %v2091
        %v2126 = vunpack.c.h.b16 %v2091
        %v2127 = vunpack.c.l.b16 %v2092
        %v2128 = vunpack.c.h.b16 %v2092
        %v2129 = vunpack.c.l.b16 %v2093
        %v2130 = vunpack.c.h.b16 %v2093
        %v2131 = vunpack.c.l.b16 %v2094
        %v2132 = vunpack.c.h.b16 %v2094
        %v2133 = vunpack.c.l.b16 %v2095
        %v2134 = vunpack.c.h.b16 %v2095
        %v2135 = vunpack.c.l.b16 %v2096
        %v2136 = vunpack.c.h.b16 %v2096
        %v2137 = vunpack.c.l.b16 %v2097
        %v2138 = vunpack.c.h.b16 %v2097
        %v2139 = vunpack.c.l.b16 %v2098
        %v2140 = vunpack.c.h.b16 %v2098
        %v2141 = vunpack.c.l.b16 %v2099
        %v2142 = vunpack.c.h.b16 %v2099
        %v2143 = vunpack.c.l.b16 %v2100
        %v2144 = vunpack.c.h.b16 %v2100
        %v2145 = vunpack.c.l.b16 %v2101
        %v2146 = vunpack.c.h.b16 %v2101
        %v2147 = vunpack.c.l.b16 %v2102
        %v2148 = vunpack.c.h.b16 %v2102
        %v2149 = vunpack.c.l.b16 %v2103
        %v2150 = vunpack.c.h.b16 %v2103
        %v2151 = vunpack.c.l.b16 %v2104
        %v2152 = vunpack.c.h.b16 %v2104
        %v2153 = vpack.c.b16 %v2121, %v2121
        %v2154 = vpack.c.b16 %v2122, %v2122
        %v2155 = vpack.c.b16 %v2123, %v2123
        %v2156 = vpack.c.b16 %v2124, %v2124
        %v2157 = vpack.c.b16 %v2125, %v2125
        %v2158 = vpack.c.b16 %v2126, %v2126
        %v2159 = vpack.c.b16 %v2127, %v2127
        %v2160 = vpack.c.b16 %v2128, %v2128
        %v2161 = vpack.c.b16 %v2129, %v2129
        %v2162 = vpack.c.b16 %v2130, %v2130
        %v2163 = vpack.c.b16 %v2131, %v2131
        %v2164 = vpack.c.b16 %v2132, %v2132
        %v2165 = vpack.c.b16 %v2133, %v2133
        %v2166 = vpack.c.b16 %v2134, %v2134
        %v2167 = vpack.c.b16 %v2135, %v2135
        %v2168 = vpack.c.b16 %v2136, %v2136
        %v2169 = vpack.c.b16 %v2137, %v2137
        %v2170 = vpack.c.b16 %v2138, %v2138
        %v2171 = vpack.c.b16 %v2139, %v2139
        %v2172 = vpack.c.b16 %v2140, %v2140
        %v2173 = vpack.c.b16 %v2141, %v2141
        %v2174 = vpack.c.b16 %v2142, %v2142
        %v2175 = vpack.c.b16 %v2143, %v2143
        %v2176 = vpack.c.b16 %v2144, %v2144
        %v2177 = vpack.c.b16 %v2145, %v2145
        %v2178 = vpack.c.b16 %v2146, %v2146
        %v2179 = vpack.c.b16 %v2147, %v2147
        %v2180 = vpack.c.b16 %v2148, %v2148
        %v2181 = vpack.c.b16 %v2149, %v2149
        %v2182 = vpack.c.b16 %v2150, %v2150
        %v2183 = vpack.c.b16 %v2151, %v2151
        %v2184 = vpack.c.b16 %v2152, %v2152
        %v2186 = vshrl.u32 %v2153, 16
        %v2188 = vrot.slane %v2186, 7
        %v2189 = vshll.u32 %v2153, 16
        %v2191 = vor.u32 %v2188, %v2189
        %v2192 = vrot.slane %v2188, 4
        %v2194 = vshrl.u32 %v2154, 16
        %v2196 = vrot.slane %v2194, 7
        %v2197 = vshll.u32 %v2154, 16
        %v2199 = vor.u32 %v2196, %v2197
        %v2200 = vsel %vm557, %v2192, %v2199
        %v2201 = vrot.slane %v2196, 4
        %v2203 = vshrl.u32 %v2155, 16
        %v2205 = vrot.slane %v2203, 7
        %v2206 = vshll.u32 %v2155, 16
        %v2208 = vor.u32 %v2205, %v2206
        %v2209 = vrot.slane %v2205, 4
        %v2211 = vshrl.u32 %v2156, 16
        %v2213 = vrot.slane %v2211, 7
        %v2214 = vshll.u32 %v2156, 16
        %v2216 = vor.u32 %v2213, %v2214
        %v2217 = vsel %vm557, %v2209, %v2216
        %v2218 = vrot.slane %v2213, 4
        %v2220 = vshrl.u32 %v2157, 16
        %v2222 = vrot.slane %v2220, 7
        %v2223 = vshll.u32 %v2157, 16
        %v2225 = vor.u32 %v2222, %v2223
        %v2226 = vrot.slane %v2222, 4
        %v2228 = vshrl.u32 %v2158, 16
        %v2230 = vrot.slane %v2228, 7
        %v2231 = vshll.u32 %v2158, 16
        %v2233 = vor.u32 %v2230, %v2231
        %v2234 = vsel %vm557, %v2226, %v2233
        %v2235 = vrot.slane %v2230, 4
        %v2237 = vshrl.u32 %v2159, 16
        %v2239 = vrot.slane %v2237, 7
        %v2240 = vshll.u32 %v2159, 16
        %v2242 = vor.u32 %v2239, %v2240
        %v2243 = vrot.slane %v2239, 4
        %v2245 = vshrl.u32 %v2160, 16
        %v2247 = vrot.slane %v2245, 7
        %v2248 = vshll.u32 %v2160, 16
        %v2250 = vor.u32 %v2247, %v2248
        %v2251 = vsel %vm557, %v2243, %v2250
        %v2252 = vrot.slane %v2247, 4
        %v2254 = vshrl.u32 %v2161, 16
        %v2256 = vrot.slane %v2254, 7
        %v2257 = vshll.u32 %v2161, 16
        %v2259 = vor.u32 %v2256, %v2257
        %v2260 = vrot.slane %v2256, 4
        %v2262 = vshrl.u32 %v2162, 16
        %v2264 = vrot.slane %v2262, 7
        %v2265 = vshll.u32 %v2162, 16
        %v2267 = vor.u32 %v2264, %v2265
        %v2268 = vsel %vm557, %v2260, %v2267
        %v2269 = vrot.slane %v2264, 4
        %v2271 = vshrl.u32 %v2163, 16
        %v2273 = vrot.slane %v2271, 7
        %v2274 = vshll.u32 %v2163, 16
        %v2276 = vor.u32 %v2273, %v2274
        %v2277 = vrot.slane %v2273, 4
        %v2279 = vshrl.u32 %v2164, 16
        %v2281 = vrot.slane %v2279, 7
        %v2282 = vshll.u32 %v2164, 16
        %v2284 = vor.u32 %v2281, %v2282
        %v2285 = vsel %vm557, %v2277, %v2284
        %v2286 = vrot.slane %v2281, 4
        %v2288 = vshrl.u32 %v2165, 16
        %v2290 = vrot.slane %v2288, 7
        %v2291 = vshll.u32 %v2165, 16
        %v2293 = vor.u32 %v2290, %v2291
        %v2294 = vrot.slane %v2290, 4
        %v2296 = vshrl.u32 %v2166, 16
        %v2298 = vrot.slane %v2296, 7
        %v2299 = vshll.u32 %v2166, 16
        %v2301 = vor.u32 %v2298, %v2299
        %v2302 = vsel %vm557, %v2294, %v2301
        %v2303 = vrot.slane %v2298, 4
        %v2305 = vshrl.u32 %v2167, 16
        %v2307 = vrot.slane %v2305, 7
        %v2308 = vshll.u32 %v2167, 16
        %v2310 = vor.u32 %v2307, %v2308
        %v2311 = vrot.slane %v2307, 4
        %v2313 = vshrl.u32 %v2168, 16
        %v2315 = vrot.slane %v2313, 7
        %v2316 = vshll.u32 %v2168, 16
        %v2318 = vor.u32 %v2315, %v2316
        %v2319 = vsel %vm557, %v2311, %v2318
        %v2320 = vrot.slane %v2315, 4
        %v2322 = vshrl.u32 %v2169, 16
        %v2324 = vrot.slane %v2322, 7
        %v2325 = vshll.u32 %v2169, 16
        %v2327 = vor.u32 %v2324, %v2325
        %v2328 = vrot.slane %v2324, 4
        %v2330 = vshrl.u32 %v2170, 16
        %v2332 = vrot.slane %v2330, 7
        %v2333 = vshll.u32 %v2170, 16
        %v2335 = vor.u32 %v2332, %v2333
        %v2336 = vsel %vm557, %v2328, %v2335
        %v2337 = vrot.slane %v2332, 4
        %v2339 = vshrl.u32 %v2171, 16
        %v2341 = vrot.slane %v2339, 7
        %v2342 = vshll.u32 %v2171, 16
        %v2344 = vor.u32 %v2341, %v2342
        %v2345 = vrot.slane %v2341, 4
        %v2347 = vshrl.u32 %v2172, 16
        %v2349 = vrot.slane %v2347, 7
        %v2350 = vshll.u32 %v2172, 16
        %v2352 = vor.u32 %v2349, %v2350
        %v2353 = vsel %vm557, %v2345, %v2352
        %v2354 = vrot.slane %v2349, 4
        %v2356 = vshrl.u32 %v2173, 16
        %v2358 = vrot.slane %v2356, 7
        %v2359 = vshll.u32 %v2173, 16
        %v2361 = vor.u32 %v2358, %v2359
        %v2362 = vrot.slane %v2358, 4
        %v2364 = vshrl.u32 %v2174, 16
        %v2366 = vrot.slane %v2364, 7
        %v2367 = vshll.u32 %v2174, 16
        %v2369 = vor.u32 %v2366, %v2367
        %v2370 = vsel %vm557, %v2362, %v2369
        %v2371 = vrot.slane %v2366, 4
        %v2373 = vshrl.u32 %v2175, 16
        %v2375 = vrot.slane %v2373, 7
        %v2376 = vshll.u32 %v2175, 16
        %v2378 = vor.u32 %v2375, %v2376
        %v2379 = vrot.slane %v2375, 4
        %v2381 = vshrl.u32 %v2176, 16
        %v2383 = vrot.slane %v2381, 7
        %v2384 = vshll.u32 %v2176, 16
        %v2386 = vor.u32 %v2383, %v2384
        %v2387 = vsel %vm557, %v2379, %v2386
        %v2388 = vrot.slane %v2383, 4
        %v2390 = vshrl.u32 %v2177, 16
        %v2392 = vrot.slane %v2390, 7
        %v2393 = vshll.u32 %v2177, 16
        %v2395 = vor.u32 %v2392, %v2393
        %v2396 = vrot.slane %v2392, 4
        %v2398 = vshrl.u32 %v2178, 16
        %v2400 = vrot.slane %v2398, 7
        %v2401 = vshll.u32 %v2178, 16
        %v2403 = vor.u32 %v2400, %v2401
        %v2404 = vsel %vm557, %v2396, %v2403
        %v2405 = vrot.slane %v2400, 4
        %v2407 = vshrl.u32 %v2179, 16
        %v2409 = vrot.slane %v2407, 7
        %v2410 = vshll.u32 %v2179, 16
        %v2412 = vor.u32 %v2409, %v2410
        %v2413 = vrot.slane %v2409, 4
        %v2415 = vshrl.u32 %v2180, 16
        %v2417 = vrot.slane %v2415, 7
        %v2418 = vshll.u32 %v2180, 16
        %v2420 = vor.u32 %v2417, %v2418
        %v2421 = vsel %vm557, %v2413, %v2420
        %v2422 = vrot.slane %v2417, 4
        %v2424 = vshrl.u32 %v2181, 16
        %v2426 = vrot.slane %v2424, 7
        %v2427 = vshll.u32 %v2181, 16
        %v2429 = vor.u32 %v2426, %v2427
        %v2430 = vrot.slane %v2426, 4
        %v2432 = vshrl.u32 %v2182, 16
        %v2434 = vrot.slane %v2432, 7
        %v2435 = vshll.u32 %v2182, 16
        %v2437 = vor.u32 %v2434, %v2435
        %v2438 = vsel %vm557, %v2430, %v2437
        %v2439 = vrot.slane %v2434, 4
        %v2441 = vshrl.u32 %v2183, 16
        %v2443 = vrot.slane %v2441, 7
        %v2444 = vshll.u32 %v2183, 16
        %v2446 = vor.u32 %v2443, %v2444
        %v2447 = vrot.slane %v2443, 4
        %v2449 = vshrl.u32 %v2184, 16
        %v2451 = vrot.slane %v2449, 7
        %v2452 = vshll.u32 %v2184, 16
        %v2454 = vor.u32 %v2451, %v2452
        %v2455 = vsel %vm557, %v2447, %v2454
        %v2456 = vrot.slane %v2451, 4
        %2457 = vrot.lane.b32.xlu0 %v2191, 4
        %v2458 = vpop.permute.xlu0 %2457
        %2459 = vrot.lane.b32.xlu0 %v2200, 4
        %v2460 = vpop.permute.xlu0 %2459
        %2461 = vrot.lane.b32.xlu0 %v2201, 4
        %v2462 = vpop.permute.xlu0 %2461
        %2463 = vrot.lane.b32.xlu0 %v2208, 4
        %v2464 = vpop.permute.xlu0 %2463
        %2465 = vrot.lane.b32.xlu0 %v2217, 4
        %v2466 = vpop.permute.xlu0 %2465
        %2467 = vrot.lane.b32.xlu0 %v2218, 4
        %v2468 = vpop.permute.xlu0 %2467
        %2469 = vrot.lane.b32.xlu0 %v2225, 4
        %v2470 = vpop.permute.xlu0 %2469
        %2471 = vrot.lane.b32.xlu0 %v2234, 4
        %v2472 = vpop.permute.xlu0 %2471
        %2473 = vrot.lane.b32.xlu0 %v2235, 4
        %v2474 = vpop.permute.xlu0 %2473
        %2475 = vrot.lane.b32.xlu0 %v2242, 4
        %v2476 = vpop.permute.xlu0 %2475
        %2477 = vrot.lane.b32.xlu0 %v2251, 4
        %v2478 = vpop.permute.xlu0 %2477
        %2479 = vrot.lane.b32.xlu0 %v2252, 4
        %v2480 = vpop.permute.xlu0 %2479
        %2481 = vrot.lane.b32.xlu0 %v2259, 4
        %v2482 = vpop.permute.xlu0 %2481
        %2483 = vrot.lane.b32.xlu0 %v2268, 4
        %v2484 = vpop.permute.xlu0 %2483
        %2485 = vrot.lane.b32.xlu0 %v2269, 4
        %v2486 = vpop.permute.xlu0 %2485
        %2487 = vrot.lane.b32.xlu0 %v2276, 4
        %v2488 = vpop.permute.xlu0 %2487
        %2489 = vrot.lane.b32.xlu0 %v2285, 4
        %v2490 = vpop.permute.xlu0 %2489
        %2491 = vrot.lane.b32.xlu0 %v2286, 4
        %v2492 = vpop.permute.xlu0 %2491
        %2493 = vrot.lane.b32.xlu0 %v2293, 4
        %v2494 = vpop.permute.xlu0 %2493
        %2495 = vrot.lane.b32.xlu0 %v2302, 4
        %v2496 = vpop.permute.xlu0 %2495
        %2497 = vrot.lane.b32.xlu0 %v2303, 4
        %v2498 = vpop.permute.xlu0 %2497
        %2499 = vrot.lane.b32.xlu0 %v2310, 4
        %v2500 = vpop.permute.xlu0 %2499
        %2501 = vrot.lane.b32.xlu0 %v2319, 4
        %v2502 = vpop.permute.xlu0 %2501
        %2503 = vrot.lane.b32.xlu0 %v2320, 4
        %v2504 = vpop.permute.xlu0 %2503
        %2505 = vrot.lane.b32.xlu0 %v2327, 4
        %v2506 = vpop.permute.xlu0 %2505
        %2507 = vrot.lane.b32.xlu0 %v2336, 4
        %v2508 = vpop.permute.xlu0 %2507
        %2509 = vrot.lane.b32.xlu0 %v2337, 4
        %v2510 = vpop.permute.xlu0 %2509
        %2511 = vrot.lane.b32.xlu0 %v2344, 4
        %v2512 = vpop.permute.xlu0 %2511
        %2513 = vrot.lane.b32.xlu0 %v2353, 4
        %v2514 = vpop.permute.xlu0 %2513
        %2515 = vrot.lane.b32.xlu0 %v2354, 4
        %v2516 = vpop.permute.xlu0 %2515
        %2517 = vrot.lane.b32.xlu0 %v2361, 4
        %v2518 = vpop.permute.xlu0 %2517
        %2519 = vrot.lane.b32.xlu0 %v2370, 4
        %v2520 = vpop.permute.xlu0 %2519
        %2521 = vrot.lane.b32.xlu0 %v2371, 4
        %v2522 = vpop.permute.xlu0 %2521
        %2523 = vrot.lane.b32.xlu0 %v2378, 4
        %v2524 = vpop.permute.xlu0 %2523
        %2525 = vrot.lane.b32.xlu0 %v2387, 4
        %v2526 = vpop.permute.xlu0 %2525
        %2527 = vrot.lane.b32.xlu0 %v2388, 4
        %v2528 = vpop.permute.xlu0 %2527
        %2529 = vrot.lane.b32.xlu0 %v2395, 4
        %v2530 = vpop.permute.xlu0 %2529
        %2531 = vrot.lane.b32.xlu0 %v2404, 4
        %v2532 = vpop.permute.xlu0 %2531
        %2533 = vrot.lane.b32.xlu0 %v2405, 4
        %v2534 = vpop.permute.xlu0 %2533
        %2535 = vrot.lane.b32.xlu0 %v2412, 4
        %v2536 = vpop.permute.xlu0 %2535
        %2537 = vrot.lane.b32.xlu0 %v2421, 4
        %v2538 = vpop.permute.xlu0 %2537
        %2539 = vrot.lane.b32.xlu0 %v2422, 4
        %v2540 = vpop.permute.xlu0 %2539
        %2541 = vrot.lane.b32.xlu0 %v2429, 4
        %v2542 = vpop.permute.xlu0 %2541
        %2543 = vrot.lane.b32.xlu0 %v2438, 4
        %v2544 = vpop.permute.xlu0 %2543
        %2545 = vrot.lane.b32.xlu0 %v2439, 4
        %v2546 = vpop.permute.xlu0 %2545
        %2547 = vrot.lane.b32.xlu0 %v2446, 4
        %v2548 = vpop.permute.xlu0 %2547
        %2549 = vrot.lane.b32.xlu0 %v2455, 4
        %v2550 = vpop.permute.xlu0 %2549
        %2551 = vrot.lane.b32.xlu0 %v2456, 4
        %v2552 = vpop.permute.xlu0 %2551
        %vm2601 = vcmask 60448
        %vm2602 = vmand %vm2601, %vm378
        %v2603 = vld [vmem:[%s326] sm:$0xf]
        %v2604 = vsel %vm2602, %v2458, %v2603
        %2605 = vst [vmem:[%s326] sm:$0xf] %v2604
        %vm2606 = vcmask 60448
        %2607 = vst.msk [vmem:[%s326 + $0x4] sm:$0xf] %vm2606, %v2460
        %vm2608 = vcmask 57376
        %vm2609 = vmand %vm2608, %vm328
        %v2610 = vld [vmem:[%s326 + $0x8] sm:$0x1]
        %v2611 = vsel %vm2609, %v2462, %v2610
        %2612 = vst [vmem:[%s326 + $0x8] sm:$0x1] %v2611
        %v2613 = vld [vmem:[%s326 + $0xc] sm:$0xf]
        %v2614 = vsel %vm2602, %v2464, %v2613
        %2615 = vst [vmem:[%s326 + $0xc] sm:$0xf] %v2614
        %2616 = vst.msk [vmem:[%s326 + $0x10] sm:$0xf] %vm2606, %v2466
        %v2617 = vld [vmem:[%s326 + $0x14] sm:$0x1]
        %v2618 = vsel %vm2609, %v2468, %v2617
        %2619 = vst [vmem:[%s326 + $0x14] sm:$0x1] %v2618
        %v2620 = vld [vmem:[%s326 + $0x18] sm:$0xf]
        %v2621 = vsel %vm2602, %v2470, %v2620
        %2622 = vst [vmem:[%s326 + $0x18] sm:$0xf] %v2621
        %2623 = vst.msk [vmem:[%s326 + $0x1c] sm:$0xf] %vm2606, %v2472
        %v2624 = vld [vmem:[%s326 + $0x20] sm:$0x1]
        %v2625 = vsel %vm2609, %v2474, %v2624
        %2626 = vst [vmem:[%s326 + $0x20] sm:$0x1] %v2625
        %v2627 = vld [vmem:[%s326 + $0x24] sm:$0xf]
        %v2628 = vsel %vm2602, %v2476, %v2627
        %2629 = vst [vmem:[%s326 + $0x24] sm:$0xf] %v2628
        %2630 = vst.msk [vmem:[%s326 + $0x28] sm:$0xf] %vm2606, %v2478
        %v2631 = vld [vmem:[%s326 + $0x2c] sm:$0x1]
        %v2632 = vsel %vm2609, %v2480, %v2631
        %2633 = vst [vmem:[%s326 + $0x2c] sm:$0x1] %v2632
        %v2634 = vld [vmem:[%s326 + $0x30] sm:$0xf]
        %v2635 = vsel %vm2602, %v2482, %v2634
        %2636 = vst [vmem:[%s326 + $0x30] sm:$0xf] %v2635
        %2637 = vst.msk [vmem:[%s326 + $0x34] sm:$0xf] %vm2606, %v2484
        %v2638 = vld [vmem:[%s326 + $0x38] sm:$0x1]
        %v2639 = vsel %vm2609, %v2486, %v2638
        %2640 = vst [vmem:[%s326 + $0x38] sm:$0x1] %v2639
        %v2641 = vld [vmem:[%s326 + $0x3c] sm:$0xf]
        %v2642 = vsel %vm2602, %v2488, %v2641
        %2643 = vst [vmem:[%s326 + $0x3c] sm:$0xf] %v2642
        %2644 = vst.msk [vmem:[%s326 + $0x40] sm:$0xf] %vm2606, %v2490
        %v2645 = vld [vmem:[%s326 + $0x44] sm:$0x1]
        %v2646 = vsel %vm2609, %v2492, %v2645
        %2647 = vst [vmem:[%s326 + $0x44] sm:$0x1] %v2646
        %v2648 = vld [vmem:[%s326 + $0x48] sm:$0xf]
        %v2649 = vsel %vm2602, %v2494, %v2648
        %2650 = vst [vmem:[%s326 + $0x48] sm:$0xf] %v2649
        %2651 = vst.msk [vmem:[%s326 + $0x4c] sm:$0xf] %vm2606, %v2496
        %v2652 = vld [vmem:[%s326 + $0x50] sm:$0x1]
        %v2653 = vsel %vm2609, %v2498, %v2652
        %2654 = vst [vmem:[%s326 + $0x50] sm:$0x1] %v2653
        %v2655 = vld [vmem:[%s326 + $0x54] sm:$0xf]
        %v2656 = vsel %vm2602, %v2500, %v2655
        %2657 = vst [vmem:[%s326 + $0x54] sm:$0xf] %v2656
        %2658 = vst.msk [vmem:[%s326 + $0x58] sm:$0xf] %vm2606, %v2502
        %v2659 = vld [vmem:[%s326 + $0x5c] sm:$0x1]
        %v2660 = vsel %vm2609, %v2504, %v2659
        %2661 = vst [vmem:[%s326 + $0x5c] sm:$0x1] %v2660
        %v2662 = vld [vmem:[%s326 + $0x60] sm:$0xf]
        %v2663 = vsel %vm2602, %v2506, %v2662
        %2664 = vst [vmem:[%s326 + $0x60] sm:$0xf] %v2663
        %2665 = vst.msk [vmem:[%s326 + $0x64] sm:$0xf] %vm2606, %v2508
        %v2666 = vld [vmem:[%s326 + $0x68] sm:$0x1]
        %v2667 = vsel %vm2609, %v2510, %v2666
        %2668 = vst [vmem:[%s326 + $0x68] sm:$0x1] %v2667
        %v2669 = vld [vmem:[%s326 + $0x6c] sm:$0xf]
        %v2670 = vsel %vm2602, %v2512, %v2669
        %2671 = vst [vmem:[%s326 + $0x6c] sm:$0xf] %v2670
        %2672 = vst.msk [vmem:[%s326 + $0x70] sm:$0xf] %vm2606, %v2514
        %v2673 = vld [vmem:[%s326 + $0x74] sm:$0x1]
        %v2674 = vsel %vm2609, %v2516, %v2673
        %2675 = vst [vmem:[%s326 + $0x74] sm:$0x1] %v2674
        %v2676 = vld [vmem:[%s326 + $0x78] sm:$0xf]
        %v2677 = vsel %vm2602, %v2518, %v2676
        %2678 = vst [vmem:[%s326 + $0x78] sm:$0xf] %v2677
        %2679 = vst.msk [vmem:[%s326 + $0x7c] sm:$0xf] %vm2606, %v2520
        %v2680 = vld [vmem:[%s326 + $0x80] sm:$0x1]
        %v2681 = vsel %vm2609, %v2522, %v2680
        %2682 = vst [vmem:[%s326 + $0x80] sm:$0x1] %v2681
        %v2683 = vld [vmem:[%s326 + $0x84] sm:$0xf]
        %v2684 = vsel %vm2602, %v2524, %v2683
        %2685 = vst [vmem:[%s326 + $0x84] sm:$0xf] %v2684
        %2686 = vst.msk [vmem:[%s326 + $0x88] sm:$0xf] %vm2606, %v2526
        %v2687 = vld [vmem:[%s326 + $0x8c] sm:$0x1]
        %v2688 = vsel %vm2609, %v2528, %v2687
        %2689 = vst [vmem:[%s326 + $0x8c] sm:$0x1] %v2688
        %v2690 = vld [vmem:[%s326 + $0x90] sm:$0xf]
        %v2691 = vsel %vm2602, %v2530, %v2690
        %2692 = vst [vmem:[%s326 + $0x90] sm:$0xf] %v2691
        %2693 = vst.msk [vmem:[%s326 + $0x94] sm:$0xf] %vm2606, %v2532
        %v2694 = vld [vmem:[%s326 + $0x98] sm:$0x1]
        %v2695 = vsel %vm2609, %v2534, %v2694
        %2696 = vst [vmem:[%s326 + $0x98] sm:$0x1] %v2695
        %v2697 = vld [vmem:[%s326 + $0x9c] sm:$0xf]
        %v2698 = vsel %vm2602, %v2536, %v2697
        %2699 = vst [vmem:[%s326 + $0x9c] sm:$0xf] %v2698
        %2700 = vst.msk [vmem:[%s326 + $0xa0] sm:$0xf] %vm2606, %v2538
        %v2701 = vld [vmem:[%s326 + $0xa4] sm:$0x1]
        %v2702 = vsel %vm2609, %v2540, %v2701
        %2703 = vst [vmem:[%s326 + $0xa4] sm:$0x1] %v2702
        %v2704 = vld [vmem:[%s326 + $0xa8] sm:$0xf]
        %v2705 = vsel %vm2602, %v2542, %v2704
        %2706 = vst [vmem:[%s326 + $0xa8] sm:$0xf] %v2705
        %2707 = vst.msk [vmem:[%s326 + $0xac] sm:$0xf] %vm2606, %v2544
        %v2708 = vld [vmem:[%s326 + $0xb0] sm:$0x1]
        %v2709 = vsel %vm2609, %v2546, %v2708
        %2710 = vst [vmem:[%s326 + $0xb0] sm:$0x1] %v2709
        %v2711 = vld [vmem:[%s326 + $0xb4] sm:$0xf]
        %v2712 = vsel %vm2602, %v2548, %v2711
        %2713 = vst [vmem:[%s326 + $0xb4] sm:$0xf] %v2712
        %2714 = vst.msk [vmem:[%s326 + $0xb8] sm:$0xf] %vm2606, %v2550
        %v2715 = vld [vmem:[%s326 + $0xbc] sm:$0x1]
        %v2716 = vsel %vm2609, %v2552, %v2715
        %2717 = vst [vmem:[%s326 + $0xbc] sm:$0x1] %v2716
        %2718 = vst.msk [vmem:[%s283 + $0x2] sm:$0xff] %vm268, %v2057
        %2719 = vst.msk [vmem:[%s283 + $0xa] sm:$0xff] %vm268, %v2058
        %2720 = vst.msk [vmem:[%s283 + $0x1a] sm:$0xff] %vm268, %v2059
        %2721 = vst.msk [vmem:[%s283 + $0x22] sm:$0xff] %vm268, %v2060
        %2722 = vst.msk [vmem:[%s283 + $0x32] sm:$0xff] %vm268, %v2061
        %2723 = vst.msk [vmem:[%s283 + $0x3a] sm:$0xff] %vm268, %v2062
        %2724 = vst.msk [vmem:[%s283 + $0x4a] sm:$0xff] %vm268, %v2063
        %2725 = vst.msk [vmem:[%s283 + $0x52] sm:$0xff] %vm268, %v2064
        %2726 = vst.msk [vmem:[%s283 + $0x62] sm:$0xff] %vm268, %v2065
        %2727 = vst.msk [vmem:[%s283 + $0x6a] sm:$0xff] %vm268, %v2066
        %2728 = vst.msk [vmem:[%s283 + $0x7a] sm:$0xff] %vm268, %v2067
        %2729 = vst.msk [vmem:[%s283 + $0x82] sm:$0xff] %vm268, %v2068
        %2730 = vst.msk [vmem:[%s283 + $0x92] sm:$0xff] %vm268, %v2069
        %2731 = vst.msk [vmem:[%s283 + $0x9a] sm:$0xff] %vm268, %v2070
        %2732 = vst.msk [vmem:[%s283 + $0xaa] sm:$0xff] %vm268, %v2071
        %2733 = vst.msk [vmem:[%s283 + $0xb2] sm:$0xff] %vm268, %v2072
        %2734 = vst.msk [vmem:[%s283 + $0xc2] sm:$0xff] %vm268, %v2073
        %2735 = vst.msk [vmem:[%s283 + $0xca] sm:$0xff] %vm268, %v2074
        %2736 = vst.msk [vmem:[%s283 + $0xda] sm:$0xff] %vm268, %v2075
        %2737 = vst.msk [vmem:[%s283 + $0xe2] sm:$0xff] %vm268, %v2076
        %2738 = vst.msk [vmem:[%s283 + $0xf2] sm:$0xff] %vm268, %v2077
        %2739 = vst.msk [vmem:[%s283 + $0xfa] sm:$0xff] %vm268, %v2078
        %2740 = vst.msk [vmem:[%s283 + $0x10a] sm:$0xff] %vm268, %v2079
        %2741 = vst.msk [vmem:[%s283 + $0x112] sm:$0xff] %vm268, %v2080
        %2742 = vst.msk [vmem:[%s283 + $0x122] sm:$0xff] %vm268, %v2081
        %2743 = vst.msk [vmem:[%s283 + $0x12a] sm:$0xff] %vm268, %v2082
        %2744 = vst.msk [vmem:[%s283 + $0x13a] sm:$0xff] %vm268, %v2083
        %2745 = vst.msk [vmem:[%s283 + $0x142] sm:$0xff] %vm268, %v2084
        %2746 = vst.msk [vmem:[%s283 + $0x152] sm:$0xff] %vm268, %v2085
        %2747 = vst.msk [vmem:[%s283 + $0x15a] sm:$0xff] %vm268, %v2086
        %2748 = vst.msk [vmem:[%s283 + $0x16a] sm:$0xff] %vm268, %v2087
        %2749 = vst.msk [vmem:[%s283 + $0x172] sm:$0xff] %vm268, %v2088
        %v2750 = vld [vmem:[#allocation2] sm:$0xff]
        %v2751 = vld [vmem:[#allocation2 + $0x8] sm:$0xff]
        %v2752 = vld [vmem:[#allocation2 + $0x10] sm:$0xf]
        %v2753 = vld [vmem:[#allocation2 + $0x18] sm:$0xff]
        %v2754 = vld [vmem:[#allocation2 + $0x20] sm:$0xff]
        %v2755 = vld [vmem:[#allocation2 + $0x28] sm:$0xf]
        %v2756 = vld [vmem:[#allocation2 + $0x30] sm:$0xff]
        %v2757 = vld [vmem:[#allocation2 + $0x38] sm:$0xff]
        %v2758 = vld [vmem:[#allocation2 + $0x40] sm:$0xf]
        %v2759 = vld [vmem:[#allocation2 + $0x48] sm:$0xff]
        %v2760 = vld [vmem:[#allocation2 + $0x50] sm:$0xff]
        %v2761 = vld [vmem:[#allocation2 + $0x58] sm:$0xf]
        %v2762 = vld [vmem:[#allocation2 + $0x60] sm:$0xff]
        %v2763 = vld [vmem:[#allocation2 + $0x68] sm:$0xff]
        %v2764 = vld [vmem:[#allocation2 + $0x70] sm:$0xf]
        %v2765 = vld [vmem:[#allocation2 + $0x78] sm:$0xff]
        %v2766 = vld [vmem:[#allocation2 + $0x80] sm:$0xff]
        %v2767 = vld [vmem:[#allocation2 + $0x88] sm:$0xf]
        %v2768 = vld [vmem:[#allocation2 + $0x90] sm:$0xff]
        %v2769 = vld [vmem:[#allocation2 + $0x98] sm:$0xff]
        %v2770 = vld [vmem:[#allocation2 + $0xa0] sm:$0xf]
        %v2771 = vld [vmem:[#allocation2 + $0xa8] sm:$0xff]
        %v2772 = vld [vmem:[#allocation2 + $0xb0] sm:$0xff]
        %v2773 = vld [vmem:[#allocation2 + $0xb8] sm:$0xf]
        %v2774 = vld [vmem:[#allocation2 + $0xc0] sm:$0xff]
        %v2775 = vld [vmem:[#allocation2 + $0xc8] sm:$0xff]
        %v2776 = vld [vmem:[#allocation2 + $0xd0] sm:$0xf]
        %v2777 = vld [vmem:[#allocation2 + $0xd8] sm:$0xff]
        %v2778 = vld [vmem:[#allocation2 + $0xe0] sm:$0xff]
        %v2779 = vld [vmem:[#allocation2 + $0xe8] sm:$0xf]
        %v2780 = vld [vmem:[#allocation2 + $0xf0] sm:$0xff]
        %v2781 = vld [vmem:[#allocation2 + $0xf8] sm:$0xff]
        %v2782 = vld [vmem:[#allocation2 + $0x100] sm:$0xf]
        %v2783 = vld [vmem:[#allocation2 + $0x108] sm:$0xff]
        %v2784 = vld [vmem:[#allocation2 + $0x110] sm:$0xff]
        %v2785 = vld [vmem:[#allocation2 + $0x118] sm:$0xf]
        %v2786 = vld [vmem:[#allocation2 + $0x120] sm:$0xff]
        %v2787 = vld [vmem:[#allocation2 + $0x128] sm:$0xff]
        %v2788 = vld [vmem:[#allocation2 + $0x130] sm:$0xf]
        %v2789 = vld [vmem:[#allocation2 + $0x138] sm:$0xff]
        %v2790 = vld [vmem:[#allocation2 + $0x140] sm:$0xff]
        %v2791 = vld [vmem:[#allocation2 + $0x148] sm:$0xf]
        %v2792 = vld [vmem:[#allocation2 + $0x150] sm:$0xff]
        %v2793 = vld [vmem:[#allocation2 + $0x158] sm:$0xff]
        %v2794 = vld [vmem:[#allocation2 + $0x160] sm:$0xf]
        %v2795 = vld [vmem:[#allocation2 + $0x168] sm:$0xff]
        %v2796 = vld [vmem:[#allocation2 + $0x170] sm:$0xff]
        %v2797 = vld [vmem:[#allocation2 + $0x178] sm:$0xf]
        %v2798 = vld [vmem:[%s1074] sm:$0xff]
        %v2799 = vld [vmem:[%s1074 + $0x8] sm:$0xff]
        %v2800 = vld [vmem:[%s1074 + $0x10] sm:$0xf]
        %v2801 = vld [vmem:[%s1074 + $0x18] sm:$0xff]
        %v2802 = vld [vmem:[%s1074 + $0x20] sm:$0xff]
        %v2803 = vld [vmem:[%s1074 + $0x28] sm:$0xf]
        %v2804 = vld [vmem:[%s1074 + $0x30] sm:$0xff]
        %v2805 = vld [vmem:[%s1074 + $0x38] sm:$0xff]
        %v2806 = vld [vmem:[%s1074 + $0x40] sm:$0xf]
        %v2807 = vld [vmem:[%s1074 + $0x48] sm:$0xff]
        %v2808 = vld [vmem:[%s1074 + $0x50] sm:$0xff]
        %v2809 = vld [vmem:[%s1074 + $0x58] sm:$0xf]
        %v2810 = vld [vmem:[%s1074 + $0x60] sm:$0xff]
        %v2811 = vld [vmem:[%s1074 + $0x68] sm:$0xff]
        %v2812 = vld [vmem:[%s1074 + $0x70] sm:$0xf]
        %v2813 = vld [vmem:[%s1074 + $0x78] sm:$0xff]
        %v2814 = vld [vmem:[%s1074 + $0x80] sm:$0xff]
        %v2815 = vld [vmem:[%s1074 + $0x88] sm:$0xf]
        %v2816 = vld [vmem:[%s1074 + $0x90] sm:$0xff]
        %v2817 = vld [vmem:[%s1074 + $0x98] sm:$0xff]
        %v2818 = vld [vmem:[%s1074 + $0xa0] sm:$0xf]
        %v2819 = vld [vmem:[%s1074 + $0xa8] sm:$0xff]
        %v2820 = vld [vmem:[%s1074 + $0xb0] sm:$0xff]
        %v2821 = vld [vmem:[%s1074 + $0xb8] sm:$0xf]
        %v2822 = vld [vmem:[%s1074 + $0xc0] sm:$0xff]
        %v2823 = vld [vmem:[%s1074 + $0xc8] sm:$0xff]
        %v2824 = vld [vmem:[%s1074 + $0xd0] sm:$0xf]
        %v2825 = vld [vmem:[%s1074 + $0xd8] sm:$0xff]
        %v2826 = vld [vmem:[%s1074 + $0xe0] sm:$0xff]
        %v2827 = vld [vmem:[%s1074 + $0xe8] sm:$0xf]
        %v2828 = vld [vmem:[%s1074 + $0xf0] sm:$0xff]
        %v2829 = vld [vmem:[%s1074 + $0xf8] sm:$0xff]
        %v2830 = vld [vmem:[%s1074 + $0x100] sm:$0xf]
        %v2831 = vld [vmem:[%s1074 + $0x108] sm:$0xff]
        %v2832 = vld [vmem:[%s1074 + $0x110] sm:$0xff]
        %v2833 = vld [vmem:[%s1074 + $0x118] sm:$0xf]
        %v2834 = vld [vmem:[%s1074 + $0x120] sm:$0xff]
        %v2835 = vld [vmem:[%s1074 + $0x128] sm:$0xff]
        %v2836 = vld [vmem:[%s1074 + $0x130] sm:$0xf]
        %v2837 = vld [vmem:[%s1074 + $0x138] sm:$0xff]
        %v2838 = vld [vmem:[%s1074 + $0x140] sm:$0xff]
        %v2839 = vld [vmem:[%s1074 + $0x148] sm:$0xf]
        %v2840 = vld [vmem:[%s1074 + $0x150] sm:$0xff]
        %v2841 = vld [vmem:[%s1074 + $0x158] sm:$0xff]
        %v2842 = vld [vmem:[%s1074 + $0x160] sm:$0xf]
        %v2843 = vld [vmem:[%s1074 + $0x168] sm:$0xff]
        %v2844 = vld [vmem:[%s1074 + $0x170] sm:$0xff]
        %v2845 = vld [vmem:[%s1074 + $0x178] sm:$0xf]
        %v2846 = vmax.f32 %v2750, %v2798
        %v2847 = vmax.f32 %v2751, %v2799
        %v2848 = vmax.f32 %v2752, %v2800
        %v2849 = vmax.f32 %v2753, %v2801
        %v2850 = vmax.f32 %v2754, %v2802
        %v2851 = vmax.f32 %v2755, %v2803
        %v2852 = vmax.f32 %v2756, %v2804
        %v2853 = vmax.f32 %v2757, %v2805
        %v2854 = vmax.f32 %v2758, %v2806
        %v2855 = vmax.f32 %v2759, %v2807
        %v2856 = vmax.f32 %v2760, %v2808
        %v2857 = vmax.f32 %v2761, %v2809
        %v2858 = vmax.f32 %v2762, %v2810
        %v2859 = vmax.f32 %v2763, %v2811
        %v2860 = vmax.f32 %v2764, %v2812
        %v2861 = vmax.f32 %v2765, %v2813
        %v2862 = vmax.f32 %v2766, %v2814
        %v2863 = vmax.f32 %v2767, %v2815
        %v2864 = vmax.f32 %v2768, %v2816
        %v2865 = vmax.f32 %v2769, %v2817
        %v2866 = vmax.f32 %v2770, %v2818
        %v2867 = vmax.f32 %v2771, %v2819
        %v2868 = vmax.f32 %v2772, %v2820
        %v2869 = vmax.f32 %v2773, %v2821
        %v2870 = vmax.f32 %v2774, %v2822
        %v2871 = vmax.f32 %v2775, %v2823
        %v2872 = vmax.f32 %v2776, %v2824
        %v2873 = vmax.f32 %v2777, %v2825
        %v2874 = vmax.f32 %v2778, %v2826
        %v2875 = vmax.f32 %v2779, %v2827
        %v2876 = vmax.f32 %v2780, %v2828
        %v2877 = vmax.f32 %v2781, %v2829
        %v2878 = vmax.f32 %v2782, %v2830
        %v2879 = vmax.f32 %v2783, %v2831
        %v2880 = vmax.f32 %v2784, %v2832
        %v2881 = vmax.f32 %v2785, %v2833
        %v2882 = vmax.f32 %v2786, %v2834
        %v2883 = vmax.f32 %v2787, %v2835
        %v2884 = vmax.f32 %v2788, %v2836
        %v2885 = vmax.f32 %v2789, %v2837
        %v2886 = vmax.f32 %v2790, %v2838
        %v2887 = vmax.f32 %v2791, %v2839
        %v2888 = vmax.f32 %v2792, %v2840
        %v2889 = vmax.f32 %v2793, %v2841
        %v2890 = vmax.f32 %v2794, %v2842
        %v2891 = vmax.f32 %v2795, %v2843
        %v2892 = vmax.f32 %v2796, %v2844
        %v2893 = vmax.f32 %v2797, %v2845
        %v2894 = vld [vmem:[%s283] sm:$0xff]
        %v2895 = vld [vmem:[%s283 + $0x8] sm:$0xff]
        %v2896 = vld [vmem:[%s283 + $0x10] sm:$0xf]
        %v2897 = vld [vmem:[%s283 + $0x18] sm:$0xff]
        %v2898 = vld [vmem:[%s283 + $0x20] sm:$0xff]
        %v2899 = vld [vmem:[%s283 + $0x28] sm:$0xf]
        %v2900 = vld [vmem:[%s283 + $0x30] sm:$0xff]
        %v2901 = vld [vmem:[%s283 + $0x38] sm:$0xff]
        %v2902 = vld [vmem:[%s283 + $0x40] sm:$0xf]
        %v2903 = vld [vmem:[%s283 + $0x48] sm:$0xff]
        %v2904 = vld [vmem:[%s283 + $0x50] sm:$0xff]
        %v2905 = vld [vmem:[%s283 + $0x58] sm:$0xf]
        %v2906 = vld [vmem:[%s283 + $0x60] sm:$0xff]
        %v2907 = vld [vmem:[%s283 + $0x68] sm:$0xff]
        %v2908 = vld [vmem:[%s283 + $0x70] sm:$0xf]
        %v2909 = vld [vmem:[%s283 + $0x78] sm:$0xff]
        %v2910 = vld [vmem:[%s283 + $0x80] sm:$0xff]
        %v2911 = vld [vmem:[%s283 + $0x88] sm:$0xf]
        %v2912 = vld [vmem:[%s283 + $0x90] sm:$0xff]
        %v2913 = vld [vmem:[%s283 + $0x98] sm:$0xff]
        %v2914 = vld [vmem:[%s283 + $0xa0] sm:$0xf]
        %v2915 = vld [vmem:[%s283 + $0xa8] sm:$0xff]
        %v2916 = vld [vmem:[%s283 + $0xb0] sm:$0xff]
        %v2917 = vld [vmem:[%s283 + $0xb8] sm:$0xf]
        %v2918 = vld [vmem:[%s283 + $0xc0] sm:$0xff]
        %v2919 = vld [vmem:[%s283 + $0xc8] sm:$0xff]
        %v2920 = vld [vmem:[%s283 + $0xd0] sm:$0xf]
        %v2921 = vld [vmem:[%s283 + $0xd8] sm:$0xff]
        %v2922 = vld [vmem:[%s283 + $0xe0] sm:$0xff]
        %v2923 = vld [vmem:[%s283 + $0xe8] sm:$0xf]
        %v2924 = vld [vmem:[%s283 + $0xf0] sm:$0xff]
        %v2925 = vld [vmem:[%s283 + $0xf8] sm:$0xff]
        %v2926 = vld [vmem:[%s283 + $0x100] sm:$0xf]
        %v2927 = vld [vmem:[%s283 + $0x108] sm:$0xff]
        %v2928 = vld [vmem:[%s283 + $0x110] sm:$0xff]
        %v2929 = vld [vmem:[%s283 + $0x118] sm:$0xf]
        %v2930 = vld [vmem:[%s283 + $0x120] sm:$0xff]
        %v2931 = vld [vmem:[%s283 + $0x128] sm:$0xff]
        %v2932 = vld [vmem:[%s283 + $0x130] sm:$0xf]
        %v2933 = vld [vmem:[%s283 + $0x138] sm:$0xff]
        %v2934 = vld [vmem:[%s283 + $0x140] sm:$0xff]
        %v2935 = vld [vmem:[%s283 + $0x148] sm:$0xf]
        %v2936 = vld [vmem:[%s283 + $0x150] sm:$0xff]
        %v2937 = vld [vmem:[%s283 + $0x158] sm:$0xff]
        %v2938 = vld [vmem:[%s283 + $0x160] sm:$0xf]
        %v2939 = vld [vmem:[%s283 + $0x168] sm:$0xff]
        %v2940 = vld [vmem:[%s283 + $0x170] sm:$0xff]
        %v2941 = vld [vmem:[%s283 + $0x178] sm:$0xf]
        %v2942 = vmax.f32 %v2846, %v2894
        %v2943 = vmax.f32 %v2847, %v2895
        %v2944 = vmax.f32 %v2848, %v2896
        %v2945 = vmax.f32 %v2849, %v2897
        %v2946 = vmax.f32 %v2850, %v2898
        %v2947 = vmax.f32 %v2851, %v2899
        %v2948 = vmax.f32 %v2852, %v2900
        %v2949 = vmax.f32 %v2853, %v2901
        %v2950 = vmax.f32 %v2854, %v2902
        %v2951 = vmax.f32 %v2855, %v2903
        %v2952 = vmax.f32 %v2856, %v2904
        %v2953 = vmax.f32 %v2857, %v2905
        %v2954 = vmax.f32 %v2858, %v2906
        %v2955 = vmax.f32 %v2859, %v2907
        %v2956 = vmax.f32 %v2860, %v2908
        %v2957 = vmax.f32 %v2861, %v2909
        %v2958 = vmax.f32 %v2862, %v2910
        %v2959 = vmax.f32 %v2863, %v2911
        %v2960 = vmax.f32 %v2864, %v2912
        %v2961 = vmax.f32 %v2865, %v2913
        %v2962 = vmax.f32 %v2866, %v2914
        %v2963 = vmax.f32 %v2867, %v2915
        %v2964 = vmax.f32 %v2868, %v2916
        %v2965 = vmax.f32 %v2869, %v2917
        %v2966 = vmax.f32 %v2870, %v2918
        %v2967 = vmax.f32 %v2871, %v2919
        %v2968 = vmax.f32 %v2872, %v2920
        %v2969 = vmax.f32 %v2873, %v2921
        %v2970 = vmax.f32 %v2874, %v2922
        %v2971 = vmax.f32 %v2875, %v2923
        %v2972 = vmax.f32 %v2876, %v2924
        %v2973 = vmax.f32 %v2877, %v2925
        %v2974 = vmax.f32 %v2878, %v2926
        %v2975 = vmax.f32 %v2879, %v2927
        %v2976 = vmax.f32 %v2880, %v2928
        %v2977 = vmax.f32 %v2881, %v2929
        %v2978 = vmax.f32 %v2882, %v2930
        %v2979 = vmax.f32 %v2883, %v2931
        %v2980 = vmax.f32 %v2884, %v2932
        %v2981 = vmax.f32 %v2885, %v2933
        %v2982 = vmax.f32 %v2886, %v2934
        %v2983 = vmax.f32 %v2887, %v2935
        %v2984 = vmax.f32 %v2888, %v2936
        %v2985 = vmax.f32 %v2889, %v2937
        %v2986 = vmax.f32 %v2890, %v2938
        %v2987 = vmax.f32 %v2891, %v2939
        %v2988 = vmax.f32 %v2892, %v2940
        %v2989 = vmax.f32 %v2893, %v2941
        %v2990 = vld [vmem:[%s1267] sm:$0xff]
        %v2991 = vld [vmem:[%s1267 + $0x8] sm:$0xff]
        %v2992 = vld [vmem:[%s1267 + $0x10] sm:$0xf]
        %v2993 = vld [vmem:[%s1267 + $0x18] sm:$0xff]
        %v2994 = vld [vmem:[%s1267 + $0x20] sm:$0xff]
        %v2995 = vld [vmem:[%s1267 + $0x28] sm:$0xf]
        %v2996 = vld [vmem:[%s1267 + $0x30] sm:$0xff]
        %v2997 = vld [vmem:[%s1267 + $0x38] sm:$0xff]
        %v2998 = vld [vmem:[%s1267 + $0x40] sm:$0xf]
        %v2999 = vld [vmem:[%s1267 + $0x48] sm:$0xff]
        %v3000 = vld [vmem:[%s1267 + $0x50] sm:$0xff]
        %v3001 = vld [vmem:[%s1267 + $0x58] sm:$0xf]
        %v3002 = vld [vmem:[%s1267 + $0x60] sm:$0xff]
        %v3003 = vld [vmem:[%s1267 + $0x68] sm:$0xff]
        %v3004 = vld [vmem:[%s1267 + $0x70] sm:$0xf]
        %v3005 = vld [vmem:[%s1267 + $0x78] sm:$0xff]
        %v3006 = vld [vmem:[%s1267 + $0x80] sm:$0xff]
        %v3007 = vld [vmem:[%s1267 + $0x88] sm:$0xf]
        %v3008 = vld [vmem:[%s1267 + $0x90] sm:$0xff]
        %v3009 = vld [vmem:[%s1267 + $0x98] sm:$0xff]
        %v3010 = vld [vmem:[%s1267 + $0xa0] sm:$0xf]
        %v3011 = vld [vmem:[%s1267 + $0xa8] sm:$0xff]
        %v3012 = vld [vmem:[%s1267 + $0xb0] sm:$0xff]
        %v3013 = vld [vmem:[%s1267 + $0xb8] sm:$0xf]
        %v3014 = vld [vmem:[%s1267 + $0xc0] sm:$0xff]
        %v3015 = vld [vmem:[%s1267 + $0xc8] sm:$0xff]
        %v3016 = vld [vmem:[%s1267 + $0xd0] sm:$0xf]
        %v3017 = vld [vmem:[%s1267 + $0xd8] sm:$0xff]
        %v3018 = vld [vmem:[%s1267 + $0xe0] sm:$0xff]
        %v3019 = vld [vmem:[%s1267 + $0xe8] sm:$0xf]
        %v3020 = vld [vmem:[%s1267 + $0xf0] sm:$0xff]
        %v3021 = vld [vmem:[%s1267 + $0xf8] sm:$0xff]
        %v3022 = vld [vmem:[%s1267 + $0x100] sm:$0xf]
        %v3023 = vld [vmem:[%s1267 + $0x108] sm:$0xff]
        %v3024 = vld [vmem:[%s1267 + $0x110] sm:$0xff]
        %v3025 = vld [vmem:[%s1267 + $0x118] sm:$0xf]
        %v3026 = vld [vmem:[%s1267 + $0x120] sm:$0xff]
        %v3027 = vld [vmem:[%s1267 + $0x128] sm:$0xff]
        %v3028 = vld [vmem:[%s1267 + $0x130] sm:$0xf]
        %v3029 = vld [vmem:[%s1267 + $0x138] sm:$0xff]
        %v3030 = vld [vmem:[%s1267 + $0x140] sm:$0xff]
        %v3031 = vld [vmem:[%s1267 + $0x148] sm:$0xf]
        %v3032 = vld [vmem:[%s1267 + $0x150] sm:$0xff]
        %v3033 = vld [vmem:[%s1267 + $0x158] sm:$0xff]
        %v3034 = vld [vmem:[%s1267 + $0x160] sm:$0xf]
        %v3035 = vld [vmem:[%s1267 + $0x168] sm:$0xff]
        %v3036 = vld [vmem:[%s1267 + $0x170] sm:$0xff]
        %v3037 = vld [vmem:[%s1267 + $0x178] sm:$0xf]
        %v3038 = vmax.f32 %v2942, %v2990
        %v3039 = vmax.f32 %v2943, %v2991
        %v3040 = vmax.f32 %v2944, %v2992
        %v3041 = vmax.f32 %v2945, %v2993
        %v3042 = vmax.f32 %v2946, %v2994
        %v3043 = vmax.f32 %v2947, %v2995
        %v3044 = vmax.f32 %v2948, %v2996
        %v3045 = vmax.f32 %v2949, %v2997
        %v3046 = vmax.f32 %v2950, %v2998
        %v3047 = vmax.f32 %v2951, %v2999
        %v3048 = vmax.f32 %v2952, %v3000
        %v3049 = vmax.f32 %v2953, %v3001
        %v3050 = vmax.f32 %v2954, %v3002
        %v3051 = vmax.f32 %v2955, %v3003
        %v3052 = vmax.f32 %v2956, %v3004
        %v3053 = vmax.f32 %v2957, %v3005
        %v3054 = vmax.f32 %v2958, %v3006
        %v3055 = vmax.f32 %v2959, %v3007
        %v3056 = vmax.f32 %v2960, %v3008
        %v3057 = vmax.f32 %v2961, %v3009
        %v3058 = vmax.f32 %v2962, %v3010
        %v3059 = vmax.f32 %v2963, %v3011
        %v3060 = vmax.f32 %v2964, %v3012
        %v3061 = vmax.f32 %v2965, %v3013
        %v3062 = vmax.f32 %v2966, %v3014
        %v3063 = vmax.f32 %v2967, %v3015
        %v3064 = vmax.f32 %v2968, %v3016
        %v3065 = vmax.f32 %v2969, %v3017
        %v3066 = vmax.f32 %v2970, %v3018
        %v3067 = vmax.f32 %v2971, %v3019
        %v3068 = vmax.f32 %v2972, %v3020
        %v3069 = vmax.f32 %v2973, %v3021
        %v3070 = vmax.f32 %v2974, %v3022
        %v3071 = vmax.f32 %v2975, %v3023
        %v3072 = vmax.f32 %v2976, %v3024
        %v3073 = vmax.f32 %v2977, %v3025
        %v3074 = vmax.f32 %v2978, %v3026
        %v3075 = vmax.f32 %v2979, %v3027
        %v3076 = vmax.f32 %v2980, %v3028
        %v3077 = vmax.f32 %v2981, %v3029
        %v3078 = vmax.f32 %v2982, %v3030
        %v3079 = vmax.f32 %v2983, %v3031
        %v3080 = vmax.f32 %v2984, %v3032
        %v3081 = vmax.f32 %v2985, %v3033
        %v3082 = vmax.f32 %v2986, %v3034
        %v3083 = vmax.f32 %v2987, %v3035
        %v3084 = vmax.f32 %v2988, %v3036
        %v3085 = vmax.f32 %v2989, %v3037
        %v3086 = vld [vmem:[%s1364] sm:$0xff]
        %v3087 = vld [vmem:[%s1364 + $0x8] sm:$0xff]
        %v3088 = vld [vmem:[%s1364 + $0x10] sm:$0xf]
        %v3089 = vld [vmem:[%s1364 + $0x18] sm:$0xff]
        %v3090 = vld [vmem:[%s1364 + $0x20] sm:$0xff]
        %v3091 = vld [vmem:[%s1364 + $0x28] sm:$0xf]
        %v3092 = vld [vmem:[%s1364 + $0x30] sm:$0xff]
        %v3093 = vld [vmem:[%s1364 + $0x38] sm:$0xff]
        %v3094 = vld [vmem:[%s1364 + $0x40] sm:$0xf]
        %v3095 = vld [vmem:[%s1364 + $0x48] sm:$0xff]
        %v3096 = vld [vmem:[%s1364 + $0x50] sm:$0xff]
        %v3097 = vld [vmem:[%s1364 + $0x58] sm:$0xf]
        %v3098 = vld [vmem:[%s1364 + $0x60] sm:$0xff]
        %v3099 = vld [vmem:[%s1364 + $0x68] sm:$0xff]
        %v3100 = vld [vmem:[%s1364 + $0x70] sm:$0xf]
        %v3101 = vld [vmem:[%s1364 + $0x78] sm:$0xff]
        %v3102 = vld [vmem:[%s1364 + $0x80] sm:$0xff]
        %v3103 = vld [vmem:[%s1364 + $0x88] sm:$0xf]
        %v3104 = vld [vmem:[%s1364 + $0x90] sm:$0xff]
        %v3105 = vld [vmem:[%s1364 + $0x98] sm:$0xff]
        %v3106 = vld [vmem:[%s1364 + $0xa0] sm:$0xf]
        %v3107 = vld [vmem:[%s1364 + $0xa8] sm:$0xff]
        %v3108 = vld [vmem:[%s1364 + $0xb0] sm:$0xff]
        %v3109 = vld [vmem:[%s1364 + $0xb8] sm:$0xf]
        %v3110 = vld [vmem:[%s1364 + $0xc0] sm:$0xff]
        %v3111 = vld [vmem:[%s1364 + $0xc8] sm:$0xff]
        %v3112 = vld [vmem:[%s1364 + $0xd0] sm:$0xf]
        %v3113 = vld [vmem:[%s1364 + $0xd8] sm:$0xff]
        %v3114 = vld [vmem:[%s1364 + $0xe0] sm:$0xff]
        %v3115 = vld [vmem:[%s1364 + $0xe8] sm:$0xf]
        %v3116 = vld [vmem:[%s1364 + $0xf0] sm:$0xff]
        %v3117 = vld [vmem:[%s1364 + $0xf8] sm:$0xff]
        %v3118 = vld [vmem:[%s1364 + $0x100] sm:$0xf]
        %v3119 = vld [vmem:[%s1364 + $0x108] sm:$0xff]
        %v3120 = vld [vmem:[%s1364 + $0x110] sm:$0xff]
        %v3121 = vld [vmem:[%s1364 + $0x118] sm:$0xf]
        %v3122 = vld [vmem:[%s1364 + $0x120] sm:$0xff]
        %v3123 = vld [vmem:[%s1364 + $0x128] sm:$0xff]
        %v3124 = vld [vmem:[%s1364 + $0x130] sm:$0xf]
        %v3125 = vld [vmem:[%s1364 + $0x138] sm:$0xff]
        %v3126 = vld [vmem:[%s1364 + $0x140] sm:$0xff]
        %v3127 = vld [vmem:[%s1364 + $0x148] sm:$0xf]
        %v3128 = vld [vmem:[%s1364 + $0x150] sm:$0xff]
        %v3129 = vld [vmem:[%s1364 + $0x158] sm:$0xff]
        %v3130 = vld [vmem:[%s1364 + $0x160] sm:$0xf]
        %v3131 = vld [vmem:[%s1364 + $0x168] sm:$0xff]
        %v3132 = vld [vmem:[%s1364 + $0x170] sm:$0xff]
        %v3133 = vld [vmem:[%s1364 + $0x178] sm:$0xf]
        %v3134 = vmax.f32 %v3038, %v3086
        %v3135 = vmax.f32 %v3039, %v3087
        %v3136 = vmax.f32 %v3040, %v3088
        %v3137 = vmax.f32 %v3041, %v3089
        %v3138 = vmax.f32 %v3042, %v3090
        %v3139 = vmax.f32 %v3043, %v3091
        %v3140 = vmax.f32 %v3044, %v3092
        %v3141 = vmax.f32 %v3045, %v3093
        %v3142 = vmax.f32 %v3046, %v3094
        %v3143 = vmax.f32 %v3047, %v3095
        %v3144 = vmax.f32 %v3048, %v3096
        %v3145 = vmax.f32 %v3049, %v3097
        %v3146 = vmax.f32 %v3050, %v3098
        %v3147 = vmax.f32 %v3051, %v3099
        %v3148 = vmax.f32 %v3052, %v3100
        %v3149 = vmax.f32 %v3053, %v3101
        %v3150 = vmax.f32 %v3054, %v3102
        %v3151 = vmax.f32 %v3055, %v3103
        %v3152 = vmax.f32 %v3056, %v3104
        %v3153 = vmax.f32 %v3057, %v3105
        %v3154 = vmax.f32 %v3058, %v3106
        %v3155 = vmax.f32 %v3059, %v3107
        %v3156 = vmax.f32 %v3060, %v3108
        %v3157 = vmax.f32 %v3061, %v3109
        %v3158 = vmax.f32 %v3062, %v3110
        %v3159 = vmax.f32 %v3063, %v3111
        %v3160 = vmax.f32 %v3064, %v3112
        %v3161 = vmax.f32 %v3065, %v3113
        %v3162 = vmax.f32 %v3066, %v3114
        %v3163 = vmax.f32 %v3067, %v3115
        %v3164 = vmax.f32 %v3068, %v3116
        %v3165 = vmax.f32 %v3069, %v3117
        %v3166 = vmax.f32 %v3070, %v3118
        %v3167 = vmax.f32 %v3071, %v3119
        %v3168 = vmax.f32 %v3072, %v3120
        %v3169 = vmax.f32 %v3073, %v3121
        %v3170 = vmax.f32 %v3074, %v3122
        %v3171 = vmax.f32 %v3075, %v3123
        %v3172 = vmax.f32 %v3076, %v3124
        %v3173 = vmax.f32 %v3077, %v3125
        %v3174 = vmax.f32 %v3078, %v3126
        %v3175 = vmax.f32 %v3079, %v3127
        %v3176 = vmax.f32 %v3080, %v3128
        %v3177 = vmax.f32 %v3081, %v3129
        %v3178 = vmax.f32 %v3082, %v3130
        %v3179 = vmax.f32 %v3083, %v3131
        %v3180 = vmax.f32 %v3084, %v3132
        %v3181 = vmax.f32 %v3085, %v3133
        %v3230 = vrot.slane %v3134, 1
        %v3231 = vrot.slane %v3135, 1
        %v3232 = vsel %vm1509, %v3230, %v3231
        %v3233 = vrot.slane %v3136, 1
        %v3234 = vsel %vm1509, %v3231, %v3233
        %v3235 = vrot.slane %v3137, 1
        %v3236 = vrot.slane %v3138, 1
        %v3237 = vsel %vm1509, %v3235, %v3236
        %v3238 = vrot.slane %v3139, 1
        %v3239 = vsel %vm1509, %v3236, %v3238
        %v3240 = vrot.slane %v3140, 1
        %v3241 = vrot.slane %v3141, 1
        %v3242 = vsel %vm1509, %v3240, %v3241
        %v3243 = vrot.slane %v3142, 1
        %v3244 = vsel %vm1509, %v3241, %v3243
        %v3245 = vrot.slane %v3143, 1
        %v3246 = vrot.slane %v3144, 1
        %v3247 = vsel %vm1509, %v3245, %v3246
        %v3248 = vrot.slane %v3145, 1
        %v3249 = vsel %vm1509, %v3246, %v3248
        %v3250 = vrot.slane %v3146, 1
        %v3251 = vrot.slane %v3147, 1
        %v3252 = vsel %vm1509, %v3250, %v3251
        %v3253 = vrot.slane %v3148, 1
        %v3254 = vsel %vm1509, %v3251, %v3253
        %v3255 = vrot.slane %v3149, 1
        %v3256 = vrot.slane %v3150, 1
        %v3257 = vsel %vm1509, %v3255, %v3256
        %v3258 = vrot.slane %v3151, 1
        %v3259 = vsel %vm1509, %v3256, %v3258
        %v3260 = vrot.slane %v3152, 1
        %v3261 = vrot.slane %v3153, 1
        %v3262 = vsel %vm1509, %v3260, %v3261
        %v3263 = vrot.slane %v3154, 1
        %v3264 = vsel %vm1509, %v3261, %v3263
        %v3265 = vrot.slane %v3155, 1
        %v3266 = vrot.slane %v3156, 1
        %v3267 = vsel %vm1509, %v3265, %v3266
        %v3268 = vrot.slane %v3157, 1
        %v3269 = vsel %vm1509, %v3266, %v3268
        %v3270 = vrot.slane %v3158, 1
        %v3271 = vrot.slane %v3159, 1
        %v3272 = vsel %vm1509, %v3270, %v3271
        %v3273 = vrot.slane %v3160, 1
        %v3274 = vsel %vm1509, %v3271, %v3273
        %v3275 = vrot.slane %v3161, 1
        %v3276 = vrot.slane %v3162, 1
        %v3277 = vsel %vm1509, %v3275, %v3276
        %v3278 = vrot.slane %v3163, 1
        %v3279 = vsel %vm1509, %v3276, %v3278
        %v3280 = vrot.slane %v3164, 1
        %v3281 = vrot.slane %v3165, 1
        %v3282 = vsel %vm1509, %v3280, %v3281
        %v3283 = vrot.slane %v3166, 1
        %v3284 = vsel %vm1509, %v3281, %v3283
        %v3285 = vrot.slane %v3167, 1
        %v3286 = vrot.slane %v3168, 1
        %v3287 = vsel %vm1509, %v3285, %v3286
        %v3288 = vrot.slane %v3169, 1
        %v3289 = vsel %vm1509, %v3286, %v3288
        %v3290 = vrot.slane %v3170, 1
        %v3291 = vrot.slane %v3171, 1
        %v3292 = vsel %vm1509, %v3290, %v3291
        %v3293 = vrot.slane %v3172, 1
        %v3294 = vsel %vm1509, %v3291, %v3293
        %v3295 = vrot.slane %v3173, 1
        %v3296 = vrot.slane %v3174, 1
        %v3297 = vsel %vm1509, %v3295, %v3296
        %v3298 = vrot.slane %v3175, 1
        %v3299 = vsel %vm1509, %v3296, %v3298
        %v3300 = vrot.slane %v3176, 1
        %v3301 = vrot.slane %v3177, 1
        %v3302 = vsel %vm1509, %v3300, %v3301
        %v3303 = vrot.slane %v3178, 1
        %v3304 = vsel %vm1509, %v3301, %v3303
        %v3305 = vrot.slane %v3179, 1
        %v3306 = vrot.slane %v3180, 1
        %v3307 = vsel %vm1509, %v3305, %v3306
        %v3308 = vrot.slane %v3181, 1
        %v3309 = vsel %vm1509, %v3306, %v3308
        %v3342 = vmax.f32 %v3134, %v3232
        %v3343 = vmax.f32 %v3135, %v3234
        %v3344 = vmax.f32 %v3137, %v3237
        %v3345 = vmax.f32 %v3138, %v3239
        %v3346 = vmax.f32 %v3140, %v3242
        %v3347 = vmax.f32 %v3141, %v3244
        %v3348 = vmax.f32 %v3143, %v3247
        %v3349 = vmax.f32 %v3144, %v3249
        %v3350 = vmax.f32 %v3146, %v3252
        %v3351 = vmax.f32 %v3147, %v3254
        %v3352 = vmax.f32 %v3149, %v3257
        %v3353 = vmax.f32 %v3150, %v3259
        %v3354 = vmax.f32 %v3152, %v3262
        %v3355 = vmax.f32 %v3153, %v3264
        %v3356 = vmax.f32 %v3155, %v3267
        %v3357 = vmax.f32 %v3156, %v3269
        %v3358 = vmax.f32 %v3158, %v3272
        %v3359 = vmax.f32 %v3159, %v3274
        %v3360 = vmax.f32 %v3161, %v3277
        %v3361 = vmax.f32 %v3162, %v3279
        %v3362 = vmax.f32 %v3164, %v3282
        %v3363 = vmax.f32 %v3165, %v3284
        %v3364 = vmax.f32 %v3167, %v3287
        %v3365 = vmax.f32 %v3168, %v3289
        %v3366 = vmax.f32 %v3170, %v3292
        %v3367 = vmax.f32 %v3171, %v3294
        %v3368 = vmax.f32 %v3173, %v3297
        %v3369 = vmax.f32 %v3174, %v3299
        %v3370 = vmax.f32 %v3176, %v3302
        %v3371 = vmax.f32 %v3177, %v3304
        %v3372 = vmax.f32 %v3179, %v3307
        %v3373 = vmax.f32 %v3180, %v3309
        %v3374 = vrot.slane %v3134, 2
        %v3375 = vrot.slane %v3135, 2
        %v3376 = vsel %vm1654, %v3374, %v3375
        %v3377 = vrot.slane %v3136, 2
        %v3378 = vsel %vm1654, %v3375, %v3377
        %v3379 = vrot.slane %v3137, 2
        %v3380 = vrot.slane %v3138, 2
        %v3381 = vsel %vm1654, %v3379, %v3380
        %v3382 = vrot.slane %v3139, 2
        %v3383 = vsel %vm1654, %v3380, %v3382
        %v3384 = vrot.slane %v3140, 2
        %v3385 = vrot.slane %v3141, 2
        %v3386 = vsel %vm1654, %v3384, %v3385
        %v3387 = vrot.slane %v3142, 2
        %v3388 = vsel %vm1654, %v3385, %v3387
        %v3389 = vrot.slane %v3143, 2
        %v3390 = vrot.slane %v3144, 2
        %v3391 = vsel %vm1654, %v3389, %v3390
        %v3392 = vrot.slane %v3145, 2
        %v3393 = vsel %vm1654, %v3390, %v3392
        %v3394 = vrot.slane %v3146, 2
        %v3395 = vrot.slane %v3147, 2
        %v3396 = vsel %vm1654, %v3394, %v3395
        %v3397 = vrot.slane %v3148, 2
        %v3398 = vsel %vm1654, %v3395, %v3397
        %v3399 = vrot.slane %v3149, 2
        %v3400 = vrot.slane %v3150, 2
        %v3401 = vsel %vm1654, %v3399, %v3400
        %v3402 = vrot.slane %v3151, 2
        %v3403 = vsel %vm1654, %v3400, %v3402
        %v3404 = vrot.slane %v3152, 2
        %v3405 = vrot.slane %v3153, 2
        %v3406 = vsel %vm1654, %v3404, %v3405
        %v3407 = vrot.slane %v3154, 2
        %v3408 = vsel %vm1654, %v3405, %v3407
        %v3409 = vrot.slane %v3155, 2
        %v3410 = vrot.slane %v3156, 2
        %v3411 = vsel %vm1654, %v3409, %v3410
        %v3412 = vrot.slane %v3157, 2
        %v3413 = vsel %vm1654, %v3410, %v3412
        %v3414 = vrot.slane %v3158, 2
        %v3415 = vrot.slane %v3159, 2
        %v3416 = vsel %vm1654, %v3414, %v3415
        %v3417 = vrot.slane %v3160, 2
        %v3418 = vsel %vm1654, %v3415, %v3417
        %v3419 = vrot.slane %v3161, 2
        %v3420 = vrot.slane %v3162, 2
        %v3421 = vsel %vm1654, %v3419, %v3420
        %v3422 = vrot.slane %v3163, 2
        %v3423 = vsel %vm1654, %v3420, %v3422
        %v3424 = vrot.slane %v3164, 2
        %v3425 = vrot.slane %v3165, 2
        %v3426 = vsel %vm1654, %v3424, %v3425
        %v3427 = vrot.slane %v3166, 2
        %v3428 = vsel %vm1654, %v3425, %v3427
        %v3429 = vrot.slane %v3167, 2
        %v3430 = vrot.slane %v3168, 2
        %v3431 = vsel %vm1654, %v3429, %v3430
        %v3432 = vrot.slane %v3169, 2
        %v3433 = vsel %vm1654, %v3430, %v3432
        %v3434 = vrot.slane %v3170, 2
        %v3435 = vrot.slane %v3171, 2
        %v3436 = vsel %vm1654, %v3434, %v3435
        %v3437 = vrot.slane %v3172, 2
        %v3438 = vsel %vm1654, %v3435, %v3437
        %v3439 = vrot.slane %v3173, 2
        %v3440 = vrot.slane %v3174, 2
        %v3441 = vsel %vm1654, %v3439, %v3440
        %v3442 = vrot.slane %v3175, 2
        %v3443 = vsel %vm1654, %v3440, %v3442
        %v3444 = vrot.slane %v3176, 2
        %v3445 = vrot.slane %v3177, 2
        %v3446 = vsel %vm1654, %v3444, %v3445
        %v3447 = vrot.slane %v3178, 2
        %v3448 = vsel %vm1654, %v3445, %v3447
        %v3449 = vrot.slane %v3179, 2
        %v3450 = vrot.slane %v3180, 2
        %v3451 = vsel %vm1654, %v3449, %v3450
        %v3452 = vrot.slane %v3181, 2
        %v3453 = vsel %vm1654, %v3450, %v3452
        %v3486 = vmax.f32 %v3342, %v3376
        %v3487 = vmax.f32 %v3343, %v3378
        %v3488 = vmax.f32 %v3344, %v3381
        %v3489 = vmax.f32 %v3345, %v3383
        %v3490 = vmax.f32 %v3346, %v3386
        %v3491 = vmax.f32 %v3347, %v3388
        %v3492 = vmax.f32 %v3348, %v3391
        %v3493 = vmax.f32 %v3349, %v3393
        %v3494 = vmax.f32 %v3350, %v3396
        %v3495 = vmax.f32 %v3351, %v3398
        %v3496 = vmax.f32 %v3352, %v3401
        %v3497 = vmax.f32 %v3353, %v3403
        %v3498 = vmax.f32 %v3354, %v3406
        %v3499 = vmax.f32 %v3355, %v3408
        %v3500 = vmax.f32 %v3356, %v3411
        %v3501 = vmax.f32 %v3357, %v3413
        %v3502 = vmax.f32 %v3358, %v3416
        %v3503 = vmax.f32 %v3359, %v3418
        %v3504 = vmax.f32 %v3360, %v3421
        %v3505 = vmax.f32 %v3361, %v3423
        %v3506 = vmax.f32 %v3362, %v3426
        %v3507 = vmax.f32 %v3363, %v3428
        %v3508 = vmax.f32 %v3364, %v3431
        %v3509 = vmax.f32 %v3365, %v3433
        %v3510 = vmax.f32 %v3366, %v3436
        %v3511 = vmax.f32 %v3367, %v3438
        %v3512 = vmax.f32 %v3368, %v3441
        %v3513 = vmax.f32 %v3369, %v3443
        %v3514 = vmax.f32 %v3370, %v3446
        %v3515 = vmax.f32 %v3371, %v3448
        %v3516 = vmax.f32 %v3372, %v3451
        %v3517 = vmax.f32 %v3373, %v3453
        %v3518 = vrot.slane %v3134, 3
        %v3519 = vrot.slane %v3135, 3
        %v3520 = vsel %vm1799, %v3518, %v3519
        %v3521 = vrot.slane %v3136, 3
        %v3522 = vsel %vm1799, %v3519, %v3521
        %v3523 = vrot.slane %v3137, 3
        %v3524 = vrot.slane %v3138, 3
        %v3525 = vsel %vm1799, %v3523, %v3524
        %v3526 = vrot.slane %v3139, 3
        %v3527 = vsel %vm1799, %v3524, %v3526
        %v3528 = vrot.slane %v3140, 3
        %v3529 = vrot.slane %v3141, 3
        %v3530 = vsel %vm1799, %v3528, %v3529
        %v3531 = vrot.slane %v3142, 3
        %v3532 = vsel %vm1799, %v3529, %v3531
        %v3533 = vrot.slane %v3143, 3
        %v3534 = vrot.slane %v3144, 3
        %v3535 = vsel %vm1799, %v3533, %v3534
        %v3536 = vrot.slane %v3145, 3
        %v3537 = vsel %vm1799, %v3534, %v3536
        %v3538 = vrot.slane %v3146, 3
        %v3539 = vrot.slane %v3147, 3
        %v3540 = vsel %vm1799, %v3538, %v3539
        %v3541 = vrot.slane %v3148, 3
        %v3542 = vsel %vm1799, %v3539, %v3541
        %v3543 = vrot.slane %v3149, 3
        %v3544 = vrot.slane %v3150, 3
        %v3545 = vsel %vm1799, %v3543, %v3544
        %v3546 = vrot.slane %v3151, 3
        %v3547 = vsel %vm1799, %v3544, %v3546
        %v3548 = vrot.slane %v3152, 3
        %v3549 = vrot.slane %v3153, 3
        %v3550 = vsel %vm1799, %v3548, %v3549
        %v3551 = vrot.slane %v3154, 3
        %v3552 = vsel %vm1799, %v3549, %v3551
        %v3553 = vrot.slane %v3155, 3
        %v3554 = vrot.slane %v3156, 3
        %v3555 = vsel %vm1799, %v3553, %v3554
        %v3556 = vrot.slane %v3157, 3
        %v3557 = vsel %vm1799, %v3554, %v3556
        %v3558 = vrot.slane %v3158, 3
        %v3559 = vrot.slane %v3159, 3
        %v3560 = vsel %vm1799, %v3558, %v3559
        %v3561 = vrot.slane %v3160, 3
        %v3562 = vsel %vm1799, %v3559, %v3561
        %v3563 = vrot.slane %v3161, 3
        %v3564 = vrot.slane %v3162, 3
        %v3565 = vsel %vm1799, %v3563, %v3564
        %v3566 = vrot.slane %v3163, 3
        %v3567 = vsel %vm1799, %v3564, %v3566
        %v3568 = vrot.slane %v3164, 3
        %v3569 = vrot.slane %v3165, 3
        %v3570 = vsel %vm1799, %v3568, %v3569
        %v3571 = vrot.slane %v3166, 3
        %v3572 = vsel %vm1799, %v3569, %v3571
        %v3573 = vrot.slane %v3167, 3
        %v3574 = vrot.slane %v3168, 3
        %v3575 = vsel %vm1799, %v3573, %v3574
        %v3576 = vrot.slane %v3169, 3
        %v3577 = vsel %vm1799, %v3574, %v3576
        %v3578 = vrot.slane %v3170, 3
        %v3579 = vrot.slane %v3171, 3
        %v3580 = vsel %vm1799, %v3578, %v3579
        %v3581 = vrot.slane %v3172, 3
        %v3582 = vsel %vm1799, %v3579, %v3581
        %v3583 = vrot.slane %v3173, 3
        %v3584 = vrot.slane %v3174, 3
        %v3585 = vsel %vm1799, %v3583, %v3584
        %v3586 = vrot.slane %v3175, 3
        %v3587 = vsel %vm1799, %v3584, %v3586
        %v3588 = vrot.slane %v3176, 3
        %v3589 = vrot.slane %v3177, 3
        %v3590 = vsel %vm1799, %v3588, %v3589
        %v3591 = vrot.slane %v3178, 3
        %v3592 = vsel %vm1799, %v3589, %v3591
        %v3593 = vrot.slane %v3179, 3
        %v3594 = vrot.slane %v3180, 3
        %v3595 = vsel %vm1799, %v3593, %v3594
        %v3596 = vrot.slane %v3181, 3
        %v3597 = vsel %vm1799, %v3594, %v3596
        %v3630 = vmax.f32 %v3486, %v3520
        %v3631 = vmax.f32 %v3487, %v3522
        %v3632 = vmax.f32 %v3488, %v3525
        %v3633 = vmax.f32 %v3489, %v3527
        %v3634 = vmax.f32 %v3490, %v3530
        %v3635 = vmax.f32 %v3491, %v3532
        %v3636 = vmax.f32 %v3492, %v3535
        %v3637 = vmax.f32 %v3493, %v3537
        %v3638 = vmax.f32 %v3494, %v3540
        %v3639 = vmax.f32 %v3495, %v3542
        %v3640 = vmax.f32 %v3496, %v3545
        %v3641 = vmax.f32 %v3497, %v3547
        %v3642 = vmax.f32 %v3498, %v3550
        %v3643 = vmax.f32 %v3499, %v3552
        %v3644 = vmax.f32 %v3500, %v3555
        %v3645 = vmax.f32 %v3501, %v3557
        %v3646 = vmax.f32 %v3502, %v3560
        %v3647 = vmax.f32 %v3503, %v3562
        %v3648 = vmax.f32 %v3504, %v3565
        %v3649 = vmax.f32 %v3505, %v3567
        %v3650 = vmax.f32 %v3506, %v3570
        %v3651 = vmax.f32 %v3507, %v3572
        %v3652 = vmax.f32 %v3508, %v3575
        %v3653 = vmax.f32 %v3509, %v3577
        %v3654 = vmax.f32 %v3510, %v3580
        %v3655 = vmax.f32 %v3511, %v3582
        %v3656 = vmax.f32 %v3512, %v3585
        %v3657 = vmax.f32 %v3513, %v3587
        %v3658 = vmax.f32 %v3514, %v3590
        %v3659 = vmax.f32 %v3515, %v3592
        %v3660 = vmax.f32 %v3516, %v3595
        %v3661 = vmax.f32 %v3517, %v3597
        %v3662 = vrot.slane %v3134, 4
        %v3663 = vrot.slane %v3135, 4
        %v3664 = vsel %vm1944, %v3662, %v3663
        %v3665 = vrot.slane %v3136, 4
        %v3666 = vsel %vm1944, %v3663, %v3665
        %v3667 = vrot.slane %v3137, 4
        %v3668 = vrot.slane %v3138, 4
        %v3669 = vsel %vm1944, %v3667, %v3668
        %v3670 = vrot.slane %v3139, 4
        %v3671 = vsel %vm1944, %v3668, %v3670
        %v3672 = vrot.slane %v3140, 4
        %v3673 = vrot.slane %v3141, 4
        %v3674 = vsel %vm1944, %v3672, %v3673
        %v3675 = vrot.slane %v3142, 4
        %v3676 = vsel %vm1944, %v3673, %v3675
        %v3677 = vrot.slane %v3143, 4
        %v3678 = vrot.slane %v3144, 4
        %v3679 = vsel %vm1944, %v3677, %v3678
        %v3680 = vrot.slane %v3145, 4
        %v3681 = vsel %vm1944, %v3678, %v3680
        %v3682 = vrot.slane %v3146, 4
        %v3683 = vrot.slane %v3147, 4
        %v3684 = vsel %vm1944, %v3682, %v3683
        %v3685 = vrot.slane %v3148, 4
        %v3686 = vsel %vm1944, %v3683, %v3685
        %v3687 = vrot.slane %v3149, 4
        %v3688 = vrot.slane %v3150, 4
        %v3689 = vsel %vm1944, %v3687, %v3688
        %v3690 = vrot.slane %v3151, 4
        %v3691 = vsel %vm1944, %v3688, %v3690
        %v3692 = vrot.slane %v3152, 4
        %v3693 = vrot.slane %v3153, 4
        %v3694 = vsel %vm1944, %v3692, %v3693
        %v3695 = vrot.slane %v3154, 4
        %v3696 = vsel %vm1944, %v3693, %v3695
        %v3697 = vrot.slane %v3155, 4
        %v3698 = vrot.slane %v3156, 4
        %v3699 = vsel %vm1944, %v3697, %v3698
        %v3700 = vrot.slane %v3157, 4
        %v3701 = vsel %vm1944, %v3698, %v3700
        %v3702 = vrot.slane %v3158, 4
        %v3703 = vrot.slane %v3159, 4
        %v3704 = vsel %vm1944, %v3702, %v3703
        %v3705 = vrot.slane %v3160, 4
        %v3706 = vsel %vm1944, %v3703, %v3705
        %v3707 = vrot.slane %v3161, 4
        %v3708 = vrot.slane %v3162, 4
        %v3709 = vsel %vm1944, %v3707, %v3708
        %v3710 = vrot.slane %v3163, 4
        %v3711 = vsel %vm1944, %v3708, %v3710
        %v3712 = vrot.slane %v3164, 4
        %v3713 = vrot.slane %v3165, 4
        %v3714 = vsel %vm1944, %v3712, %v3713
        %v3715 = vrot.slane %v3166, 4
        %v3716 = vsel %vm1944, %v3713, %v3715
        %v3717 = vrot.slane %v3167, 4
        %v3718 = vrot.slane %v3168, 4
        %v3719 = vsel %vm1944, %v3717, %v3718
        %v3720 = vrot.slane %v3169, 4
        %v3721 = vsel %vm1944, %v3718, %v3720
        %v3722 = vrot.slane %v3170, 4
        %v3723 = vrot.slane %v3171, 4
        %v3724 = vsel %vm1944, %v3722, %v3723
        %v3725 = vrot.slane %v3172, 4
        %v3726 = vsel %vm1944, %v3723, %v3725
        %v3727 = vrot.slane %v3173, 4
        %v3728 = vrot.slane %v3174, 4
        %v3729 = vsel %vm1944, %v3727, %v3728
        %v3730 = vrot.slane %v3175, 4
        %v3731 = vsel %vm1944, %v3728, %v3730
        %v3732 = vrot.slane %v3176, 4
        %v3733 = vrot.slane %v3177, 4
        %v3734 = vsel %vm1944, %v3732, %v3733
        %v3735 = vrot.slane %v3178, 4
        %v3736 = vsel %vm1944, %v3733, %v3735
        %v3737 = vrot.slane %v3179, 4
        %v3738 = vrot.slane %v3180, 4
        %v3739 = vsel %vm1944, %v3737, %v3738
        %v3740 = vrot.slane %v3181, 4
        %v3741 = vsel %vm1944, %v3738, %v3740
        %v3774 = vmax.f32 %v3630, %v3664
        %v3775 = vmax.f32 %v3631, %v3666
        %v3776 = vmax.f32 %v3632, %v3669
        %v3777 = vmax.f32 %v3633, %v3671
        %v3778 = vmax.f32 %v3634, %v3674
        %v3779 = vmax.f32 %v3635, %v3676
        %v3780 = vmax.f32 %v3636, %v3679
        %v3781 = vmax.f32 %v3637, %v3681
        %v3782 = vmax.f32 %v3638, %v3684
        %v3783 = vmax.f32 %v3639, %v3686
        %v3784 = vmax.f32 %v3640, %v3689
        %v3785 = vmax.f32 %v3641, %v3691
        %v3786 = vmax.f32 %v3642, %v3694
        %v3787 = vmax.f32 %v3643, %v3696
        %v3788 = vmax.f32 %v3644, %v3699
        %v3789 = vmax.f32 %v3645, %v3701
        %v3790 = vmax.f32 %v3646, %v3704
        %v3791 = vmax.f32 %v3647, %v3706
        %v3792 = vmax.f32 %v3648, %v3709
        %v3793 = vmax.f32 %v3649, %v3711
        %v3794 = vmax.f32 %v3650, %v3714
        %v3795 = vmax.f32 %v3651, %v3716
        %v3796 = vmax.f32 %v3652, %v3719
        %v3797 = vmax.f32 %v3653, %v3721
        %v3798 = vmax.f32 %v3654, %v3724
        %v3799 = vmax.f32 %v3655, %v3726
        %v3800 = vmax.f32 %v3656, %v3729
        %v3801 = vmax.f32 %v3657, %v3731
        %v3802 = vmax.f32 %v3658, %v3734
        %v3803 = vmax.f32 %v3659, %v3736
        %v3804 = vmax.f32 %v3660, %v3739
        %v3805 = vmax.f32 %v3661, %v3741
        %v3806 = vpack.c.bf16 %v3775, %v3774
        %v3807 = vpack.c.bf16 %v3777, %v3776
        %v3808 = vpack.c.bf16 %v3779, %v3778
        %v3809 = vpack.c.bf16 %v3781, %v3780
        %v3810 = vpack.c.bf16 %v3783, %v3782
        %v3811 = vpack.c.bf16 %v3785, %v3784
        %v3812 = vpack.c.bf16 %v3787, %v3786
        %v3813 = vpack.c.bf16 %v3789, %v3788
        %v3814 = vpack.c.bf16 %v3791, %v3790
        %v3815 = vpack.c.bf16 %v3793, %v3792
        %v3816 = vpack.c.bf16 %v3795, %v3794
        %v3817 = vpack.c.bf16 %v3797, %v3796
        %v3818 = vpack.c.bf16 %v3799, %v3798
        %v3819 = vpack.c.bf16 %v3801, %v3800
        %v3820 = vpack.c.bf16 %v3803, %v3802
        %v3821 = vpack.c.bf16 %v3805, %v3804
        %v3838 = vunpack.c.l.b16 %v3806
        %v3839 = vunpack.c.h.b16 %v3806
        %v3840 = vunpack.c.l.b16 %v3807
        %v3841 = vunpack.c.h.b16 %v3807
        %v3842 = vunpack.c.l.b16 %v3808
        %v3843 = vunpack.c.h.b16 %v3808
        %v3844 = vunpack.c.l.b16 %v3809
        %v3845 = vunpack.c.h.b16 %v3809
        %v3846 = vunpack.c.l.b16 %v3810
        %v3847 = vunpack.c.h.b16 %v3810
        %v3848 = vunpack.c.l.b16 %v3811
        %v3849 = vunpack.c.h.b16 %v3811
        %v3850 = vunpack.c.l.b16 %v3812
        %v3851 = vunpack.c.h.b16 %v3812
        %v3852 = vunpack.c.l.b16 %v3813
        %v3853 = vunpack.c.h.b16 %v3813
        %v3854 = vunpack.c.l.b16 %v3814
        %v3855 = vunpack.c.h.b16 %v3814
        %v3856 = vunpack.c.l.b16 %v3815
        %v3857 = vunpack.c.h.b16 %v3815
        %v3858 = vunpack.c.l.b16 %v3816
        %v3859 = vunpack.c.h.b16 %v3816
        %v3860 = vunpack.c.l.b16 %v3817
        %v3861 = vunpack.c.h.b16 %v3817
        %v3862 = vunpack.c.l.b16 %v3818
        %v3863 = vunpack.c.h.b16 %v3818
        %v3864 = vunpack.c.l.b16 %v3819
        %v3865 = vunpack.c.h.b16 %v3819
        %v3866 = vunpack.c.l.b16 %v3820
        %v3867 = vunpack.c.h.b16 %v3820
        %v3868 = vunpack.c.l.b16 %v3821
        %v3869 = vunpack.c.h.b16 %v3821
        %v3870 = vpack.c.b16 %v3838, %v3838
        %v3871 = vpack.c.b16 %v3839, %v3839
        %v3872 = vpack.c.b16 %v3840, %v3840
        %v3873 = vpack.c.b16 %v3841, %v3841
        %v3874 = vpack.c.b16 %v3842, %v3842
        %v3875 = vpack.c.b16 %v3843, %v3843
        %v3876 = vpack.c.b16 %v3844, %v3844
        %v3877 = vpack.c.b16 %v3845, %v3845
        %v3878 = vpack.c.b16 %v3846, %v3846
        %v3879 = vpack.c.b16 %v3847, %v3847
        %v3880 = vpack.c.b16 %v3848, %v3848
        %v3881 = vpack.c.b16 %v3849, %v3849
        %v3882 = vpack.c.b16 %v3850, %v3850
        %v3883 = vpack.c.b16 %v3851, %v3851
        %v3884 = vpack.c.b16 %v3852, %v3852
        %v3885 = vpack.c.b16 %v3853, %v3853
        %v3886 = vpack.c.b16 %v3854, %v3854
        %v3887 = vpack.c.b16 %v3855, %v3855
        %v3888 = vpack.c.b16 %v3856, %v3856
        %v3889 = vpack.c.b16 %v3857, %v3857
        %v3890 = vpack.c.b16 %v3858, %v3858
        %v3891 = vpack.c.b16 %v3859, %v3859
        %v3892 = vpack.c.b16 %v3860, %v3860
        %v3893 = vpack.c.b16 %v3861, %v3861
        %v3894 = vpack.c.b16 %v3862, %v3862
        %v3895 = vpack.c.b16 %v3863, %v3863
        %v3896 = vpack.c.b16 %v3864, %v3864
        %v3897 = vpack.c.b16 %v3865, %v3865
        %v3898 = vpack.c.b16 %v3866, %v3866
        %v3899 = vpack.c.b16 %v3867, %v3867
        %v3900 = vpack.c.b16 %v3868, %v3868
        %v3901 = vpack.c.b16 %v3869, %v3869
        %v3903 = vshrl.u32 %v3870, 16
        %v3905 = vrot.slane %v3903, 7
        %v3906 = vshll.u32 %v3870, 16
        %v3908 = vor.u32 %v3905, %v3906
        %v3909 = vrot.slane %v3905, 4
        %v3911 = vshrl.u32 %v3871, 16
        %v3913 = vrot.slane %v3911, 7
        %v3914 = vshll.u32 %v3871, 16
        %v3916 = vor.u32 %v3913, %v3914
        %v3917 = vsel %vm557, %v3909, %v3916
        %v3918 = vrot.slane %v3913, 4
        %v3920 = vshrl.u32 %v3872, 16
        %v3922 = vrot.slane %v3920, 7
        %v3923 = vshll.u32 %v3872, 16
        %v3925 = vor.u32 %v3922, %v3923
        %v3926 = vrot.slane %v3922, 4
        %v3928 = vshrl.u32 %v3873, 16
        %v3930 = vrot.slane %v3928, 7
        %v3931 = vshll.u32 %v3873, 16
        %v3933 = vor.u32 %v3930, %v3931
        %v3934 = vsel %vm557, %v3926, %v3933
        %v3935 = vrot.slane %v3930, 4
        %v3937 = vshrl.u32 %v3874, 16
        %v3939 = vrot.slane %v3937, 7
        %v3940 = vshll.u32 %v3874, 16
        %v3942 = vor.u32 %v3939, %v3940
        %v3943 = vrot.slane %v3939, 4
        %v3945 = vshrl.u32 %v3875, 16
        %v3947 = vrot.slane %v3945, 7
        %v3948 = vshll.u32 %v3875, 16
        %v3950 = vor.u32 %v3947, %v3948
        %v3951 = vsel %vm557, %v3943, %v3950
        %v3952 = vrot.slane %v3947, 4
        %v3954 = vshrl.u32 %v3876, 16
        %v3956 = vrot.slane %v3954, 7
        %v3957 = vshll.u32 %v3876, 16
        %v3959 = vor.u32 %v3956, %v3957
        %v3960 = vrot.slane %v3956, 4
        %v3962 = vshrl.u32 %v3877, 16
        %v3964 = vrot.slane %v3962, 7
        %v3965 = vshll.u32 %v3877, 16
        %v3967 = vor.u32 %v3964, %v3965
        %v3968 = vsel %vm557, %v3960, %v3967
        %v3969 = vrot.slane %v3964, 4
        %v3971 = vshrl.u32 %v3878, 16
        %v3973 = vrot.slane %v3971, 7
        %v3974 = vshll.u32 %v3878, 16
        %v3976 = vor.u32 %v3973, %v3974
        %v3977 = vrot.slane %v3973, 4
        %v3979 = vshrl.u32 %v3879, 16
        %v3981 = vrot.slane %v3979, 7
        %v3982 = vshll.u32 %v3879, 16
        %v3984 = vor.u32 %v3981, %v3982
        %v3985 = vsel %vm557, %v3977, %v3984
        %v3986 = vrot.slane %v3981, 4
        %v3988 = vshrl.u32 %v3880, 16
        %v3990 = vrot.slane %v3988, 7
        %v3991 = vshll.u32 %v3880, 16
        %v3993 = vor.u32 %v3990, %v3991
        %v3994 = vrot.slane %v3990, 4
        %v3996 = vshrl.u32 %v3881, 16
        %v3998 = vrot.slane %v3996, 7
        %v3999 = vshll.u32 %v3881, 16
        %v4001 = vor.u32 %v3998, %v3999
        %v4002 = vsel %vm557, %v3994, %v4001
        %v4003 = vrot.slane %v3998, 4
        %v4005 = vshrl.u32 %v3882, 16
        %v4007 = vrot.slane %v4005, 7
        %v4008 = vshll.u32 %v3882, 16
        %v4010 = vor.u32 %v4007, %v4008
        %v4011 = vrot.slane %v4007, 4
        %v4013 = vshrl.u32 %v3883, 16
        %v4015 = vrot.slane %v4013, 7
        %v4016 = vshll.u32 %v3883, 16
        %v4018 = vor.u32 %v4015, %v4016
        %v4019 = vsel %vm557, %v4011, %v4018
        %v4020 = vrot.slane %v4015, 4
        %v4022 = vshrl.u32 %v3884, 16
        %v4024 = vrot.slane %v4022, 7
        %v4025 = vshll.u32 %v3884, 16
        %v4027 = vor.u32 %v4024, %v4025
        %v4028 = vrot.slane %v4024, 4
        %v4030 = vshrl.u32 %v3885, 16
        %v4032 = vrot.slane %v4030, 7
        %v4033 = vshll.u32 %v3885, 16
        %v4035 = vor.u32 %v4032, %v4033
        %v4036 = vsel %vm557, %v4028, %v4035
        %v4037 = vrot.slane %v4032, 4
        %v4039 = vshrl.u32 %v3886, 16
        %v4041 = vrot.slane %v4039, 7
        %v4042 = vshll.u32 %v3886, 16
        %v4044 = vor.u32 %v4041, %v4042
        %v4045 = vrot.slane %v4041, 4
        %v4047 = vshrl.u32 %v3887, 16
        %v4049 = vrot.slane %v4047, 7
        %v4050 = vshll.u32 %v3887, 16
        %v4052 = vor.u32 %v4049, %v4050
        %v4053 = vsel %vm557, %v4045, %v4052
        %v4054 = vrot.slane %v4049, 4
        %v4056 = vshrl.u32 %v3888, 16
        %v4058 = vrot.slane %v4056, 7
        %v4059 = vshll.u32 %v3888, 16
        %v4061 = vor.u32 %v4058, %v4059
        %v4062 = vrot.slane %v4058, 4
        %v4064 = vshrl.u32 %v3889, 16
        %v4066 = vrot.slane %v4064, 7
        %v4067 = vshll.u32 %v3889, 16
        %v4069 = vor.u32 %v4066, %v4067
        %v4070 = vsel %vm557, %v4062, %v4069
        %v4071 = vrot.slane %v4066, 4
        %v4073 = vshrl.u32 %v3890, 16
        %v4075 = vrot.slane %v4073, 7
        %v4076 = vshll.u32 %v3890, 16
        %v4078 = vor.u32 %v4075, %v4076
        %v4079 = vrot.slane %v4075, 4
        %v4081 = vshrl.u32 %v3891, 16
        %v4083 = vrot.slane %v4081, 7
        %v4084 = vshll.u32 %v3891, 16
        %v4086 = vor.u32 %v4083, %v4084
        %v4087 = vsel %vm557, %v4079, %v4086
        %v4088 = vrot.slane %v4083, 4
        %v4090 = vshrl.u32 %v3892, 16
        %v4092 = vrot.slane %v4090, 7
        %v4093 = vshll.u32 %v3892, 16
        %v4095 = vor.u32 %v4092, %v4093
        %v4096 = vrot.slane %v4092, 4
        %v4098 = vshrl.u32 %v3893, 16
        %v4100 = vrot.slane %v4098, 7
        %v4101 = vshll.u32 %v3893, 16
        %v4103 = vor.u32 %v4100, %v4101
        %v4104 = vsel %vm557, %v4096, %v4103
        %v4105 = vrot.slane %v4100, 4
        %v4107 = vshrl.u32 %v3894, 16
        %v4109 = vrot.slane %v4107, 7
        %v4110 = vshll.u32 %v3894, 16
        %v4112 = vor.u32 %v4109, %v4110
        %v4113 = vrot.slane %v4109, 4
        %v4115 = vshrl.u32 %v3895, 16
        %v4117 = vrot.slane %v4115, 7
        %v4118 = vshll.u32 %v3895, 16
        %v4120 = vor.u32 %v4117, %v4118
        %v4121 = vsel %vm557, %v4113, %v4120
        %v4122 = vrot.slane %v4117, 4
        %v4124 = vshrl.u32 %v3896, 16
        %v4126 = vrot.slane %v4124, 7
        %v4127 = vshll.u32 %v3896, 16
        %v4129 = vor.u32 %v4126, %v4127
        %v4130 = vrot.slane %v4126, 4
        %v4132 = vshrl.u32 %v3897, 16
        %v4134 = vrot.slane %v4132, 7
        %v4135 = vshll.u32 %v3897, 16
        %v4137 = vor.u32 %v4134, %v4135
        %v4138 = vsel %vm557, %v4130, %v4137
        %v4139 = vrot.slane %v4134, 4
        %v4141 = vshrl.u32 %v3898, 16
        %v4143 = vrot.slane %v4141, 7
        %v4144 = vshll.u32 %v3898, 16
        %v4146 = vor.u32 %v4143, %v4144
        %v4147 = vrot.slane %v4143, 4
        %v4149 = vshrl.u32 %v3899, 16
        %v4151 = vrot.slane %v4149, 7
        %v4152 = vshll.u32 %v3899, 16
        %v4154 = vor.u32 %v4151, %v4152
        %v4155 = vsel %vm557, %v4147, %v4154
        %v4156 = vrot.slane %v4151, 4
        %v4158 = vshrl.u32 %v3900, 16
        %v4160 = vrot.slane %v4158, 7
        %v4161 = vshll.u32 %v3900, 16
        %v4163 = vor.u32 %v4160, %v4161
        %v4164 = vrot.slane %v4160, 4
        %v4166 = vshrl.u32 %v3901, 16
        %v4168 = vrot.slane %v4166, 7
        %v4169 = vshll.u32 %v3901, 16
        %v4171 = vor.u32 %v4168, %v4169
        %v4172 = vsel %vm557, %v4164, %v4171
        %v4173 = vrot.slane %v4168, 4
        %4174 = vrot.lane.b32.xlu0 %v3908, 8
        %v4175 = vpop.permute.xlu0 %4174
        %4176 = vrot.lane.b32.xlu0 %v3917, 8
        %v4177 = vpop.permute.xlu0 %4176
        %4178 = vrot.lane.b32.xlu0 %v3918, 8
        %v4179 = vpop.permute.xlu0 %4178
        %4180 = vrot.lane.b32.xlu0 %v3925, 8
        %v4181 = vpop.permute.xlu0 %4180
        %4182 = vrot.lane.b32.xlu0 %v3934, 8
        %v4183 = vpop.permute.xlu0 %4182
        %4184 = vrot.lane.b32.xlu0 %v3935, 8
        %v4185 = vpop.permute.xlu0 %4184
        %4186 = vrot.lane.b32.xlu0 %v3942, 8
        %v4187 = vpop.permute.xlu0 %4186
        %4188 = vrot.lane.b32.xlu0 %v3951, 8
        %v4189 = vpop.permute.xlu0 %4188
        %4190 = vrot.lane.b32.xlu0 %v3952, 8
        %v4191 = vpop.permute.xlu0 %4190
        %4192 = vrot.lane.b32.xlu0 %v3959, 8
        %v4193 = vpop.permute.xlu0 %4192
        %4194 = vrot.lane.b32.xlu0 %v3968, 8
        %v4195 = vpop.permute.xlu0 %4194
        %4196 = vrot.lane.b32.xlu0 %v3969, 8
        %v4197 = vpop.permute.xlu0 %4196
        %4198 = vrot.lane.b32.xlu0 %v3976, 8
        %v4199 = vpop.permute.xlu0 %4198
        %4200 = vrot.lane.b32.xlu0 %v3985, 8
        %v4201 = vpop.permute.xlu0 %4200
        %4202 = vrot.lane.b32.xlu0 %v3986, 8
        %v4203 = vpop.permute.xlu0 %4202
        %4204 = vrot.lane.b32.xlu0 %v3993, 8
        %v4205 = vpop.permute.xlu0 %4204
        %4206 = vrot.lane.b32.xlu0 %v4002, 8
        %v4207 = vpop.permute.xlu0 %4206
        %4208 = vrot.lane.b32.xlu0 %v4003, 8
        %v4209 = vpop.permute.xlu0 %4208
        %4210 = vrot.lane.b32.xlu0 %v4010, 8
        %v4211 = vpop.permute.xlu0 %4210
        %4212 = vrot.lane.b32.xlu0 %v4019, 8
        %v4213 = vpop.permute.xlu0 %4212
        %4214 = vrot.lane.b32.xlu0 %v4020, 8
        %v4215 = vpop.permute.xlu0 %4214
        %4216 = vrot.lane.b32.xlu0 %v4027, 8
        %v4217 = vpop.permute.xlu0 %4216
        %4218 = vrot.lane.b32.xlu0 %v4036, 8
        %v4219 = vpop.permute.xlu0 %4218
        %4220 = vrot.lane.b32.xlu0 %v4037, 8
        %v4221 = vpop.permute.xlu0 %4220
        %4222 = vrot.lane.b32.xlu0 %v4044, 8
        %v4223 = vpop.permute.xlu0 %4222
        %4224 = vrot.lane.b32.xlu0 %v4053, 8
        %v4225 = vpop.permute.xlu0 %4224
        %4226 = vrot.lane.b32.xlu0 %v4054, 8
        %v4227 = vpop.permute.xlu0 %4226
        %4228 = vrot.lane.b32.xlu0 %v4061, 8
        %v4229 = vpop.permute.xlu0 %4228
        %4230 = vrot.lane.b32.xlu0 %v4070, 8
        %v4231 = vpop.permute.xlu0 %4230
        %4232 = vrot.lane.b32.xlu0 %v4071, 8
        %v4233 = vpop.permute.xlu0 %4232
        %4234 = vrot.lane.b32.xlu0 %v4078, 8
        %v4235 = vpop.permute.xlu0 %4234
        %4236 = vrot.lane.b32.xlu0 %v4087, 8
        %v4237 = vpop.permute.xlu0 %4236
        %4238 = vrot.lane.b32.xlu0 %v4088, 8
        %v4239 = vpop.permute.xlu0 %4238
        %4240 = vrot.lane.b32.xlu0 %v4095, 8
        %v4241 = vpop.permute.xlu0 %4240
        %4242 = vrot.lane.b32.xlu0 %v4104, 8
        %v4243 = vpop.permute.xlu0 %4242
        %4244 = vrot.lane.b32.xlu0 %v4105, 8
        %v4245 = vpop.permute.xlu0 %4244
        %4246 = vrot.lane.b32.xlu0 %v4112, 8
        %v4247 = vpop.permute.xlu0 %4246
        %4248 = vrot.lane.b32.xlu0 %v4121, 8
        %v4249 = vpop.permute.xlu0 %4248
        %4250 = vrot.lane.b32.xlu0 %v4122, 8
        %v4251 = vpop.permute.xlu0 %4250
        %4252 = vrot.lane.b32.xlu0 %v4129, 8
        %v4253 = vpop.permute.xlu0 %4252
        %4254 = vrot.lane.b32.xlu0 %v4138, 8
        %v4255 = vpop.permute.xlu0 %4254
        %4256 = vrot.lane.b32.xlu0 %v4139, 8
        %v4257 = vpop.permute.xlu0 %4256
        %4258 = vrot.lane.b32.xlu0 %v4146, 8
        %v4259 = vpop.permute.xlu0 %4258
        %4260 = vrot.lane.b32.xlu0 %v4155, 8
        %v4261 = vpop.permute.xlu0 %4260
        %4262 = vrot.lane.b32.xlu0 %v4156, 8
        %v4263 = vpop.permute.xlu0 %4262
        %4264 = vrot.lane.b32.xlu0 %v4163, 8
        %v4265 = vpop.permute.xlu0 %4264
        %4266 = vrot.lane.b32.xlu0 %v4172, 8
        %v4267 = vpop.permute.xlu0 %4266
        %4268 = vrot.lane.b32.xlu0 %v4173, 8
        %v4269 = vpop.permute.xlu0 %4268
        %vm4318 = vcmask 93248
        %vm4319 = vmand %vm4318, %vm378
        %v4320 = vld [vmem:[%s326] sm:$0xf]
        %v4321 = vsel %vm4319, %v4175, %v4320
        %4322 = vst [vmem:[%s326] sm:$0xf] %v4321
        %vm4323 = vcmask 93248
        %4324 = vst.msk [vmem:[%s326 + $0x4] sm:$0xf] %vm4323, %v4177
        %vm4325 = vcmask 90176
        %vm4326 = vmand %vm4325, %vm328
        %v4327 = vld [vmem:[%s326 + $0x8] sm:$0x1]
        %v4328 = vsel %vm4326, %v4179, %v4327
        %4329 = vst [vmem:[%s326 + $0x8] sm:$0x1] %v4328
        %v4330 = vld [vmem:[%s326 + $0xc] sm:$0xf]
        %v4331 = vsel %vm4319, %v4181, %v4330
        %4332 = vst [vmem:[%s326 + $0xc] sm:$0xf] %v4331
        %4333 = vst.msk [vmem:[%s326 + $0x10] sm:$0xf] %vm4323, %v4183
        %v4334 = vld [vmem:[%s326 + $0x14] sm:$0x1]
        %v4335 = vsel %vm4326, %v4185, %v4334
        %4336 = vst [vmem:[%s326 + $0x14] sm:$0x1] %v4335
        %v4337 = vld [vmem:[%s326 + $0x18] sm:$0xf]
        %v4338 = vsel %vm4319, %v4187, %v4337
        %4339 = vst [vmem:[%s326 + $0x18] sm:$0xf] %v4338
        %4340 = vst.msk [vmem:[%s326 + $0x1c] sm:$0xf] %vm4323, %v4189
        %v4341 = vld [vmem:[%s326 + $0x20] sm:$0x1]
        %v4342 = vsel %vm4326, %v4191, %v4341
        %4343 = vst [vmem:[%s326 + $0x20] sm:$0x1] %v4342
        %v4344 = vld [vmem:[%s326 + $0x24] sm:$0xf]
        %v4345 = vsel %vm4319, %v4193, %v4344
        %4346 = vst [vmem:[%s326 + $0x24] sm:$0xf] %v4345
        %4347 = vst.msk [vmem:[%s326 + $0x28] sm:$0xf] %vm4323, %v4195
        %v4348 = vld [vmem:[%s326 + $0x2c] sm:$0x1]
        %v4349 = vsel %vm4326, %v4197, %v4348
        %4350 = vst [vmem:[%s326 + $0x2c] sm:$0x1] %v4349
        %v4351 = vld [vmem:[%s326 + $0x30] sm:$0xf]
        %v4352 = vsel %vm4319, %v4199, %v4351
        %4353 = vst [vmem:[%s326 + $0x30] sm:$0xf] %v4352
        %4354 = vst.msk [vmem:[%s326 + $0x34] sm:$0xf] %vm4323, %v4201
        %v4355 = vld [vmem:[%s326 + $0x38] sm:$0x1]
        %v4356 = vsel %vm4326, %v4203, %v4355
        %4357 = vst [vmem:[%s326 + $0x38] sm:$0x1] %v4356
        %v4358 = vld [vmem:[%s326 + $0x3c] sm:$0xf]
        %v4359 = vsel %vm4319, %v4205, %v4358
        %4360 = vst [vmem:[%s326 + $0x3c] sm:$0xf] %v4359
        %4361 = vst.msk [vmem:[%s326 + $0x40] sm:$0xf] %vm4323, %v4207
        %v4362 = vld [vmem:[%s326 + $0x44] sm:$0x1]
        %v4363 = vsel %vm4326, %v4209, %v4362
        %4364 = vst [vmem:[%s326 + $0x44] sm:$0x1] %v4363
        %v4365 = vld [vmem:[%s326 + $0x48] sm:$0xf]
        %v4366 = vsel %vm4319, %v4211, %v4365
        %4367 = vst [vmem:[%s326 + $0x48] sm:$0xf] %v4366
        %4368 = vst.msk [vmem:[%s326 + $0x4c] sm:$0xf] %vm4323, %v4213
        %v4369 = vld [vmem:[%s326 + $0x50] sm:$0x1]
        %v4370 = vsel %vm4326, %v4215, %v4369
        %4371 = vst [vmem:[%s326 + $0x50] sm:$0x1] %v4370
        %v4372 = vld [vmem:[%s326 + $0x54] sm:$0xf]
        %v4373 = vsel %vm4319, %v4217, %v4372
        %4374 = vst [vmem:[%s326 + $0x54] sm:$0xf] %v4373
        %4375 = vst.msk [vmem:[%s326 + $0x58] sm:$0xf] %vm4323, %v4219
        %v4376 = vld [vmem:[%s326 + $0x5c] sm:$0x1]
        %v4377 = vsel %vm4326, %v4221, %v4376
        %4378 = vst [vmem:[%s326 + $0x5c] sm:$0x1] %v4377
        %v4379 = vld [vmem:[%s326 + $0x60] sm:$0xf]
        %v4380 = vsel %vm4319, %v4223, %v4379
        %4381 = vst [vmem:[%s326 + $0x60] sm:$0xf] %v4380
        %4382 = vst.msk [vmem:[%s326 + $0x64] sm:$0xf] %vm4323, %v4225
        %v4383 = vld [vmem:[%s326 + $0x68] sm:$0x1]
        %v4384 = vsel %vm4326, %v4227, %v4383
        %4385 = vst [vmem:[%s326 + $0x68] sm:$0x1] %v4384
        %v4386 = vld [vmem:[%s326 + $0x6c] sm:$0xf]
        %v4387 = vsel %vm4319, %v4229, %v4386
        %4388 = vst [vmem:[%s326 + $0x6c] sm:$0xf] %v4387
        %4389 = vst.msk [vmem:[%s326 + $0x70] sm:$0xf] %vm4323, %v4231
        %v4390 = vld [vmem:[%s326 + $0x74] sm:$0x1]
        %v4391 = vsel %vm4326, %v4233, %v4390
        %4392 = vst [vmem:[%s326 + $0x74] sm:$0x1] %v4391
        %v4393 = vld [vmem:[%s326 + $0x78] sm:$0xf]
        %v4394 = vsel %vm4319, %v4235, %v4393
        %4395 = vst [vmem:[%s326 + $0x78] sm:$0xf] %v4394
        %4396 = vst.msk [vmem:[%s326 + $0x7c] sm:$0xf] %vm4323, %v4237
        %v4397 = vld [vmem:[%s326 + $0x80] sm:$0x1]
        %v4398 = vsel %vm4326, %v4239, %v4397
        %4399 = vst [vmem:[%s326 + $0x80] sm:$0x1] %v4398
        %v4400 = vld [vmem:[%s326 + $0x84] sm:$0xf]
        %v4401 = vsel %vm4319, %v4241, %v4400
        %4402 = vst [vmem:[%s326 + $0x84] sm:$0xf] %v4401
        %4403 = vst.msk [vmem:[%s326 + $0x88] sm:$0xf] %vm4323, %v4243
        %v4404 = vld [vmem:[%s326 + $0x8c] sm:$0x1]
        %v4405 = vsel %vm4326, %v4245, %v4404
        %4406 = vst [vmem:[%s326 + $0x8c] sm:$0x1] %v4405
        %v4407 = vld [vmem:[%s326 + $0x90] sm:$0xf]
        %v4408 = vsel %vm4319, %v4247, %v4407
        %4409 = vst [vmem:[%s326 + $0x90] sm:$0xf] %v4408
        %4410 = vst.msk [vmem:[%s326 + $0x94] sm:$0xf] %vm4323, %v4249
        %v4411 = vld [vmem:[%s326 + $0x98] sm:$0x1]
        %v4412 = vsel %vm4326, %v4251, %v4411
        %4413 = vst [vmem:[%s326 + $0x98] sm:$0x1] %v4412
        %v4414 = vld [vmem:[%s326 + $0x9c] sm:$0xf]
        %v4415 = vsel %vm4319, %v4253, %v4414
        %4416 = vst [vmem:[%s326 + $0x9c] sm:$0xf] %v4415
        %4417 = vst.msk [vmem:[%s326 + $0xa0] sm:$0xf] %vm4323, %v4255
        %v4418 = vld [vmem:[%s326 + $0xa4] sm:$0x1]
        %v4419 = vsel %vm4326, %v4257, %v4418
        %4420 = vst [vmem:[%s326 + $0xa4] sm:$0x1] %v4419
        %v4421 = vld [vmem:[%s326 + $0xa8] sm:$0xf]
        %v4422 = vsel %vm4319, %v4259, %v4421
        %4423 = vst [vmem:[%s326 + $0xa8] sm:$0xf] %v4422
        %4424 = vst.msk [vmem:[%s326 + $0xac] sm:$0xf] %vm4323, %v4261
        %v4425 = vld [vmem:[%s326 + $0xb0] sm:$0x1]
        %v4426 = vsel %vm4326, %v4263, %v4425
        %4427 = vst [vmem:[%s326 + $0xb0] sm:$0x1] %v4426
        %v4428 = vld [vmem:[%s326 + $0xb4] sm:$0xf]
        %v4429 = vsel %vm4319, %v4265, %v4428
        %4430 = vst [vmem:[%s326 + $0xb4] sm:$0xf] %v4429
        %4431 = vst.msk [vmem:[%s326 + $0xb8] sm:$0xf] %vm4323, %v4267
        %v4432 = vld [vmem:[%s326 + $0xbc] sm:$0x1]
        %v4433 = vsel %vm4326, %v4269, %v4432
        %4434 = vst [vmem:[%s326 + $0xbc] sm:$0x1] %v4433
        %4435 = vst.msk [vmem:[%s283 + $0x2] sm:$0xff] %vm268, %v3774
        %4436 = vst.msk [vmem:[%s283 + $0xa] sm:$0xff] %vm268, %v3775
        %4437 = vst.msk [vmem:[%s283 + $0x1a] sm:$0xff] %vm268, %v3776
        %4438 = vst.msk [vmem:[%s283 + $0x22] sm:$0xff] %vm268, %v3777
        %4439 = vst.msk [vmem:[%s283 + $0x32] sm:$0xff] %vm268, %v3778
        %4440 = vst.msk [vmem:[%s283 + $0x3a] sm:$0xff] %vm268, %v3779
        %4441 = vst.msk [vmem:[%s283 + $0x4a] sm:$0xff] %vm268, %v3780
        %4442 = vst.msk [vmem:[%s283 + $0x52] sm:$0xff] %vm268, %v3781
        %4443 = vst.msk [vmem:[%s283 + $0x62] sm:$0xff] %vm268, %v3782
        %4444 = vst.msk [vmem:[%s283 + $0x6a] sm:$0xff] %vm268, %v3783
        %4445 = vst.msk [vmem:[%s283 + $0x7a] sm:$0xff] %vm268, %v3784
        %4446 = vst.msk [vmem:[%s283 + $0x82] sm:$0xff] %vm268, %v3785
        %4447 = vst.msk [vmem:[%s283 + $0x92] sm:$0xff] %vm268, %v3786
        %4448 = vst.msk [vmem:[%s283 + $0x9a] sm:$0xff] %vm268, %v3787
        %4449 = vst.msk [vmem:[%s283 + $0xaa] sm:$0xff] %vm268, %v3788
        %4450 = vst.msk [vmem:[%s283 + $0xb2] sm:$0xff] %vm268, %v3789
        %4451 = vst.msk [vmem:[%s283 + $0xc2] sm:$0xff] %vm268, %v3790
        %4452 = vst.msk [vmem:[%s283 + $0xca] sm:$0xff] %vm268, %v3791
        %4453 = vst.msk [vmem:[%s283 + $0xda] sm:$0xff] %vm268, %v3792
        %4454 = vst.msk [vmem:[%s283 + $0xe2] sm:$0xff] %vm268, %v3793
        %4455 = vst.msk [vmem:[%s283 + $0xf2] sm:$0xff] %vm268, %v3794
        %4456 = vst.msk [vmem:[%s283 + $0xfa] sm:$0xff] %vm268, %v3795
        %4457 = vst.msk [vmem:[%s283 + $0x10a] sm:$0xff] %vm268, %v3796
        %4458 = vst.msk [vmem:[%s283 + $0x112] sm:$0xff] %vm268, %v3797
        %4459 = vst.msk [vmem:[%s283 + $0x122] sm:$0xff] %vm268, %v3798
        %4460 = vst.msk [vmem:[%s283 + $0x12a] sm:$0xff] %vm268, %v3799
        %4461 = vst.msk [vmem:[%s283 + $0x13a] sm:$0xff] %vm268, %v3800
        %4462 = vst.msk [vmem:[%s283 + $0x142] sm:$0xff] %vm268, %v3801
        %4463 = vst.msk [vmem:[%s283 + $0x152] sm:$0xff] %vm268, %v3802
        %4464 = vst.msk [vmem:[%s283 + $0x15a] sm:$0xff] %vm268, %v3803
        %4465 = vst.msk [vmem:[%s283 + $0x16a] sm:$0xff] %vm268, %v3804
        %4466 = vst.msk [vmem:[%s283 + $0x172] sm:$0xff] %vm268, %v3805
        %v4467 = vld [vmem:[#allocation2] sm:$0xff]
        %v4468 = vld [vmem:[#allocation2 + $0x8] sm:$0xff]
        %v4469 = vld [vmem:[#allocation2 + $0x10] sm:$0xf]
        %v4470 = vld [vmem:[#allocation2 + $0x18] sm:$0xff]
        %v4471 = vld [vmem:[#allocation2 + $0x20] sm:$0xff]
        %v4472 = vld [vmem:[#allocation2 + $0x28] sm:$0xf]
        %v4473 = vld [vmem:[#allocation2 + $0x30] sm:$0xff]
        %v4474 = vld [vmem:[#allocation2 + $0x38] sm:$0xff]
        %v4475 = vld [vmem:[#allocation2 + $0x40] sm:$0xf]
        %v4476 = vld [vmem:[#allocation2 + $0x48] sm:$0xff]
        %v4477 = vld [vmem:[#allocation2 + $0x50] sm:$0xff]
        %v4478 = vld [vmem:[#allocation2 + $0x58] sm:$0xf]
        %v4479 = vld [vmem:[#allocation2 + $0x60] sm:$0xff]
        %v4480 = vld [vmem:[#allocation2 + $0x68] sm:$0xff]
        %v4481 = vld [vmem:[#allocation2 + $0x70] sm:$0xf]
        %v4482 = vld [vmem:[#allocation2 + $0x78] sm:$0xff]
        %v4483 = vld [vmem:[#allocation2 + $0x80] sm:$0xff]
        %v4484 = vld [vmem:[#allocation2 + $0x88] sm:$0xf]
        %v4485 = vld [vmem:[#allocation2 + $0x90] sm:$0xff]
        %v4486 = vld [vmem:[#allocation2 + $0x98] sm:$0xff]
        %v4487 = vld [vmem:[#allocation2 + $0xa0] sm:$0xf]
        %v4488 = vld [vmem:[#allocation2 + $0xa8] sm:$0xff]
        %v4489 = vld [vmem:[#allocation2 + $0xb0] sm:$0xff]
        %v4490 = vld [vmem:[#allocation2 + $0xb8] sm:$0xf]
        %v4491 = vld [vmem:[#allocation2 + $0xc0] sm:$0xff]
        %v4492 = vld [vmem:[#allocation2 + $0xc8] sm:$0xff]
        %v4493 = vld [vmem:[#allocation2 + $0xd0] sm:$0xf]
        %v4494 = vld [vmem:[#allocation2 + $0xd8] sm:$0xff]
        %v4495 = vld [vmem:[#allocation2 + $0xe0] sm:$0xff]
        %v4496 = vld [vmem:[#allocation2 + $0xe8] sm:$0xf]
        %v4497 = vld [vmem:[#allocation2 + $0xf0] sm:$0xff]
        %v4498 = vld [vmem:[#allocation2 + $0xf8] sm:$0xff]
        %v4499 = vld [vmem:[#allocation2 + $0x100] sm:$0xf]
        %v4500 = vld [vmem:[#allocation2 + $0x108] sm:$0xff]
        %v4501 = vld [vmem:[#allocation2 + $0x110] sm:$0xff]
        %v4502 = vld [vmem:[#allocation2 + $0x118] sm:$0xf]
        %v4503 = vld [vmem:[#allocation2 + $0x120] sm:$0xff]
        %v4504 = vld [vmem:[#allocation2 + $0x128] sm:$0xff]
        %v4505 = vld [vmem:[#allocation2 + $0x130] sm:$0xf]
        %v4506 = vld [vmem:[#allocation2 + $0x138] sm:$0xff]
        %v4507 = vld [vmem:[#allocation2 + $0x140] sm:$0xff]
        %v4508 = vld [vmem:[#allocation2 + $0x148] sm:$0xf]
        %v4509 = vld [vmem:[#allocation2 + $0x150] sm:$0xff]
        %v4510 = vld [vmem:[#allocation2 + $0x158] sm:$0xff]
        %v4511 = vld [vmem:[#allocation2 + $0x160] sm:$0xf]
        %v4512 = vld [vmem:[#allocation2 + $0x168] sm:$0xff]
        %v4513 = vld [vmem:[#allocation2 + $0x170] sm:$0xff]
        %v4514 = vld [vmem:[#allocation2 + $0x178] sm:$0xf]
        %v4515 = vld [vmem:[%s1074] sm:$0xff]
        %v4516 = vld [vmem:[%s1074 + $0x8] sm:$0xff]
        %v4517 = vld [vmem:[%s1074 + $0x10] sm:$0xf]
        %v4518 = vld [vmem:[%s1074 + $0x18] sm:$0xff]
        %v4519 = vld [vmem:[%s1074 + $0x20] sm:$0xff]
        %v4520 = vld [vmem:[%s1074 + $0x28] sm:$0xf]
        %v4521 = vld [vmem:[%s1074 + $0x30] sm:$0xff]
        %v4522 = vld [vmem:[%s1074 + $0x38] sm:$0xff]
        %v4523 = vld [vmem:[%s1074 + $0x40] sm:$0xf]
        %v4524 = vld [vmem:[%s1074 + $0x48] sm:$0xff]
        %v4525 = vld [vmem:[%s1074 + $0x50] sm:$0xff]
        %v4526 = vld [vmem:[%s1074 + $0x58] sm:$0xf]
        %v4527 = vld [vmem:[%s1074 + $0x60] sm:$0xff]
        %v4528 = vld [vmem:[%s1074 + $0x68] sm:$0xff]
        %v4529 = vld [vmem:[%s1074 + $0x70] sm:$0xf]
        %v4530 = vld [vmem:[%s1074 + $0x78] sm:$0xff]
        %v4531 = vld [vmem:[%s1074 + $0x80] sm:$0xff]
        %v4532 = vld [vmem:[%s1074 + $0x88] sm:$0xf]
        %v4533 = vld [vmem:[%s1074 + $0x90] sm:$0xff]
        %v4534 = vld [vmem:[%s1074 + $0x98] sm:$0xff]
        %v4535 = vld [vmem:[%s1074 + $0xa0] sm:$0xf]
        %v4536 = vld [vmem:[%s1074 + $0xa8] sm:$0xff]
        %v4537 = vld [vmem:[%s1074 + $0xb0] sm:$0xff]
        %v4538 = vld [vmem:[%s1074 + $0xb8] sm:$0xf]
        %v4539 = vld [vmem:[%s1074 + $0xc0] sm:$0xff]
        %v4540 = vld [vmem:[%s1074 + $0xc8] sm:$0xff]
        %v4541 = vld [vmem:[%s1074 + $0xd0] sm:$0xf]
        %v4542 = vld [vmem:[%s1074 + $0xd8] sm:$0xff]
        %v4543 = vld [vmem:[%s1074 + $0xe0] sm:$0xff]
        %v4544 = vld [vmem:[%s1074 + $0xe8] sm:$0xf]
        %v4545 = vld [vmem:[%s1074 + $0xf0] sm:$0xff]
        %v4546 = vld [vmem:[%s1074 + $0xf8] sm:$0xff]
        %v4547 = vld [vmem:[%s1074 + $0x100] sm:$0xf]
        %v4548 = vld [vmem:[%s1074 + $0x108] sm:$0xff]
        %v4549 = vld [vmem:[%s1074 + $0x110] sm:$0xff]
        %v4550 = vld [vmem:[%s1074 + $0x118] sm:$0xf]
        %v4551 = vld [vmem:[%s1074 + $0x120] sm:$0xff]
        %v4552 = vld [vmem:[%s1074 + $0x128] sm:$0xff]
        %v4553 = vld [vmem:[%s1074 + $0x130] sm:$0xf]
        %v4554 = vld [vmem:[%s1074 + $0x138] sm:$0xff]
        %v4555 = vld [vmem:[%s1074 + $0x140] sm:$0xff]
        %v4556 = vld [vmem:[%s1074 + $0x148] sm:$0xf]
        %v4557 = vld [vmem:[%s1074 + $0x150] sm:$0xff]
        %v4558 = vld [vmem:[%s1074 + $0x158] sm:$0xff]
        %v4559 = vld [vmem:[%s1074 + $0x160] sm:$0xf]
        %v4560 = vld [vmem:[%s1074 + $0x168] sm:$0xff]
        %v4561 = vld [vmem:[%s1074 + $0x170] sm:$0xff]
        %v4562 = vld [vmem:[%s1074 + $0x178] sm:$0xf]
        %v4563 = vmax.f32 %v4467, %v4515
        %v4564 = vmax.f32 %v4468, %v4516
        %v4565 = vmax.f32 %v4469, %v4517
        %v4566 = vmax.f32 %v4470, %v4518
        %v4567 = vmax.f32 %v4471, %v4519
        %v4568 = vmax.f32 %v4472, %v4520
        %v4569 = vmax.f32 %v4473, %v4521
        %v4570 = vmax.f32 %v4474, %v4522
        %v4571 = vmax.f32 %v4475, %v4523
        %v4572 = vmax.f32 %v4476, %v4524
        %v4573 = vmax.f32 %v4477, %v4525
        %v4574 = vmax.f32 %v4478, %v4526
        %v4575 = vmax.f32 %v4479, %v4527
        %v4576 = vmax.f32 %v4480, %v4528
        %v4577 = vmax.f32 %v4481, %v4529
        %v4578 = vmax.f32 %v4482, %v4530
        %v4579 = vmax.f32 %v4483, %v4531
        %v4580 = vmax.f32 %v4484, %v4532
        %v4581 = vmax.f32 %v4485, %v4533
        %v4582 = vmax.f32 %v4486, %v4534
        %v4583 = vmax.f32 %v4487, %v4535
        %v4584 = vmax.f32 %v4488, %v4536
        %v4585 = vmax.f32 %v4489, %v4537
        %v4586 = vmax.f32 %v4490, %v4538
        %v4587 = vmax.f32 %v4491, %v4539
        %v4588 = vmax.f32 %v4492, %v4540
        %v4589 = vmax.f32 %v4493, %v4541
        %v4590 = vmax.f32 %v4494, %v4542
        %v4591 = vmax.f32 %v4495, %v4543
        %v4592 = vmax.f32 %v4496, %v4544
        %v4593 = vmax.f32 %v4497, %v4545
        %v4594 = vmax.f32 %v4498, %v4546
        %v4595 = vmax.f32 %v4499, %v4547
        %v4596 = vmax.f32 %v4500, %v4548
        %v4597 = vmax.f32 %v4501, %v4549
        %v4598 = vmax.f32 %v4502, %v4550
        %v4599 = vmax.f32 %v4503, %v4551
        %v4600 = vmax.f32 %v4504, %v4552
        %v4601 = vmax.f32 %v4505, %v4553
        %v4602 = vmax.f32 %v4506, %v4554
        %v4603 = vmax.f32 %v4507, %v4555
        %v4604 = vmax.f32 %v4508, %v4556
        %v4605 = vmax.f32 %v4509, %v4557
        %v4606 = vmax.f32 %v4510, %v4558
        %v4607 = vmax.f32 %v4511, %v4559
        %v4608 = vmax.f32 %v4512, %v4560
        %v4609 = vmax.f32 %v4513, %v4561
        %v4610 = vmax.f32 %v4514, %v4562
        %v4611 = vld [vmem:[%s283] sm:$0xff]
        %v4612 = vld [vmem:[%s283 + $0x8] sm:$0xff]
        %v4613 = vld [vmem:[%s283 + $0x10] sm:$0xf]
        %v4614 = vld [vmem:[%s283 + $0x18] sm:$0xff]
        %v4615 = vld [vmem:[%s283 + $0x20] sm:$0xff]
        %v4616 = vld [vmem:[%s283 + $0x28] sm:$0xf]
        %v4617 = vld [vmem:[%s283 + $0x30] sm:$0xff]
        %v4618 = vld [vmem:[%s283 + $0x38] sm:$0xff]
        %v4619 = vld [vmem:[%s283 + $0x40] sm:$0xf]
        %v4620 = vld [vmem:[%s283 + $0x48] sm:$0xff]
        %v4621 = vld [vmem:[%s283 + $0x50] sm:$0xff]
        %v4622 = vld [vmem:[%s283 + $0x58] sm:$0xf]
        %v4623 = vld [vmem:[%s283 + $0x60] sm:$0xff]
        %v4624 = vld [vmem:[%s283 + $0x68] sm:$0xff]
        %v4625 = vld [vmem:[%s283 + $0x70] sm:$0xf]
        %v4626 = vld [vmem:[%s283 + $0x78] sm:$0xff]
        %v4627 = vld [vmem:[%s283 + $0x80] sm:$0xff]
        %v4628 = vld [vmem:[%s283 + $0x88] sm:$0xf]
        %v4629 = vld [vmem:[%s283 + $0x90] sm:$0xff]
        %v4630 = vld [vmem:[%s283 + $0x98] sm:$0xff]
        %v4631 = vld [vmem:[%s283 + $0xa0] sm:$0xf]
        %v4632 = vld [vmem:[%s283 + $0xa8] sm:$0xff]
        %v4633 = vld [vmem:[%s283 + $0xb0] sm:$0xff]
        %v4634 = vld [vmem:[%s283 + $0xb8] sm:$0xf]
        %v4635 = vld [vmem:[%s283 + $0xc0] sm:$0xff]
        %v4636 = vld [vmem:[%s283 + $0xc8] sm:$0xff]
        %v4637 = vld [vmem:[%s283 + $0xd0] sm:$0xf]
        %v4638 = vld [vmem:[%s283 + $0xd8] sm:$0xff]
        %v4639 = vld [vmem:[%s283 + $0xe0] sm:$0xff]
        %v4640 = vld [vmem:[%s283 + $0xe8] sm:$0xf]
        %v4641 = vld [vmem:[%s283 + $0xf0] sm:$0xff]
        %v4642 = vld [vmem:[%s283 + $0xf8] sm:$0xff]
        %v4643 = vld [vmem:[%s283 + $0x100] sm:$0xf]
        %v4644 = vld [vmem:[%s283 + $0x108] sm:$0xff]
        %v4645 = vld [vmem:[%s283 + $0x110] sm:$0xff]
        %v4646 = vld [vmem:[%s283 + $0x118] sm:$0xf]
        %v4647 = vld [vmem:[%s283 + $0x120] sm:$0xff]
        %v4648 = vld [vmem:[%s283 + $0x128] sm:$0xff]
        %v4649 = vld [vmem:[%s283 + $0x130] sm:$0xf]
        %v4650 = vld [vmem:[%s283 + $0x138] sm:$0xff]
        %v4651 = vld [vmem:[%s283 + $0x140] sm:$0xff]
        %v4652 = vld [vmem:[%s283 + $0x148] sm:$0xf]
        %v4653 = vld [vmem:[%s283 + $0x150] sm:$0xff]
        %v4654 = vld [vmem:[%s283 + $0x158] sm:$0xff]
        %v4655 = vld [vmem:[%s283 + $0x160] sm:$0xf]
        %v4656 = vld [vmem:[%s283 + $0x168] sm:$0xff]
        %v4657 = vld [vmem:[%s283 + $0x170] sm:$0xff]
        %v4658 = vld [vmem:[%s283 + $0x178] sm:$0xf]
        %v4659 = vmax.f32 %v4563, %v4611
        %v4660 = vmax.f32 %v4564, %v4612
        %v4661 = vmax.f32 %v4565, %v4613
        %v4662 = vmax.f32 %v4566, %v4614
        %v4663 = vmax.f32 %v4567, %v4615
        %v4664 = vmax.f32 %v4568, %v4616
        %v4665 = vmax.f32 %v4569, %v4617
        %v4666 = vmax.f32 %v4570, %v4618
        %v4667 = vmax.f32 %v4571, %v4619
        %v4668 = vmax.f32 %v4572, %v4620
        %v4669 = vmax.f32 %v4573, %v4621
        %v4670 = vmax.f32 %v4574, %v4622
        %v4671 = vmax.f32 %v4575, %v4623
        %v4672 = vmax.f32 %v4576, %v4624
        %v4673 = vmax.f32 %v4577, %v4625
        %v4674 = vmax.f32 %v4578, %v4626
        %v4675 = vmax.f32 %v4579, %v4627
        %v4676 = vmax.f32 %v4580, %v4628
        %v4677 = vmax.f32 %v4581, %v4629
        %v4678 = vmax.f32 %v4582, %v4630
        %v4679 = vmax.f32 %v4583, %v4631
        %v4680 = vmax.f32 %v4584, %v4632
        %v4681 = vmax.f32 %v4585, %v4633
        %v4682 = vmax.f32 %v4586, %v4634
        %v4683 = vmax.f32 %v4587, %v4635
        %v4684 = vmax.f32 %v4588, %v4636
        %v4685 = vmax.f32 %v4589, %v4637
        %v4686 = vmax.f32 %v4590, %v4638
        %v4687 = vmax.f32 %v4591, %v4639
        %v4688 = vmax.f32 %v4592, %v4640
        %v4689 = vmax.f32 %v4593, %v4641
        %v4690 = vmax.f32 %v4594, %v4642
        %v4691 = vmax.f32 %v4595, %v4643
        %v4692 = vmax.f32 %v4596, %v4644
        %v4693 = vmax.f32 %v4597, %v4645
        %v4694 = vmax.f32 %v4598, %v4646
        %v4695 = vmax.f32 %v4599, %v4647
        %v4696 = vmax.f32 %v4600, %v4648
        %v4697 = vmax.f32 %v4601, %v4649
        %v4698 = vmax.f32 %v4602, %v4650
        %v4699 = vmax.f32 %v4603, %v4651
        %v4700 = vmax.f32 %v4604, %v4652
        %v4701 = vmax.f32 %v4605, %v4653
        %v4702 = vmax.f32 %v4606, %v4654
        %v4703 = vmax.f32 %v4607, %v4655
        %v4704 = vmax.f32 %v4608, %v4656
        %v4705 = vmax.f32 %v4609, %v4657
        %v4706 = vmax.f32 %v4610, %v4658
        %v4707 = vld [vmem:[%s1267] sm:$0xff]
        %v4708 = vld [vmem:[%s1267 + $0x8] sm:$0xff]
        %v4709 = vld [vmem:[%s1267 + $0x10] sm:$0xf]
        %v4710 = vld [vmem:[%s1267 + $0x18] sm:$0xff]
        %v4711 = vld [vmem:[%s1267 + $0x20] sm:$0xff]
        %v4712 = vld [vmem:[%s1267 + $0x28] sm:$0xf]
        %v4713 = vld [vmem:[%s1267 + $0x30] sm:$0xff]
        %v4714 = vld [vmem:[%s1267 + $0x38] sm:$0xff]
        %v4715 = vld [vmem:[%s1267 + $0x40] sm:$0xf]
        %v4716 = vld [vmem:[%s1267 + $0x48] sm:$0xff]
        %v4717 = vld [vmem:[%s1267 + $0x50] sm:$0xff]
        %v4718 = vld [vmem:[%s1267 + $0x58] sm:$0xf]
        %v4719 = vld [vmem:[%s1267 + $0x60] sm:$0xff]
        %v4720 = vld [vmem:[%s1267 + $0x68] sm:$0xff]
        %v4721 = vld [vmem:[%s1267 + $0x70] sm:$0xf]
        %v4722 = vld [vmem:[%s1267 + $0x78] sm:$0xff]
        %v4723 = vld [vmem:[%s1267 + $0x80] sm:$0xff]
        %v4724 = vld [vmem:[%s1267 + $0x88] sm:$0xf]
        %v4725 = vld [vmem:[%s1267 + $0x90] sm:$0xff]
        %v4726 = vld [vmem:[%s1267 + $0x98] sm:$0xff]
        %v4727 = vld [vmem:[%s1267 + $0xa0] sm:$0xf]
        %v4728 = vld [vmem:[%s1267 + $0xa8] sm:$0xff]
        %v4729 = vld [vmem:[%s1267 + $0xb0] sm:$0xff]
        %v4730 = vld [vmem:[%s1267 + $0xb8] sm:$0xf]
        %v4731 = vld [vmem:[%s1267 + $0xc0] sm:$0xff]
        %v4732 = vld [vmem:[%s1267 + $0xc8] sm:$0xff]
        %v4733 = vld [vmem:[%s1267 + $0xd0] sm:$0xf]
        %v4734 = vld [vmem:[%s1267 + $0xd8] sm:$0xff]
        %v4735 = vld [vmem:[%s1267 + $0xe0] sm:$0xff]
        %v4736 = vld [vmem:[%s1267 + $0xe8] sm:$0xf]
        %v4737 = vld [vmem:[%s1267 + $0xf0] sm:$0xff]
        %v4738 = vld [vmem:[%s1267 + $0xf8] sm:$0xff]
        %v4739 = vld [vmem:[%s1267 + $0x100] sm:$0xf]
        %v4740 = vld [vmem:[%s1267 + $0x108] sm:$0xff]
        %v4741 = vld [vmem:[%s1267 + $0x110] sm:$0xff]
        %v4742 = vld [vmem:[%s1267 + $0x118] sm:$0xf]
        %v4743 = vld [vmem:[%s1267 + $0x120] sm:$0xff]
        %v4744 = vld [vmem:[%s1267 + $0x128] sm:$0xff]
        %v4745 = vld [vmem:[%s1267 + $0x130] sm:$0xf]
        %v4746 = vld [vmem:[%s1267 + $0x138] sm:$0xff]
        %v4747 = vld [vmem:[%s1267 + $0x140] sm:$0xff]
        %v4748 = vld [vmem:[%s1267 + $0x148] sm:$0xf]
        %v4749 = vld [vmem:[%s1267 + $0x150] sm:$0xff]
        %v4750 = vld [vmem:[%s1267 + $0x158] sm:$0xff]
        %v4751 = vld [vmem:[%s1267 + $0x160] sm:$0xf]
        %v4752 = vld [vmem:[%s1267 + $0x168] sm:$0xff]
        %v4753 = vld [vmem:[%s1267 + $0x170] sm:$0xff]
        %v4754 = vld [vmem:[%s1267 + $0x178] sm:$0xf]
        %v4755 = vmax.f32 %v4659, %v4707
        %v4756 = vmax.f32 %v4660, %v4708
        %v4757 = vmax.f32 %v4661, %v4709
        %v4758 = vmax.f32 %v4662, %v4710
        %v4759 = vmax.f32 %v4663, %v4711
        %v4760 = vmax.f32 %v4664, %v4712
        %v4761 = vmax.f32 %v4665, %v4713
        %v4762 = vmax.f32 %v4666, %v4714
        %v4763 = vmax.f32 %v4667, %v4715
        %v4764 = vmax.f32 %v4668, %v4716
        %v4765 = vmax.f32 %v4669, %v4717
        %v4766 = vmax.f32 %v4670, %v4718
        %v4767 = vmax.f32 %v4671, %v4719
        %v4768 = vmax.f32 %v4672, %v4720
        %v4769 = vmax.f32 %v4673, %v4721
        %v4770 = vmax.f32 %v4674, %v4722
        %v4771 = vmax.f32 %v4675, %v4723
        %v4772 = vmax.f32 %v4676, %v4724
        %v4773 = vmax.f32 %v4677, %v4725
        %v4774 = vmax.f32 %v4678, %v4726
        %v4775 = vmax.f32 %v4679, %v4727
        %v4776 = vmax.f32 %v4680, %v4728
        %v4777 = vmax.f32 %v4681, %v4729
        %v4778 = vmax.f32 %v4682, %v4730
        %v4779 = vmax.f32 %v4683, %v4731
        %v4780 = vmax.f32 %v4684, %v4732
        %v4781 = vmax.f32 %v4685, %v4733
        %v4782 = vmax.f32 %v4686, %v4734
        %v4783 = vmax.f32 %v4687, %v4735
        %v4784 = vmax.f32 %v4688, %v4736
        %v4785 = vmax.f32 %v4689, %v4737
        %v4786 = vmax.f32 %v4690, %v4738
        %v4787 = vmax.f32 %v4691, %v4739
        %v4788 = vmax.f32 %v4692, %v4740
        %v4789 = vmax.f32 %v4693, %v4741
        %v4790 = vmax.f32 %v4694, %v4742
        %v4791 = vmax.f32 %v4695, %v4743
        %v4792 = vmax.f32 %v4696, %v4744
        %v4793 = vmax.f32 %v4697, %v4745
        %v4794 = vmax.f32 %v4698, %v4746
        %v4795 = vmax.f32 %v4699, %v4747
        %v4796 = vmax.f32 %v4700, %v4748
        %v4797 = vmax.f32 %v4701, %v4749
        %v4798 = vmax.f32 %v4702, %v4750
        %v4799 = vmax.f32 %v4703, %v4751
        %v4800 = vmax.f32 %v4704, %v4752
        %v4801 = vmax.f32 %v4705, %v4753
        %v4802 = vmax.f32 %v4706, %v4754
        %v4803 = vld [vmem:[%s1364] sm:$0xff]
        %v4804 = vld [vmem:[%s1364 + $0x8] sm:$0xff]
        %v4805 = vld [vmem:[%s1364 + $0x10] sm:$0xf]
        %v4806 = vld [vmem:[%s1364 + $0x18] sm:$0xff]
        %v4807 = vld [vmem:[%s1364 + $0x20] sm:$0xff]
        %v4808 = vld [vmem:[%s1364 + $0x28] sm:$0xf]
        %v4809 = vld [vmem:[%s1364 + $0x30] sm:$0xff]
        %v4810 = vld [vmem:[%s1364 + $0x38] sm:$0xff]
        %v4811 = vld [vmem:[%s1364 + $0x40] sm:$0xf]
        %v4812 = vld [vmem:[%s1364 + $0x48] sm:$0xff]
        %v4813 = vld [vmem:[%s1364 + $0x50] sm:$0xff]
        %v4814 = vld [vmem:[%s1364 + $0x58] sm:$0xf]
        %v4815 = vld [vmem:[%s1364 + $0x60] sm:$0xff]
        %v4816 = vld [vmem:[%s1364 + $0x68] sm:$0xff]
        %v4817 = vld [vmem:[%s1364 + $0x70] sm:$0xf]
        %v4818 = vld [vmem:[%s1364 + $0x78] sm:$0xff]
        %v4819 = vld [vmem:[%s1364 + $0x80] sm:$0xff]
        %v4820 = vld [vmem:[%s1364 + $0x88] sm:$0xf]
        %v4821 = vld [vmem:[%s1364 + $0x90] sm:$0xff]
        %v4822 = vld [vmem:[%s1364 + $0x98] sm:$0xff]
        %v4823 = vld [vmem:[%s1364 + $0xa0] sm:$0xf]
        %v4824 = vld [vmem:[%s1364 + $0xa8] sm:$0xff]
        %v4825 = vld [vmem:[%s1364 + $0xb0] sm:$0xff]
        %v4826 = vld [vmem:[%s1364 + $0xb8] sm:$0xf]
        %v4827 = vld [vmem:[%s1364 + $0xc0] sm:$0xff]
        %v4828 = vld [vmem:[%s1364 + $0xc8] sm:$0xff]
        %v4829 = vld [vmem:[%s1364 + $0xd0] sm:$0xf]
        %v4830 = vld [vmem:[%s1364 + $0xd8] sm:$0xff]
        %v4831 = vld [vmem:[%s1364 + $0xe0] sm:$0xff]
        %v4832 = vld [vmem:[%s1364 + $0xe8] sm:$0xf]
        %v4833 = vld [vmem:[%s1364 + $0xf0] sm:$0xff]
        %v4834 = vld [vmem:[%s1364 + $0xf8] sm:$0xff]
        %v4835 = vld [vmem:[%s1364 + $0x100] sm:$0xf]
        %v4836 = vld [vmem:[%s1364 + $0x108] sm:$0xff]
        %v4837 = vld [vmem:[%s1364 + $0x110] sm:$0xff]
        %v4838 = vld [vmem:[%s1364 + $0x118] sm:$0xf]
        %v4839 = vld [vmem:[%s1364 + $0x120] sm:$0xff]
        %v4840 = vld [vmem:[%s1364 + $0x128] sm:$0xff]
        %v4841 = vld [vmem:[%s1364 + $0x130] sm:$0xf]
        %v4842 = vld [vmem:[%s1364 + $0x138] sm:$0xff]
        %v4843 = vld [vmem:[%s1364 + $0x140] sm:$0xff]
        %v4844 = vld [vmem:[%s1364 + $0x148] sm:$0xf]
        %v4845 = vld [vmem:[%s1364 + $0x150] sm:$0xff]
        %v4846 = vld [vmem:[%s1364 + $0x158] sm:$0xff]
        %v4847 = vld [vmem:[%s1364 + $0x160] sm:$0xf]
        %v4848 = vld [vmem:[%s1364 + $0x168] sm:$0xff]
        %v4849 = vld [vmem:[%s1364 + $0x170] sm:$0xff]
        %v4850 = vld [vmem:[%s1364 + $0x178] sm:$0xf]
        %v4851 = vmax.f32 %v4755, %v4803
        %v4852 = vmax.f32 %v4756, %v4804
        %v4853 = vmax.f32 %v4757, %v4805
        %v4854 = vmax.f32 %v4758, %v4806
        %v4855 = vmax.f32 %v4759, %v4807
        %v4856 = vmax.f32 %v4760, %v4808
        %v4857 = vmax.f32 %v4761, %v4809
        %v4858 = vmax.f32 %v4762, %v4810
        %v4859 = vmax.f32 %v4763, %v4811
        %v4860 = vmax.f32 %v4764, %v4812
        %v4861 = vmax.f32 %v4765, %v4813
        %v4862 = vmax.f32 %v4766, %v4814
        %v4863 = vmax.f32 %v4767, %v4815
        %v4864 = vmax.f32 %v4768, %v4816
        %v4865 = vmax.f32 %v4769, %v4817
        %v4866 = vmax.f32 %v4770, %v4818
        %v4867 = vmax.f32 %v4771, %v4819
        %v4868 = vmax.f32 %v4772, %v4820
        %v4869 = vmax.f32 %v4773, %v4821
        %v4870 = vmax.f32 %v4774, %v4822
        %v4871 = vmax.f32 %v4775, %v4823
        %v4872 = vmax.f32 %v4776, %v4824
        %v4873 = vmax.f32 %v4777, %v4825
        %v4874 = vmax.f32 %v4778, %v4826
        %v4875 = vmax.f32 %v4779, %v4827
        %v4876 = vmax.f32 %v4780, %v4828
        %v4877 = vmax.f32 %v4781, %v4829
        %v4878 = vmax.f32 %v4782, %v4830
        %v4879 = vmax.f32 %v4783, %v4831
        %v4880 = vmax.f32 %v4784, %v4832
        %v4881 = vmax.f32 %v4785, %v4833
        %v4882 = vmax.f32 %v4786, %v4834
        %v4883 = vmax.f32 %v4787, %v4835
        %v4884 = vmax.f32 %v4788, %v4836
        %v4885 = vmax.f32 %v4789, %v4837
        %v4886 = vmax.f32 %v4790, %v4838
        %v4887 = vmax.f32 %v4791, %v4839
        %v4888 = vmax.f32 %v4792, %v4840
        %v4889 = vmax.f32 %v4793, %v4841
        %v4890 = vmax.f32 %v4794, %v4842
        %v4891 = vmax.f32 %v4795, %v4843
        %v4892 = vmax.f32 %v4796, %v4844
        %v4893 = vmax.f32 %v4797, %v4845
        %v4894 = vmax.f32 %v4798, %v4846
        %v4895 = vmax.f32 %v4799, %v4847
        %v4896 = vmax.f32 %v4800, %v4848
        %v4897 = vmax.f32 %v4801, %v4849
        %v4898 = vmax.f32 %v4802, %v4850
        %v4947 = vrot.slane %v4851, 1
        %v4948 = vrot.slane %v4852, 1
        %v4949 = vsel %vm1509, %v4947, %v4948
        %v4950 = vrot.slane %v4853, 1
        %v4951 = vsel %vm1509, %v4948, %v4950
        %v4952 = vrot.slane %v4854, 1
        %v4953 = vrot.slane %v4855, 1
        %v4954 = vsel %vm1509, %v4952, %v4953
        %v4955 = vrot.slane %v4856, 1
        %v4956 = vsel %vm1509, %v4953, %v4955
        %v4957 = vrot.slane %v4857, 1
        %v4958 = vrot.slane %v4858, 1
        %v4959 = vsel %vm1509, %v4957, %v4958
        %v4960 = vrot.slane %v4859, 1
        %v4961 = vsel %vm1509, %v4958, %v4960
        %v4962 = vrot.slane %v4860, 1
        %v4963 = vrot.slane %v4861, 1
        %v4964 = vsel %vm1509, %v4962, %v4963
        %v4965 = vrot.slane %v4862, 1
        %v4966 = vsel %vm1509, %v4963, %v4965
        %v4967 = vrot.slane %v4863, 1
        %v4968 = vrot.slane %v4864, 1
        %v4969 = vsel %vm1509, %v4967, %v4968
        %v4970 = vrot.slane %v4865, 1
        %v4971 = vsel %vm1509, %v4968, %v4970
        %v4972 = vrot.slane %v4866, 1
        %v4973 = vrot.slane %v4867, 1
        %v4974 = vsel %vm1509, %v4972, %v4973
        %v4975 = vrot.slane %v4868, 1
        %v4976 = vsel %vm1509, %v4973, %v4975
        %v4977 = vrot.slane %v4869, 1
        %v4978 = vrot.slane %v4870, 1
        %v4979 = vsel %vm1509, %v4977, %v4978
        %v4980 = vrot.slane %v4871, 1
        %v4981 = vsel %vm1509, %v4978, %v4980
        %v4982 = vrot.slane %v4872, 1
        %v4983 = vrot.slane %v4873, 1
        %v4984 = vsel %vm1509, %v4982, %v4983
        %v4985 = vrot.slane %v4874, 1
        %v4986 = vsel %vm1509, %v4983, %v4985
        %v4987 = vrot.slane %v4875, 1
        %v4988 = vrot.slane %v4876, 1
        %v4989 = vsel %vm1509, %v4987, %v4988
        %v4990 = vrot.slane %v4877, 1
        %v4991 = vsel %vm1509, %v4988, %v4990
        %v4992 = vrot.slane %v4878, 1
        %v4993 = vrot.slane %v4879, 1
        %v4994 = vsel %vm1509, %v4992, %v4993
        %v4995 = vrot.slane %v4880, 1
        %v4996 = vsel %vm1509, %v4993, %v4995
        %v4997 = vrot.slane %v4881, 1
        %v4998 = vrot.slane %v4882, 1
        %v4999 = vsel %vm1509, %v4997, %v4998
        %v5000 = vrot.slane %v4883, 1
        %v5001 = vsel %vm1509, %v4998, %v5000
        %v5002 = vrot.slane %v4884, 1
        %v5003 = vrot.slane %v4885, 1
        %v5004 = vsel %vm1509, %v5002, %v5003
        %v5005 = vrot.slane %v4886, 1
        %v5006 = vsel %vm1509, %v5003, %v5005
        %v5007 = vrot.slane %v4887, 1
        %v5008 = vrot.slane %v4888, 1
        %v5009 = vsel %vm1509, %v5007, %v5008
        %v5010 = vrot.slane %v4889, 1
        %v5011 = vsel %vm1509, %v5008, %v5010
        %v5012 = vrot.slane %v4890, 1
        %v5013 = vrot.slane %v4891, 1
        %v5014 = vsel %vm1509, %v5012, %v5013
        %v5015 = vrot.slane %v4892, 1
        %v5016 = vsel %vm1509, %v5013, %v5015
        %v5017 = vrot.slane %v4893, 1
        %v5018 = vrot.slane %v4894, 1
        %v5019 = vsel %vm1509, %v5017, %v5018
        %v5020 = vrot.slane %v4895, 1
        %v5021 = vsel %vm1509, %v5018, %v5020
        %v5022 = vrot.slane %v4896, 1
        %v5023 = vrot.slane %v4897, 1
        %v5024 = vsel %vm1509, %v5022, %v5023
        %v5025 = vrot.slane %v4898, 1
        %v5026 = vsel %vm1509, %v5023, %v5025
        %v5059 = vmax.f32 %v4851, %v4949
        %v5060 = vmax.f32 %v4852, %v4951
        %v5061 = vmax.f32 %v4854, %v4954
        %v5062 = vmax.f32 %v4855, %v4956
        %v5063 = vmax.f32 %v4857, %v4959
        %v5064 = vmax.f32 %v4858, %v4961
        %v5065 = vmax.f32 %v4860, %v4964
        %v5066 = vmax.f32 %v4861, %v4966
        %v5067 = vmax.f32 %v4863, %v4969
        %v5068 = vmax.f32 %v4864, %v4971
        %v5069 = vmax.f32 %v4866, %v4974
        %v5070 = vmax.f32 %v4867, %v4976
        %v5071 = vmax.f32 %v4869, %v4979
        %v5072 = vmax.f32 %v4870, %v4981
        %v5073 = vmax.f32 %v4872, %v4984
        %v5074 = vmax.f32 %v4873, %v4986
        %v5075 = vmax.f32 %v4875, %v4989
        %v5076 = vmax.f32 %v4876, %v4991
        %v5077 = vmax.f32 %v4878, %v4994
        %v5078 = vmax.f32 %v4879, %v4996
        %v5079 = vmax.f32 %v4881, %v4999
        %v5080 = vmax.f32 %v4882, %v5001
        %v5081 = vmax.f32 %v4884, %v5004
        %v5082 = vmax.f32 %v4885, %v5006
        %v5083 = vmax.f32 %v4887, %v5009
        %v5084 = vmax.f32 %v4888, %v5011
        %v5085 = vmax.f32 %v4890, %v5014
        %v5086 = vmax.f32 %v4891, %v5016
        %v5087 = vmax.f32 %v4893, %v5019
        %v5088 = vmax.f32 %v4894, %v5021
        %v5089 = vmax.f32 %v4896, %v5024
        %v5090 = vmax.f32 %v4897, %v5026
        %v5091 = vrot.slane %v4851, 2
        %v5092 = vrot.slane %v4852, 2
        %v5093 = vsel %vm1654, %v5091, %v5092
        %v5094 = vrot.slane %v4853, 2
        %v5095 = vsel %vm1654, %v5092, %v5094
        %v5096 = vrot.slane %v4854, 2
        %v5097 = vrot.slane %v4855, 2
        %v5098 = vsel %vm1654, %v5096, %v5097
        %v5099 = vrot.slane %v4856, 2
        %v5100 = vsel %vm1654, %v5097, %v5099
        %v5101 = vrot.slane %v4857, 2
        %v5102 = vrot.slane %v4858, 2
        %v5103 = vsel %vm1654, %v5101, %v5102
        %v5104 = vrot.slane %v4859, 2
        %v5105 = vsel %vm1654, %v5102, %v5104
        %v5106 = vrot.slane %v4860, 2
        %v5107 = vrot.slane %v4861, 2
        %v5108 = vsel %vm1654, %v5106, %v5107
        %v5109 = vrot.slane %v4862, 2
        %v5110 = vsel %vm1654, %v5107, %v5109
        %v5111 = vrot.slane %v4863, 2
        %v5112 = vrot.slane %v4864, 2
        %v5113 = vsel %vm1654, %v5111, %v5112
        %v5114 = vrot.slane %v4865, 2
        %v5115 = vsel %vm1654, %v5112, %v5114
        %v5116 = vrot.slane %v4866, 2
        %v5117 = vrot.slane %v4867, 2
        %v5118 = vsel %vm1654, %v5116, %v5117
        %v5119 = vrot.slane %v4868, 2
        %v5120 = vsel %vm1654, %v5117, %v5119
        %v5121 = vrot.slane %v4869, 2
        %v5122 = vrot.slane %v4870, 2
        %v5123 = vsel %vm1654, %v5121, %v5122
        %v5124 = vrot.slane %v4871, 2
        %v5125 = vsel %vm1654, %v5122, %v5124
        %v5126 = vrot.slane %v4872, 2
        %v5127 = vrot.slane %v4873, 2
        %v5128 = vsel %vm1654, %v5126, %v5127
        %v5129 = vrot.slane %v4874, 2
        %v5130 = vsel %vm1654, %v5127, %v5129
        %v5131 = vrot.slane %v4875, 2
        %v5132 = vrot.slane %v4876, 2
        %v5133 = vsel %vm1654, %v5131, %v5132
        %v5134 = vrot.slane %v4877, 2
        %v5135 = vsel %vm1654, %v5132, %v5134
        %v5136 = vrot.slane %v4878, 2
        %v5137 = vrot.slane %v4879, 2
        %v5138 = vsel %vm1654, %v5136, %v5137
        %v5139 = vrot.slane %v4880, 2
        %v5140 = vsel %vm1654, %v5137, %v5139
        %v5141 = vrot.slane %v4881, 2
        %v5142 = vrot.slane %v4882, 2
        %v5143 = vsel %vm1654, %v5141, %v5142
        %v5144 = vrot.slane %v4883, 2
        %v5145 = vsel %vm1654, %v5142, %v5144
        %v5146 = vrot.slane %v4884, 2
        %v5147 = vrot.slane %v4885, 2
        %v5148 = vsel %vm1654, %v5146, %v5147
        %v5149 = vrot.slane %v4886, 2
        %v5150 = vsel %vm1654, %v5147, %v5149
        %v5151 = vrot.slane %v4887, 2
        %v5152 = vrot.slane %v4888, 2
        %v5153 = vsel %vm1654, %v5151, %v5152
        %v5154 = vrot.slane %v4889, 2
        %v5155 = vsel %vm1654, %v5152, %v5154
        %v5156 = vrot.slane %v4890, 2
        %v5157 = vrot.slane %v4891, 2
        %v5158 = vsel %vm1654, %v5156, %v5157
        %v5159 = vrot.slane %v4892, 2
        %v5160 = vsel %vm1654, %v5157, %v5159
        %v5161 = vrot.slane %v4893, 2
        %v5162 = vrot.slane %v4894, 2
        %v5163 = vsel %vm1654, %v5161, %v5162
        %v5164 = vrot.slane %v4895, 2
        %v5165 = vsel %vm1654, %v5162, %v5164
        %v5166 = vrot.slane %v4896, 2
        %v5167 = vrot.slane %v4897, 2
        %v5168 = vsel %vm1654, %v5166, %v5167
        %v5169 = vrot.slane %v4898, 2
        %v5170 = vsel %vm1654, %v5167, %v5169
        %v5203 = vmax.f32 %v5059, %v5093
        %v5204 = vmax.f32 %v5060, %v5095
        %v5205 = vmax.f32 %v5061, %v5098
        %v5206 = vmax.f32 %v5062, %v5100
        %v5207 = vmax.f32 %v5063, %v5103
        %v5208 = vmax.f32 %v5064, %v5105
        %v5209 = vmax.f32 %v5065, %v5108
        %v5210 = vmax.f32 %v5066, %v5110
        %v5211 = vmax.f32 %v5067, %v5113
        %v5212 = vmax.f32 %v5068, %v5115
        %v5213 = vmax.f32 %v5069, %v5118
        %v5214 = vmax.f32 %v5070, %v5120
        %v5215 = vmax.f32 %v5071, %v5123
        %v5216 = vmax.f32 %v5072, %v5125
        %v5217 = vmax.f32 %v5073, %v5128
        %v5218 = vmax.f32 %v5074, %v5130
        %v5219 = vmax.f32 %v5075, %v5133
        %v5220 = vmax.f32 %v5076, %v5135
        %v5221 = vmax.f32 %v5077, %v5138
        %v5222 = vmax.f32 %v5078, %v5140
        %v5223 = vmax.f32 %v5079, %v5143
        %v5224 = vmax.f32 %v5080, %v5145
        %v5225 = vmax.f32 %v5081, %v5148
        %v5226 = vmax.f32 %v5082, %v5150
        %v5227 = vmax.f32 %v5083, %v5153
        %v5228 = vmax.f32 %v5084, %v5155
        %v5229 = vmax.f32 %v5085, %v5158
        %v5230 = vmax.f32 %v5086, %v5160
        %v5231 = vmax.f32 %v5087, %v5163
        %v5232 = vmax.f32 %v5088, %v5165
        %v5233 = vmax.f32 %v5089, %v5168
        %v5234 = vmax.f32 %v5090, %v5170
        %v5235 = vrot.slane %v4851, 3
        %v5236 = vrot.slane %v4852, 3
        %v5237 = vsel %vm1799, %v5235, %v5236
        %v5238 = vrot.slane %v4853, 3
        %v5239 = vsel %vm1799, %v5236, %v5238
        %v5240 = vrot.slane %v4854, 3
        %v5241 = vrot.slane %v4855, 3
        %v5242 = vsel %vm1799, %v5240, %v5241
        %v5243 = vrot.slane %v4856, 3
        %v5244 = vsel %vm1799, %v5241, %v5243
        %v5245 = vrot.slane %v4857, 3
        %v5246 = vrot.slane %v4858, 3
        %v5247 = vsel %vm1799, %v5245, %v5246
        %v5248 = vrot.slane %v4859, 3
        %v5249 = vsel %vm1799, %v5246, %v5248
        %v5250 = vrot.slane %v4860, 3
        %v5251 = vrot.slane %v4861, 3
        %v5252 = vsel %vm1799, %v5250, %v5251
        %v5253 = vrot.slane %v4862, 3
        %v5254 = vsel %vm1799, %v5251, %v5253
        %v5255 = vrot.slane %v4863, 3
        %v5256 = vrot.slane %v4864, 3
        %v5257 = vsel %vm1799, %v5255, %v5256
        %v5258 = vrot.slane %v4865, 3
        %v5259 = vsel %vm1799, %v5256, %v5258
        %v5260 = vrot.slane %v4866, 3
        %v5261 = vrot.slane %v4867, 3
        %v5262 = vsel %vm1799, %v5260, %v5261
        %v5263 = vrot.slane %v4868, 3
        %v5264 = vsel %vm1799, %v5261, %v5263
        %v5265 = vrot.slane %v4869, 3
        %v5266 = vrot.slane %v4870, 3
        %v5267 = vsel %vm1799, %v5265, %v5266
        %v5268 = vrot.slane %v4871, 3
        %v5269 = vsel %vm1799, %v5266, %v5268
        %v5270 = vrot.slane %v4872, 3
        %v5271 = vrot.slane %v4873, 3
        %v5272 = vsel %vm1799, %v5270, %v5271
        %v5273 = vrot.slane %v4874, 3
        %v5274 = vsel %vm1799, %v5271, %v5273
        %v5275 = vrot.slane %v4875, 3
        %v5276 = vrot.slane %v4876, 3
        %v5277 = vsel %vm1799, %v5275, %v5276
        %v5278 = vrot.slane %v4877, 3
        %v5279 = vsel %vm1799, %v5276, %v5278
        %v5280 = vrot.slane %v4878, 3
        %v5281 = vrot.slane %v4879, 3
        %v5282 = vsel %vm1799, %v5280, %v5281
        %v5283 = vrot.slane %v4880, 3
        %v5284 = vsel %vm1799, %v5281, %v5283
        %v5285 = vrot.slane %v4881, 3
        %v5286 = vrot.slane %v4882, 3
        %v5287 = vsel %vm1799, %v5285, %v5286
        %v5288 = vrot.slane %v4883, 3
        %v5289 = vsel %vm1799, %v5286, %v5288
        %v5290 = vrot.slane %v4884, 3
        %v5291 = vrot.slane %v4885, 3
        %v5292 = vsel %vm1799, %v5290, %v5291
        %v5293 = vrot.slane %v4886, 3
        %v5294 = vsel %vm1799, %v5291, %v5293
        %v5295 = vrot.slane %v4887, 3
        %v5296 = vrot.slane %v4888, 3
        %v5297 = vsel %vm1799, %v5295, %v5296
        %v5298 = vrot.slane %v4889, 3
        %v5299 = vsel %vm1799, %v5296, %v5298
        %v5300 = vrot.slane %v4890, 3
        %v5301 = vrot.slane %v4891, 3
        %v5302 = vsel %vm1799, %v5300, %v5301
        %v5303 = vrot.slane %v4892, 3
        %v5304 = vsel %vm1799, %v5301, %v5303
        %v5305 = vrot.slane %v4893, 3
        %v5306 = vrot.slane %v4894, 3
        %v5307 = vsel %vm1799, %v5305, %v5306
        %v5308 = vrot.slane %v4895, 3
        %v5309 = vsel %vm1799, %v5306, %v5308
        %v5310 = vrot.slane %v4896, 3
        %v5311 = vrot.slane %v4897, 3
        %v5312 = vsel %vm1799, %v5310, %v5311
        %v5313 = vrot.slane %v4898, 3
        %v5314 = vsel %vm1799, %v5311, %v5313
        %v5347 = vmax.f32 %v5203, %v5237
        %v5348 = vmax.f32 %v5204, %v5239
        %v5349 = vmax.f32 %v5205, %v5242
        %v5350 = vmax.f32 %v5206, %v5244
        %v5351 = vmax.f32 %v5207, %v5247
        %v5352 = vmax.f32 %v5208, %v5249
        %v5353 = vmax.f32 %v5209, %v5252
        %v5354 = vmax.f32 %v5210, %v5254
        %v5355 = vmax.f32 %v5211, %v5257
        %v5356 = vmax.f32 %v5212, %v5259
        %v5357 = vmax.f32 %v5213, %v5262
        %v5358 = vmax.f32 %v5214, %v5264
        %v5359 = vmax.f32 %v5215, %v5267
        %v5360 = vmax.f32 %v5216, %v5269
        %v5361 = vmax.f32 %v5217, %v5272
        %v5362 = vmax.f32 %v5218, %v5274
        %v5363 = vmax.f32 %v5219, %v5277
        %v5364 = vmax.f32 %v5220, %v5279
        %v5365 = vmax.f32 %v5221, %v5282
        %v5366 = vmax.f32 %v5222, %v5284
        %v5367 = vmax.f32 %v5223, %v5287
        %v5368 = vmax.f32 %v5224, %v5289
        %v5369 = vmax.f32 %v5225, %v5292
        %v5370 = vmax.f32 %v5226, %v5294
        %v5371 = vmax.f32 %v5227, %v5297
        %v5372 = vmax.f32 %v5228, %v5299
        %v5373 = vmax.f32 %v5229, %v5302
        %v5374 = vmax.f32 %v5230, %v5304
        %v5375 = vmax.f32 %v5231, %v5307
        %v5376 = vmax.f32 %v5232, %v5309
        %v5377 = vmax.f32 %v5233, %v5312
        %v5378 = vmax.f32 %v5234, %v5314
        %v5379 = vrot.slane %v4851, 4
        %v5380 = vrot.slane %v4852, 4
        %v5381 = vsel %vm1944, %v5379, %v5380
        %v5382 = vrot.slane %v4853, 4
        %v5383 = vsel %vm1944, %v5380, %v5382
        %v5384 = vrot.slane %v4854, 4
        %v5385 = vrot.slane %v4855, 4
        %v5386 = vsel %vm1944, %v5384, %v5385
        %v5387 = vrot.slane %v4856, 4
        %v5388 = vsel %vm1944, %v5385, %v5387
        %v5389 = vrot.slane %v4857, 4
        %v5390 = vrot.slane %v4858, 4
        %v5391 = vsel %vm1944, %v5389, %v5390
        %v5392 = vrot.slane %v4859, 4
        %v5393 = vsel %vm1944, %v5390, %v5392
        %v5394 = vrot.slane %v4860, 4
        %v5395 = vrot.slane %v4861, 4
        %v5396 = vsel %vm1944, %v5394, %v5395
        %v5397 = vrot.slane %v4862, 4
        %v5398 = vsel %vm1944, %v5395, %v5397
        %v5399 = vrot.slane %v4863, 4
        %v5400 = vrot.slane %v4864, 4
        %v5401 = vsel %vm1944, %v5399, %v5400
        %v5402 = vrot.slane %v4865, 4
        %v5403 = vsel %vm1944, %v5400, %v5402
        %v5404 = vrot.slane %v4866, 4
        %v5405 = vrot.slane %v4867, 4
        %v5406 = vsel %vm1944, %v5404, %v5405
        %v5407 = vrot.slane %v4868, 4
        %v5408 = vsel %vm1944, %v5405, %v5407
        %v5409 = vrot.slane %v4869, 4
        %v5410 = vrot.slane %v4870, 4
        %v5411 = vsel %vm1944, %v5409, %v5410
        %v5412 = vrot.slane %v4871, 4
        %v5413 = vsel %vm1944, %v5410, %v5412
        %v5414 = vrot.slane %v4872, 4
        %v5415 = vrot.slane %v4873, 4
        %v5416 = vsel %vm1944, %v5414, %v5415
        %v5417 = vrot.slane %v4874, 4
        %v5418 = vsel %vm1944, %v5415, %v5417
        %v5419 = vrot.slane %v4875, 4
        %v5420 = vrot.slane %v4876, 4
        %v5421 = vsel %vm1944, %v5419, %v5420
        %v5422 = vrot.slane %v4877, 4
        %v5423 = vsel %vm1944, %v5420, %v5422
        %v5424 = vrot.slane %v4878, 4
        %v5425 = vrot.slane %v4879, 4
        %v5426 = vsel %vm1944, %v5424, %v5425
        %v5427 = vrot.slane %v4880, 4
        %v5428 = vsel %vm1944, %v5425, %v5427
        %v5429 = vrot.slane %v4881, 4
        %v5430 = vrot.slane %v4882, 4
        %v5431 = vsel %vm1944, %v5429, %v5430
        %v5432 = vrot.slane %v4883, 4
        %v5433 = vsel %vm1944, %v5430, %v5432
        %v5434 = vrot.slane %v4884, 4
        %v5435 = vrot.slane %v4885, 4
        %v5436 = vsel %vm1944, %v5434, %v5435
        %v5437 = vrot.slane %v4886, 4
        %v5438 = vsel %vm1944, %v5435, %v5437
        %v5439 = vrot.slane %v4887, 4
        %v5440 = vrot.slane %v4888, 4
        %v5441 = vsel %vm1944, %v5439, %v5440
        %v5442 = vrot.slane %v4889, 4
        %v5443 = vsel %vm1944, %v5440, %v5442
        %v5444 = vrot.slane %v4890, 4
        %v5445 = vrot.slane %v4891, 4
        %v5446 = vsel %vm1944, %v5444, %v5445
        %v5447 = vrot.slane %v4892, 4
        %v5448 = vsel %vm1944, %v5445, %v5447
        %v5449 = vrot.slane %v4893, 4
        %v5450 = vrot.slane %v4894, 4
        %v5451 = vsel %vm1944, %v5449, %v5450
        %v5452 = vrot.slane %v4895, 4
        %v5453 = vsel %vm1944, %v5450, %v5452
        %v5454 = vrot.slane %v4896, 4
        %v5455 = vrot.slane %v4897, 4
        %v5456 = vsel %vm1944, %v5454, %v5455
        %v5457 = vrot.slane %v4898, 4
        %v5458 = vsel %vm1944, %v5455, %v5457
        %v5491 = vmax.f32 %v5347, %v5381
        %v5492 = vmax.f32 %v5348, %v5383
        %v5493 = vmax.f32 %v5349, %v5386
        %v5494 = vmax.f32 %v5350, %v5388
        %v5495 = vmax.f32 %v5351, %v5391
        %v5496 = vmax.f32 %v5352, %v5393
        %v5497 = vmax.f32 %v5353, %v5396
        %v5498 = vmax.f32 %v5354, %v5398
        %v5499 = vmax.f32 %v5355, %v5401
        %v5500 = vmax.f32 %v5356, %v5403
        %v5501 = vmax.f32 %v5357, %v5406
        %v5502 = vmax.f32 %v5358, %v5408
        %v5503 = vmax.f32 %v5359, %v5411
        %v5504 = vmax.f32 %v5360, %v5413
        %v5505 = vmax.f32 %v5361, %v5416
        %v5506 = vmax.f32 %v5362, %v5418
        %v5507 = vmax.f32 %v5363, %v5421
        %v5508 = vmax.f32 %v5364, %v5423
        %v5509 = vmax.f32 %v5365, %v5426
        %v5510 = vmax.f32 %v5366, %v5428
        %v5511 = vmax.f32 %v5367, %v5431
        %v5512 = vmax.f32 %v5368, %v5433
        %v5513 = vmax.f32 %v5369, %v5436
        %v5514 = vmax.f32 %v5370, %v5438
        %v5515 = vmax.f32 %v5371, %v5441
        %v5516 = vmax.f32 %v5372, %v5443
        %v5517 = vmax.f32 %v5373, %v5446
        %v5518 = vmax.f32 %v5374, %v5448
        %v5519 = vmax.f32 %v5375, %v5451
        %v5520 = vmax.f32 %v5376, %v5453
        %v5521 = vmax.f32 %v5377, %v5456
        %v5522 = vmax.f32 %v5378, %v5458
        %v5523 = vpack.c.bf16 %v5492, %v5491
        %v5524 = vpack.c.bf16 %v5494, %v5493
        %v5525 = vpack.c.bf16 %v5496, %v5495
        %v5526 = vpack.c.bf16 %v5498, %v5497
        %v5527 = vpack.c.bf16 %v5500, %v5499
        %v5528 = vpack.c.bf16 %v5502, %v5501
        %v5529 = vpack.c.bf16 %v5504, %v5503
        %v5530 = vpack.c.bf16 %v5506, %v5505
        %v5531 = vpack.c.bf16 %v5508, %v5507
        %v5532 = vpack.c.bf16 %v5510, %v5509
        %v5533 = vpack.c.bf16 %v5512, %v5511
        %v5534 = vpack.c.bf16 %v5514, %v5513
        %v5535 = vpack.c.bf16 %v5516, %v5515
        %v5536 = vpack.c.bf16 %v5518, %v5517
        %v5537 = vpack.c.bf16 %v5520, %v5519
        %v5538 = vpack.c.bf16 %v5522, %v5521
        %v5555 = vunpack.c.l.b16 %v5523
        %v5556 = vunpack.c.h.b16 %v5523
        %v5557 = vunpack.c.l.b16 %v5524
        %v5558 = vunpack.c.h.b16 %v5524
        %v5559 = vunpack.c.l.b16 %v5525
        %v5560 = vunpack.c.h.b16 %v5525
        %v5561 = vunpack.c.l.b16 %v5526
        %v5562 = vunpack.c.h.b16 %v5526
        %v5563 = vunpack.c.l.b16 %v5527
        %v5564 = vunpack.c.h.b16 %v5527
        %v5565 = vunpack.c.l.b16 %v5528
        %v5566 = vunpack.c.h.b16 %v5528
        %v5567 = vunpack.c.l.b16 %v5529
        %v5568 = vunpack.c.h.b16 %v5529
        %v5569 = vunpack.c.l.b16 %v5530
        %v5570 = vunpack.c.h.b16 %v5530
        %v5571 = vunpack.c.l.b16 %v5531
        %v5572 = vunpack.c.h.b16 %v5531
        %v5573 = vunpack.c.l.b16 %v5532
        %v5574 = vunpack.c.h.b16 %v5532
        %v5575 = vunpack.c.l.b16 %v5533
        %v5576 = vunpack.c.h.b16 %v5533
        %v5577 = vunpack.c.l.b16 %v5534
        %v5578 = vunpack.c.h.b16 %v5534
        %v5579 = vunpack.c.l.b16 %v5535
        %v5580 = vunpack.c.h.b16 %v5535
        %v5581 = vunpack.c.l.b16 %v5536
        %v5582 = vunpack.c.h.b16 %v5536
        %v5583 = vunpack.c.l.b16 %v5537
        %v5584 = vunpack.c.h.b16 %v5537
        %v5585 = vunpack.c.l.b16 %v5538
        %v5586 = vunpack.c.h.b16 %v5538
        %v5587 = vpack.c.b16 %v5555, %v5555
        %v5588 = vpack.c.b16 %v5556, %v5556
        %v5589 = vpack.c.b16 %v5557, %v5557
        %v5590 = vpack.c.b16 %v5558, %v5558
        %v5591 = vpack.c.b16 %v5559, %v5559
        %v5592 = vpack.c.b16 %v5560, %v5560
        %v5593 = vpack.c.b16 %v5561, %v5561
        %v5594 = vpack.c.b16 %v5562, %v5562
        %v5595 = vpack.c.b16 %v5563, %v5563
        %v5596 = vpack.c.b16 %v5564, %v5564
        %v5597 = vpack.c.b16 %v5565, %v5565
        %v5598 = vpack.c.b16 %v5566, %v5566
        %v5599 = vpack.c.b16 %v5567, %v5567
        %v5600 = vpack.c.b16 %v5568, %v5568
        %v5601 = vpack.c.b16 %v5569, %v5569
        %v5602 = vpack.c.b16 %v5570, %v5570
        %v5603 = vpack.c.b16 %v5571, %v5571
        %v5604 = vpack.c.b16 %v5572, %v5572
        %v5605 = vpack.c.b16 %v5573, %v5573
        %v5606 = vpack.c.b16 %v5574, %v5574
        %v5607 = vpack.c.b16 %v5575, %v5575
        %v5608 = vpack.c.b16 %v5576, %v5576
        %v5609 = vpack.c.b16 %v5577, %v5577
        %v5610 = vpack.c.b16 %v5578, %v5578
        %v5611 = vpack.c.b16 %v5579, %v5579
        %v5612 = vpack.c.b16 %v5580, %v5580
        %v5613 = vpack.c.b16 %v5581, %v5581
        %v5614 = vpack.c.b16 %v5582, %v5582
        %v5615 = vpack.c.b16 %v5583, %v5583
        %v5616 = vpack.c.b16 %v5584, %v5584
        %v5617 = vpack.c.b16 %v5585, %v5585
        %v5618 = vpack.c.b16 %v5586, %v5586
        %v5620 = vshrl.u32 %v5587, 16
        %v5622 = vrot.slane %v5620, 7
        %v5623 = vshll.u32 %v5587, 16
        %v5625 = vor.u32 %v5622, %v5623
        %v5626 = vrot.slane %v5622, 4
        %v5628 = vshrl.u32 %v5588, 16
        %v5630 = vrot.slane %v5628, 7
        %v5631 = vshll.u32 %v5588, 16
        %v5633 = vor.u32 %v5630, %v5631
        %v5634 = vsel %vm557, %v5626, %v5633
        %v5635 = vrot.slane %v5630, 4
        %v5637 = vshrl.u32 %v5589, 16
        %v5639 = vrot.slane %v5637, 7
        %v5640 = vshll.u32 %v5589, 16
        %v5642 = vor.u32 %v5639, %v5640
        %v5643 = vrot.slane %v5639, 4
        %v5645 = vshrl.u32 %v5590, 16
        %v5647 = vrot.slane %v5645, 7
        %v5648 = vshll.u32 %v5590, 16
        %v5650 = vor.u32 %v5647, %v5648
        %v5651 = vsel %vm557, %v5643, %v5650
        %v5652 = vrot.slane %v5647, 4
        %v5654 = vshrl.u32 %v5591, 16
        %v5656 = vrot.slane %v5654, 7
        %v5657 = vshll.u32 %v5591, 16
        %v5659 = vor.u32 %v5656, %v5657
        %v5660 = vrot.slane %v5656, 4
        %v5662 = vshrl.u32 %v5592, 16
        %v5664 = vrot.slane %v5662, 7
        %v5665 = vshll.u32 %v5592, 16
        %v5667 = vor.u32 %v5664, %v5665
        %v5668 = vsel %vm557, %v5660, %v5667
        %v5669 = vrot.slane %v5664, 4
        %v5671 = vshrl.u32 %v5593, 16
        %v5673 = vrot.slane %v5671, 7
        %v5674 = vshll.u32 %v5593, 16
        %v5676 = vor.u32 %v5673, %v5674
        %v5677 = vrot.slane %v5673, 4
        %v5679 = vshrl.u32 %v5594, 16
        %v5681 = vrot.slane %v5679, 7
        %v5682 = vshll.u32 %v5594, 16
        %v5684 = vor.u32 %v5681, %v5682
        %v5685 = vsel %vm557, %v5677, %v5684
        %v5686 = vrot.slane %v5681, 4
        %v5688 = vshrl.u32 %v5595, 16
        %v5690 = vrot.slane %v5688, 7
        %v5691 = vshll.u32 %v5595, 16
        %v5693 = vor.u32 %v5690, %v5691
        %v5694 = vrot.slane %v5690, 4
        %v5696 = vshrl.u32 %v5596, 16
        %v5698 = vrot.slane %v5696, 7
        %v5699 = vshll.u32 %v5596, 16
        %v5701 = vor.u32 %v5698, %v5699
        %v5702 = vsel %vm557, %v5694, %v5701
        %v5703 = vrot.slane %v5698, 4
        %v5705 = vshrl.u32 %v5597, 16
        %v5707 = vrot.slane %v5705, 7
        %v5708 = vshll.u32 %v5597, 16
        %v5710 = vor.u32 %v5707, %v5708
        %v5711 = vrot.slane %v5707, 4
        %v5713 = vshrl.u32 %v5598, 16
        %v5715 = vrot.slane %v5713, 7
        %v5716 = vshll.u32 %v5598, 16
        %v5718 = vor.u32 %v5715, %v5716
        %v5719 = vsel %vm557, %v5711, %v5718
        %v5720 = vrot.slane %v5715, 4
        %v5722 = vshrl.u32 %v5599, 16
        %v5724 = vrot.slane %v5722, 7
        %v5725 = vshll.u32 %v5599, 16
        %v5727 = vor.u32 %v5724, %v5725
        %v5728 = vrot.slane %v5724, 4
        %v5730 = vshrl.u32 %v5600, 16
        %v5732 = vrot.slane %v5730, 7
        %v5733 = vshll.u32 %v5600, 16
        %v5735 = vor.u32 %v5732, %v5733
        %v5736 = vsel %vm557, %v5728, %v5735
        %v5737 = vrot.slane %v5732, 4
        %v5739 = vshrl.u32 %v5601, 16
        %v5741 = vrot.slane %v5739, 7
        %v5742 = vshll.u32 %v5601, 16
        %v5744 = vor.u32 %v5741, %v5742
        %v5745 = vrot.slane %v5741, 4
        %v5747 = vshrl.u32 %v5602, 16
        %v5749 = vrot.slane %v5747, 7
        %v5750 = vshll.u32 %v5602, 16
        %v5752 = vor.u32 %v5749, %v5750
        %v5753 = vsel %vm557, %v5745, %v5752
        %v5754 = vrot.slane %v5749, 4
        %v5756 = vshrl.u32 %v5603, 16
        %v5758 = vrot.slane %v5756, 7
        %v5759 = vshll.u32 %v5603, 16
        %v5761 = vor.u32 %v5758, %v5759
        %v5762 = vrot.slane %v5758, 4
        %v5764 = vshrl.u32 %v5604, 16
        %v5766 = vrot.slane %v5764, 7
        %v5767 = vshll.u32 %v5604, 16
        %v5769 = vor.u32 %v5766, %v5767
        %v5770 = vsel %vm557, %v5762, %v5769
        %v5771 = vrot.slane %v5766, 4
        %v5773 = vshrl.u32 %v5605, 16
        %v5775 = vrot.slane %v5773, 7
        %v5776 = vshll.u32 %v5605, 16
        %v5778 = vor.u32 %v5775, %v5776
        %v5779 = vrot.slane %v5775, 4
        %v5781 = vshrl.u32 %v5606, 16
        %v5783 = vrot.slane %v5781, 7
        %v5784 = vshll.u32 %v5606, 16
        %v5786 = vor.u32 %v5783, %v5784
        %v5787 = vsel %vm557, %v5779, %v5786
        %v5788 = vrot.slane %v5783, 4
        %v5790 = vshrl.u32 %v5607, 16
        %v5792 = vrot.slane %v5790, 7
        %v5793 = vshll.u32 %v5607, 16
        %v5795 = vor.u32 %v5792, %v5793
        %v5796 = vrot.slane %v5792, 4
        %v5798 = vshrl.u32 %v5608, 16
        %v5800 = vrot.slane %v5798, 7
        %v5801 = vshll.u32 %v5608, 16
        %v5803 = vor.u32 %v5800, %v5801
        %v5804 = vsel %vm557, %v5796, %v5803
        %v5805 = vrot.slane %v5800, 4
        %v5807 = vshrl.u32 %v5609, 16
        %v5809 = vrot.slane %v5807, 7
        %v5810 = vshll.u32 %v5609, 16
        %v5812 = vor.u32 %v5809, %v5810
        %v5813 = vrot.slane %v5809, 4
        %v5815 = vshrl.u32 %v5610, 16
        %v5817 = vrot.slane %v5815, 7
        %v5818 = vshll.u32 %v5610, 16
        %v5820 = vor.u32 %v5817, %v5818
        %v5821 = vsel %vm557, %v5813, %v5820
        %v5822 = vrot.slane %v5817, 4
        %v5824 = vshrl.u32 %v5611, 16
        %v5826 = vrot.slane %v5824, 7
        %v5827 = vshll.u32 %v5611, 16
        %v5829 = vor.u32 %v5826, %v5827
        %v5830 = vrot.slane %v5826, 4
        %v5832 = vshrl.u32 %v5612, 16
        %v5834 = vrot.slane %v5832, 7
        %v5835 = vshll.u32 %v5612, 16
        %v5837 = vor.u32 %v5834, %v5835
        %v5838 = vsel %vm557, %v5830, %v5837
        %v5839 = vrot.slane %v5834, 4
        %v5841 = vshrl.u32 %v5613, 16
        %v5843 = vrot.slane %v5841, 7
        %v5844 = vshll.u32 %v5613, 16
        %v5846 = vor.u32 %v5843, %v5844
        %v5847 = vrot.slane %v5843, 4
        %v5849 = vshrl.u32 %v5614, 16
        %v5851 = vrot.slane %v5849, 7
        %v5852 = vshll.u32 %v5614, 16
        %v5854 = vor.u32 %v5851, %v5852
        %v5855 = vsel %vm557, %v5847, %v5854
        %v5856 = vrot.slane %v5851, 4
        %v5858 = vshrl.u32 %v5615, 16
        %v5860 = vrot.slane %v5858, 7
        %v5861 = vshll.u32 %v5615, 16
        %v5863 = vor.u32 %v5860, %v5861
        %v5864 = vrot.slane %v5860, 4
        %v5866 = vshrl.u32 %v5616, 16
        %v5868 = vrot.slane %v5866, 7
        %v5869 = vshll.u32 %v5616, 16
        %v5871 = vor.u32 %v5868, %v5869
        %v5872 = vsel %vm557, %v5864, %v5871
        %v5873 = vrot.slane %v5868, 4
        %v5875 = vshrl.u32 %v5617, 16
        %v5877 = vrot.slane %v5875, 7
        %v5878 = vshll.u32 %v5617, 16
        %v5880 = vor.u32 %v5877, %v5878
        %v5881 = vrot.slane %v5877, 4
        %v5883 = vshrl.u32 %v5618, 16
        %v5885 = vrot.slane %v5883, 7
        %v5886 = vshll.u32 %v5618, 16
        %v5888 = vor.u32 %v5885, %v5886
        %v5889 = vsel %vm557, %v5881, %v5888
        %v5890 = vrot.slane %v5885, 4
        %5891 = vrot.lane.b32.xlu0 %v5625, 12
        %v5892 = vpop.permute.xlu0 %5891
        %5893 = vrot.lane.b32.xlu0 %v5634, 12
        %v5894 = vpop.permute.xlu0 %5893
        %5895 = vrot.lane.b32.xlu0 %v5635, 12
        %v5896 = vpop.permute.xlu0 %5895
        %5897 = vrot.lane.b32.xlu0 %v5642, 12
        %v5898 = vpop.permute.xlu0 %5897
        %5899 = vrot.lane.b32.xlu0 %v5651, 12
        %v5900 = vpop.permute.xlu0 %5899
        %5901 = vrot.lane.b32.xlu0 %v5652, 12
        %v5902 = vpop.permute.xlu0 %5901
        %5903 = vrot.lane.b32.xlu0 %v5659, 12
        %v5904 = vpop.permute.xlu0 %5903
        %5905 = vrot.lane.b32.xlu0 %v5668, 12
        %v5906 = vpop.permute.xlu0 %5905
        %5907 = vrot.lane.b32.xlu0 %v5669, 12
        %v5908 = vpop.permute.xlu0 %5907
        %5909 = vrot.lane.b32.xlu0 %v5676, 12
        %v5910 = vpop.permute.xlu0 %5909
        %5911 = vrot.lane.b32.xlu0 %v5685, 12
        %v5912 = vpop.permute.xlu0 %5911
        %5913 = vrot.lane.b32.xlu0 %v5686, 12
        %v5914 = vpop.permute.xlu0 %5913
        %5915 = vrot.lane.b32.xlu0 %v5693, 12
        %v5916 = vpop.permute.xlu0 %5915
        %5917 = vrot.lane.b32.xlu0 %v5702, 12
        %v5918 = vpop.permute.xlu0 %5917
        %5919 = vrot.lane.b32.xlu0 %v5703, 12
        %v5920 = vpop.permute.xlu0 %5919
        %5921 = vrot.lane.b32.xlu0 %v5710, 12
        %v5922 = vpop.permute.xlu0 %5921
        %5923 = vrot.lane.b32.xlu0 %v5719, 12
        %v5924 = vpop.permute.xlu0 %5923
        %5925 = vrot.lane.b32.xlu0 %v5720, 12
        %v5926 = vpop.permute.xlu0 %5925
        %5927 = vrot.lane.b32.xlu0 %v5727, 12
        %v5928 = vpop.permute.xlu0 %5927
        %5929 = vrot.lane.b32.xlu0 %v5736, 12
        %v5930 = vpop.permute.xlu0 %5929
        %5931 = vrot.lane.b32.xlu0 %v5737, 12
        %v5932 = vpop.permute.xlu0 %5931
        %5933 = vrot.lane.b32.xlu0 %v5744, 12
        %v5934 = vpop.permute.xlu0 %5933
        %5935 = vrot.lane.b32.xlu0 %v5753, 12
        %v5936 = vpop.permute.xlu0 %5935
        %5937 = vrot.lane.b32.xlu0 %v5754, 12
        %v5938 = vpop.permute.xlu0 %5937
        %5939 = vrot.lane.b32.xlu0 %v5761, 12
        %v5940 = vpop.permute.xlu0 %5939
        %5941 = vrot.lane.b32.xlu0 %v5770, 12
        %v5942 = vpop.permute.xlu0 %5941
        %5943 = vrot.lane.b32.xlu0 %v5771, 12
        %v5944 = vpop.permute.xlu0 %5943
        %5945 = vrot.lane.b32.xlu0 %v5778, 12
        %v5946 = vpop.permute.xlu0 %5945
        %5947 = vrot.lane.b32.xlu0 %v5787, 12
        %v5948 = vpop.permute.xlu0 %5947
        %5949 = vrot.lane.b32.xlu0 %v5788, 12
        %v5950 = vpop.permute.xlu0 %5949
        %5951 = vrot.lane.b32.xlu0 %v5795, 12
        %v5952 = vpop.permute.xlu0 %5951
        %5953 = vrot.lane.b32.xlu0 %v5804, 12
        %v5954 = vpop.permute.xlu0 %5953
        %5955 = vrot.lane.b32.xlu0 %v5805, 12
        %v5956 = vpop.permute.xlu0 %5955
        %5957 = vrot.lane.b32.xlu0 %v5812, 12
        %v5958 = vpop.permute.xlu0 %5957
        %5959 = vrot.lane.b32.xlu0 %v5821, 12
        %v5960 = vpop.permute.xlu0 %5959
        %5961 = vrot.lane.b32.xlu0 %v5822, 12
        %v5962 = vpop.permute.xlu0 %5961
        %5963 = vrot.lane.b32.xlu0 %v5829, 12
        %v5964 = vpop.permute.xlu0 %5963
        %5965 = vrot.lane.b32.xlu0 %v5838, 12
        %v5966 = vpop.permute.xlu0 %5965
        %5967 = vrot.lane.b32.xlu0 %v5839, 12
        %v5968 = vpop.permute.xlu0 %5967
        %5969 = vrot.lane.b32.xlu0 %v5846, 12
        %v5970 = vpop.permute.xlu0 %5969
        %5971 = vrot.lane.b32.xlu0 %v5855, 12
        %v5972 = vpop.permute.xlu0 %5971
        %5973 = vrot.lane.b32.xlu0 %v5856, 12
        %v5974 = vpop.permute.xlu0 %5973
        %5975 = vrot.lane.b32.xlu0 %v5863, 12
        %v5976 = vpop.permute.xlu0 %5975
        %5977 = vrot.lane.b32.xlu0 %v5872, 12
        %v5978 = vpop.permute.xlu0 %5977
        %5979 = vrot.lane.b32.xlu0 %v5873, 12
        %v5980 = vpop.permute.xlu0 %5979
        %5981 = vrot.lane.b32.xlu0 %v5880, 12
        %v5982 = vpop.permute.xlu0 %5981
        %5983 = vrot.lane.b32.xlu0 %v5889, 12
        %v5984 = vpop.permute.xlu0 %5983
        %5985 = vrot.lane.b32.xlu0 %v5890, 12
        %v5986 = vpop.permute.xlu0 %5985
        %vm6035 = vcmask 126048
        %vm6036 = vmand %vm6035, %vm378
        %v6037 = vld [vmem:[%s326] sm:$0xf]
        %v6038 = vsel %vm6036, %v5892, %v6037
        %6039 = vst [vmem:[%s326] sm:$0xf] %v6038
        %vm6040 = vcmask 126048
        %6041 = vst.msk [vmem:[%s326 + $0x4] sm:$0xf] %vm6040, %v5894
        %vm6042 = vcmask 122976
        %vm6043 = vmand %vm6042, %vm328
        %v6044 = vld [vmem:[%s326 + $0x8] sm:$0x1]
        %v6045 = vsel %vm6043, %v5896, %v6044
        %6046 = vst [vmem:[%s326 + $0x8] sm:$0x1] %v6045
        %v6047 = vld [vmem:[%s326 + $0xc] sm:$0xf]
        %v6048 = vsel %vm6036, %v5898, %v6047
        %6049 = vst [vmem:[%s326 + $0xc] sm:$0xf] %v6048
        %6050 = vst.msk [vmem:[%s326 + $0x10] sm:$0xf] %vm6040, %v5900
        %v6051 = vld [vmem:[%s326 + $0x14] sm:$0x1]
        %v6052 = vsel %vm6043, %v5902, %v6051
        %6053 = vst [vmem:[%s326 + $0x14] sm:$0x1] %v6052
        %v6054 = vld [vmem:[%s326 + $0x18] sm:$0xf]
        %v6055 = vsel %vm6036, %v5904, %v6054
        %6056 = vst [vmem:[%s326 + $0x18] sm:$0xf] %v6055
        %6057 = vst.msk [vmem:[%s326 + $0x1c] sm:$0xf] %vm6040, %v5906
        %v6058 = vld [vmem:[%s326 + $0x20] sm:$0x1]
        %v6059 = vsel %vm6043, %v5908, %v6058
        %6060 = vst [vmem:[%s326 + $0x20] sm:$0x1] %v6059
        %v6061 = vld [vmem:[%s326 + $0x24] sm:$0xf]
        %v6062 = vsel %vm6036, %v5910, %v6061
        %6063 = vst [vmem:[%s326 + $0x24] sm:$0xf] %v6062
        %6064 = vst.msk [vmem:[%s326 + $0x28] sm:$0xf] %vm6040, %v5912
        %v6065 = vld [vmem:[%s326 + $0x2c] sm:$0x1]
        %v6066 = vsel %vm6043, %v5914, %v6065
        %6067 = vst [vmem:[%s326 + $0x2c] sm:$0x1] %v6066
        %v6068 = vld [vmem:[%s326 + $0x30] sm:$0xf]
        %v6069 = vsel %vm6036, %v5916, %v6068
        %6070 = vst [vmem:[%s326 + $0x30] sm:$0xf] %v6069
        %6071 = vst.msk [vmem:[%s326 + $0x34] sm:$0xf] %vm6040, %v5918
        %v6072 = vld [vmem:[%s326 + $0x38] sm:$0x1]
        %v6073 = vsel %vm6043, %v5920, %v6072
        %6074 = vst [vmem:[%s326 + $0x38] sm:$0x1] %v6073
        %v6075 = vld [vmem:[%s326 + $0x3c] sm:$0xf]
        %v6076 = vsel %vm6036, %v5922, %v6075
        %6077 = vst [vmem:[%s326 + $0x3c] sm:$0xf] %v6076
        %6078 = vst.msk [vmem:[%s326 + $0x40] sm:$0xf] %vm6040, %v5924
        %v6079 = vld [vmem:[%s326 + $0x44] sm:$0x1]
        %v6080 = vsel %vm6043, %v5926, %v6079
        %6081 = vst [vmem:[%s326 + $0x44] sm:$0x1] %v6080
        %v6082 = vld [vmem:[%s326 + $0x48] sm:$0xf]
        %v6083 = vsel %vm6036, %v5928, %v6082
        %6084 = vst [vmem:[%s326 + $0x48] sm:$0xf] %v6083
        %6085 = vst.msk [vmem:[%s326 + $0x4c] sm:$0xf] %vm6040, %v5930
        %v6086 = vld [vmem:[%s326 + $0x50] sm:$0x1]
        %v6087 = vsel %vm6043, %v5932, %v6086
        %6088 = vst [vmem:[%s326 + $0x50] sm:$0x1] %v6087
        %v6089 = vld [vmem:[%s326 + $0x54] sm:$0xf]
        %v6090 = vsel %vm6036, %v5934, %v6089
        %6091 = vst [vmem:[%s326 + $0x54] sm:$0xf] %v6090
        %6092 = vst.msk [vmem:[%s326 + $0x58] sm:$0xf] %vm6040, %v5936
        %v6093 = vld [vmem:[%s326 + $0x5c] sm:$0x1]
        %v6094 = vsel %vm6043, %v5938, %v6093
        %6095 = vst [vmem:[%s326 + $0x5c] sm:$0x1] %v6094
        %v6096 = vld [vmem:[%s326 + $0x60] sm:$0xf]
        %v6097 = vsel %vm6036, %v5940, %v6096
        %6098 = vst [vmem:[%s326 + $0x60] sm:$0xf] %v6097
        %6099 = vst.msk [vmem:[%s326 + $0x64] sm:$0xf] %vm6040, %v5942
        %v6100 = vld [vmem:[%s326 + $0x68] sm:$0x1]
        %v6101 = vsel %vm6043, %v5944, %v6100
        %6102 = vst [vmem:[%s326 + $0x68] sm:$0x1] %v6101
        %v6103 = vld [vmem:[%s326 + $0x6c] sm:$0xf]
        %v6104 = vsel %vm6036, %v5946, %v6103
        %6105 = vst [vmem:[%s326 + $0x6c] sm:$0xf] %v6104
        %6106 = vst.msk [vmem:[%s326 + $0x70] sm:$0xf] %vm6040, %v5948
        %v6107 = vld [vmem:[%s326 + $0x74] sm:$0x1]
        %v6108 = vsel %vm6043, %v5950, %v6107
        %6109 = vst [vmem:[%s326 + $0x74] sm:$0x1] %v6108
        %v6110 = vld [vmem:[%s326 + $0x78] sm:$0xf]
        %v6111 = vsel %vm6036, %v5952, %v6110
        %6112 = vst [vmem:[%s326 + $0x78] sm:$0xf] %v6111
        %6113 = vst.msk [vmem:[%s326 + $0x7c] sm:$0xf] %vm6040, %v5954
        %v6114 = vld [vmem:[%s326 + $0x80] sm:$0x1]
        %v6115 = vsel %vm6043, %v5956, %v6114
        %6116 = vst [vmem:[%s326 + $0x80] sm:$0x1] %v6115
        %v6117 = vld [vmem:[%s326 + $0x84] sm:$0xf]
        %v6118 = vsel %vm6036, %v5958, %v6117
        %6119 = vst [vmem:[%s326 + $0x84] sm:$0xf] %v6118
        %6120 = vst.msk [vmem:[%s326 + $0x88] sm:$0xf] %vm6040, %v5960
        %v6121 = vld [vmem:[%s326 + $0x8c] sm:$0x1]
        %v6122 = vsel %vm6043, %v5962, %v6121
        %6123 = vst [vmem:[%s326 + $0x8c] sm:$0x1] %v6122
        %v6124 = vld [vmem:[%s326 + $0x90] sm:$0xf]
        %v6125 = vsel %vm6036, %v5964, %v6124
        %6126 = vst [vmem:[%s326 + $0x90] sm:$0xf] %v6125
        %6127 = vst.msk [vmem:[%s326 + $0x94] sm:$0xf] %vm6040, %v5966
        %v6128 = vld [vmem:[%s326 + $0x98] sm:$0x1]
        %v6129 = vsel %vm6043, %v5968, %v6128
        %6130 = vst [vmem:[%s326 + $0x98] sm:$0x1] %v6129
        %v6131 = vld [vmem:[%s326 + $0x9c] sm:$0xf]
        %v6132 = vsel %vm6036, %v5970, %v6131
        %6133 = vst [vmem:[%s326 + $0x9c] sm:$0xf] %v6132
        %6134 = vst.msk [vmem:[%s326 + $0xa0] sm:$0xf] %vm6040, %v5972
        %v6135 = vld [vmem:[%s326 + $0xa4] sm:$0x1]
        %v6136 = vsel %vm6043, %v5974, %v6135
        %6137 = vst [vmem:[%s326 + $0xa4] sm:$0x1] %v6136
        %v6138 = vld [vmem:[%s326 + $0xa8] sm:$0xf]
        %v6139 = vsel %vm6036, %v5976, %v6138
        %6140 = vst [vmem:[%s326 + $0xa8] sm:$0xf] %v6139
        %6141 = vst.msk [vmem:[%s326 + $0xac] sm:$0xf] %vm6040, %v5978
        %v6142 = vld [vmem:[%s326 + $0xb0] sm:$0x1]
        %v6143 = vsel %vm6043, %v5980, %v6142
        %6144 = vst [vmem:[%s326 + $0xb0] sm:$0x1] %v6143
        %v6145 = vld [vmem:[%s326 + $0xb4] sm:$0xf]
        %v6146 = vsel %vm6036, %v5982, %v6145
        %6147 = vst [vmem:[%s326 + $0xb4] sm:$0xf] %v6146
        %6148 = vst.msk [vmem:[%s326 + $0xb8] sm:$0xf] %vm6040, %v5984
        %v6149 = vld [vmem:[%s326 + $0xbc] sm:$0x1]
        %v6150 = vsel %vm6043, %v5986, %v6149
        %6151 = vst [vmem:[%s326 + $0xbc] sm:$0x1] %v6150
      $region40: #{tpu_custom_call.1} parent=35 // pred_fallthru
        _
      %v6152 = vld [vmem:[#allocation3] sm:$0xf]
      %v6153 = vld [vmem:[#allocation3 + $0x4] sm:$0xf]
      %v6154 = vld [vmem:[#allocation3 + $0xc] sm:$0xf]
      %v6155 = vld [vmem:[#allocation3 + $0x10] sm:$0xf]
      %v6156 = vld [vmem:[#allocation3 + $0x18] sm:$0xf]
      %v6157 = vld [vmem:[#allocation3 + $0x1c] sm:$0xf]
      %v6158 = vld [vmem:[#allocation3 + $0x24] sm:$0xf]
      %v6159 = vld [vmem:[#allocation3 + $0x28] sm:$0xf]
      %v6160 = vld [vmem:[#allocation3 + $0x30] sm:$0xf]
      %v6161 = vld [vmem:[#allocation3 + $0x34] sm:$0xf]
      %v6162 = vld [vmem:[#allocation3 + $0x3c] sm:$0xf]
      %v6163 = vld [vmem:[#allocation3 + $0x40] sm:$0xf]
      %v6164 = vld [vmem:[#allocation3 + $0x48] sm:$0xf]
      %v6165 = vld [vmem:[#allocation3 + $0x4c] sm:$0xf]
      %v6166 = vld [vmem:[#allocation3 + $0x54] sm:$0xf]
      %v6167 = vld [vmem:[#allocation3 + $0x58] sm:$0xf]
      %v6168 = vld [vmem:[#allocation3 + $0x60] sm:$0xf]
      %v6169 = vld [vmem:[#allocation3 + $0x64] sm:$0xf]
      %v6170 = vld [vmem:[#allocation3 + $0x6c] sm:$0xf]
      %v6171 = vld [vmem:[#allocation3 + $0x70] sm:$0xf]
      %v6172 = vld [vmem:[#allocation3 + $0x78] sm:$0xf]
      %v6173 = vld [vmem:[#allocation3 + $0x7c] sm:$0xf]
      %v6174 = vld [vmem:[#allocation3 + $0x84] sm:$0xf]
      %v6175 = vld [vmem:[#allocation3 + $0x88] sm:$0xf]
      %v6176 = vld [vmem:[#allocation3 + $0x90] sm:$0xf]
      %v6177 = vld [vmem:[#allocation3 + $0x94] sm:$0xf]
      %v6178 = vld [vmem:[#allocation3 + $0x9c] sm:$0xf]
      %v6179 = vld [vmem:[#allocation3 + $0xa0] sm:$0xf]
      %v6180 = vld [vmem:[#allocation3 + $0xa8] sm:$0xf]
      %v6181 = vld [vmem:[#allocation3 + $0xac] sm:$0xf]
      %v6182 = vld [vmem:[#allocation3 + $0xb4] sm:$0xf]
      %v6183 = vld [vmem:[#allocation3 + $0xb8] sm:$0xf]
      %v6184 = vld [vmem:[#allocation3 + $0xc0] sm:$0xf]
      %v6185 = vld [vmem:[#allocation3 + $0xc4] sm:$0xf]
      %v6186 = vld [vmem:[#allocation3 + $0xcc] sm:$0xf]
      %v6187 = vld [vmem:[#allocation3 + $0xd0] sm:$0xf]
      %v6188 = vld [vmem:[%s248] sm:$0xf]
      %v6189 = vld [vmem:[%s248 + $0x4] sm:$0xf]
      %s6190 = scalar_lea.vmem %s248, 24
      %v6191 = vld [vmem:[%s6190] sm:$0xf]
      %v6192 = vld [vmem:[%s6190 + $0x4] sm:$0xf]
      %v6225 = vunpack.c.l.b16 %v6154
      %v6226 = vunpack.c.l.b16 %v6155
      %v6227 = vunpack.c.l.b16 %v6156
      %v6228 = vunpack.c.l.b16 %v6157
      %v6229 = vunpack.c.l.b16 %v6158
      %v6230 = vunpack.c.l.b16 %v6159
      %v6231 = vunpack.c.l.b16 %v6160
      %v6232 = vunpack.c.l.b16 %v6161
      %v6233 = vunpack.c.l.b16 %v6162
      %v6234 = vunpack.c.l.b16 %v6163
      %v6235 = vunpack.c.l.b16 %v6164
      %v6236 = vunpack.c.l.b16 %v6165
      %v6237 = vunpack.c.l.b16 %v6166
      %v6238 = vunpack.c.l.b16 %v6167
      %v6239 = vunpack.c.l.b16 %v6168
      %v6240 = vunpack.c.l.b16 %v6169
      %v6241 = vunpack.c.l.b16 %v6170
      %v6242 = vunpack.c.l.b16 %v6171
      %v6243 = vunpack.c.l.b16 %v6172
      %v6244 = vunpack.c.l.b16 %v6173
      %v6245 = vunpack.c.l.b16 %v6174
      %v6246 = vunpack.c.l.b16 %v6175
      %v6247 = vunpack.c.l.b16 %v6176
      %v6248 = vunpack.c.l.b16 %v6177
      %v6249 = vunpack.c.l.b16 %v6178
      %v6250 = vunpack.c.l.b16 %v6179
      %v6251 = vunpack.c.l.b16 %v6180
      %v6252 = vunpack.c.l.b16 %v6181
      %v6253 = vunpack.c.l.b16 %v6182
      %v6254 = vunpack.c.l.b16 %v6183
      %v6255 = vunpack.c.l.b16 %v6184
      %v6256 = vunpack.c.l.b16 %v6185
      %v6257 = vpack.c.b16 %v6226, %v6225
      %v6258 = vpack.c.b16 %v6228, %v6227
      %v6259 = vpack.c.b16 %v6230, %v6229
      %v6260 = vpack.c.b16 %v6232, %v6231
      %v6261 = vpack.c.b16 %v6234, %v6233
      %v6262 = vpack.c.b16 %v6236, %v6235
      %v6263 = vpack.c.b16 %v6238, %v6237
      %v6264 = vpack.c.b16 %v6240, %v6239
      %v6265 = vpack.c.b16 %v6242, %v6241
      %v6266 = vpack.c.b16 %v6244, %v6243
      %v6267 = vpack.c.b16 %v6246, %v6245
      %v6268 = vpack.c.b16 %v6248, %v6247
      %v6269 = vpack.c.b16 %v6250, %v6249
      %v6270 = vpack.c.b16 %v6252, %v6251
      %v6271 = vpack.c.b16 %v6254, %v6253
      %v6272 = vpack.c.b16 %v6256, %v6255
      %v6275 = vunpack.c.l.b16 %v6191
      %v6276 = vunpack.c.l.b16 %v6192
      %v6277 = vpack.c.b16 %v6276, %v6275
      %vm6279 = vcmask 130048
      %v6281 = vsel %vm6279, %v6257, 0
      %v6284 = vsel %vm6279, %v6258, 0
      %v6287 = vsel %vm6279, %v6259, 0
      %v6290 = vsel %vm6279, %v6260, 0
      %v6293 = vsel %vm6279, %v6261, 0
      %v6296 = vsel %vm6279, %v6262, 0
      %v6299 = vsel %vm6279, %v6263, 0
      %v6302 = vsel %vm6279, %v6264, 0
      %v6305 = vsel %vm6279, %v6265, 0
      %v6308 = vsel %vm6279, %v6266, 0
      %v6311 = vsel %vm6279, %v6267, 0
      %v6314 = vsel %vm6279, %v6268, 0
      %v6317 = vsel %vm6279, %v6269, 0
      %v6320 = vsel %vm6279, %v6270, 0
      %v6323 = vsel %vm6279, %v6271, 0
      %v6326 = vsel %vm6279, %v6272, 0
      %6328 = vmatprep.subr.bf16.mxu0 0
      %6329 = vmatpush1.bf16.msra.mxu0 %v6277
      %6330 = vmatprep.subr.bf16.mxu0 0
      %6331 = vmatpush1.bf16.msra.mxu0 0
      %6332 = vmatprep.subr.bf16.mxu0 0
      %6333 = vmatpush1.bf16.msra.mxu0 0
      %6334 = vmatprep.subr.bf16.mxu0 0
      %6335 = vmatpush1.bf16.msra.mxu0 0
      %6336 = vmatprep.subr.bf16.mxu0 0
      %6337 = vmatpush1.bf16.msra.mxu0 0
      %6338 = vmatprep.subr.bf16.mxu0 0
      %6339 = vmatpush1.bf16.msra.mxu0 0
      %6340 = vmatprep.subr.bf16.mxu0 0
      %6341 = vmatpush1.bf16.msra.mxu0 0
      %6342 = vmatprep.subr.bf16.mxu0 0
      %6343 = vmatpush1.bf16.msra.mxu0 0
      %6344 = vmatprep.subr.bf16.mxu0 0
      %6345 = vmatpush1.bf16.msra.mxu0 0
      %6346 = vmatprep.subr.bf16.mxu0 0
      %6347 = vmatpush1.bf16.msra.mxu0 0
      %6348 = vmatprep.subr.bf16.mxu0 0
      %6349 = vmatpush1.bf16.msra.mxu0 0
      %6350 = vmatprep.subr.bf16.mxu0 0
      %6351 = vmatpush1.bf16.msra.mxu0 0
      %6352 = vmatprep.subr.bf16.mxu0 0
      %6353 = vmatpush1.bf16.msra.mxu0 0
      %6354 = vmatprep.subr.bf16.mxu0 0
      %6355 = vmatpush1.bf16.msra.mxu0 0
      %6356 = vmatprep.subr.bf16.mxu0 0
      %6357 = vmatpush1.bf16.msra.mxu0 0
      %6358 = vmatprep.subr.bf16.mxu0 0
      %6359 = vmatpush1.bf16.msra.mxu0 0
      %6360 = vmatprep.mubr.bf16.mxu0 0
      %6361 = vmatmul.mubr.bf16.gmra.mrb[0].mxu0 %v6281
      %v6362 = vpop.f32.mrb[0].mxu0
      %v6363 = vadd.f32 0.0, %v6362
      %v6364 = vpop.f32.mrb[0].mxu0
      %v6365 = vpop.f32.mrb[0].mxu0
      %v6366 = vadd.f32 0.0, %v6365
      %v6367 = vpop.f32.mrb[0].mxu0
      %6368 = vmatprep.mubr.bf16.mxu0 0
      %6369 = vmatmul.mubr.bf16.gmra.mrb[0].mxu0 %v6284
      %v6370 = vpop.f32.mrb[0].mxu0
      %v6371 = vadd.f32 0.0, %v6370
      %v6372 = vpop.f32.mrb[0].mxu0
      %v6373 = vpop.f32.mrb[0].mxu0
      %v6374 = vadd.f32 0.0, %v6373
      %v6375 = vpop.f32.mrb[0].mxu0
      %6376 = vmatprep.mubr.bf16.mxu0 0
      %6377 = vmatmul.mubr.bf16.gmra.mrb[0].mxu0 %v6287
      %v6378 = vpop.f32.mrb[0].mxu0
      %v6379 = vadd.f32 0.0, %v6378
      %v6380 = vpop.f32.mrb[0].mxu0
      %v6381 = vpop.f32.mrb[0].mxu0
      %v6382 = vadd.f32 0.0, %v6381
      %v6383 = vpop.f32.mrb[0].mxu0
      %6384 = vmatprep.mubr.bf16.mxu0 0
      %6385 = vmatmul.mubr.bf16.gmra.mrb[0].mxu0 %v6290
      %v6386 = vpop.f32.mrb[0].mxu0
      %v6387 = vadd.f32 0.0, %v6386
      %v6388 = vpop.f32.mrb[0].mxu0
      %v6389 = vpop.f32.mrb[0].mxu0
      %v6390 = vadd.f32 0.0, %v6389
      %v6391 = vpop.f32.mrb[0].mxu0
      %6392 = vmatprep.mubr.bf16.mxu0 0
      %6393 = vmatmul.mubr.bf16.gmra.mrb[0].mxu0 %v6293
      %v6394 = vpop.f32.mrb[0].mxu0
      %v6395 = vadd.f32 0.0, %v6394
      %v6396 = vpop.f32.mrb[0].mxu0
      %v6397 = vpop.f32.mrb[0].mxu0
      %v6398 = vadd.f32 0.0, %v6397
      %v6399 = vpop.f32.mrb[0].mxu0
      %6400 = vmatprep.mubr.bf16.mxu0 0
      %6401 = vmatmul.mubr.bf16.gmra.mrb[0].mxu0 %v6296
      %v6402 = vpop.f32.mrb[0].mxu0
      %v6403 = vadd.f32 0.0, %v6402
      %v6404 = vpop.f32.mrb[0].mxu0
      %v6405 = vpop.f32.mrb[0].mxu0
      %v6406 = vadd.f32 0.0, %v6405
      %v6407 = vpop.f32.mrb[0].mxu0
      %6408 = vmatprep.mubr.bf16.mxu0 0
      %6409 = vmatmul.mubr.bf16.gmra.mrb[0].mxu0 %v6299
      %v6410 = vpop.f32.mrb[0].mxu0
      %v6411 = vadd.f32 0.0, %v6410
      %v6412 = vpop.f32.mrb[0].mxu0
      %v6413 = vpop.f32.mrb[0].mxu0
      %v6414 = vadd.f32 0.0, %v6413
      %v6415 = vpop.f32.mrb[0].mxu0
      %6416 = vmatprep.mubr.bf16.mxu0 0
      %6417 = vmatmul.mubr.bf16.gmra.mrb[0].mxu0 %v6302
      %v6418 = vpop.f32.mrb[0].mxu0
      %v6419 = vadd.f32 0.0, %v6418
      %v6420 = vpop.f32.mrb[0].mxu0
      %v6421 = vpop.f32.mrb[0].mxu0
      %v6422 = vadd.f32 0.0, %v6421
      %v6423 = vpop.f32.mrb[0].mxu0
      %6424 = vmatprep.mubr.bf16.mxu0 0
      %6425 = vmatmul.mubr.bf16.gmra.mrb[0].mxu0 %v6305
      %v6426 = vpop.f32.mrb[0].mxu0
      %v6427 = vadd.f32 0.0, %v6426
      %v6428 = vpop.f32.mrb[0].mxu0
      %v6429 = vpop.f32.mrb[0].mxu0
      %v6430 = vadd.f32 0.0, %v6429
      %v6431 = vpop.f32.mrb[0].mxu0
      %6432 = vmatprep.mubr.bf16.mxu0 0
      %6433 = vmatmul.mubr.bf16.gmra.mrb[0].mxu0 %v6308
      %v6434 = vpop.f32.mrb[0].mxu0
      %v6435 = vadd.f32 0.0, %v6434
      %v6436 = vpop.f32.mrb[0].mxu0
      %v6437 = vpop.f32.mrb[0].mxu0
      %v6438 = vadd.f32 0.0, %v6437
      %v6439 = vpop.f32.mrb[0].mxu0
      %6440 = vmatprep.mubr.bf16.mxu0 0
      %6441 = vmatmul.mubr.bf16.gmra.mrb[0].mxu0 %v6311
      %v6442 = vpop.f32.mrb[0].mxu0
      %v6443 = vadd.f32 0.0, %v6442
      %v6444 = vpop.f32.mrb[0].mxu0
      %v6445 = vpop.f32.mrb[0].mxu0
      %v6446 = vadd.f32 0.0, %v6445
      %v6447 = vpop.f32.mrb[0].mxu0
      %6448 = vmatprep.mubr.bf16.mxu0 0
      %6449 = vmatmul.mubr.bf16.gmra.mrb[0].mxu0 %v6314
      %v6450 = vpop.f32.mrb[0].mxu0
      %v6451 = vadd.f32 0.0, %v6450
      %v6452 = vpop.f32.mrb[0].mxu0
      %v6453 = vpop.f32.mrb[0].mxu0
      %v6454 = vadd.f32 0.0, %v6453
      %v6455 = vpop.f32.mrb[0].mxu0
      %6456 = vmatprep.mubr.bf16.mxu0 0
      %6457 = vmatmul.mubr.bf16.gmra.mrb[0].mxu0 %v6317
      %v6458 = vpop.f32.mrb[0].mxu0
      %v6459 = vadd.f32 0.0, %v6458
      %v6460 = vpop.f32.mrb[0].mxu0
      %v6461 = vpop.f32.mrb[0].mxu0
      %v6462 = vadd.f32 0.0, %v6461
      %v6463 = vpop.f32.mrb[0].mxu0
      %6464 = vmatprep.mubr.bf16.mxu0 0
      %6465 = vmatmul.mubr.bf16.gmra.mrb[0].mxu0 %v6320
      %v6466 = vpop.f32.mrb[0].mxu0
      %v6467 = vadd.f32 0.0, %v6466
      %v6468 = vpop.f32.mrb[0].mxu0
      %v6469 = vpop.f32.mrb[0].mxu0
      %v6470 = vadd.f32 0.0, %v6469
      %v6471 = vpop.f32.mrb[0].mxu0
      %6472 = vmatprep.mubr.bf16.mxu0 0
      %6473 = vmatmul.mubr.bf16.gmra.mrb[0].mxu0 %v6323
      %v6474 = vpop.f32.mrb[0].mxu0
      %v6475 = vadd.f32 0.0, %v6474
      %v6476 = vpop.f32.mrb[0].mxu0
      %v6477 = vpop.f32.mrb[0].mxu0
      %v6478 = vadd.f32 0.0, %v6477
      %v6479 = vpop.f32.mrb[0].mxu0
      %6480 = vmatprep.mubr.bf16.mxu0 0
      %6481 = vmatmul.mubr.bf16.gmra.mrb[0].mxu0 %v6326
      %v6482 = vpop.f32.mrb[0].mxu0
      %v6483 = vadd.f32 0.0, %v6482
      %v6484 = vpop.f32.mrb[0].mxu0
      %v6485 = vpop.f32.mrb[0].mxu0
      %v6486 = vadd.f32 0.0, %v6485
      %v6487 = vpop.f32.mrb[0].mxu0
      %6488 = vdwg.mxu0
      %v6491 = vunpack.c.l.b16 %v6152
      %v6492 = vunpack.c.l.b16 %v6153
      %v6493 = vpack.c.b16 %v6492, %v6491
      %v6496 = vunpack.c.l.b16 %v6188
      %v6497 = vunpack.c.l.b16 %v6189
      %v6498 = vpack.c.b16 %v6497, %v6496
      %v6501 = vsel %vm6279, %v6493, 0
      %6503 = vmatprep.subr.bf16.mxu0 0
      %6504 = vmatpush1.bf16.msra.mxu0 %v6498
      %6505 = vmatprep.subr.bf16.mxu0 0
      %6506 = vmatpush1.bf16.msra.mxu0 0
      %6507 = vmatprep.subr.bf16.mxu0 0
      %6508 = vmatpush1.bf16.msra.mxu0 0
      %6509 = vmatprep.subr.bf16.mxu0 0
      %6510 = vmatpush1.bf16.msra.mxu0 0
      %6511 = vmatprep.subr.bf16.mxu0 0
      %6512 = vmatpush1.bf16.msra.mxu0 0
      %6513 = vmatprep.subr.bf16.mxu0 0
      %6514 = vmatpush1.bf16.msra.mxu0 0
      %6515 = vmatprep.subr.bf16.mxu0 0
      %6516 = vmatpush1.bf16.msra.mxu0 0
      %6517 = vmatprep.subr.bf16.mxu0 0
      %6518 = vmatpush1.bf16.msra.mxu0 0
      %6519 = vmatprep.subr.bf16.mxu0 0
      %6520 = vmatpush1.bf16.msra.mxu0 0
      %6521 = vmatprep.subr.bf16.mxu0 0
      %6522 = vmatpush1.bf16.msra.mxu0 0
      %6523 = vmatprep.subr.bf16.mxu0 0
      %6524 = vmatpush1.bf16.msra.mxu0 0
      %6525 = vmatprep.subr.bf16.mxu0 0
      %6526 = vmatpush1.bf16.msra.mxu0 0
      %6527 = vmatprep.subr.bf16.mxu0 0
      %6528 = vmatpush1.bf16.msra.mxu0 0
      %6529 = vmatprep.subr.bf16.mxu0 0
      %6530 = vmatpush1.bf16.msra.mxu0 0
      %6531 = vmatprep.subr.bf16.mxu0 0
      %6532 = vmatpush1.bf16.msra.mxu0 0
      %6533 = vmatprep.subr.bf16.mxu0 0
      %6534 = vmatpush1.bf16.msra.mxu0 0
      %6535 = vmatprep.mubr.bf16.mxu0 0
      %6536 = vmatmul.mubr.bf16.gmra.mrb[0].mxu0 %v6501
      %v6537 = vpop.f32.mrb[0].mxu0
      %v6538 = vadd.f32 %v6363, %v6537
      %v6539 = vpop.f32.mrb[0].mxu0
      %v6540 = vpop.f32.mrb[0].mxu0
      %v6541 = vadd.f32 %v6366, %v6540
      %v6542 = vpop.f32.mrb[0].mxu0
      %6543 = vmatprep.mubr.bf16.mxu0 0
      %6544 = vmatmul.mubr.bf16.gmra.mrb[0].mxu0 %v6281
      %v6545 = vpop.f32.mrb[0].mxu0
      %v6546 = vadd.f32 %v6371, %v6545
      %v6547 = vpop.f32.mrb[0].mxu0
      %v6548 = vpop.f32.mrb[0].mxu0
      %v6549 = vadd.f32 %v6374, %v6548
      %v6550 = vpop.f32.mrb[0].mxu0
      %6551 = vmatprep.mubr.bf16.mxu0 0
      %6552 = vmatmul.mubr.bf16.gmra.mrb[0].mxu0 %v6284
      %v6553 = vpop.f32.mrb[0].mxu0
      %v6554 = vadd.f32 %v6379, %v6553
      %v6555 = vpop.f32.mrb[0].mxu0
      %v6556 = vpop.f32.mrb[0].mxu0
      %v6557 = vadd.f32 %v6382, %v6556
      %v6558 = vpop.f32.mrb[0].mxu0
      %6559 = vmatprep.mubr.bf16.mxu0 0
      %6560 = vmatmul.mubr.bf16.gmra.mrb[0].mxu0 %v6287
      %v6561 = vpop.f32.mrb[0].mxu0
      %v6562 = vadd.f32 %v6387, %v6561
      %v6563 = vpop.f32.mrb[0].mxu0
      %v6564 = vpop.f32.mrb[0].mxu0
      %v6565 = vadd.f32 %v6390, %v6564
      %v6566 = vpop.f32.mrb[0].mxu0
      %6567 = vmatprep.mubr.bf16.mxu0 0
      %6568 = vmatmul.mubr.bf16.gmra.mrb[0].mxu0 %v6290
      %v6569 = vpop.f32.mrb[0].mxu0
      %v6570 = vadd.f32 %v6395, %v6569
      %v6571 = vpop.f32.mrb[0].mxu0
      %v6572 = vpop.f32.mrb[0].mxu0
      %v6573 = vadd.f32 %v6398, %v6572
      %v6574 = vpop.f32.mrb[0].mxu0
      %6575 = vmatprep.mubr.bf16.mxu0 0
      %6576 = vmatmul.mubr.bf16.gmra.mrb[0].mxu0 %v6293
      %v6577 = vpop.f32.mrb[0].mxu0
      %v6578 = vadd.f32 %v6403, %v6577
      %v6579 = vpop.f32.mrb[0].mxu0
      %v6580 = vpop.f32.mrb[0].mxu0
      %v6581 = vadd.f32 %v6406, %v6580
      %v6582 = vpop.f32.mrb[0].mxu0
      %6583 = vmatprep.mubr.bf16.mxu0 0
      %6584 = vmatmul.mubr.bf16.gmra.mrb[0].mxu0 %v6296
      %v6585 = vpop.f32.mrb[0].mxu0
      %v6586 = vadd.f32 %v6411, %v6585
      %v6587 = vpop.f32.mrb[0].mxu0
      %v6588 = vpop.f32.mrb[0].mxu0
      %v6589 = vadd.f32 %v6414, %v6588
      %v6590 = vpop.f32.mrb[0].mxu0
      %6591 = vmatprep.mubr.bf16.mxu0 0
      %6592 = vmatmul.mubr.bf16.gmra.mrb[0].mxu0 %v6299
      %v6593 = vpop.f32.mrb[0].mxu0
      %v6594 = vadd.f32 %v6419, %v6593
      %v6595 = vpop.f32.mrb[0].mxu0
      %v6596 = vpop.f32.mrb[0].mxu0
      %v6597 = vadd.f32 %v6422, %v6596
      %v6598 = vpop.f32.mrb[0].mxu0
      %6599 = vmatprep.mubr.bf16.mxu0 0
      %6600 = vmatmul.mubr.bf16.gmra.mrb[0].mxu0 %v6302
      %v6601 = vpop.f32.mrb[0].mxu0
      %v6602 = vadd.f32 %v6427, %v6601
      %v6603 = vpop.f32.mrb[0].mxu0
      %v6604 = vpop.f32.mrb[0].mxu0
      %v6605 = vadd.f32 %v6430, %v6604
      %v6606 = vpop.f32.mrb[0].mxu0
      %6607 = vmatprep.mubr.bf16.mxu0 0
      %6608 = vmatmul.mubr.bf16.gmra.mrb[0].mxu0 %v6305
      %v6609 = vpop.f32.mrb[0].mxu0
      %v6610 = vadd.f32 %v6435, %v6609
      %v6611 = vpop.f32.mrb[0].mxu0
      %v6612 = vpop.f32.mrb[0].mxu0
      %v6613 = vadd.f32 %v6438, %v6612
      %v6614 = vpop.f32.mrb[0].mxu0
      %6615 = vmatprep.mubr.bf16.mxu0 0
      %6616 = vmatmul.mubr.bf16.gmra.mrb[0].mxu0 %v6308
      %v6617 = vpop.f32.mrb[0].mxu0
      %v6618 = vadd.f32 %v6443, %v6617
      %v6619 = vpop.f32.mrb[0].mxu0
      %v6620 = vpop.f32.mrb[0].mxu0
      %v6621 = vadd.f32 %v6446, %v6620
      %v6622 = vpop.f32.mrb[0].mxu0
      %6623 = vmatprep.mubr.bf16.mxu0 0
      %6624 = vmatmul.mubr.bf16.gmra.mrb[0].mxu0 %v6311
      %v6625 = vpop.f32.mrb[0].mxu0
      %v6626 = vadd.f32 %v6451, %v6625
      %v6627 = vpop.f32.mrb[0].mxu0
      %v6628 = vpop.f32.mrb[0].mxu0
      %v6629 = vadd.f32 %v6454, %v6628
      %v6630 = vpop.f32.mrb[0].mxu0
      %6631 = vmatprep.mubr.bf16.mxu0 0
      %6632 = vmatmul.mubr.bf16.gmra.mrb[0].mxu0 %v6314
      %v6633 = vpop.f32.mrb[0].mxu0
      %v6634 = vadd.f32 %v6459, %v6633
      %v6635 = vpop.f32.mrb[0].mxu0
      %v6636 = vpop.f32.mrb[0].mxu0
      %v6637 = vadd.f32 %v6462, %v6636
      %v6638 = vpop.f32.mrb[0].mxu0
      %6639 = vmatprep.mubr.bf16.mxu0 0
      %6640 = vmatmul.mubr.bf16.gmra.mrb[0].mxu0 %v6317
      %v6641 = vpop.f32.mrb[0].mxu0
      %v6642 = vadd.f32 %v6467, %v6641
      %v6643 = vpop.f32.mrb[0].mxu0
      %v6644 = vpop.f32.mrb[0].mxu0
      %v6645 = vadd.f32 %v6470, %v6644
      %v6646 = vpop.f32.mrb[0].mxu0
      %6647 = vmatprep.mubr.bf16.mxu0 0
      %6648 = vmatmul.mubr.bf16.gmra.mrb[0].mxu0 %v6320
      %v6649 = vpop.f32.mrb[0].mxu0
      %v6650 = vadd.f32 %v6475, %v6649
      %v6651 = vpop.f32.mrb[0].mxu0
      %v6652 = vpop.f32.mrb[0].mxu0
      %v6653 = vadd.f32 %v6478, %v6652
      %v6654 = vpop.f32.mrb[0].mxu0
      %6655 = vmatprep.mubr.bf16.mxu0 0
      %6656 = vmatmul.mubr.bf16.gmra.mrb[0].mxu0 %v6323
      %v6657 = vpop.f32.mrb[0].mxu0
      %v6658 = vadd.f32 %v6483, %v6657
      %v6659 = vpop.f32.mrb[0].mxu0
      %v6660 = vpop.f32.mrb[0].mxu0
      %v6661 = vadd.f32 %v6486, %v6660
      %v6662 = vpop.f32.mrb[0].mxu0
      %6663 = vdwg.mxu0
      %s6664 = scalar_lea.vmem %s248, 48
      %v6665 = vld [vmem:[%s6664] sm:$0xf]
      %v6666 = vld [vmem:[%s6664 + $0x4] sm:$0xf]
      %v6669 = vunpack.c.l.b16 %v6186
      %v6670 = vunpack.c.l.b16 %v6187
      %v6671 = vpack.c.b16 %v6670, %v6669
      %v6674 = vunpack.c.l.b16 %v6665
      %v6675 = vunpack.c.l.b16 %v6666
      %v6676 = vpack.c.b16 %v6675, %v6674
      %v6679 = vsel %vm6279, %v6671, 0
      %6681 = vmatprep.subr.bf16.mxu0 0
      %6682 = vmatpush1.bf16.msra.mxu0 %v6676
      %6683 = vmatprep.subr.bf16.mxu0 0
      %6684 = vmatpush1.bf16.msra.mxu0 0
      %6685 = vmatprep.subr.bf16.mxu0 0
      %6686 = vmatpush1.bf16.msra.mxu0 0
      %6687 = vmatprep.subr.bf16.mxu0 0
      %6688 = vmatpush1.bf16.msra.mxu0 0
      %6689 = vmatprep.subr.bf16.mxu0 0
      %6690 = vmatpush1.bf16.msra.mxu0 0
      %6691 = vmatprep.subr.bf16.mxu0 0
      %6692 = vmatpush1.bf16.msra.mxu0 0
      %6693 = vmatprep.subr.bf16.mxu0 0
      %6694 = vmatpush1.bf16.msra.mxu0 0
      %6695 = vmatprep.subr.bf16.mxu0 0
      %6696 = vmatpush1.bf16.msra.mxu0 0
      %6697 = vmatprep.subr.bf16.mxu0 0
      %6698 = vmatpush1.bf16.msra.mxu0 0
      %6699 = vmatprep.subr.bf16.mxu0 0
      %6700 = vmatpush1.bf16.msra.mxu0 0
      %6701 = vmatprep.subr.bf16.mxu0 0
      %6702 = vmatpush1.bf16.msra.mxu0 0
      %6703 = vmatprep.subr.bf16.mxu0 0
      %6704 = vmatpush1.bf16.msra.mxu0 0
      %6705 = vmatprep.subr.bf16.mxu0 0
      %6706 = vmatpush1.bf16.msra.mxu0 0
      %6707 = vmatprep.subr.bf16.mxu0 0
      %6708 = vmatpush1.bf16.msra.mxu0 0
      %6709 = vmatprep.subr.bf16.mxu0 0
      %6710 = vmatpush1.bf16.msra.mxu0 0
      %6711 = vmatprep.subr.bf16.mxu0 0
      %6712 = vmatpush1.bf16.msra.mxu0 0
      %6713 = vmatprep.mubr.bf16.mxu0 0
      %6714 = vmatmul.mubr.bf16.gmra.mrb[0].mxu0 %v6284
      %v6715 = vpop.f32.mrb[0].mxu0
      %v6716 = vadd.f32 0.0, %v6715
      %v6717 = vpop.f32.mrb[0].mxu0
      %v6718 = vpop.f32.mrb[0].mxu0
      %v6719 = vadd.f32 0.0, %v6718
      %v6720 = vpop.f32.mrb[0].mxu0
      %6721 = vmatprep.mubr.bf16.mxu0 0
      %6722 = vmatmul.mubr.bf16.gmra.mrb[0].mxu0 %v6287
      %v6723 = vpop.f32.mrb[0].mxu0
      %v6724 = vadd.f32 0.0, %v6723
      %v6725 = vpop.f32.mrb[0].mxu0
      %v6726 = vpop.f32.mrb[0].mxu0
      %v6727 = vadd.f32 0.0, %v6726
      %v6728 = vpop.f32.mrb[0].mxu0
      %6729 = vmatprep.mubr.bf16.mxu0 0
      %6730 = vmatmul.mubr.bf16.gmra.mrb[0].mxu0 %v6290
      %v6731 = vpop.f32.mrb[0].mxu0
      %v6732 = vadd.f32 0.0, %v6731
      %v6733 = vpop.f32.mrb[0].mxu0
      %v6734 = vpop.f32.mrb[0].mxu0
      %v6735 = vadd.f32 0.0, %v6734
      %v6736 = vpop.f32.mrb[0].mxu0
      %6737 = vmatprep.mubr.bf16.mxu0 0
      %6738 = vmatmul.mubr.bf16.gmra.mrb[0].mxu0 %v6293
      %v6739 = vpop.f32.mrb[0].mxu0
      %v6740 = vadd.f32 0.0, %v6739
      %v6741 = vpop.f32.mrb[0].mxu0
      %v6742 = vpop.f32.mrb[0].mxu0
      %v6743 = vadd.f32 0.0, %v6742
      %v6744 = vpop.f32.mrb[0].mxu0
      %6745 = vmatprep.mubr.bf16.mxu0 0
      %6746 = vmatmul.mubr.bf16.gmra.mrb[0].mxu0 %v6296
      %v6747 = vpop.f32.mrb[0].mxu0
      %v6748 = vadd.f32 0.0, %v6747
      %v6749 = vpop.f32.mrb[0].mxu0
      %v6750 = vpop.f32.mrb[0].mxu0
      %v6751 = vadd.f32 0.0, %v6750
      %v6752 = vpop.f32.mrb[0].mxu0
      %6753 = vmatprep.mubr.bf16.mxu0 0
      %6754 = vmatmul.mubr.bf16.gmra.mrb[0].mxu0 %v6299
      %v6755 = vpop.f32.mrb[0].mxu0
      %v6756 = vadd.f32 0.0, %v6755
      %v6757 = vpop.f32.mrb[0].mxu0
      %v6758 = vpop.f32.mrb[0].mxu0
      %v6759 = vadd.f32 0.0, %v6758
      %v6760 = vpop.f32.mrb[0].mxu0
      %6761 = vmatprep.mubr.bf16.mxu0 0
      %6762 = vmatmul.mubr.bf16.gmra.mrb[0].mxu0 %v6302
      %v6763 = vpop.f32.mrb[0].mxu0
      %v6764 = vadd.f32 0.0, %v6763
      %v6765 = vpop.f32.mrb[0].mxu0
      %v6766 = vpop.f32.mrb[0].mxu0
      %v6767 = vadd.f32 0.0, %v6766
      %v6768 = vpop.f32.mrb[0].mxu0
      %6769 = vmatprep.mubr.bf16.mxu0 0
      %6770 = vmatmul.mubr.bf16.gmra.mrb[0].mxu0 %v6305
      %v6771 = vpop.f32.mrb[0].mxu0
      %v6772 = vadd.f32 0.0, %v6771
      %v6773 = vpop.f32.mrb[0].mxu0
      %v6774 = vpop.f32.mrb[0].mxu0
      %v6775 = vadd.f32 0.0, %v6774
      %v6776 = vpop.f32.mrb[0].mxu0
      %6777 = vmatprep.mubr.bf16.mxu0 0
      %6778 = vmatmul.mubr.bf16.gmra.mrb[0].mxu0 %v6308
      %v6779 = vpop.f32.mrb[0].mxu0
      %v6780 = vadd.f32 0.0, %v6779
      %v6781 = vpop.f32.mrb[0].mxu0
      %v6782 = vpop.f32.mrb[0].mxu0
      %v6783 = vadd.f32 0.0, %v6782
      %v6784 = vpop.f32.mrb[0].mxu0
      %6785 = vmatprep.mubr.bf16.mxu0 0
      %6786 = vmatmul.mubr.bf16.gmra.mrb[0].mxu0 %v6311
      %v6787 = vpop.f32.mrb[0].mxu0
      %v6788 = vadd.f32 0.0, %v6787
      %v6789 = vpop.f32.mrb[0].mxu0
      %v6790 = vpop.f32.mrb[0].mxu0
      %v6791 = vadd.f32 0.0, %v6790
      %v6792 = vpop.f32.mrb[0].mxu0
      %6793 = vmatprep.mubr.bf16.mxu0 0
      %6794 = vmatmul.mubr.bf16.gmra.mrb[0].mxu0 %v6314
      %v6795 = vpop.f32.mrb[0].mxu0
      %v6796 = vadd.f32 0.0, %v6795
      %v6797 = vpop.f32.mrb[0].mxu0
      %v6798 = vpop.f32.mrb[0].mxu0
      %v6799 = vadd.f32 0.0, %v6798
      %v6800 = vpop.f32.mrb[0].mxu0
      %6801 = vmatprep.mubr.bf16.mxu0 0
      %6802 = vmatmul.mubr.bf16.gmra.mrb[0].mxu0 %v6317
      %v6803 = vpop.f32.mrb[0].mxu0
      %v6804 = vadd.f32 0.0, %v6803
      %v6805 = vpop.f32.mrb[0].mxu0
      %v6806 = vpop.f32.mrb[0].mxu0
      %v6807 = vadd.f32 0.0, %v6806
      %v6808 = vpop.f32.mrb[0].mxu0
      %6809 = vmatprep.mubr.bf16.mxu0 0
      %6810 = vmatmul.mubr.bf16.gmra.mrb[0].mxu0 %v6320
      %v6811 = vpop.f32.mrb[0].mxu0
      %v6812 = vadd.f32 0.0, %v6811
      %v6813 = vpop.f32.mrb[0].mxu0
      %v6814 = vpop.f32.mrb[0].mxu0
      %v6815 = vadd.f32 0.0, %v6814
      %v6816 = vpop.f32.mrb[0].mxu0
      %6817 = vmatprep.mubr.bf16.mxu0 0
      %6818 = vmatmul.mubr.bf16.gmra.mrb[0].mxu0 %v6323
      %v6819 = vpop.f32.mrb[0].mxu0
      %v6820 = vadd.f32 0.0, %v6819
      %v6821 = vpop.f32.mrb[0].mxu0
      %v6822 = vpop.f32.mrb[0].mxu0
      %v6823 = vadd.f32 0.0, %v6822
      %v6824 = vpop.f32.mrb[0].mxu0
      %6825 = vmatprep.mubr.bf16.mxu0 0
      %6826 = vmatmul.mubr.bf16.gmra.mrb[0].mxu0 %v6326
      %v6827 = vpop.f32.mrb[0].mxu0
      %v6828 = vadd.f32 0.0, %v6827
      %v6829 = vpop.f32.mrb[0].mxu0
      %v6830 = vpop.f32.mrb[0].mxu0
      %v6831 = vadd.f32 0.0, %v6830
      %v6832 = vpop.f32.mrb[0].mxu0
      %6833 = vmatprep.mubr.bf16.mxu0 0
      %6834 = vmatmul.mubr.bf16.gmra.mrb[0].mxu0 %v6679
      %v6835 = vpop.f32.mrb[0].mxu0
      %v6836 = vadd.f32 0.0, %v6835
      %v6837 = vpop.f32.mrb[0].mxu0
      %v6838 = vpop.f32.mrb[0].mxu0
      %v6839 = vadd.f32 0.0, %v6838
      %v6840 = vpop.f32.mrb[0].mxu0
      %6841 = vdwg.mxu0
      %v6842 = vadd.f32 %v6538, %v6716
      %v6843 = vadd.f32 %v6541, %v6719
      %v6844 = vadd.f32 %v6546, %v6724
      %v6845 = vadd.f32 %v6549, %v6727
      %v6846 = vadd.f32 %v6554, %v6732
      %v6847 = vadd.f32 %v6557, %v6735
      %v6848 = vadd.f32 %v6562, %v6740
      %v6849 = vadd.f32 %v6565, %v6743
      %v6850 = vadd.f32 %v6570, %v6748
      %v6851 = vadd.f32 %v6573, %v6751
      %v6852 = vadd.f32 %v6578, %v6756
      %v6853 = vadd.f32 %v6581, %v6759
      %v6854 = vadd.f32 %v6586, %v6764
      %v6855 = vadd.f32 %v6589, %v6767
      %v6856 = vadd.f32 %v6594, %v6772
      %v6857 = vadd.f32 %v6597, %v6775
      %v6858 = vadd.f32 %v6602, %v6780
      %v6859 = vadd.f32 %v6605, %v6783
      %v6860 = vadd.f32 %v6610, %v6788
      %v6861 = vadd.f32 %v6613, %v6791
      %v6862 = vadd.f32 %v6618, %v6796
      %v6863 = vadd.f32 %v6621, %v6799
      %v6864 = vadd.f32 %v6626, %v6804
      %v6865 = vadd.f32 %v6629, %v6807
      %v6866 = vadd.f32 %v6634, %v6812
      %v6867 = vadd.f32 %v6637, %v6815
      %v6868 = vadd.f32 %v6642, %v6820
      %v6869 = vadd.f32 %v6645, %v6823
      %v6870 = vadd.f32 %v6650, %v6828
      %v6871 = vadd.f32 %v6653, %v6831
      %v6872 = vadd.f32 %v6658, %v6836
      %v6873 = vadd.f32 %v6661, %v6839
      %v6874 = vld [vmem:[#allocation3] sm:$0xf]
      %v6875 = vld [vmem:[#allocation3 + $0x4] sm:$0xf]
      %v6876 = vld [vmem:[#allocation3 + $0x8] sm:$0x1]
      %v6877 = vld [vmem:[#allocation3 + $0xc] sm:$0xf]
      %v6878 = vld [vmem:[#allocation3 + $0x10] sm:$0xf]
      %v6879 = vld [vmem:[#allocation3 + $0x14] sm:$0x1]
      %v6880 = vld [vmem:[#allocation3 + $0x18] sm:$0xf]
      %v6881 = vld [vmem:[#allocation3 + $0x1c] sm:$0xf]
      %v6882 = vld [vmem:[#allocation3 + $0x20] sm:$0x1]
      %v6883 = vld [vmem:[#allocation3 + $0x24] sm:$0xf]
      %v6884 = vld [vmem:[#allocation3 + $0x28] sm:$0xf]
      %v6885 = vld [vmem:[#allocation3 + $0x2c] sm:$0x1]
      %v6886 = vld [vmem:[#allocation3 + $0x30] sm:$0xf]
      %v6887 = vld [vmem:[#allocation3 + $0x34] sm:$0xf]
      %v6888 = vld [vmem:[#allocation3 + $0x38] sm:$0x1]
      %v6889 = vld [vmem:[#allocation3 + $0x3c] sm:$0xf]
      %v6890 = vld [vmem:[#allocation3 + $0x40] sm:$0xf]
      %v6891 = vld [vmem:[#allocation3 + $0x44] sm:$0x1]
      %v6892 = vld [vmem:[#allocation3 + $0x48] sm:$0xf]
      %v6893 = vld [vmem:[#allocation3 + $0x4c] sm:$0xf]
      %v6894 = vld [vmem:[#allocation3 + $0x50] sm:$0x1]
      %v6895 = vld [vmem:[#allocation3 + $0x54] sm:$0xf]
      %v6896 = vld [vmem:[#allocation3 + $0x58] sm:$0xf]
      %v6897 = vld [vmem:[#allocation3 + $0x5c] sm:$0x1]
      %v6898 = vld [vmem:[#allocation3 + $0x60] sm:$0xf]
      %v6899 = vld [vmem:[#allocation3 + $0x64] sm:$0xf]
      %v6900 = vld [vmem:[#allocation3 + $0x68] sm:$0x1]
      %v6901 = vld [vmem:[#allocation3 + $0x6c] sm:$0xf]
      %v6902 = vld [vmem:[#allocation3 + $0x70] sm:$0xf]
      %v6903 = vld [vmem:[#allocation3 + $0x74] sm:$0x1]
      %v6904 = vld [vmem:[#allocation3 + $0x78] sm:$0xf]
      %v6905 = vld [vmem:[#allocation3 + $0x7c] sm:$0xf]
      %v6906 = vld [vmem:[#allocation3 + $0x80] sm:$0x1]
      %v6907 = vld [vmem:[#allocation3 + $0x84] sm:$0xf]
      %v6908 = vld [vmem:[#allocation3 + $0x88] sm:$0xf]
      %v6909 = vld [vmem:[#allocation3 + $0x8c] sm:$0x1]
      %v6910 = vld [vmem:[#allocation3 + $0x90] sm:$0xf]
      %v6911 = vld [vmem:[#allocation3 + $0x94] sm:$0xf]
      %v6912 = vld [vmem:[#allocation3 + $0x98] sm:$0x1]
      %v6913 = vld [vmem:[#allocation3 + $0x9c] sm:$0xf]
      %v6914 = vld [vmem:[#allocation3 + $0xa0] sm:$0xf]
      %v6915 = vld [vmem:[#allocation3 + $0xa4] sm:$0x1]
      %v6916 = vld [vmem:[#allocation3 + $0xa8] sm:$0xf]
      %v6917 = vld [vmem:[#allocation3 + $0xac] sm:$0xf]
      %v6918 = vld [vmem:[#allocation3 + $0xb0] sm:$0x1]
      %v6919 = vld [vmem:[#allocation3 + $0xb4] sm:$0xf]
      %v6920 = vld [vmem:[#allocation3 + $0xb8] sm:$0xf]
      %v6921 = vld [vmem:[#allocation3 + $0xbc] sm:$0x1]
      %v6922 = vld [vmem:[#allocation3 + $0xc0] sm:$0xf]
      %v6923 = vld [vmem:[#allocation3 + $0xc4] sm:$0xf]
      %v6924 = vld [vmem:[#allocation3 + $0xc8] sm:$0x1]
      %v6925 = vld [vmem:[#allocation3 + $0xcc] sm:$0xf]
      %v6926 = vld [vmem:[#allocation3 + $0xd0] sm:$0xf]
      %v6927 = vld [vmem:[#allocation3 + $0xd4] sm:$0x1]
      %vm6928 = vsmask.f32 3328
      %vm6929 = vsmask.f32 7440
      %vm6930 = vmor %vm6928, %vm6929
      %v6932 = vshrl.u32 %v6874, 16
      %v6934 = vrot.slane %v6932, 4
      %v6935 = vshll.u32 %v6874, 16
      %v6937 = vrot.slane %v6935, 5
      %v6938 = vor.u32 %v6934, %v6937
      %v6939 = vrot.slane %v6938, 4
      %v6941 = vshll.u32 %v6875, 16
      %v6943 = vrot.slane %v6941, 5
      %v6944 = vsel %vm6930, %v6939, %v6943
      %v6945 = vshrl.u32 %v6875, 16
      %v6947 = vrot.slane %v6945, 4
      %v6948 = vor.u32 %v6947, %v6943
      %v6949 = vrot.slane %v6948, 4
      %v6951 = vshll.u32 %v6876, 16
      %v6953 = vrot.slane %v6951, 5
      %v6954 = vsel %vm6930, %v6949, %v6953
      %v6956 = vshrl.u32 %v6877, 16
      %v6958 = vrot.slane %v6956, 4
      %v6959 = vshll.u32 %v6877, 16
      %v6961 = vrot.slane %v6959, 5
      %v6962 = vor.u32 %v6958, %v6961
      %v6963 = vrot.slane %v6962, 4
      %v6965 = vshll.u32 %v6878, 16
      %v6967 = vrot.slane %v6965, 5
      %v6968 = vsel %vm6930, %v6963, %v6967
      %v6969 = vshrl.u32 %v6878, 16
      %v6971 = vrot.slane %v6969, 4
      %v6972 = vor.u32 %v6971, %v6967
      %v6973 = vrot.slane %v6972, 4
      %v6975 = vshll.u32 %v6879, 16
      %v6977 = vrot.slane %v6975, 5
      %v6978 = vsel %vm6930, %v6973, %v6977
      %v6980 = vshrl.u32 %v6880, 16
      %v6982 = vrot.slane %v6980, 4
      %v6983 = vshll.u32 %v6880, 16
      %v6985 = vrot.slane %v6983, 5
      %v6986 = vor.u32 %v6982, %v6985
      %v6987 = vrot.slane %v6986, 4
      %v6989 = vshll.u32 %v6881, 16
      %v6991 = vrot.slane %v6989, 5
      %v6992 = vsel %vm6930, %v6987, %v6991
      %v6993 = vshrl.u32 %v6881, 16
      %v6995 = vrot.slane %v6993, 4
      %v6996 = vor.u32 %v6995, %v6991
      %v6997 = vrot.slane %v6996, 4
      %v6999 = vshll.u32 %v6882, 16
      %v7001 = vrot.slane %v6999, 5
      %v7002 = vsel %vm6930, %v6997, %v7001
      %v7004 = vshrl.u32 %v6883, 16
      %v7006 = vrot.slane %v7004, 4
      %v7007 = vshll.u32 %v6883, 16
      %v7009 = vrot.slane %v7007, 5
      %v7010 = vor.u32 %v7006, %v7009
      %v7011 = vrot.slane %v7010, 4
      %v7013 = vshll.u32 %v6884, 16
      %v7015 = vrot.slane %v7013, 5
      %v7016 = vsel %vm6930, %v7011, %v7015
      %v7017 = vshrl.u32 %v6884, 16
      %v7019 = vrot.slane %v7017, 4
      %v7020 = vor.u32 %v7019, %v7015
      %v7021 = vrot.slane %v7020, 4
      %v7023 = vshll.u32 %v6885, 16
      %v7025 = vrot.slane %v7023, 5
      %v7026 = vsel %vm6930, %v7021, %v7025
      %v7028 = vshrl.u32 %v6886, 16
      %v7030 = vrot.slane %v7028, 4
      %v7031 = vshll.u32 %v6886, 16
      %v7033 = vrot.slane %v7031, 5
      %v7034 = vor.u32 %v7030, %v7033
      %v7035 = vrot.slane %v7034, 4
      %v7037 = vshll.u32 %v6887, 16
      %v7039 = vrot.slane %v7037, 5
      %v7040 = vsel %vm6930, %v7035, %v7039
      %v7041 = vshrl.u32 %v6887, 16
      %v7043 = vrot.slane %v7041, 4
      %v7044 = vor.u32 %v7043, %v7039
      %v7045 = vrot.slane %v7044, 4
      %v7047 = vshll.u32 %v6888, 16
      %v7049 = vrot.slane %v7047, 5
      %v7050 = vsel %vm6930, %v7045, %v7049
      %v7052 = vshrl.u32 %v6889, 16
      %v7054 = vrot.slane %v7052, 4
      %v7055 = vshll.u32 %v6889, 16
      %v7057 = vrot.slane %v7055, 5
      %v7058 = vor.u32 %v7054, %v7057
      %v7059 = vrot.slane %v7058, 4
      %v7061 = vshll.u32 %v6890, 16
      %v7063 = vrot.slane %v7061, 5
      %v7064 = vsel %vm6930, %v7059, %v7063
      %v7065 = vshrl.u32 %v6890, 16
      %v7067 = vrot.slane %v7065, 4
      %v7068 = vor.u32 %v7067, %v7063
      %v7069 = vrot.slane %v7068, 4
      %v7071 = vshll.u32 %v6891, 16
      %v7073 = vrot.slane %v7071, 5
      %v7074 = vsel %vm6930, %v7069, %v7073
      %v7076 = vshrl.u32 %v6892, 16
      %v7078 = vrot.slane %v7076, 4
      %v7079 = vshll.u32 %v6892, 16
      %v7081 = vrot.slane %v7079, 5
      %v7082 = vor.u32 %v7078, %v7081
      %v7083 = vrot.slane %v7082, 4
      %v7085 = vshll.u32 %v6893, 16
      %v7087 = vrot.slane %v7085, 5
      %v7088 = vsel %vm6930, %v7083, %v7087
      %v7089 = vshrl.u32 %v6893, 16
      %v7091 = vrot.slane %v7089, 4
      %v7092 = vor.u32 %v7091, %v7087
      %v7093 = vrot.slane %v7092, 4
      %v7095 = vshll.u32 %v6894, 16
      %v7097 = vrot.slane %v7095, 5
      %v7098 = vsel %vm6930, %v7093, %v7097
      %v7100 = vshrl.u32 %v6895, 16
      %v7102 = vrot.slane %v7100, 4
      %v7103 = vshll.u32 %v6895, 16
      %v7105 = vrot.slane %v7103, 5
      %v7106 = vor.u32 %v7102, %v7105
      %v7107 = vrot.slane %v7106, 4
      %v7109 = vshll.u32 %v6896, 16
      %v7111 = vrot.slane %v7109, 5
      %v7112 = vsel %vm6930, %v7107, %v7111
      %v7113 = vshrl.u32 %v6896, 16
      %v7115 = vrot.slane %v7113, 4
      %v7116 = vor.u32 %v7115, %v7111
      %v7117 = vrot.slane %v7116, 4
      %v7119 = vshll.u32 %v6897, 16
      %v7121 = vrot.slane %v7119, 5
      %v7122 = vsel %vm6930, %v7117, %v7121
      %v7124 = vshrl.u32 %v6898, 16
      %v7126 = vrot.slane %v7124, 4
      %v7127 = vshll.u32 %v6898, 16
      %v7129 = vrot.slane %v7127, 5
      %v7130 = vor.u32 %v7126, %v7129
      %v7131 = vrot.slane %v7130, 4
      %v7133 = vshll.u32 %v6899, 16
      %v7135 = vrot.slane %v7133, 5
      %v7136 = vsel %vm6930, %v7131, %v7135
      %v7137 = vshrl.u32 %v6899, 16
      %v7139 = vrot.slane %v7137, 4
      %v7140 = vor.u32 %v7139, %v7135
      %v7141 = vrot.slane %v7140, 4
      %v7143 = vshll.u32 %v6900, 16
      %v7145 = vrot.slane %v7143, 5
      %v7146 = vsel %vm6930, %v7141, %v7145
      %v7148 = vshrl.u32 %v6901, 16
      %v7150 = vrot.slane %v7148, 4
      %v7151 = vshll.u32 %v6901, 16
      %v7153 = vrot.slane %v7151, 5
      %v7154 = vor.u32 %v7150, %v7153
      %v7155 = vrot.slane %v7154, 4
      %v7157 = vshll.u32 %v6902, 16
      %v7159 = vrot.slane %v7157, 5
      %v7160 = vsel %vm6930, %v7155, %v7159
      %v7161 = vshrl.u32 %v6902, 16
      %v7163 = vrot.slane %v7161, 4
      %v7164 = vor.u32 %v7163, %v7159
      %v7165 = vrot.slane %v7164, 4
      %v7167 = vshll.u32 %v6903, 16
      %v7169 = vrot.slane %v7167, 5
      %v7170 = vsel %vm6930, %v7165, %v7169
      %v7172 = vshrl.u32 %v6904, 16
      %v7174 = vrot.slane %v7172, 4
      %v7175 = vshll.u32 %v6904, 16
      %v7177 = vrot.slane %v7175, 5
      %v7178 = vor.u32 %v7174, %v7177
      %v7179 = vrot.slane %v7178, 4
      %v7181 = vshll.u32 %v6905, 16
      %v7183 = vrot.slane %v7181, 5
      %v7184 = vsel %vm6930, %v7179, %v7183
      %v7185 = vshrl.u32 %v6905, 16
      %v7187 = vrot.slane %v7185, 4
      %v7188 = vor.u32 %v7187, %v7183
      %v7189 = vrot.slane %v7188, 4
      %v7191 = vshll.u32 %v6906, 16
      %v7193 = vrot.slane %v7191, 5
      %v7194 = vsel %vm6930, %v7189, %v7193
      %v7196 = vshrl.u32 %v6907, 16
      %v7198 = vrot.slane %v7196, 4
      %v7199 = vshll.u32 %v6907, 16
      %v7201 = vrot.slane %v7199, 5
      %v7202 = vor.u32 %v7198, %v7201
      %v7203 = vrot.slane %v7202, 4
      %v7205 = vshll.u32 %v6908, 16
      %v7207 = vrot.slane %v7205, 5
      %v7208 = vsel %vm6930, %v7203, %v7207
      %v7209 = vshrl.u32 %v6908, 16
      %v7211 = vrot.slane %v7209, 4
      %v7212 = vor.u32 %v7211, %v7207
      %v7213 = vrot.slane %v7212, 4
      %v7215 = vshll.u32 %v6909, 16
      %v7217 = vrot.slane %v7215, 5
      %v7218 = vsel %vm6930, %v7213, %v7217
      %v7220 = vshrl.u32 %v6910, 16
      %v7222 = vrot.slane %v7220, 4
      %v7223 = vshll.u32 %v6910, 16
      %v7225 = vrot.slane %v7223, 5
      %v7226 = vor.u32 %v7222, %v7225
      %v7227 = vrot.slane %v7226, 4
      %v7229 = vshll.u32 %v6911, 16
      %v7231 = vrot.slane %v7229, 5
      %v7232 = vsel %vm6930, %v7227, %v7231
      %v7233 = vshrl.u32 %v6911, 16
      %v7235 = vrot.slane %v7233, 4
      %v7236 = vor.u32 %v7235, %v7231
      %v7237 = vrot.slane %v7236, 4
      %v7239 = vshll.u32 %v6912, 16
      %v7241 = vrot.slane %v7239, 5
      %v7242 = vsel %vm6930, %v7237, %v7241
      %v7244 = vshrl.u32 %v6913, 16
      %v7246 = vrot.slane %v7244, 4
      %v7247 = vshll.u32 %v6913, 16
      %v7249 = vrot.slane %v7247, 5
      %v7250 = vor.u32 %v7246, %v7249
      %v7251 = vrot.slane %v7250, 4
      %v7253 = vshll.u32 %v6914, 16
      %v7255 = vrot.slane %v7253, 5
      %v7256 = vsel %vm6930, %v7251, %v7255
      %v7257 = vshrl.u32 %v6914, 16
      %v7259 = vrot.slane %v7257, 4
      %v7260 = vor.u32 %v7259, %v7255
      %v7261 = vrot.slane %v7260, 4
      %v7263 = vshll.u32 %v6915, 16
      %v7265 = vrot.slane %v7263, 5
      %v7266 = vsel %vm6930, %v7261, %v7265
      %v7268 = vshrl.u32 %v6916, 16
      %v7270 = vrot.slane %v7268, 4
      %v7271 = vshll.u32 %v6916, 16
      %v7273 = vrot.slane %v7271, 5
      %v7274 = vor.u32 %v7270, %v7273
      %v7275 = vrot.slane %v7274, 4
      %v7277 = vshll.u32 %v6917, 16
      %v7279 = vrot.slane %v7277, 5
      %v7280 = vsel %vm6930, %v7275, %v7279
      %v7281 = vshrl.u32 %v6917, 16
      %v7283 = vrot.slane %v7281, 4
      %v7284 = vor.u32 %v7283, %v7279
      %v7285 = vrot.slane %v7284, 4
      %v7287 = vshll.u32 %v6918, 16
      %v7289 = vrot.slane %v7287, 5
      %v7290 = vsel %vm6930, %v7285, %v7289
      %v7292 = vshrl.u32 %v6919, 16
      %v7294 = vrot.slane %v7292, 4
      %v7295 = vshll.u32 %v6919, 16
      %v7297 = vrot.slane %v7295, 5
      %v7298 = vor.u32 %v7294, %v7297
      %v7299 = vrot.slane %v7298, 4
      %v7301 = vshll.u32 %v6920, 16
      %v7303 = vrot.slane %v7301, 5
      %v7304 = vsel %vm6930, %v7299, %v7303
      %v7305 = vshrl.u32 %v6920, 16
      %v7307 = vrot.slane %v7305, 4
      %v7308 = vor.u32 %v7307, %v7303
      %v7309 = vrot.slane %v7308, 4
      %v7311 = vshll.u32 %v6921, 16
      %v7313 = vrot.slane %v7311, 5
      %v7314 = vsel %vm6930, %v7309, %v7313
      %s7315 = scalar_lea.vmem %s248, 8
      %v7316 = vld [vmem:[%s7315] sm:$0xf]
      %v7317 = vld [vmem:[%s7315 + $0x4] sm:$0xf]
      %v7318 = vunpack.c.l.b16 %v6944
      %v7319 = vunpack.c.l.b16 %v6954
      %v7320 = vunpack.c.l.b16 %v6968
      %v7321 = vunpack.c.l.b16 %v6978
      %v7322 = vunpack.c.l.b16 %v6992
      %v7323 = vunpack.c.l.b16 %v7002
      %v7324 = vunpack.c.l.b16 %v7016
      %v7325 = vunpack.c.l.b16 %v7026
      %v7326 = vunpack.c.l.b16 %v7040
      %v7327 = vunpack.c.l.b16 %v7050
      %v7328 = vunpack.c.l.b16 %v7064
      %v7329 = vunpack.c.l.b16 %v7074
      %v7330 = vunpack.c.l.b16 %v7088
      %v7331 = vunpack.c.l.b16 %v7098
      %v7332 = vunpack.c.l.b16 %v7112
      %v7333 = vunpack.c.l.b16 %v7122
      %v7334 = vunpack.c.l.b16 %v7136
      %v7335 = vunpack.c.l.b16 %v7146
      %v7336 = vunpack.c.l.b16 %v7160
      %v7337 = vunpack.c.l.b16 %v7170
      %v7338 = vunpack.c.l.b16 %v7184
      %v7339 = vunpack.c.l.b16 %v7194
      %v7340 = vunpack.c.l.b16 %v7208
      %v7341 = vunpack.c.l.b16 %v7218
      %v7342 = vunpack.c.l.b16 %v7232
      %v7343 = vunpack.c.l.b16 %v7242
      %v7344 = vunpack.c.l.b16 %v7256
      %v7345 = vunpack.c.l.b16 %v7266
      %v7346 = vunpack.c.l.b16 %v7280
      %v7347 = vunpack.c.l.b16 %v7290
      %v7348 = vunpack.c.l.b16 %v7304
      %v7349 = vunpack.c.l.b16 %v7314
      %v7350 = vpack.c.b16 %v7319, %v7318
      %v7351 = vpack.c.b16 %v7321, %v7320
      %v7352 = vpack.c.b16 %v7323, %v7322
      %v7353 = vpack.c.b16 %v7325, %v7324
      %v7354 = vpack.c.b16 %v7327, %v7326
      %v7355 = vpack.c.b16 %v7329, %v7328
      %v7356 = vpack.c.b16 %v7331, %v7330
      %v7357 = vpack.c.b16 %v7333, %v7332
      %v7358 = vpack.c.b16 %v7335, %v7334
      %v7359 = vpack.c.b16 %v7337, %v7336
      %v7360 = vpack.c.b16 %v7339, %v7338
      %v7361 = vpack.c.b16 %v7341, %v7340
      %v7362 = vpack.c.b16 %v7343, %v7342
      %v7363 = vpack.c.b16 %v7345, %v7344
      %v7364 = vpack.c.b16 %v7347, %v7346
      %v7365 = vpack.c.b16 %v7349, %v7348
      %v7368 = vunpack.c.l.b16 %v7316
      %v7369 = vunpack.c.l.b16 %v7317
      %v7370 = vpack.c.b16 %v7369, %v7368
      %v7373 = vsel %vm6279, %v7350, 0
      %v7376 = vsel %vm6279, %v7351, 0
      %v7379 = vsel %vm6279, %v7352, 0
      %v7382 = vsel %vm6279, %v7353, 0
      %v7385 = vsel %vm6279, %v7354, 0
      %v7388 = vsel %vm6279, %v7355, 0
      %v7391 = vsel %vm6279, %v7356, 0
      %v7394 = vsel %vm6279, %v7357, 0
      %v7397 = vsel %vm6279, %v7358, 0
      %v7400 = vsel %vm6279, %v7359, 0
      %v7403 = vsel %vm6279, %v7360, 0
      %v7406 = vsel %vm6279, %v7361, 0
      %v7409 = vsel %vm6279, %v7362, 0
      %v7412 = vsel %vm6279, %v7363, 0
      %v7415 = vsel %vm6279, %v7364, 0
      %v7418 = vsel %vm6279, %v7365, 0
      %7420 = vmatprep.subr.bf16.mxu0 0
      %7421 = vmatpush1.bf16.msra.mxu0 %v7370
      %7422 = vmatprep.subr.bf16.mxu0 0
      %7423 = vmatpush1.bf16.msra.mxu0 0
      %7424 = vmatprep.subr.bf16.mxu0 0
      %7425 = vmatpush1.bf16.msra.mxu0 0
      %7426 = vmatprep.subr.bf16.mxu0 0
      %7427 = vmatpush1.bf16.msra.mxu0 0
      %7428 = vmatprep.subr.bf16.mxu0 0
      %7429 = vmatpush1.bf16.msra.mxu0 0
      %7430 = vmatprep.subr.bf16.mxu0 0
      %7431 = vmatpush1.bf16.msra.mxu0 0
      %7432 = vmatprep.subr.bf16.mxu0 0
      %7433 = vmatpush1.bf16.msra.mxu0 0
      %7434 = vmatprep.subr.bf16.mxu0 0
      %7435 = vmatpush1.bf16.msra.mxu0 0
      %7436 = vmatprep.subr.bf16.mxu0 0
      %7437 = vmatpush1.bf16.msra.mxu0 0
      %7438 = vmatprep.subr.bf16.mxu0 0
      %7439 = vmatpush1.bf16.msra.mxu0 0
      %7440 = vmatprep.subr.bf16.mxu0 0
      %7441 = vmatpush1.bf16.msra.mxu0 0
      %7442 = vmatprep.subr.bf16.mxu0 0
      %7443 = vmatpush1.bf16.msra.mxu0 0
      %7444 = vmatprep.subr.bf16.mxu0 0
      %7445 = vmatpush1.bf16.msra.mxu0 0
      %7446 = vmatprep.subr.bf16.mxu0 0
      %7447 = vmatpush1.bf16.msra.mxu0 0
      %7448 = vmatprep.subr.bf16.mxu0 0
      %7449 = vmatpush1.bf16.msra.mxu0 0
      %7450 = vmatprep.subr.bf16.mxu0 0
      %7451 = vmatpush1.bf16.msra.mxu0 0
      %7452 = vmatprep.mubr.bf16.mxu0 0
      %7453 = vmatmul.mubr.bf16.gmra.mrb[0].mxu0 %v7373
      %v7454 = vpop.f32.mrb[0].mxu0
      %v7455 = vadd.f32 0.0, %v7454
      %v7456 = vpop.f32.mrb[0].mxu0
      %v7457 = vpop.f32.mrb[0].mxu0
      %v7458 = vadd.f32 0.0, %v7457
      %v7459 = vpop.f32.mrb[0].mxu0
      %7460 = vmatprep.mubr.bf16.mxu0 0
      %7461 = vmatmul.mubr.bf16.gmra.mrb[0].mxu0 %v7376
      %v7462 = vpop.f32.mrb[0].mxu0
      %v7463 = vadd.f32 0.0, %v7462
      %v7464 = vpop.f32.mrb[0].mxu0
      %v7465 = vpop.f32.mrb[0].mxu0
      %v7466 = vadd.f32 0.0, %v7465
      %v7467 = vpop.f32.mrb[0].mxu0
      %7468 = vmatprep.mubr.bf16.mxu0 0
      %7469 = vmatmul.mubr.bf16.gmra.mrb[0].mxu0 %v7379
      %v7470 = vpop.f32.mrb[0].mxu0
      %v7471 = vadd.f32 0.0, %v7470
      %v7472 = vpop.f32.mrb[0].mxu0
      %v7473 = vpop.f32.mrb[0].mxu0
      %v7474 = vadd.f32 0.0, %v7473
      %v7475 = vpop.f32.mrb[0].mxu0
      %7476 = vmatprep.mubr.bf16.mxu0 0
      %7477 = vmatmul.mubr.bf16.gmra.mrb[0].mxu0 %v7382
      %v7478 = vpop.f32.mrb[0].mxu0
      %v7479 = vadd.f32 0.0, %v7478
      %v7480 = vpop.f32.mrb[0].mxu0
      %v7481 = vpop.f32.mrb[0].mxu0
      %v7482 = vadd.f32 0.0, %v7481
      %v7483 = vpop.f32.mrb[0].mxu0
      %7484 = vmatprep.mubr.bf16.mxu0 0
      %7485 = vmatmul.mubr.bf16.gmra.mrb[0].mxu0 %v7385
      %v7486 = vpop.f32.mrb[0].mxu0
      %v7487 = vadd.f32 0.0, %v7486
      %v7488 = vpop.f32.mrb[0].mxu0
      %v7489 = vpop.f32.mrb[0].mxu0
      %v7490 = vadd.f32 0.0, %v7489
      %v7491 = vpop.f32.mrb[0].mxu0
      %7492 = vmatprep.mubr.bf16.mxu0 0
      %7493 = vmatmul.mubr.bf16.gmra.mrb[0].mxu0 %v7388
      %v7494 = vpop.f32.mrb[0].mxu0
      %v7495 = vadd.f32 0.0, %v7494
      %v7496 = vpop.f32.mrb[0].mxu0
      %v7497 = vpop.f32.mrb[0].mxu0
      %v7498 = vadd.f32 0.0, %v7497
      %v7499 = vpop.f32.mrb[0].mxu0
      %7500 = vmatprep.mubr.bf16.mxu0 0
      %7501 = vmatmul.mubr.bf16.gmra.mrb[0].mxu0 %v7391
      %v7502 = vpop.f32.mrb[0].mxu0
      %v7503 = vadd.f32 0.0, %v7502
      %v7504 = vpop.f32.mrb[0].mxu0
      %v7505 = vpop.f32.mrb[0].mxu0
      %v7506 = vadd.f32 0.0, %v7505
      %v7507 = vpop.f32.mrb[0].mxu0
      %7508 = vmatprep.mubr.bf16.mxu0 0
      %7509 = vmatmul.mubr.bf16.gmra.mrb[0].mxu0 %v7394
      %v7510 = vpop.f32.mrb[0].mxu0
      %v7511 = vadd.f32 0.0, %v7510
      %v7512 = vpop.f32.mrb[0].mxu0
      %v7513 = vpop.f32.mrb[0].mxu0
      %v7514 = vadd.f32 0.0, %v7513
      %v7515 = vpop.f32.mrb[0].mxu0
      %7516 = vmatprep.mubr.bf16.mxu0 0
      %7517 = vmatmul.mubr.bf16.gmra.mrb[0].mxu0 %v7397
      %v7518 = vpop.f32.mrb[0].mxu0
      %v7519 = vadd.f32 0.0, %v7518
      %v7520 = vpop.f32.mrb[0].mxu0
      %v7521 = vpop.f32.mrb[0].mxu0
      %v7522 = vadd.f32 0.0, %v7521
      %v7523 = vpop.f32.mrb[0].mxu0
      %7524 = vmatprep.mubr.bf16.mxu0 0
      %7525 = vmatmul.mubr.bf16.gmra.mrb[0].mxu0 %v7400
      %v7526 = vpop.f32.mrb[0].mxu0
      %v7527 = vadd.f32 0.0, %v7526
      %v7528 = vpop.f32.mrb[0].mxu0
      %v7529 = vpop.f32.mrb[0].mxu0
      %v7530 = vadd.f32 0.0, %v7529
      %v7531 = vpop.f32.mrb[0].mxu0
      %7532 = vmatprep.mubr.bf16.mxu0 0
      %7533 = vmatmul.mubr.bf16.gmra.mrb[0].mxu0 %v7403
      %v7534 = vpop.f32.mrb[0].mxu0
      %v7535 = vadd.f32 0.0, %v7534
      %v7536 = vpop.f32.mrb[0].mxu0
      %v7537 = vpop.f32.mrb[0].mxu0
      %v7538 = vadd.f32 0.0, %v7537
      %v7539 = vpop.f32.mrb[0].mxu0
      %7540 = vmatprep.mubr.bf16.mxu0 0
      %7541 = vmatmul.mubr.bf16.gmra.mrb[0].mxu0 %v7406
      %v7542 = vpop.f32.mrb[0].mxu0
      %v7543 = vadd.f32 0.0, %v7542
      %v7544 = vpop.f32.mrb[0].mxu0
      %v7545 = vpop.f32.mrb[0].mxu0
      %v7546 = vadd.f32 0.0, %v7545
      %v7547 = vpop.f32.mrb[0].mxu0
      %7548 = vmatprep.mubr.bf16.mxu0 0
      %7549 = vmatmul.mubr.bf16.gmra.mrb[0].mxu0 %v7409
      %v7550 = vpop.f32.mrb[0].mxu0
      %v7551 = vadd.f32 0.0, %v7550
      %v7552 = vpop.f32.mrb[0].mxu0
      %v7553 = vpop.f32.mrb[0].mxu0
      %v7554 = vadd.f32 0.0, %v7553
      %v7555 = vpop.f32.mrb[0].mxu0
      %7556 = vmatprep.mubr.bf16.mxu0 0
      %7557 = vmatmul.mubr.bf16.gmra.mrb[0].mxu0 %v7412
      %v7558 = vpop.f32.mrb[0].mxu0
      %v7559 = vadd.f32 0.0, %v7558
      %v7560 = vpop.f32.mrb[0].mxu0
      %v7561 = vpop.f32.mrb[0].mxu0
      %v7562 = vadd.f32 0.0, %v7561
      %v7563 = vpop.f32.mrb[0].mxu0
      %7564 = vmatprep.mubr.bf16.mxu0 0
      %7565 = vmatmul.mubr.bf16.gmra.mrb[0].mxu0 %v7415
      %v7566 = vpop.f32.mrb[0].mxu0
      %v7567 = vadd.f32 0.0, %v7566
      %v7568 = vpop.f32.mrb[0].mxu0
      %v7569 = vpop.f32.mrb[0].mxu0
      %v7570 = vadd.f32 0.0, %v7569
      %v7571 = vpop.f32.mrb[0].mxu0
      %7572 = vmatprep.mubr.bf16.mxu0 0
      %7573 = vmatmul.mubr.bf16.gmra.mrb[0].mxu0 %v7418
      %v7574 = vpop.f32.mrb[0].mxu0
      %v7575 = vadd.f32 0.0, %v7574
      %v7576 = vpop.f32.mrb[0].mxu0
      %v7577 = vpop.f32.mrb[0].mxu0
      %v7578 = vadd.f32 0.0, %v7577
      %v7579 = vpop.f32.mrb[0].mxu0
      %7580 = vdwg.mxu0
      %v7581 = vadd.f32 %v6842, %v7455
      %v7582 = vadd.f32 %v6843, %v7458
      %v7583 = vadd.f32 %v6844, %v7463
      %v7584 = vadd.f32 %v6845, %v7466
      %v7585 = vadd.f32 %v6846, %v7471
      %v7586 = vadd.f32 %v6847, %v7474
      %v7587 = vadd.f32 %v6848, %v7479
      %v7588 = vadd.f32 %v6849, %v7482
      %v7589 = vadd.f32 %v6850, %v7487
      %v7590 = vadd.f32 %v6851, %v7490
      %v7591 = vadd.f32 %v6852, %v7495
      %v7592 = vadd.f32 %v6853, %v7498
      %v7593 = vadd.f32 %v6854, %v7503
      %v7594 = vadd.f32 %v6855, %v7506
      %v7595 = vadd.f32 %v6856, %v7511
      %v7596 = vadd.f32 %v6857, %v7514
      %v7597 = vadd.f32 %v6858, %v7519
      %v7598 = vadd.f32 %v6859, %v7522
      %v7599 = vadd.f32 %v6860, %v7527
      %v7600 = vadd.f32 %v6861, %v7530
      %v7601 = vadd.f32 %v6862, %v7535
      %v7602 = vadd.f32 %v6863, %v7538
      %v7603 = vadd.f32 %v6864, %v7543
      %v7604 = vadd.f32 %v6865, %v7546
      %v7605 = vadd.f32 %v6866, %v7551
      %v7606 = vadd.f32 %v6867, %v7554
      %v7607 = vadd.f32 %v6868, %v7559
      %v7608 = vadd.f32 %v6869, %v7562
      %v7609 = vadd.f32 %v6870, %v7567
      %v7610 = vadd.f32 %v6871, %v7570
      %v7611 = vadd.f32 %v6872, %v7575
      %v7612 = vadd.f32 %v6873, %v7578
      %v7614 = vshrl.u32 %v6922, 16
      %v7616 = vrot.slane %v7614, 4
      %v7617 = vshll.u32 %v6922, 16
      %v7619 = vrot.slane %v7617, 5
      %v7620 = vor.u32 %v7616, %v7619
      %v7621 = vrot.slane %v7620, 4
      %v7623 = vshll.u32 %v6923, 16
      %v7625 = vrot.slane %v7623, 5
      %v7626 = vsel %vm6930, %v7621, %v7625
      %v7627 = vshrl.u32 %v6923, 16
      %v7629 = vrot.slane %v7627, 4
      %v7630 = vor.u32 %v7629, %v7625
      %v7631 = vrot.slane %v7630, 4
      %v7633 = vshll.u32 %v6924, 16
      %v7635 = vrot.slane %v7633, 5
      %v7636 = vsel %vm6930, %v7631, %v7635
      %s7637 = scalar_lea.vmem %s248, 32
      %v7638 = vld [vmem:[%s7637] sm:$0xf]
      %v7639 = vld [vmem:[%s7637 + $0x4] sm:$0xf]
      %v7640 = vunpack.c.l.b16 %v7626
      %v7641 = vunpack.c.l.b16 %v7636
      %v7642 = vpack.c.b16 %v7641, %v7640
      %v7645 = vunpack.c.l.b16 %v7638
      %v7646 = vunpack.c.l.b16 %v7639
      %v7647 = vpack.c.b16 %v7646, %v7645
      %v7650 = vsel %vm6279, %v7642, 0
      %7652 = vmatprep.subr.bf16.mxu0 0
      %7653 = vmatpush1.bf16.msra.mxu0 %v7647
      %7654 = vmatprep.subr.bf16.mxu0 0
      %7655 = vmatpush1.bf16.msra.mxu0 0
      %7656 = vmatprep.subr.bf16.mxu0 0
      %7657 = vmatpush1.bf16.msra.mxu0 0
      %7658 = vmatprep.subr.bf16.mxu0 0
      %7659 = vmatpush1.bf16.msra.mxu0 0
      %7660 = vmatprep.subr.bf16.mxu0 0
      %7661 = vmatpush1.bf16.msra.mxu0 0
      %7662 = vmatprep.subr.bf16.mxu0 0
      %7663 = vmatpush1.bf16.msra.mxu0 0
      %7664 = vmatprep.subr.bf16.mxu0 0
      %7665 = vmatpush1.bf16.msra.mxu0 0
      %7666 = vmatprep.subr.bf16.mxu0 0
      %7667 = vmatpush1.bf16.msra.mxu0 0
      %7668 = vmatprep.subr.bf16.mxu0 0
      %7669 = vmatpush1.bf16.msra.mxu0 0
      %7670 = vmatprep.subr.bf16.mxu0 0
      %7671 = vmatpush1.bf16.msra.mxu0 0
      %7672 = vmatprep.subr.bf16.mxu0 0
      %7673 = vmatpush1.bf16.msra.mxu0 0
      %7674 = vmatprep.subr.bf16.mxu0 0
      %7675 = vmatpush1.bf16.msra.mxu0 0
      %7676 = vmatprep.subr.bf16.mxu0 0
      %7677 = vmatpush1.bf16.msra.mxu0 0
      %7678 = vmatprep.subr.bf16.mxu0 0
      %7679 = vmatpush1.bf16.msra.mxu0 0
      %7680 = vmatprep.subr.bf16.mxu0 0
      %7681 = vmatpush1.bf16.msra.mxu0 0
      %7682 = vmatprep.subr.bf16.mxu0 0
      %7683 = vmatpush1.bf16.msra.mxu0 0
      %7684 = vmatprep.mubr.bf16.mxu0 0
      %7685 = vmatmul.mubr.bf16.gmra.mrb[0].mxu0 %v7376
      %v7686 = vpop.f32.mrb[0].mxu0
      %v7687 = vadd.f32 0.0, %v7686
      %v7688 = vpop.f32.mrb[0].mxu0
      %v7689 = vpop.f32.mrb[0].mxu0
      %v7690 = vadd.f32 0.0, %v7689
      %v7691 = vpop.f32.mrb[0].mxu0
      %7692 = vmatprep.mubr.bf16.mxu0 0
      %7693 = vmatmul.mubr.bf16.gmra.mrb[0].mxu0 %v7379
      %v7694 = vpop.f32.mrb[0].mxu0
      %v7695 = vadd.f32 0.0, %v7694
      %v7696 = vpop.f32.mrb[0].mxu0
      %v7697 = vpop.f32.mrb[0].mxu0
      %v7698 = vadd.f32 0.0, %v7697
      %v7699 = vpop.f32.mrb[0].mxu0
      %7700 = vmatprep.mubr.bf16.mxu0 0
      %7701 = vmatmul.mubr.bf16.gmra.mrb[0].mxu0 %v7382
      %v7702 = vpop.f32.mrb[0].mxu0
      %v7703 = vadd.f32 0.0, %v7702
      %v7704 = vpop.f32.mrb[0].mxu0
      %v7705 = vpop.f32.mrb[0].mxu0
      %v7706 = vadd.f32 0.0, %v7705
      %v7707 = vpop.f32.mrb[0].mxu0
      %7708 = vmatprep.mubr.bf16.mxu0 0
      %7709 = vmatmul.mubr.bf16.gmra.mrb[0].mxu0 %v7385
      %v7710 = vpop.f32.mrb[0].mxu0
      %v7711 = vadd.f32 0.0, %v7710
      %v7712 = vpop.f32.mrb[0].mxu0
      %v7713 = vpop.f32.mrb[0].mxu0
      %v7714 = vadd.f32 0.0, %v7713
      %v7715 = vpop.f32.mrb[0].mxu0
      %7716 = vmatprep.mubr.bf16.mxu0 0
      %7717 = vmatmul.mubr.bf16.gmra.mrb[0].mxu0 %v7388
      %v7718 = vpop.f32.mrb[0].mxu0
      %v7719 = vadd.f32 0.0, %v7718
      %v7720 = vpop.f32.mrb[0].mxu0
      %v7721 = vpop.f32.mrb[0].mxu0
      %v7722 = vadd.f32 0.0, %v7721
      %v7723 = vpop.f32.mrb[0].mxu0
      %7724 = vmatprep.mubr.bf16.mxu0 0
      %7725 = vmatmul.mubr.bf16.gmra.mrb[0].mxu0 %v7391
      %v7726 = vpop.f32.mrb[0].mxu0
      %v7727 = vadd.f32 0.0, %v7726
      %v7728 = vpop.f32.mrb[0].mxu0
      %v7729 = vpop.f32.mrb[0].mxu0
      %v7730 = vadd.f32 0.0, %v7729
      %v7731 = vpop.f32.mrb[0].mxu0
      %7732 = vmatprep.mubr.bf16.mxu0 0
      %7733 = vmatmul.mubr.bf16.gmra.mrb[0].mxu0 %v7394
      %v7734 = vpop.f32.mrb[0].mxu0
      %v7735 = vadd.f32 0.0, %v7734
      %v7736 = vpop.f32.mrb[0].mxu0
      %v7737 = vpop.f32.mrb[0].mxu0
      %v7738 = vadd.f32 0.0, %v7737
      %v7739 = vpop.f32.mrb[0].mxu0
      %7740 = vmatprep.mubr.bf16.mxu0 0
      %7741 = vmatmul.mubr.bf16.gmra.mrb[0].mxu0 %v7397
      %v7742 = vpop.f32.mrb[0].mxu0
      %v7743 = vadd.f32 0.0, %v7742
      %v7744 = vpop.f32.mrb[0].mxu0
      %v7745 = vpop.f32.mrb[0].mxu0
      %v7746 = vadd.f32 0.0, %v7745
      %v7747 = vpop.f32.mrb[0].mxu0
      %7748 = vmatprep.mubr.bf16.mxu0 0
      %7749 = vmatmul.mubr.bf16.gmra.mrb[0].mxu0 %v7400
      %v7750 = vpop.f32.mrb[0].mxu0
      %v7751 = vadd.f32 0.0, %v7750
      %v7752 = vpop.f32.mrb[0].mxu0
      %v7753 = vpop.f32.mrb[0].mxu0
      %v7754 = vadd.f32 0.0, %v7753
      %v7755 = vpop.f32.mrb[0].mxu0
      %7756 = vmatprep.mubr.bf16.mxu0 0
      %7757 = vmatmul.mubr.bf16.gmra.mrb[0].mxu0 %v7403
      %v7758 = vpop.f32.mrb[0].mxu0
      %v7759 = vadd.f32 0.0, %v7758
      %v7760 = vpop.f32.mrb[0].mxu0
      %v7761 = vpop.f32.mrb[0].mxu0
      %v7762 = vadd.f32 0.0, %v7761
      %v7763 = vpop.f32.mrb[0].mxu0
      %7764 = vmatprep.mubr.bf16.mxu0 0
      %7765 = vmatmul.mubr.bf16.gmra.mrb[0].mxu0 %v7406
      %v7766 = vpop.f32.mrb[0].mxu0
      %v7767 = vadd.f32 0.0, %v7766
      %v7768 = vpop.f32.mrb[0].mxu0
      %v7769 = vpop.f32.mrb[0].mxu0
      %v7770 = vadd.f32 0.0, %v7769
      %v7771 = vpop.f32.mrb[0].mxu0
      %7772 = vmatprep.mubr.bf16.mxu0 0
      %7773 = vmatmul.mubr.bf16.gmra.mrb[0].mxu0 %v7409
      %v7774 = vpop.f32.mrb[0].mxu0
      %v7775 = vadd.f32 0.0, %v7774
      %v7776 = vpop.f32.mrb[0].mxu0
      %v7777 = vpop.f32.mrb[0].mxu0
      %v7778 = vadd.f32 0.0, %v7777
      %v7779 = vpop.f32.mrb[0].mxu0
      %7780 = vmatprep.mubr.bf16.mxu0 0
      %7781 = vmatmul.mubr.bf16.gmra.mrb[0].mxu0 %v7412
      %v7782 = vpop.f32.mrb[0].mxu0
      %v7783 = vadd.f32 0.0, %v7782
      %v7784 = vpop.f32.mrb[0].mxu0
      %v7785 = vpop.f32.mrb[0].mxu0
      %v7786 = vadd.f32 0.0, %v7785
      %v7787 = vpop.f32.mrb[0].mxu0
      %7788 = vmatprep.mubr.bf16.mxu0 0
      %7789 = vmatmul.mubr.bf16.gmra.mrb[0].mxu0 %v7415
      %v7790 = vpop.f32.mrb[0].mxu0
      %v7791 = vadd.f32 0.0, %v7790
      %v7792 = vpop.f32.mrb[0].mxu0
      %v7793 = vpop.f32.mrb[0].mxu0
      %v7794 = vadd.f32 0.0, %v7793
      %v7795 = vpop.f32.mrb[0].mxu0
      %7796 = vmatprep.mubr.bf16.mxu0 0
      %7797 = vmatmul.mubr.bf16.gmra.mrb[0].mxu0 %v7418
      %v7798 = vpop.f32.mrb[0].mxu0
      %v7799 = vadd.f32 0.0, %v7798
      %v7800 = vpop.f32.mrb[0].mxu0
      %v7801 = vpop.f32.mrb[0].mxu0
      %v7802 = vadd.f32 0.0, %v7801
      %v7803 = vpop.f32.mrb[0].mxu0
      %7804 = vmatprep.mubr.bf16.mxu0 0
      %7805 = vmatmul.mubr.bf16.gmra.mrb[0].mxu0 %v7650
      %v7806 = vpop.f32.mrb[0].mxu0
      %v7807 = vadd.f32 0.0, %v7806
      %v7808 = vpop.f32.mrb[0].mxu0
      %v7809 = vpop.f32.mrb[0].mxu0
      %v7810 = vadd.f32 0.0, %v7809
      %v7811 = vpop.f32.mrb[0].mxu0
      %7812 = vdwg.mxu0
      %v7813 = vadd.f32 %v7581, %v7687
      %v7814 = vadd.f32 %v7582, %v7690
      %v7815 = vadd.f32 %v7583, %v7695
      %v7816 = vadd.f32 %v7584, %v7698
      %v7817 = vadd.f32 %v7585, %v7703
      %v7818 = vadd.f32 %v7586, %v7706
      %v7819 = vadd.f32 %v7587, %v7711
      %v7820 = vadd.f32 %v7588, %v7714
      %v7821 = vadd.f32 %v7589, %v7719
      %v7822 = vadd.f32 %v7590, %v7722
      %v7823 = vadd.f32 %v7591, %v7727
      %v7824 = vadd.f32 %v7592, %v7730
      %v7825 = vadd.f32 %v7593, %v7735
      %v7826 = vadd.f32 %v7594, %v7738
      %v7827 = vadd.f32 %v7595, %v7743
      %v7828 = vadd.f32 %v7596, %v7746
      %v7829 = vadd.f32 %v7597, %v7751
      %v7830 = vadd.f32 %v7598, %v7754
      %v7831 = vadd.f32 %v7599, %v7759
      %v7832 = vadd.f32 %v7600, %v7762
      %v7833 = vadd.f32 %v7601, %v7767
      %v7834 = vadd.f32 %v7602, %v7770
      %v7835 = vadd.f32 %v7603, %v7775
      %v7836 = vadd.f32 %v7604, %v7778
      %v7837 = vadd.f32 %v7605, %v7783
      %v7838 = vadd.f32 %v7606, %v7786
      %v7839 = vadd.f32 %v7607, %v7791
      %v7840 = vadd.f32 %v7608, %v7794
      %v7841 = vadd.f32 %v7609, %v7799
      %v7842 = vadd.f32 %v7610, %v7802
      %v7843 = vadd.f32 %v7611, %v7807
      %v7844 = vadd.f32 %v7612, %v7810
      %v7846 = vshrl.u32 %v6925, 16
      %v7848 = vrot.slane %v7846, 4
      %v7849 = vshll.u32 %v6925, 16
      %v7851 = vrot.slane %v7849, 5
      %v7852 = vor.u32 %v7848, %v7851
      %v7853 = vrot.slane %v7852, 4
      %v7855 = vshll.u32 %v6926, 16
      %v7857 = vrot.slane %v7855, 5
      %v7858 = vsel %vm6930, %v7853, %v7857
      %v7859 = vshrl.u32 %v6926, 16
      %v7861 = vrot.slane %v7859, 4
      %v7862 = vor.u32 %v7861, %v7857
      %v7863 = vrot.slane %v7862, 4
      %v7865 = vshll.u32 %v6927, 16
      %v7867 = vrot.slane %v7865, 5
      %v7868 = vsel %vm6930, %v7863, %v7867
      %s7869 = scalar_lea.vmem %s248, 56
      %v7870 = vld [vmem:[%s7869] sm:$0xf]
      %v7871 = vld [vmem:[%s7869 + $0x4] sm:$0xf]
      %v7872 = vunpack.c.l.b16 %v7858
      %v7873 = vunpack.c.l.b16 %v7868
      %v7874 = vpack.c.b16 %v7873, %v7872
      %v7877 = vunpack.c.l.b16 %v7870
      %v7878 = vunpack.c.l.b16 %v7871
      %v7879 = vpack.c.b16 %v7878, %v7877
      %v7882 = vsel %vm6279, %v7874, 0
      %7884 = vmatprep.subr.bf16.mxu0 0
      %7885 = vmatpush1.bf16.msra.mxu0 %v7879
      %7886 = vmatprep.subr.bf16.mxu0 0
      %7887 = vmatpush1.bf16.msra.mxu0 0
      %7888 = vmatprep.subr.bf16.mxu0 0
      %7889 = vmatpush1.bf16.msra.mxu0 0
      %7890 = vmatprep.subr.bf16.mxu0 0
      %7891 = vmatpush1.bf16.msra.mxu0 0
      %7892 = vmatprep.subr.bf16.mxu0 0
      %7893 = vmatpush1.bf16.msra.mxu0 0
      %7894 = vmatprep.subr.bf16.mxu0 0
      %7895 = vmatpush1.bf16.msra.mxu0 0
      %7896 = vmatprep.subr.bf16.mxu0 0
      %7897 = vmatpush1.bf16.msra.mxu0 0
      %7898 = vmatprep.subr.bf16.mxu0 0
      %7899 = vmatpush1.bf16.msra.mxu0 0
      %7900 = vmatprep.subr.bf16.mxu0 0
      %7901 = vmatpush1.bf16.msra.mxu0 0
      %7902 = vmatprep.subr.bf16.mxu0 0
      %7903 = vmatpush1.bf16.msra.mxu0 0
      %7904 = vmatprep.subr.bf16.mxu0 0
      %7905 = vmatpush1.bf16.msra.mxu0 0
      %7906 = vmatprep.subr.bf16.mxu0 0
      %7907 = vmatpush1.bf16.msra.mxu0 0
      %7908 = vmatprep.subr.bf16.mxu0 0
      %7909 = vmatpush1.bf16.msra.mxu0 0
      %7910 = vmatprep.subr.bf16.mxu0 0
      %7911 = vmatpush1.bf16.msra.mxu0 0
      %7912 = vmatprep.subr.bf16.mxu0 0
      %7913 = vmatpush1.bf16.msra.mxu0 0
      %7914 = vmatprep.subr.bf16.mxu0 0
      %7915 = vmatpush1.bf16.msra.mxu0 0
      %7916 = vmatprep.mubr.bf16.mxu0 0
      %7917 = vmatmul.mubr.bf16.gmra.mrb[0].mxu0 %v7379
      %v7918 = vpop.f32.mrb[0].mxu0
      %v7919 = vadd.f32 0.0, %v7918
      %v7920 = vpop.f32.mrb[0].mxu0
      %v7921 = vpop.f32.mrb[0].mxu0
      %v7922 = vadd.f32 0.0, %v7921
      %v7923 = vpop.f32.mrb[0].mxu0
      %7924 = vmatprep.mubr.bf16.mxu0 0
      %7925 = vmatmul.mubr.bf16.gmra.mrb[0].mxu0 %v7382
      %v7926 = vpop.f32.mrb[0].mxu0
      %v7927 = vadd.f32 0.0, %v7926
      %v7928 = vpop.f32.mrb[0].mxu0
      %v7929 = vpop.f32.mrb[0].mxu0
      %v7930 = vadd.f32 0.0, %v7929
      %v7931 = vpop.f32.mrb[0].mxu0
      %7932 = vmatprep.mubr.bf16.mxu0 0
      %7933 = vmatmul.mubr.bf16.gmra.mrb[0].mxu0 %v7385
      %v7934 = vpop.f32.mrb[0].mxu0
      %v7935 = vadd.f32 0.0, %v7934
      %v7936 = vpop.f32.mrb[0].mxu0
      %v7937 = vpop.f32.mrb[0].mxu0
      %v7938 = vadd.f32 0.0, %v7937
      %v7939 = vpop.f32.mrb[0].mxu0
      %7940 = vmatprep.mubr.bf16.mxu0 0
      %7941 = vmatmul.mubr.bf16.gmra.mrb[0].mxu0 %v7388
      %v7942 = vpop.f32.mrb[0].mxu0
      %v7943 = vadd.f32 0.0, %v7942
      %v7944 = vpop.f32.mrb[0].mxu0
      %v7945 = vpop.f32.mrb[0].mxu0
      %v7946 = vadd.f32 0.0, %v7945
      %v7947 = vpop.f32.mrb[0].mxu0
      %7948 = vmatprep.mubr.bf16.mxu0 0
      %7949 = vmatmul.mubr.bf16.gmra.mrb[0].mxu0 %v7391
      %v7950 = vpop.f32.mrb[0].mxu0
      %v7951 = vadd.f32 0.0, %v7950
      %v7952 = vpop.f32.mrb[0].mxu0
      %v7953 = vpop.f32.mrb[0].mxu0
      %v7954 = vadd.f32 0.0, %v7953
      %v7955 = vpop.f32.mrb[0].mxu0
      %7956 = vmatprep.mubr.bf16.mxu0 0
      %7957 = vmatmul.mubr.bf16.gmra.mrb[0].mxu0 %v7394
      %v7958 = vpop.f32.mrb[0].mxu0
      %v7959 = vadd.f32 0.0, %v7958
      %v7960 = vpop.f32.mrb[0].mxu0
      %v7961 = vpop.f32.mrb[0].mxu0
      %v7962 = vadd.f32 0.0, %v7961
      %v7963 = vpop.f32.mrb[0].mxu0
      %7964 = vmatprep.mubr.bf16.mxu0 0
      %7965 = vmatmul.mubr.bf16.gmra.mrb[0].mxu0 %v7397
      %v7966 = vpop.f32.mrb[0].mxu0
      %v7967 = vadd.f32 0.0, %v7966
      %v7968 = vpop.f32.mrb[0].mxu0
      %v7969 = vpop.f32.mrb[0].mxu0
      %v7970 = vadd.f32 0.0, %v7969
      %v7971 = vpop.f32.mrb[0].mxu0
      %7972 = vmatprep.mubr.bf16.mxu0 0
      %7973 = vmatmul.mubr.bf16.gmra.mrb[0].mxu0 %v7400
      %v7974 = vpop.f32.mrb[0].mxu0
      %v7975 = vadd.f32 0.0, %v7974
      %v7976 = vpop.f32.mrb[0].mxu0
      %v7977 = vpop.f32.mrb[0].mxu0
      %v7978 = vadd.f32 0.0, %v7977
      %v7979 = vpop.f32.mrb[0].mxu0
      %7980 = vmatprep.mubr.bf16.mxu0 0
      %7981 = vmatmul.mubr.bf16.gmra.mrb[0].mxu0 %v7403
      %v7982 = vpop.f32.mrb[0].mxu0
      %v7983 = vadd.f32 0.0, %v7982
      %v7984 = vpop.f32.mrb[0].mxu0
      %v7985 = vpop.f32.mrb[0].mxu0
      %v7986 = vadd.f32 0.0, %v7985
      %v7987 = vpop.f32.mrb[0].mxu0
      %7988 = vmatprep.mubr.bf16.mxu0 0
      %7989 = vmatmul.mubr.bf16.gmra.mrb[0].mxu0 %v7406
      %v7990 = vpop.f32.mrb[0].mxu0
      %v7991 = vadd.f32 0.0, %v7990
      %v7992 = vpop.f32.mrb[0].mxu0
      %v7993 = vpop.f32.mrb[0].mxu0
      %v7994 = vadd.f32 0.0, %v7993
      %v7995 = vpop.f32.mrb[0].mxu0
      %7996 = vmatprep.mubr.bf16.mxu0 0
      %7997 = vmatmul.mubr.bf16.gmra.mrb[0].mxu0 %v7409
      %v7998 = vpop.f32.mrb[0].mxu0
      %v7999 = vadd.f32 0.0, %v7998
      %v8000 = vpop.f32.mrb[0].mxu0
      %v8001 = vpop.f32.mrb[0].mxu0
      %v8002 = vadd.f32 0.0, %v8001
      %v8003 = vpop.f32.mrb[0].mxu0
      %8004 = vmatprep.mubr.bf16.mxu0 0
      %8005 = vmatmul.mubr.bf16.gmra.mrb[0].mxu0 %v7412
      %v8006 = vpop.f32.mrb[0].mxu0
      %v8007 = vadd.f32 0.0, %v8006
      %v8008 = vpop.f32.mrb[0].mxu0
      %v8009 = vpop.f32.mrb[0].mxu0
      %v8010 = vadd.f32 0.0, %v8009
      %v8011 = vpop.f32.mrb[0].mxu0
      %8012 = vmatprep.mubr.bf16.mxu0 0
      %8013 = vmatmul.mubr.bf16.gmra.mrb[0].mxu0 %v7415
      %v8014 = vpop.f32.mrb[0].mxu0
      %v8015 = vadd.f32 0.0, %v8014
      %v8016 = vpop.f32.mrb[0].mxu0
      %v8017 = vpop.f32.mrb[0].mxu0
      %v8018 = vadd.f32 0.0, %v8017
      %v8019 = vpop.f32.mrb[0].mxu0
      %8020 = vmatprep.mubr.bf16.mxu0 0
      %8021 = vmatmul.mubr.bf16.gmra.mrb[0].mxu0 %v7418
      %v8022 = vpop.f32.mrb[0].mxu0
      %v8023 = vadd.f32 0.0, %v8022
      %v8024 = vpop.f32.mrb[0].mxu0
      %v8025 = vpop.f32.mrb[0].mxu0
      %v8026 = vadd.f32 0.0, %v8025
      %v8027 = vpop.f32.mrb[0].mxu0
      %8028 = vmatprep.mubr.bf16.mxu0 0
      %8029 = vmatmul.mubr.bf16.gmra.mrb[0].mxu0 %v7650
      %v8030 = vpop.f32.mrb[0].mxu0
      %v8031 = vadd.f32 0.0, %v8030
      %v8032 = vpop.f32.mrb[0].mxu0
      %v8033 = vpop.f32.mrb[0].mxu0
      %v8034 = vadd.f32 0.0, %v8033
      %v8035 = vpop.f32.mrb[0].mxu0
      %8036 = vmatprep.mubr.bf16.mxu0 0
      %8037 = vmatmul.mubr.bf16.gmra.mrb[0].mxu0 %v7882
      %v8038 = vpop.f32.mrb[0].mxu0
      %v8039 = vadd.f32 0.0, %v8038
      %v8040 = vpop.f32.mrb[0].mxu0
      %v8041 = vpop.f32.mrb[0].mxu0
      %v8042 = vadd.f32 0.0, %v8041
      %v8043 = vpop.f32.mrb[0].mxu0
      %8044 = vdwg.mxu0
      %v8045 = vadd.f32 %v7813, %v7919
      %v8046 = vadd.f32 %v7814, %v7922
      %v8047 = vadd.f32 %v7815, %v7927
      %v8048 = vadd.f32 %v7816, %v7930
      %v8049 = vadd.f32 %v7817, %v7935
      %v8050 = vadd.f32 %v7818, %v7938
      %v8051 = vadd.f32 %v7819, %v7943
      %v8052 = vadd.f32 %v7820, %v7946
      %v8053 = vadd.f32 %v7821, %v7951
      %v8054 = vadd.f32 %v7822, %v7954
      %v8055 = vadd.f32 %v7823, %v7959
      %v8056 = vadd.f32 %v7824, %v7962
      %v8057 = vadd.f32 %v7825, %v7967
      %v8058 = vadd.f32 %v7826, %v7970
      %v8059 = vadd.f32 %v7827, %v7975
      %v8060 = vadd.f32 %v7828, %v7978
      %v8061 = vadd.f32 %v7829, %v7983
      %v8062 = vadd.f32 %v7830, %v7986
      %v8063 = vadd.f32 %v7831, %v7991
      %v8064 = vadd.f32 %v7832, %v7994
      %v8065 = vadd.f32 %v7833, %v7999
      %v8066 = vadd.f32 %v7834, %v8002
      %v8067 = vadd.f32 %v7835, %v8007
      %v8068 = vadd.f32 %v7836, %v8010
      %v8069 = vadd.f32 %v7837, %v8015
      %v8070 = vadd.f32 %v7838, %v8018
      %v8071 = vadd.f32 %v7839, %v8023
      %v8072 = vadd.f32 %v7840, %v8026
      %v8073 = vadd.f32 %v7841, %v8031
      %v8074 = vadd.f32 %v7842, %v8034
      %v8075 = vadd.f32 %v7843, %v8039
      %v8076 = vadd.f32 %v7844, %v8042
      %v8077 = vld [vmem:[#allocation3] sm:$0xe]
      %v8078 = vld [vmem:[#allocation3 + $0xc] sm:$0xe]
      %v8079 = vld [vmem:[#allocation3 + $0x18] sm:$0xe]
      %v8080 = vld [vmem:[#allocation3 + $0x24] sm:$0xe]
      %v8081 = vld [vmem:[#allocation3 + $0x30] sm:$0xe]
      %v8082 = vld [vmem:[#allocation3 + $0x3c] sm:$0xe]
      %v8083 = vld [vmem:[#allocation3 + $0x48] sm:$0xe]
      %v8084 = vld [vmem:[#allocation3 + $0x54] sm:$0xe]
      %v8085 = vld [vmem:[#allocation3 + $0x60] sm:$0xe]
      %v8086 = vld [vmem:[#allocation3 + $0x6c] sm:$0xe]
      %v8087 = vld [vmem:[#allocation3 + $0x78] sm:$0xe]
      %v8088 = vld [vmem:[#allocation3 + $0x84] sm:$0xe]
      %v8089 = vld [vmem:[#allocation3 + $0x90] sm:$0xe]
      %v8090 = vld [vmem:[#allocation3 + $0x9c] sm:$0xe]
      %v8091 = vld [vmem:[#allocation3 + $0xa8] sm:$0xe]
      %v8092 = vld [vmem:[#allocation3 + $0xb4] sm:$0xe]
      %v8093 = vld [vmem:[#allocation3 + $0xc0] sm:$0xe]
      %v8094 = vld [vmem:[#allocation3 + $0xcc] sm:$0xe]
      %vm8143 = vcmask 1042432
      %vm8144 = vcmask 1046532
      %vm8145 = vmor %vm8143, %vm8144
      %v8146 = vrot.slane %v8077, 5
      %v8147 = vrot.slane %v8146, 4
      %v8148 = vrot.slane %v6875, 5
      %v8149 = vsel %vm8145, %v8147, %v8148
      %v8150 = vrot.slane %v8148, 4
      %v8151 = vrot.slane %v6876, 5
      %v8152 = vsel %vm8145, %v8150, %v8151
      %v8153 = vrot.slane %v8078, 5
      %v8154 = vrot.slane %v8153, 4
      %v8155 = vrot.slane %v6878, 5
      %v8156 = vsel %vm8145, %v8154, %v8155
      %v8157 = vrot.slane %v8155, 4
      %v8158 = vrot.slane %v6879, 5
      %v8159 = vsel %vm8145, %v8157, %v8158
      %v8160 = vrot.slane %v8079, 5
      %v8161 = vrot.slane %v8160, 4
      %v8162 = vrot.slane %v6881, 5
      %v8163 = vsel %vm8145, %v8161, %v8162
      %v8164 = vrot.slane %v8162, 4
      %v8165 = vrot.slane %v6882, 5
      %v8166 = vsel %vm8145, %v8164, %v8165
      %v8167 = vrot.slane %v8080, 5
      %v8168 = vrot.slane %v8167, 4
      %v8169 = vrot.slane %v6884, 5
      %v8170 = vsel %vm8145, %v8168, %v8169
      %v8171 = vrot.slane %v8169, 4
      %v8172 = vrot.slane %v6885, 5
      %v8173 = vsel %vm8145, %v8171, %v8172
      %v8174 = vrot.slane %v8081, 5
      %v8175 = vrot.slane %v8174, 4
      %v8176 = vrot.slane %v6887, 5
      %v8177 = vsel %vm8145, %v8175, %v8176
      %v8178 = vrot.slane %v8176, 4
      %v8179 = vrot.slane %v6888, 5
      %v8180 = vsel %vm8145, %v8178, %v8179
      %v8181 = vrot.slane %v8082, 5
      %v8182 = vrot.slane %v8181, 4
      %v8183 = vrot.slane %v6890, 5
      %v8184 = vsel %vm8145, %v8182, %v8183
      %v8185 = vrot.slane %v8183, 4
      %v8186 = vrot.slane %v6891, 5
      %v8187 = vsel %vm8145, %v8185, %v8186
      %v8188 = vrot.slane %v8083, 5
      %v8189 = vrot.slane %v8188, 4
      %v8190 = vrot.slane %v6893, 5
      %v8191 = vsel %vm8145, %v8189, %v8190
      %v8192 = vrot.slane %v8190, 4
      %v8193 = vrot.slane %v6894, 5
      %v8194 = vsel %vm8145, %v8192, %v8193
      %v8195 = vrot.slane %v8084, 5
      %v8196 = vrot.slane %v8195, 4
      %v8197 = vrot.slane %v6896, 5
      %v8198 = vsel %vm8145, %v8196, %v8197
      %v8199 = vrot.slane %v8197, 4
      %v8200 = vrot.slane %v6897, 5
      %v8201 = vsel %vm8145, %v8199, %v8200
      %v8202 = vrot.slane %v8085, 5
      %v8203 = vrot.slane %v8202, 4
      %v8204 = vrot.slane %v6899, 5
      %v8205 = vsel %vm8145, %v8203, %v8204
      %v8206 = vrot.slane %v8204, 4
      %v8207 = vrot.slane %v6900, 5
      %v8208 = vsel %vm8145, %v8206, %v8207
      %v8209 = vrot.slane %v8086, 5
      %v8210 = vrot.slane %v8209, 4
      %v8211 = vrot.slane %v6902, 5
      %v8212 = vsel %vm8145, %v8210, %v8211
      %v8213 = vrot.slane %v8211, 4
      %v8214 = vrot.slane %v6903, 5
      %v8215 = vsel %vm8145, %v8213, %v8214
      %v8216 = vrot.slane %v8087, 5
      %v8217 = vrot.slane %v8216, 4
      %v8218 = vrot.slane %v6905, 5
      %v8219 = vsel %vm8145, %v8217, %v8218
      %v8220 = vrot.slane %v8218, 4
      %v8221 = vrot.slane %v6906, 5
      %v8222 = vsel %vm8145, %v8220, %v8221
      %v8223 = vrot.slane %v8088, 5
      %v8224 = vrot.slane %v8223, 4
      %v8225 = vrot.slane %v6908, 5
      %v8226 = vsel %vm8145, %v8224, %v8225
      %v8227 = vrot.slane %v8225, 4
      %v8228 = vrot.slane %v6909, 5
      %v8229 = vsel %vm8145, %v8227, %v8228
      %v8230 = vrot.slane %v8089, 5
      %v8231 = vrot.slane %v8230, 4
      %v8232 = vrot.slane %v6911, 5
      %v8233 = vsel %vm8145, %v8231, %v8232
      %v8234 = vrot.slane %v8232, 4
      %v8235 = vrot.slane %v6912, 5
      %v8236 = vsel %vm8145, %v8234, %v8235
      %v8237 = vrot.slane %v8090, 5
      %v8238 = vrot.slane %v8237, 4
      %v8239 = vrot.slane %v6914, 5
      %v8240 = vsel %vm8145, %v8238, %v8239
      %v8241 = vrot.slane %v8239, 4
      %v8242 = vrot.slane %v6915, 5
      %v8243 = vsel %vm8145, %v8241, %v8242
      %v8244 = vrot.slane %v8091, 5
      %v8245 = vrot.slane %v8244, 4
      %v8246 = vrot.slane %v6917, 5
      %v8247 = vsel %vm8145, %v8245, %v8246
      %v8248 = vrot.slane %v8246, 4
      %v8249 = vrot.slane %v6918, 5
      %v8250 = vsel %vm8145, %v8248, %v8249
      %v8251 = vrot.slane %v8092, 5
      %v8252 = vrot.slane %v8251, 4
      %v8253 = vrot.slane %v6920, 5
      %v8254 = vsel %vm8145, %v8252, %v8253
      %v8255 = vrot.slane %v8253, 4
      %v8256 = vrot.slane %v6921, 5
      %v8257 = vsel %vm8145, %v8255, %v8256
      %s8258 = scalar_lea.vmem %s248, 16
      %v8259 = vld [vmem:[%s8258] sm:$0xf]
      %v8260 = vld [vmem:[%s8258 + $0x4] sm:$0xf]
      %v8261 = vunpack.c.l.b16 %v8149
      %v8262 = vunpack.c.l.b16 %v8152
      %v8263 = vunpack.c.l.b16 %v8156
      %v8264 = vunpack.c.l.b16 %v8159
      %v8265 = vunpack.c.l.b16 %v8163
      %v8266 = vunpack.c.l.b16 %v8166
      %v8267 = vunpack.c.l.b16 %v8170
      %v8268 = vunpack.c.l.b16 %v8173
      %v8269 = vunpack.c.l.b16 %v8177
      %v8270 = vunpack.c.l.b16 %v8180
      %v8271 = vunpack.c.l.b16 %v8184
      %v8272 = vunpack.c.l.b16 %v8187
      %v8273 = vunpack.c.l.b16 %v8191
      %v8274 = vunpack.c.l.b16 %v8194
      %v8275 = vunpack.c.l.b16 %v8198
      %v8276 = vunpack.c.l.b16 %v8201
      %v8277 = vunpack.c.l.b16 %v8205
      %v8278 = vunpack.c.l.b16 %v8208
      %v8279 = vunpack.c.l.b16 %v8212
      %v8280 = vunpack.c.l.b16 %v8215
      %v8281 = vunpack.c.l.b16 %v8219
      %v8282 = vunpack.c.l.b16 %v8222
      %v8283 = vunpack.c.l.b16 %v8226
      %v8284 = vunpack.c.l.b16 %v8229
      %v8285 = vunpack.c.l.b16 %v8233
      %v8286 = vunpack.c.l.b16 %v8236
      %v8287 = vunpack.c.l.b16 %v8240
      %v8288 = vunpack.c.l.b16 %v8243
      %v8289 = vunpack.c.l.b16 %v8247
      %v8290 = vunpack.c.l.b16 %v8250
      %v8291 = vunpack.c.l.b16 %v8254
      %v8292 = vunpack.c.l.b16 %v8257
      %v8293 = vpack.c.b16 %v8262, %v8261
      %v8294 = vpack.c.b16 %v8264, %v8263
      %v8295 = vpack.c.b16 %v8266, %v8265
      %v8296 = vpack.c.b16 %v8268, %v8267
      %v8297 = vpack.c.b16 %v8270, %v8269
      %v8298 = vpack.c.b16 %v8272, %v8271
      %v8299 = vpack.c.b16 %v8274, %v8273
      %v8300 = vpack.c.b16 %v8276, %v8275
      %v8301 = vpack.c.b16 %v8278, %v8277
      %v8302 = vpack.c.b16 %v8280, %v8279
      %v8303 = vpack.c.b16 %v8282, %v8281
      %v8304 = vpack.c.b16 %v8284, %v8283
      %v8305 = vpack.c.b16 %v8286, %v8285
      %v8306 = vpack.c.b16 %v8288, %v8287
      %v8307 = vpack.c.b16 %v8290, %v8289
      %v8308 = vpack.c.b16 %v8292, %v8291
      %v8311 = vunpack.c.l.b16 %v8259
      %v8312 = vunpack.c.l.b16 %v8260
      %v8313 = vpack.c.b16 %v8312, %v8311
      %v8316 = vsel %vm6279, %v8293, 0
      %v8319 = vsel %vm6279, %v8294, 0
      %v8322 = vsel %vm6279, %v8295, 0
      %v8325 = vsel %vm6279, %v8296, 0
      %v8328 = vsel %vm6279, %v8297, 0
      %v8331 = vsel %vm6279, %v8298, 0
      %v8334 = vsel %vm6279, %v8299, 0
      %v8337 = vsel %vm6279, %v8300, 0
      %v8340 = vsel %vm6279, %v8301, 0
      %v8343 = vsel %vm6279, %v8302, 0
      %v8346 = vsel %vm6279, %v8303, 0
      %v8349 = vsel %vm6279, %v8304, 0
      %v8352 = vsel %vm6279, %v8305, 0
      %v8355 = vsel %vm6279, %v8306, 0
      %v8358 = vsel %vm6279, %v8307, 0
      %v8361 = vsel %vm6279, %v8308, 0
      %8363 = vmatprep.subr.bf16.mxu0 0
      %8364 = vmatpush1.bf16.msra.mxu0 %v8313
      %8365 = vmatprep.subr.bf16.mxu0 0
      %8366 = vmatpush1.bf16.msra.mxu0 0
      %8367 = vmatprep.subr.bf16.mxu0 0
      %8368 = vmatpush1.bf16.msra.mxu0 0
      %8369 = vmatprep.subr.bf16.mxu0 0
      %8370 = vmatpush1.bf16.msra.mxu0 0
      %8371 = vmatprep.subr.bf16.mxu0 0
      %8372 = vmatpush1.bf16.msra.mxu0 0
      %8373 = vmatprep.subr.bf16.mxu0 0
      %8374 = vmatpush1.bf16.msra.mxu0 0
      %8375 = vmatprep.subr.bf16.mxu0 0
      %8376 = vmatpush1.bf16.msra.mxu0 0
      %8377 = vmatprep.subr.bf16.mxu0 0
      %8378 = vmatpush1.bf16.msra.mxu0 0
      %8379 = vmatprep.subr.bf16.mxu0 0
      %8380 = vmatpush1.bf16.msra.mxu0 0
      %8381 = vmatprep.subr.bf16.mxu0 0
      %8382 = vmatpush1.bf16.msra.mxu0 0
      %8383 = vmatprep.subr.bf16.mxu0 0
      %8384 = vmatpush1.bf16.msra.mxu0 0
      %8385 = vmatprep.subr.bf16.mxu0 0
      %8386 = vmatpush1.bf16.msra.mxu0 0
      %8387 = vmatprep.subr.bf16.mxu0 0
      %8388 = vmatpush1.bf16.msra.mxu0 0
      %8389 = vmatprep.subr.bf16.mxu0 0
      %8390 = vmatpush1.bf16.msra.mxu0 0
      %8391 = vmatprep.subr.bf16.mxu0 0
      %8392 = vmatpush1.bf16.msra.mxu0 0
      %8393 = vmatprep.subr.bf16.mxu0 0
      %8394 = vmatpush1.bf16.msra.mxu0 0
      %8395 = vmatprep.mubr.bf16.mxu0 0
      %8396 = vmatmul.mubr.bf16.gmra.mrb[0].mxu0 %v8316
      %v8397 = vpop.f32.mrb[0].mxu0
      %v8398 = vadd.f32 0.0, %v8397
      %v8399 = vpop.f32.mrb[0].mxu0
      %v8400 = vpop.f32.mrb[0].mxu0
      %v8401 = vadd.f32 0.0, %v8400
      %v8402 = vpop.f32.mrb[0].mxu0
      %8403 = vmatprep.mubr.bf16.mxu0 0
      %8404 = vmatmul.mubr.bf16.gmra.mrb[0].mxu0 %v8319
      %v8405 = vpop.f32.mrb[0].mxu0
      %v8406 = vadd.f32 0.0, %v8405
      %v8407 = vpop.f32.mrb[0].mxu0
      %v8408 = vpop.f32.mrb[0].mxu0
      %v8409 = vadd.f32 0.0, %v8408
      %v8410 = vpop.f32.mrb[0].mxu0
      %8411 = vmatprep.mubr.bf16.mxu0 0
      %8412 = vmatmul.mubr.bf16.gmra.mrb[0].mxu0 %v8322
      %v8413 = vpop.f32.mrb[0].mxu0
      %v8414 = vadd.f32 0.0, %v8413
      %v8415 = vpop.f32.mrb[0].mxu0
      %v8416 = vpop.f32.mrb[0].mxu0
      %v8417 = vadd.f32 0.0, %v8416
      %v8418 = vpop.f32.mrb[0].mxu0
      %8419 = vmatprep.mubr.bf16.mxu0 0
      %8420 = vmatmul.mubr.bf16.gmra.mrb[0].mxu0 %v8325
      %v8421 = vpop.f32.mrb[0].mxu0
      %v8422 = vadd.f32 0.0, %v8421
      %v8423 = vpop.f32.mrb[0].mxu0
      %v8424 = vpop.f32.mrb[0].mxu0
      %v8425 = vadd.f32 0.0, %v8424
      %v8426 = vpop.f32.mrb[0].mxu0
      %8427 = vmatprep.mubr.bf16.mxu0 0
      %8428 = vmatmul.mubr.bf16.gmra.mrb[0].mxu0 %v8328
      %v8429 = vpop.f32.mrb[0].mxu0
      %v8430 = vadd.f32 0.0, %v8429
      %v8431 = vpop.f32.mrb[0].mxu0
      %v8432 = vpop.f32.mrb[0].mxu0
      %v8433 = vadd.f32 0.0, %v8432
      %v8434 = vpop.f32.mrb[0].mxu0
      %8435 = vmatprep.mubr.bf16.mxu0 0
      %8436 = vmatmul.mubr.bf16.gmra.mrb[0].mxu0 %v8331
      %v8437 = vpop.f32.mrb[0].mxu0
      %v8438 = vadd.f32 0.0, %v8437
      %v8439 = vpop.f32.mrb[0].mxu0
      %v8440 = vpop.f32.mrb[0].mxu0
      %v8441 = vadd.f32 0.0, %v8440
      %v8442 = vpop.f32.mrb[0].mxu0
      %8443 = vmatprep.mubr.bf16.mxu0 0
      %8444 = vmatmul.mubr.bf16.gmra.mrb[0].mxu0 %v8334
      %v8445 = vpop.f32.mrb[0].mxu0
      %v8446 = vadd.f32 0.0, %v8445
      %v8447 = vpop.f32.mrb[0].mxu0
      %v8448 = vpop.f32.mrb[0].mxu0
      %v8449 = vadd.f32 0.0, %v8448
      %v8450 = vpop.f32.mrb[0].mxu0
      %8451 = vmatprep.mubr.bf16.mxu0 0
      %8452 = vmatmul.mubr.bf16.gmra.mrb[0].mxu0 %v8337
      %v8453 = vpop.f32.mrb[0].mxu0
      %v8454 = vadd.f32 0.0, %v8453
      %v8455 = vpop.f32.mrb[0].mxu0
      %v8456 = vpop.f32.mrb[0].mxu0
      %v8457 = vadd.f32 0.0, %v8456
      %v8458 = vpop.f32.mrb[0].mxu0
      %8459 = vmatprep.mubr.bf16.mxu0 0
      %8460 = vmatmul.mubr.bf16.gmra.mrb[0].mxu0 %v8340
      %v8461 = vpop.f32.mrb[0].mxu0
      %v8462 = vadd.f32 0.0, %v8461
      %v8463 = vpop.f32.mrb[0].mxu0
      %v8464 = vpop.f32.mrb[0].mxu0
      %v8465 = vadd.f32 0.0, %v8464
      %v8466 = vpop.f32.mrb[0].mxu0
      %8467 = vmatprep.mubr.bf16.mxu0 0
      %8468 = vmatmul.mubr.bf16.gmra.mrb[0].mxu0 %v8343
      %v8469 = vpop.f32.mrb[0].mxu0
      %v8470 = vadd.f32 0.0, %v8469
      %v8471 = vpop.f32.mrb[0].mxu0
      %v8472 = vpop.f32.mrb[0].mxu0
      %v8473 = vadd.f32 0.0, %v8472
      %v8474 = vpop.f32.mrb[0].mxu0
      %8475 = vmatprep.mubr.bf16.mxu0 0
      %8476 = vmatmul.mubr.bf16.gmra.mrb[0].mxu0 %v8346
      %v8477 = vpop.f32.mrb[0].mxu0
      %v8478 = vadd.f32 0.0, %v8477
      %v8479 = vpop.f32.mrb[0].mxu0
      %v8480 = vpop.f32.mrb[0].mxu0
      %v8481 = vadd.f32 0.0, %v8480
      %v8482 = vpop.f32.mrb[0].mxu0
      %8483 = vmatprep.mubr.bf16.mxu0 0
      %8484 = vmatmul.mubr.bf16.gmra.mrb[0].mxu0 %v8349
      %v8485 = vpop.f32.mrb[0].mxu0
      %v8486 = vadd.f32 0.0, %v8485
      %v8487 = vpop.f32.mrb[0].mxu0
      %v8488 = vpop.f32.mrb[0].mxu0
      %v8489 = vadd.f32 0.0, %v8488
      %v8490 = vpop.f32.mrb[0].mxu0
      %8491 = vmatprep.mubr.bf16.mxu0 0
      %8492 = vmatmul.mubr.bf16.gmra.mrb[0].mxu0 %v8352
      %v8493 = vpop.f32.mrb[0].mxu0
      %v8494 = vadd.f32 0.0, %v8493
      %v8495 = vpop.f32.mrb[0].mxu0
      %v8496 = vpop.f32.mrb[0].mxu0
      %v8497 = vadd.f32 0.0, %v8496
      %v8498 = vpop.f32.mrb[0].mxu0
      %8499 = vmatprep.mubr.bf16.mxu0 0
      %8500 = vmatmul.mubr.bf16.gmra.mrb[0].mxu0 %v8355
      %v8501 = vpop.f32.mrb[0].mxu0
      %v8502 = vadd.f32 0.0, %v8501
      %v8503 = vpop.f32.mrb[0].mxu0
      %v8504 = vpop.f32.mrb[0].mxu0
      %v8505 = vadd.f32 0.0, %v8504
      %v8506 = vpop.f32.mrb[0].mxu0
      %8507 = vmatprep.mubr.bf16.mxu0 0
      %8508 = vmatmul.mubr.bf16.gmra.mrb[0].mxu0 %v8358
      %v8509 = vpop.f32.mrb[0].mxu0
      %v8510 = vadd.f32 0.0, %v8509
      %v8511 = vpop.f32.mrb[0].mxu0
      %v8512 = vpop.f32.mrb[0].mxu0
      %v8513 = vadd.f32 0.0, %v8512
      %v8514 = vpop.f32.mrb[0].mxu0
      %8515 = vmatprep.mubr.bf16.mxu0 0
      %8516 = vmatmul.mubr.bf16.gmra.mrb[0].mxu0 %v8361
      %v8517 = vpop.f32.mrb[0].mxu0
      %v8518 = vadd.f32 0.0, %v8517
      %v8519 = vpop.f32.mrb[0].mxu0
      %v8520 = vpop.f32.mrb[0].mxu0
      %v8521 = vadd.f32 0.0, %v8520
      %v8522 = vpop.f32.mrb[0].mxu0
      %8523 = vdwg.mxu0
      %v8524 = vadd.f32 %v8045, %v8398
      %v8525 = vadd.f32 %v8046, %v8401
      %v8526 = vadd.f32 %v8047, %v8406
      %v8527 = vadd.f32 %v8048, %v8409
      %v8528 = vadd.f32 %v8049, %v8414
      %v8529 = vadd.f32 %v8050, %v8417
      %v8530 = vadd.f32 %v8051, %v8422
      %v8531 = vadd.f32 %v8052, %v8425
      %v8532 = vadd.f32 %v8053, %v8430
      %v8533 = vadd.f32 %v8054, %v8433
      %v8534 = vadd.f32 %v8055, %v8438
      %v8535 = vadd.f32 %v8056, %v8441
      %v8536 = vadd.f32 %v8057, %v8446
      %v8537 = vadd.f32 %v8058, %v8449
      %v8538 = vadd.f32 %v8059, %v8454
      %v8539 = vadd.f32 %v8060, %v8457
      %v8540 = vadd.f32 %v8061, %v8462
      %v8541 = vadd.f32 %v8062, %v8465
      %v8542 = vadd.f32 %v8063, %v8470
      %v8543 = vadd.f32 %v8064, %v8473
      %v8544 = vadd.f32 %v8065, %v8478
      %v8545 = vadd.f32 %v8066, %v8481
      %v8546 = vadd.f32 %v8067, %v8486
      %v8547 = vadd.f32 %v8068, %v8489
      %v8548 = vadd.f32 %v8069, %v8494
      %v8549 = vadd.f32 %v8070, %v8497
      %v8550 = vadd.f32 %v8071, %v8502
      %v8551 = vadd.f32 %v8072, %v8505
      %v8552 = vadd.f32 %v8073, %v8510
      %v8553 = vadd.f32 %v8074, %v8513
      %v8554 = vadd.f32 %v8075, %v8518
      %v8555 = vadd.f32 %v8076, %v8521
      %v8559 = vrot.slane %v8093, 5
      %v8560 = vrot.slane %v8559, 4
      %v8561 = vrot.slane %v6923, 5
      %v8562 = vsel %vm8145, %v8560, %v8561
      %v8563 = vrot.slane %v8561, 4
      %v8564 = vrot.slane %v6924, 5
      %v8565 = vsel %vm8145, %v8563, %v8564
      %s8566 = scalar_lea.vmem %s248, 40
      %v8567 = vld [vmem:[%s8566] sm:$0xf]
      %v8568 = vld [vmem:[%s8566 + $0x4] sm:$0xf]
      %v8569 = vunpack.c.l.b16 %v8562
      %v8570 = vunpack.c.l.b16 %v8565
      %v8571 = vpack.c.b16 %v8570, %v8569
      %v8574 = vunpack.c.l.b16 %v8567
      %v8575 = vunpack.c.l.b16 %v8568
      %v8576 = vpack.c.b16 %v8575, %v8574
      %v8579 = vsel %vm6279, %v8571, 0
      %8581 = vmatprep.subr.bf16.mxu0 0
      %8582 = vmatpush1.bf16.msra.mxu0 %v8576
      %8583 = vmatprep.subr.bf16.mxu0 0
      %8584 = vmatpush1.bf16.msra.mxu0 0
      %8585 = vmatprep.subr.bf16.mxu0 0
      %8586 = vmatpush1.bf16.msra.mxu0 0
      %8587 = vmatprep.subr.bf16.mxu0 0
      %8588 = vmatpush1.bf16.msra.mxu0 0
      %8589 = vmatprep.subr.bf16.mxu0 0
      %8590 = vmatpush1.bf16.msra.mxu0 0
      %8591 = vmatprep.subr.bf16.mxu0 0
      %8592 = vmatpush1.bf16.msra.mxu0 0
      %8593 = vmatprep.subr.bf16.mxu0 0
      %8594 = vmatpush1.bf16.msra.mxu0 0
      %8595 = vmatprep.subr.bf16.mxu0 0
      %8596 = vmatpush1.bf16.msra.mxu0 0
      %8597 = vmatprep.subr.bf16.mxu0 0
      %8598 = vmatpush1.bf16.msra.mxu0 0
      %8599 = vmatprep.subr.bf16.mxu0 0
      %8600 = vmatpush1.bf16.msra.mxu0 0
      %8601 = vmatprep.subr.bf16.mxu0 0
      %8602 = vmatpush1.bf16.msra.mxu0 0
      %8603 = vmatprep.subr.bf16.mxu0 0
      %8604 = vmatpush1.bf16.msra.mxu0 0
      %8605 = vmatprep.subr.bf16.mxu0 0
      %8606 = vmatpush1.bf16.msra.mxu0 0
      %8607 = vmatprep.subr.bf16.mxu0 0
      %8608 = vmatpush1.bf16.msra.mxu0 0
      %8609 = vmatprep.subr.bf16.mxu0 0
      %8610 = vmatpush1.bf16.msra.mxu0 0
      %8611 = vmatprep.subr.bf16.mxu0 0
      %8612 = vmatpush1.bf16.msra.mxu0 0
      %8613 = vmatprep.mubr.bf16.mxu0 0
      %8614 = vmatmul.mubr.bf16.gmra.mrb[0].mxu0 %v8319
      %v8615 = vpop.f32.mrb[0].mxu0
      %v8616 = vadd.f32 0.0, %v8615
      %v8617 = vpop.f32.mrb[0].mxu0
      %v8618 = vpop.f32.mrb[0].mxu0
      %v8619 = vadd.f32 0.0, %v8618
      %v8620 = vpop.f32.mrb[0].mxu0
      %8621 = vmatprep.mubr.bf16.mxu0 0
      %8622 = vmatmul.mubr.bf16.gmra.mrb[0].mxu0 %v8322
      %v8623 = vpop.f32.mrb[0].mxu0
      %v8624 = vadd.f32 0.0, %v8623
      %v8625 = vpop.f32.mrb[0].mxu0
      %v8626 = vpop.f32.mrb[0].mxu0
      %v8627 = vadd.f32 0.0, %v8626
      %v8628 = vpop.f32.mrb[0].mxu0
      %8629 = vmatprep.mubr.bf16.mxu0 0
      %8630 = vmatmul.mubr.bf16.gmra.mrb[0].mxu0 %v8325
      %v8631 = vpop.f32.mrb[0].mxu0
      %v8632 = vadd.f32 0.0, %v8631
      %v8633 = vpop.f32.mrb[0].mxu0
      %v8634 = vpop.f32.mrb[0].mxu0
      %v8635 = vadd.f32 0.0, %v8634
      %v8636 = vpop.f32.mrb[0].mxu0
      %8637 = vmatprep.mubr.bf16.mxu0 0
      %8638 = vmatmul.mubr.bf16.gmra.mrb[0].mxu0 %v8328
      %v8639 = vpop.f32.mrb[0].mxu0
      %v8640 = vadd.f32 0.0, %v8639
      %v8641 = vpop.f32.mrb[0].mxu0
      %v8642 = vpop.f32.mrb[0].mxu0
      %v8643 = vadd.f32 0.0, %v8642
      %v8644 = vpop.f32.mrb[0].mxu0
      %8645 = vmatprep.mubr.bf16.mxu0 0
      %8646 = vmatmul.mubr.bf16.gmra.mrb[0].mxu0 %v8331
      %v8647 = vpop.f32.mrb[0].mxu0
      %v8648 = vadd.f32 0.0, %v8647
      %v8649 = vpop.f32.mrb[0].mxu0
      %v8650 = vpop.f32.mrb[0].mxu0
      %v8651 = vadd.f32 0.0, %v8650
      %v8652 = vpop.f32.mrb[0].mxu0
      %8653 = vmatprep.mubr.bf16.mxu0 0
      %8654 = vmatmul.mubr.bf16.gmra.mrb[0].mxu0 %v8334
      %v8655 = vpop.f32.mrb[0].mxu0
      %v8656 = vadd.f32 0.0, %v8655
      %v8657 = vpop.f32.mrb[0].mxu0
      %v8658 = vpop.f32.mrb[0].mxu0
      %v8659 = vadd.f32 0.0, %v8658
      %v8660 = vpop.f32.mrb[0].mxu0
      %8661 = vmatprep.mubr.bf16.mxu0 0
      %8662 = vmatmul.mubr.bf16.gmra.mrb[0].mxu0 %v8337
      %v8663 = vpop.f32.mrb[0].mxu0
      %v8664 = vadd.f32 0.0, %v8663
      %v8665 = vpop.f32.mrb[0].mxu0
      %v8666 = vpop.f32.mrb[0].mxu0
      %v8667 = vadd.f32 0.0, %v8666
      %v8668 = vpop.f32.mrb[0].mxu0
      %8669 = vmatprep.mubr.bf16.mxu0 0
      %8670 = vmatmul.mubr.bf16.gmra.mrb[0].mxu0 %v8340
      %v8671 = vpop.f32.mrb[0].mxu0
      %v8672 = vadd.f32 0.0, %v8671
      %v8673 = vpop.f32.mrb[0].mxu0
      %v8674 = vpop.f32.mrb[0].mxu0
      %v8675 = vadd.f32 0.0, %v8674
      %v8676 = vpop.f32.mrb[0].mxu0
      %8677 = vmatprep.mubr.bf16.mxu0 0
      %8678 = vmatmul.mubr.bf16.gmra.mrb[0].mxu0 %v8343
      %v8679 = vpop.f32.mrb[0].mxu0
      %v8680 = vadd.f32 0.0, %v8679
      %v8681 = vpop.f32.mrb[0].mxu0
      %v8682 = vpop.f32.mrb[0].mxu0
      %v8683 = vadd.f32 0.0, %v8682
      %v8684 = vpop.f32.mrb[0].mxu0
      %8685 = vmatprep.mubr.bf16.mxu0 0
      %8686 = vmatmul.mubr.bf16.gmra.mrb[0].mxu0 %v8346
      %v8687 = vpop.f32.mrb[0].mxu0
      %v8688 = vadd.f32 0.0, %v8687
      %v8689 = vpop.f32.mrb[0].mxu0
      %v8690 = vpop.f32.mrb[0].mxu0
      %v8691 = vadd.f32 0.0, %v8690
      %v8692 = vpop.f32.mrb[0].mxu0
      %8693 = vmatprep.mubr.bf16.mxu0 0
      %8694 = vmatmul.mubr.bf16.gmra.mrb[0].mxu0 %v8349
      %v8695 = vpop.f32.mrb[0].mxu0
      %v8696 = vadd.f32 0.0, %v8695
      %v8697 = vpop.f32.mrb[0].mxu0
      %v8698 = vpop.f32.mrb[0].mxu0
      %v8699 = vadd.f32 0.0, %v8698
      %v8700 = vpop.f32.mrb[0].mxu0
      %8701 = vmatprep.mubr.bf16.mxu0 0
      %8702 = vmatmul.mubr.bf16.gmra.mrb[0].mxu0 %v8352
      %v8703 = vpop.f32.mrb[0].mxu0
      %v8704 = vadd.f32 0.0, %v8703
      %v8705 = vpop.f32.mrb[0].mxu0
      %v8706 = vpop.f32.mrb[0].mxu0
      %v8707 = vadd.f32 0.0, %v8706
      %v8708 = vpop.f32.mrb[0].mxu0
      %8709 = vmatprep.mubr.bf16.mxu0 0
      %8710 = vmatmul.mubr.bf16.gmra.mrb[0].mxu0 %v8355
      %v8711 = vpop.f32.mrb[0].mxu0
      %v8712 = vadd.f32 0.0, %v8711
      %v8713 = vpop.f32.mrb[0].mxu0
      %v8714 = vpop.f32.mrb[0].mxu0
      %v8715 = vadd.f32 0.0, %v8714
      %v8716 = vpop.f32.mrb[0].mxu0
      %8717 = vmatprep.mubr.bf16.mxu0 0
      %8718 = vmatmul.mubr.bf16.gmra.mrb[0].mxu0 %v8358
      %v8719 = vpop.f32.mrb[0].mxu0
      %v8720 = vadd.f32 0.0, %v8719
      %v8721 = vpop.f32.mrb[0].mxu0
      %v8722 = vpop.f32.mrb[0].mxu0
      %v8723 = vadd.f32 0.0, %v8722
      %v8724 = vpop.f32.mrb[0].mxu0
      %8725 = vmatprep.mubr.bf16.mxu0 0
      %8726 = vmatmul.mubr.bf16.gmra.mrb[0].mxu0 %v8361
      %v8727 = vpop.f32.mrb[0].mxu0
      %v8728 = vadd.f32 0.0, %v8727
      %v8729 = vpop.f32.mrb[0].mxu0
      %v8730 = vpop.f32.mrb[0].mxu0
      %v8731 = vadd.f32 0.0, %v8730
      %v8732 = vpop.f32.mrb[0].mxu0
      %8733 = vmatprep.mubr.bf16.mxu0 0
      %8734 = vmatmul.mubr.bf16.gmra.mrb[0].mxu0 %v8579
      %v8735 = vpop.f32.mrb[0].mxu0
      %v8736 = vadd.f32 0.0, %v8735
      %v8737 = vpop.f32.mrb[0].mxu0
      %v8738 = vpop.f32.mrb[0].mxu0
      %v8739 = vadd.f32 0.0, %v8738
      %v8740 = vpop.f32.mrb[0].mxu0
      %8741 = vdwg.mxu0
      %v8742 = vadd.f32 %v8524, %v8616
      %v8743 = vadd.f32 %v8525, %v8619
      %v8744 = vadd.f32 %v8526, %v8624
      %v8745 = vadd.f32 %v8527, %v8627
      %v8746 = vadd.f32 %v8528, %v8632
      %v8747 = vadd.f32 %v8529, %v8635
      %v8748 = vadd.f32 %v8530, %v8640
      %v8749 = vadd.f32 %v8531, %v8643
      %v8750 = vadd.f32 %v8532, %v8648
      %v8751 = vadd.f32 %v8533, %v8651
      %v8752 = vadd.f32 %v8534, %v8656
      %v8753 = vadd.f32 %v8535, %v8659
      %v8754 = vadd.f32 %v8536, %v8664
      %v8755 = vadd.f32 %v8537, %v8667
      %v8756 = vadd.f32 %v8538, %v8672
      %v8757 = vadd.f32 %v8539, %v8675
      %v8758 = vadd.f32 %v8540, %v8680
      %v8759 = vadd.f32 %v8541, %v8683
      %v8760 = vadd.f32 %v8542, %v8688
      %v8761 = vadd.f32 %v8543, %v8691
      %v8762 = vadd.f32 %v8544, %v8696
      %v8763 = vadd.f32 %v8545, %v8699
      %v8764 = vadd.f32 %v8546, %v8704
      %v8765 = vadd.f32 %v8547, %v8707
      %v8766 = vadd.f32 %v8548, %v8712
      %v8767 = vadd.f32 %v8549, %v8715
      %v8768 = vadd.f32 %v8550, %v8720
      %v8769 = vadd.f32 %v8551, %v8723
      %v8770 = vadd.f32 %v8552, %v8728
      %v8771 = vadd.f32 %v8553, %v8731
      %v8772 = vadd.f32 %v8554, %v8736
      %v8773 = vadd.f32 %v8555, %v8739
      %v8777 = vrot.slane %v8094, 5
      %v8778 = vrot.slane %v8777, 4
      %v8779 = vrot.slane %v6926, 5
      %v8780 = vsel %vm8145, %v8778, %v8779
      %v8781 = vrot.slane %v8779, 4
      %v8782 = vrot.slane %v6927, 5
      %v8783 = vsel %vm8145, %v8781, %v8782
      %s8784 = scalar_lea.vmem %s248, 64
      %v8785 = vld [vmem:[%s8784] sm:$0xf]
      %v8786 = vld [vmem:[%s8784 + $0x4] sm:$0xf]
      %v8787 = vunpack.c.l.b16 %v8780
      %v8788 = vunpack.c.l.b16 %v8783
      %v8789 = vpack.c.b16 %v8788, %v8787
      %v8792 = vunpack.c.l.b16 %v8785
      %v8793 = vunpack.c.l.b16 %v8786
      %v8794 = vpack.c.b16 %v8793, %v8792
      %v8797 = vsel %vm6279, %v8789, 0
      %8799 = vmatprep.subr.bf16.mxu0 0
      %8800 = vmatpush1.bf16.msra.mxu0 %v8794
      %8801 = vmatprep.subr.bf16.mxu0 0
      %8802 = vmatpush1.bf16.msra.mxu0 0
      %8803 = vmatprep.subr.bf16.mxu0 0
      %8804 = vmatpush1.bf16.msra.mxu0 0
      %8805 = vmatprep.subr.bf16.mxu0 0
      %8806 = vmatpush1.bf16.msra.mxu0 0
      %8807 = vmatprep.subr.bf16.mxu0 0
      %8808 = vmatpush1.bf16.msra.mxu0 0
      %8809 = vmatprep.subr.bf16.mxu0 0
      %8810 = vmatpush1.bf16.msra.mxu0 0
      %8811 = vmatprep.subr.bf16.mxu0 0
      %8812 = vmatpush1.bf16.msra.mxu0 0
      %8813 = vmatprep.subr.bf16.mxu0 0
      %8814 = vmatpush1.bf16.msra.mxu0 0
      %8815 = vmatprep.subr.bf16.mxu0 0
      %8816 = vmatpush1.bf16.msra.mxu0 0
      %8817 = vmatprep.subr.bf16.mxu0 0
      %8818 = vmatpush1.bf16.msra.mxu0 0
      %8819 = vmatprep.subr.bf16.mxu0 0
      %8820 = vmatpush1.bf16.msra.mxu0 0
      %8821 = vmatprep.subr.bf16.mxu0 0
      %8822 = vmatpush1.bf16.msra.mxu0 0
      %8823 = vmatprep.subr.bf16.mxu0 0
      %8824 = vmatpush1.bf16.msra.mxu0 0
      %8825 = vmatprep.subr.bf16.mxu0 0
      %8826 = vmatpush1.bf16.msra.mxu0 0
      %8827 = vmatprep.subr.bf16.mxu0 0
      %8828 = vmatpush1.bf16.msra.mxu0 0
      %8829 = vmatprep.subr.bf16.mxu0 0
      %8830 = vmatpush1.bf16.msra.mxu0 0
      %8831 = vmatprep.mubr.bf16.mxu0 0
      %8832 = vmatmul.mubr.bf16.gmra.mrb[0].mxu0 %v8322
      %v8833 = vpop.f32.mrb[0].mxu0
      %v8834 = vadd.f32 0.0, %v8833
      %v8835 = vpop.f32.mrb[0].mxu0
      %v8836 = vpop.f32.mrb[0].mxu0
      %v8837 = vadd.f32 0.0, %v8836
      %v8838 = vpop.f32.mrb[0].mxu0
      %8839 = vmatprep.mubr.bf16.mxu0 0
      %8840 = vmatmul.mubr.bf16.gmra.mrb[0].mxu0 %v8325
      %v8841 = vpop.f32.mrb[0].mxu0
      %v8842 = vadd.f32 0.0, %v8841
      %v8843 = vpop.f32.mrb[0].mxu0
      %v8844 = vpop.f32.mrb[0].mxu0
      %v8845 = vadd.f32 0.0, %v8844
      %v8846 = vpop.f32.mrb[0].mxu0
      %8847 = vmatprep.mubr.bf16.mxu0 0
      %8848 = vmatmul.mubr.bf16.gmra.mrb[0].mxu0 %v8328
      %v8849 = vpop.f32.mrb[0].mxu0
      %v8850 = vadd.f32 0.0, %v8849
      %v8851 = vpop.f32.mrb[0].mxu0
      %v8852 = vpop.f32.mrb[0].mxu0
      %v8853 = vadd.f32 0.0, %v8852
      %v8854 = vpop.f32.mrb[0].mxu0
      %8855 = vmatprep.mubr.bf16.mxu0 0
      %8856 = vmatmul.mubr.bf16.gmra.mrb[0].mxu0 %v8331
      %v8857 = vpop.f32.mrb[0].mxu0
      %v8858 = vadd.f32 0.0, %v8857
      %v8859 = vpop.f32.mrb[0].mxu0
      %v8860 = vpop.f32.mrb[0].mxu0
      %v8861 = vadd.f32 0.0, %v8860
      %v8862 = vpop.f32.mrb[0].mxu0
      %8863 = vmatprep.mubr.bf16.mxu0 0
      %8864 = vmatmul.mubr.bf16.gmra.mrb[0].mxu0 %v8334
      %v8865 = vpop.f32.mrb[0].mxu0
      %v8866 = vadd.f32 0.0, %v8865
      %v8867 = vpop.f32.mrb[0].mxu0
      %v8868 = vpop.f32.mrb[0].mxu0
      %v8869 = vadd.f32 0.0, %v8868
      %v8870 = vpop.f32.mrb[0].mxu0
      %8871 = vmatprep.mubr.bf16.mxu0 0
      %8872 = vmatmul.mubr.bf16.gmra.mrb[0].mxu0 %v8337
      %v8873 = vpop.f32.mrb[0].mxu0
      %v8874 = vadd.f32 0.0, %v8873
      %v8875 = vpop.f32.mrb[0].mxu0
      %v8876 = vpop.f32.mrb[0].mxu0
      %v8877 = vadd.f32 0.0, %v8876
      %v8878 = vpop.f32.mrb[0].mxu0
      %8879 = vmatprep.mubr.bf16.mxu0 0
      %8880 = vmatmul.mubr.bf16.gmra.mrb[0].mxu0 %v8340
      %v8881 = vpop.f32.mrb[0].mxu0
      %v8882 = vadd.f32 0.0, %v8881
      %v8883 = vpop.f32.mrb[0].mxu0
      %v8884 = vpop.f32.mrb[0].mxu0
      %v8885 = vadd.f32 0.0, %v8884
      %v8886 = vpop.f32.mrb[0].mxu0
      %8887 = vmatprep.mubr.bf16.mxu0 0
      %8888 = vmatmul.mubr.bf16.gmra.mrb[0].mxu0 %v8343
      %v8889 = vpop.f32.mrb[0].mxu0
      %v8890 = vadd.f32 0.0, %v8889
      %v8891 = vpop.f32.mrb[0].mxu0
      %v8892 = vpop.f32.mrb[0].mxu0
      %v8893 = vadd.f32 0.0, %v8892
      %v8894 = vpop.f32.mrb[0].mxu0
      %8895 = vmatprep.mubr.bf16.mxu0 0
      %8896 = vmatmul.mubr.bf16.gmra.mrb[0].mxu0 %v8346
      %v8897 = vpop.f32.mrb[0].mxu0
      %v8898 = vadd.f32 0.0, %v8897
      %v8899 = vpop.f32.mrb[0].mxu0
      %v8900 = vpop.f32.mrb[0].mxu0
      %v8901 = vadd.f32 0.0, %v8900
      %v8902 = vpop.f32.mrb[0].mxu0
      %8903 = vmatprep.mubr.bf16.mxu0 0
      %8904 = vmatmul.mubr.bf16.gmra.mrb[0].mxu0 %v8349
      %v8905 = vpop.f32.mrb[0].mxu0
      %v8906 = vadd.f32 0.0, %v8905
      %v8907 = vpop.f32.mrb[0].mxu0
      %v8908 = vpop.f32.mrb[0].mxu0
      %v8909 = vadd.f32 0.0, %v8908
      %v8910 = vpop.f32.mrb[0].mxu0
      %8911 = vmatprep.mubr.bf16.mxu0 0
      %8912 = vmatmul.mubr.bf16.gmra.mrb[0].mxu0 %v8352
      %v8913 = vpop.f32.mrb[0].mxu0
      %v8914 = vadd.f32 0.0, %v8913
      %v8915 = vpop.f32.mrb[0].mxu0
      %v8916 = vpop.f32.mrb[0].mxu0
      %v8917 = vadd.f32 0.0, %v8916
      %v8918 = vpop.f32.mrb[0].mxu0
      %8919 = vmatprep.mubr.bf16.mxu0 0
      %8920 = vmatmul.mubr.bf16.gmra.mrb[0].mxu0 %v8355
      %v8921 = vpop.f32.mrb[0].mxu0
      %v8922 = vadd.f32 0.0, %v8921
      %v8923 = vpop.f32.mrb[0].mxu0
      %v8924 = vpop.f32.mrb[0].mxu0
      %v8925 = vadd.f32 0.0, %v8924
      %v8926 = vpop.f32.mrb[0].mxu0
      %8927 = vmatprep.mubr.bf16.mxu0 0
      %8928 = vmatmul.mubr.bf16.gmra.mrb[0].mxu0 %v8358
      %v8929 = vpop.f32.mrb[0].mxu0
      %v8930 = vadd.f32 0.0, %v8929
      %v8931 = vpop.f32.mrb[0].mxu0
      %v8932 = vpop.f32.mrb[0].mxu0
      %v8933 = vadd.f32 0.0, %v8932
      %v8934 = vpop.f32.mrb[0].mxu0
      %8935 = vmatprep.mubr.bf16.mxu0 0
      %8936 = vmatmul.mubr.bf16.gmra.mrb[0].mxu0 %v8361
      %v8937 = vpop.f32.mrb[0].mxu0
      %v8938 = vadd.f32 0.0, %v8937
      %v8939 = vpop.f32.mrb[0].mxu0
      %v8940 = vpop.f32.mrb[0].mxu0
      %v8941 = vadd.f32 0.0, %v8940
      %v8942 = vpop.f32.mrb[0].mxu0
      %8943 = vmatprep.mubr.bf16.mxu0 0
      %8944 = vmatmul.mubr.bf16.gmra.mrb[0].mxu0 %v8579
      %v8945 = vpop.f32.mrb[0].mxu0
      %v8946 = vadd.f32 0.0, %v8945
      %v8947 = vpop.f32.mrb[0].mxu0
      %v8948 = vpop.f32.mrb[0].mxu0
      %v8949 = vadd.f32 0.0, %v8948
      %v8950 = vpop.f32.mrb[0].mxu0
      %8951 = vmatprep.mubr.bf16.mxu0 0
      %8952 = vmatmul.mubr.bf16.gmra.mrb[0].mxu0 %v8797
      %v8953 = vpop.f32.mrb[0].mxu0
      %v8954 = vadd.f32 0.0, %v8953
      %v8955 = vpop.f32.mrb[0].mxu0
      %v8956 = vpop.f32.mrb[0].mxu0
      %v8957 = vadd.f32 0.0, %v8956
      %v8958 = vpop.f32.mrb[0].mxu0
      %8959 = vdwg.mxu0
      %v8960 = vadd.f32 %v8742, %v8834
      %v8961 = vadd.f32 %v8743, %v8837
      %v8962 = vadd.f32 %v8744, %v8842
      %v8963 = vadd.f32 %v8745, %v8845
      %v8964 = vadd.f32 %v8746, %v8850
      %v8965 = vadd.f32 %v8747, %v8853
      %v8966 = vadd.f32 %v8748, %v8858
      %v8967 = vadd.f32 %v8749, %v8861
      %v8968 = vadd.f32 %v8750, %v8866
      %v8969 = vadd.f32 %v8751, %v8869
      %v8970 = vadd.f32 %v8752, %v8874
      %v8971 = vadd.f32 %v8753, %v8877
      %v8972 = vadd.f32 %v8754, %v8882
      %v8973 = vadd.f32 %v8755, %v8885
      %v8974 = vadd.f32 %v8756, %v8890
      %v8975 = vadd.f32 %v8757, %v8893
      %v8976 = vadd.f32 %v8758, %v8898
      %v8977 = vadd.f32 %v8759, %v8901
      %v8978 = vadd.f32 %v8760, %v8906
      %v8979 = vadd.f32 %v8761, %v8909
      %v8980 = vadd.f32 %v8762, %v8914
      %v8981 = vadd.f32 %v8763, %v8917
      %v8982 = vadd.f32 %v8764, %v8922
      %v8983 = vadd.f32 %v8765, %v8925
      %v8984 = vadd.f32 %v8766, %v8930
      %v8985 = vadd.f32 %v8767, %v8933
      %v8986 = vadd.f32 %v8768, %v8938
      %v8987 = vadd.f32 %v8769, %v8941
      %v8988 = vadd.f32 %v8770, %v8946
      %v8989 = vadd.f32 %v8771, %v8949
      %v8990 = vadd.f32 %v8772, %v8954
      %v8991 = vadd.f32 %v8773, %v8957
      %v8992 = vld [vmem:[%s251] sm:$0x1]
      %v8994 = vlaneseq
      %v8995 = vshrl.u32 %v8994, 7
      %v8996 = vsub.s32 0, %v8995
      %v8997 = vrot.slane %v8992, %v8996
      %v8999 = vmul.f32 %v8960, %v8997
      %v9000 = vmul.f32 %v8961, %v8997
      %v9001 = vmul.f32 %v8962, %v8997
      %v9002 = vmul.f32 %v8963, %v8997
      %v9003 = vmul.f32 %v8964, %v8997
      %v9004 = vmul.f32 %v8965, %v8997
      %v9005 = vmul.f32 %v8966, %v8997
      %v9006 = vmul.f32 %v8967, %v8997
      %v9007 = vmul.f32 %v8968, %v8997
      %v9008 = vmul.f32 %v8969, %v8997
      %v9009 = vmul.f32 %v8970, %v8997
      %v9010 = vmul.f32 %v8971, %v8997
      %v9011 = vmul.f32 %v8972, %v8997
      %v9012 = vmul.f32 %v8973, %v8997
      %v9013 = vmul.f32 %v8974, %v8997
      %v9014 = vmul.f32 %v8975, %v8997
      %v9015 = vmul.f32 %v8976, %v8997
      %v9016 = vmul.f32 %v8977, %v8997
      %v9017 = vmul.f32 %v8978, %v8997
      %v9018 = vmul.f32 %v8979, %v8997
      %v9019 = vmul.f32 %v8980, %v8997
      %v9020 = vmul.f32 %v8981, %v8997
      %v9021 = vmul.f32 %v8982, %v8997
      %v9022 = vmul.f32 %v8983, %v8997
      %v9023 = vmul.f32 %v8984, %v8997
      %v9024 = vmul.f32 %v8985, %v8997
      %v9025 = vmul.f32 %v8986, %v8997
      %v9026 = vmul.f32 %v8987, %v8997
      %v9027 = vmul.f32 %v8988, %v8997
      %v9028 = vmul.f32 %v8989, %v8997
      %v9029 = vmul.f32 %v8990, %v8997
      %v9030 = vmul.f32 %v8991, %v8997
      %v9031 = vld [vmem:[%s254] sm:$0x1]
      %v9033 = vlaneseq
      %v9034 = vshrl.u32 %v9033, 7
      %v9035 = vsub.s32 0, %v9034
      %v9036 = vrot.slane %v9031, %v9035
      %v9038 = vadd.f32 %v8999, %v9036
      %v9039 = vadd.f32 %v9000, %v9036
      %v9040 = vadd.f32 %v9001, %v9036
      %v9041 = vadd.f32 %v9002, %v9036
      %v9042 = vadd.f32 %v9003, %v9036
      %v9043 = vadd.f32 %v9004, %v9036
      %v9044 = vadd.f32 %v9005, %v9036
      %v9045 = vadd.f32 %v9006, %v9036
      %v9046 = vadd.f32 %v9007, %v9036
      %v9047 = vadd.f32 %v9008, %v9036
      %v9048 = vadd.f32 %v9009, %v9036
      %v9049 = vadd.f32 %v9010, %v9036
      %v9050 = vadd.f32 %v9011, %v9036
      %v9051 = vadd.f32 %v9012, %v9036
      %v9052 = vadd.f32 %v9013, %v9036
      %v9053 = vadd.f32 %v9014, %v9036
      %v9054 = vadd.f32 %v9015, %v9036
      %v9055 = vadd.f32 %v9016, %v9036
      %v9056 = vadd.f32 %v9017, %v9036
      %v9057 = vadd.f32 %v9018, %v9036
      %v9058 = vadd.f32 %v9019, %v9036
      %v9059 = vadd.f32 %v9020, %v9036
      %v9060 = vadd.f32 %v9021, %v9036
      %v9061 = vadd.f32 %v9022, %v9036
      %v9062 = vadd.f32 %v9023, %v9036
      %v9063 = vadd.f32 %v9024, %v9036
      %v9064 = vadd.f32 %v9025, %v9036
      %v9065 = vadd.f32 %v9026, %v9036
      %v9066 = vadd.f32 %v9027, %v9036
      %v9067 = vadd.f32 %v9028, %v9036
      %v9068 = vadd.f32 %v9029, %v9036
      %v9069 = vadd.f32 %v9030, %v9036
      %vm9070 = vcmp.ge.f32.partialorder %v9038, 0.0
      %vm9071 = vcmp.ge.f32.partialorder %v9039, 0.0
      %vm9072 = vcmp.ge.f32.partialorder %v9040, 0.0
      %vm9073 = vcmp.ge.f32.partialorder %v9041, 0.0
      %vm9074 = vcmp.ge.f32.partialorder %v9042, 0.0
      %vm9075 = vcmp.ge.f32.partialorder %v9043, 0.0
      %vm9076 = vcmp.ge.f32.partialorder %v9044, 0.0
      %vm9077 = vcmp.ge.f32.partialorder %v9045, 0.0
      %vm9078 = vcmp.ge.f32.partialorder %v9046, 0.0
      %vm9079 = vcmp.ge.f32.partialorder %v9047, 0.0
      %vm9080 = vcmp.ge.f32.partialorder %v9048, 0.0
      %vm9081 = vcmp.ge.f32.partialorder %v9049, 0.0
      %vm9082 = vcmp.ge.f32.partialorder %v9050, 0.0
      %vm9083 = vcmp.ge.f32.partialorder %v9051, 0.0
      %vm9084 = vcmp.ge.f32.partialorder %v9052, 0.0
      %vm9085 = vcmp.ge.f32.partialorder %v9053, 0.0
      %vm9086 = vcmp.ge.f32.partialorder %v9054, 0.0
      %vm9087 = vcmp.ge.f32.partialorder %v9055, 0.0
      %vm9088 = vcmp.ge.f32.partialorder %v9056, 0.0
      %vm9089 = vcmp.ge.f32.partialorder %v9057, 0.0
      %vm9090 = vcmp.ge.f32.partialorder %v9058, 0.0
      %vm9091 = vcmp.ge.f32.partialorder %v9059, 0.0
      %vm9092 = vcmp.ge.f32.partialorder %v9060, 0.0
      %vm9093 = vcmp.ge.f32.partialorder %v9061, 0.0
      %vm9094 = vcmp.ge.f32.partialorder %v9062, 0.0
      %vm9095 = vcmp.ge.f32.partialorder %v9063, 0.0
      %vm9096 = vcmp.ge.f32.partialorder %v9064, 0.0
      %vm9097 = vcmp.ge.f32.partialorder %v9065, 0.0
      %vm9098 = vcmp.ge.f32.partialorder %v9066, 0.0
      %vm9099 = vcmp.ge.f32.partialorder %v9067, 0.0
      %vm9100 = vcmp.ge.f32.partialorder %v9068, 0.0
      %vm9101 = vcmp.ge.f32.partialorder %v9069, 0.0
      %v9102 = vmul.f32 %v9038, 0.1
      %v9103 = vmul.f32 %v9039, 0.1
      %v9104 = vmul.f32 %v9040, 0.1
      %v9105 = vmul.f32 %v9041, 0.1
      %v9106 = vmul.f32 %v9042, 0.1
      %v9107 = vmul.f32 %v9043, 0.1
      %v9108 = vmul.f32 %v9044, 0.1
      %v9109 = vmul.f32 %v9045, 0.1
      %v9110 = vmul.f32 %v9046, 0.1
      %v9111 = vmul.f32 %v9047, 0.1
      %v9112 = vmul.f32 %v9048, 0.1
      %v9113 = vmul.f32 %v9049, 0.1
      %v9114 = vmul.f32 %v9050, 0.1
      %v9115 = vmul.f32 %v9051, 0.1
      %v9116 = vmul.f32 %v9052, 0.1
      %v9117 = vmul.f32 %v9053, 0.1
      %v9118 = vmul.f32 %v9054, 0.1
      %v9119 = vmul.f32 %v9055, 0.1
      %v9120 = vmul.f32 %v9056, 0.1
      %v9121 = vmul.f32 %v9057, 0.1
      %v9122 = vmul.f32 %v9058, 0.1
      %v9123 = vmul.f32 %v9059, 0.1
      %v9124 = vmul.f32 %v9060, 0.1
      %v9125 = vmul.f32 %v9061, 0.1
      %v9126 = vmul.f32 %v9062, 0.1
      %v9127 = vmul.f32 %v9063, 0.1
      %v9128 = vmul.f32 %v9064, 0.1
      %v9129 = vmul.f32 %v9065, 0.1
      %v9130 = vmul.f32 %v9066, 0.1
      %v9131 = vmul.f32 %v9067, 0.1
      %v9132 = vmul.f32 %v9068, 0.1
      %v9133 = vmul.f32 %v9069, 0.1
      %v9134 = vsel %vm9070, %v9038, %v9102
      %v9135 = vsel %vm9071, %v9039, %v9103
      %v9136 = vsel %vm9072, %v9040, %v9104
      %v9137 = vsel %vm9073, %v9041, %v9105
      %v9138 = vsel %vm9074, %v9042, %v9106
      %v9139 = vsel %vm9075, %v9043, %v9107
      %v9140 = vsel %vm9076, %v9044, %v9108
      %v9141 = vsel %vm9077, %v9045, %v9109
      %v9142 = vsel %vm9078, %v9046, %v9110
      %v9143 = vsel %vm9079, %v9047, %v9111
      %v9144 = vsel %vm9080, %v9048, %v9112
      %v9145 = vsel %vm9081, %v9049, %v9113
      %v9146 = vsel %vm9082, %v9050, %v9114
      %v9147 = vsel %vm9083, %v9051, %v9115
      %v9148 = vsel %vm9084, %v9052, %v9116
      %v9149 = vsel %vm9085, %v9053, %v9117
      %v9150 = vsel %vm9086, %v9054, %v9118
      %v9151 = vsel %vm9087, %v9055, %v9119
      %v9152 = vsel %vm9088, %v9056, %v9120
      %v9153 = vsel %vm9089, %v9057, %v9121
      %v9154 = vsel %vm9090, %v9058, %v9122
      %v9155 = vsel %vm9091, %v9059, %v9123
      %v9156 = vsel %vm9092, %v9060, %v9124
      %v9157 = vsel %vm9093, %v9061, %v9125
      %v9158 = vsel %vm9094, %v9062, %v9126
      %v9159 = vsel %vm9095, %v9063, %v9127
      %v9160 = vsel %vm9096, %v9064, %v9128
      %v9161 = vsel %vm9097, %v9065, %v9129
      %v9162 = vsel %vm9098, %v9066, %v9130
      %v9163 = vsel %vm9099, %v9067, %v9131
      %v9164 = vsel %vm9100, %v9068, %v9132
      %v9165 = vsel %vm9101, %v9069, %v9133
      %vm9166 = vcmask 64512
      %9167 = vst.msk [vmem:[%s262] sm:$0xff] %vm9166, %v9134
      %9168 = vst.msk [vmem:[%s262 + $0x8] sm:$0xff] %vm9166, %v9135
      %9169 = vst.msk [vmem:[%s262 + $0x10] sm:$0xff] %vm9166, %v9136
      %9170 = vst.msk [vmem:[%s262 + $0x18] sm:$0xff] %vm9166, %v9137
      %9171 = vst.msk [vmem:[%s262 + $0x20] sm:$0xff] %vm9166, %v9138
      %9172 = vst.msk [vmem:[%s262 + $0x28] sm:$0xff] %vm9166, %v9139
      %9173 = vst.msk [vmem:[%s262 + $0x30] sm:$0xff] %vm9166, %v9140
      %9174 = vst.msk [vmem:[%s262 + $0x38] sm:$0xff] %vm9166, %v9141
      %9175 = vst.msk [vmem:[%s262 + $0x40] sm:$0xff] %vm9166, %v9142
      %9176 = vst.msk [vmem:[%s262 + $0x48] sm:$0xff] %vm9166, %v9143
      %9177 = vst.msk [vmem:[%s262 + $0x50] sm:$0xff] %vm9166, %v9144
      %9178 = vst.msk [vmem:[%s262 + $0x58] sm:$0xff] %vm9166, %v9145
      %9179 = vst.msk [vmem:[%s262 + $0x60] sm:$0xff] %vm9166, %v9146
      %9180 = vst.msk [vmem:[%s262 + $0x68] sm:$0xff] %vm9166, %v9147
      %9181 = vst.msk [vmem:[%s262 + $0x70] sm:$0xff] %vm9166, %v9148
      %9182 = vst.msk [vmem:[%s262 + $0x78] sm:$0xff] %vm9166, %v9149
      %9183 = vst.msk [vmem:[%s262 + $0x80] sm:$0xff] %vm9166, %v9150
      %9184 = vst.msk [vmem:[%s262 + $0x88] sm:$0xff] %vm9166, %v9151
      %9185 = vst.msk [vmem:[%s262 + $0x90] sm:$0xff] %vm9166, %v9152
      %9186 = vst.msk [vmem:[%s262 + $0x98] sm:$0xff] %vm9166, %v9153
      %9187 = vst.msk [vmem:[%s262 + $0xa0] sm:$0xff] %vm9166, %v9154
      %9188 = vst.msk [vmem:[%s262 + $0xa8] sm:$0xff] %vm9166, %v9155
      %9189 = vst.msk [vmem:[%s262 + $0xb0] sm:$0xff] %vm9166, %v9156
      %9190 = vst.msk [vmem:[%s262 + $0xb8] sm:$0xff] %vm9166, %v9157
      %9191 = vst.msk [vmem:[%s262 + $0xc0] sm:$0xff] %vm9166, %v9158
      %9192 = vst.msk [vmem:[%s262 + $0xc8] sm:$0xff] %vm9166, %v9159
      %9193 = vst.msk [vmem:[%s262 + $0xd0] sm:$0xff] %vm9166, %v9160
      %9194 = vst.msk [vmem:[%s262 + $0xd8] sm:$0xff] %vm9166, %v9161
      %9195 = vst.msk [vmem:[%s262 + $0xe0] sm:$0xff] %vm9166, %v9162
      %9196 = vst.msk [vmem:[%s262 + $0xe8] sm:$0xff] %vm9166, %v9163
      %9197 = vst.msk [vmem:[%s262 + $0xf0] sm:$0xff] %vm9166, %v9164
      %9198 = vst.msk [vmem:[%s262 + $0xf8] sm:$0xff] %vm9166, %v9165
      %p9199 = scmp.lt.s32.totalorder %s19, 1
      %s9200 = scalar_select %p9199, %s19, 1
      %p9201 = scmp.lt.s32.totalorder %s20, 0
      %s9202 = scalar_select %p9201, %s20, 0
      %s9203 = smul.addr %s9200, 32
      %s9204 = sadd.s32 %s9202, %s9203
      %s9205 = smul.addr %s9204, 8
      %s9206 = scalar_lea.vmem %s4, %s9205
      // Predicated region
      $region41: #{tpu_custom_call.1} parent=35 // pred_check
        %p9207 = pneg %p151
      $region42: #{tpu_custom_call.1} parent=35 // pred_check_branch
        %9209 = sbr.rel (%p9207) target = $region44
      $region43: #{tpu_custom_call.1} parent=35 // pred_region
        _
      $region44: #{tpu_custom_call.1} parent=35 // pred_fallthru
        _
    $region36: #{tpu_custom_call.1} parent=5 // pred_fallthru
      _
    %p9210 = scmp.le.s32.totalorder 2, %s10
    // Predicated region
    $region45: #{tpu_custom_call.1} parent=5 // pred_check
      %p9211 = pneg %p9210
    $region46: #{tpu_custom_call.1} parent=5 // pred_check_branch
      %9213 = sbr.rel (%p9211) target = $region48
    $region47: #{tpu_custom_call.1} parent=5 // pred_region
      %s9214 = ssub.s32 %s10, 2
      // Predicated region
      $region49: #{tpu_custom_call.1} parent=47 // pred_check
        %p9215 = pneg %p157
      $region50: #{tpu_custom_call.1} parent=47 // pred_check_branch
        %9217 = sbr.rel (%p9215) target = $region52
      $region51: #{tpu_custom_call.1} parent=47 // pred_region
        %p9218 = scmp.lt.s32.totalorder %s21, 1
        %s9219 = scalar_select %p9218, %s21, 1
        %p9220 = scmp.lt.s32.totalorder %s22, 0
        %s9221 = scalar_select %p9220, %s22, 0
        %s9222 = smul.addr %s9219, 32
        %s9223 = sadd.s32 %s9221, %s9222
        %s9224 = smul.addr %s9223, 8
        %s9225 = scalar_lea.vmem %s4, %s9224
      $region52: #{tpu_custom_call.1} parent=47 // pred_fallthru
        _
    $region48: #{tpu_custom_call.1} parent=5 // pred_fallthru
      _
  $region6: #{tpu_custom_call.1} parent=0 // loop_footer
    %s14 = sadd.s32 1, %s10
  $region7: #{tpu_custom_call.1} parent=0 // loop_footer_branch
    %9 = sbr.rel target = $region3
  $region8: #{tpu_custom_call.1} parent=0 // loop_exit
    _

</llo_original>
